<compile_context>
chip_gen: v7x
topology: tpu7x:2x2x1
jax: 0.10.0
libtpu: 0.0.40
codegen_flags: <defaults>
</compile_context>

<pallas_src>
import functools

import numpy as np
import jax
import jax.numpy as jnp
from jax.experimental import pallas as pl
from jax.experimental.pallas import tpu as pltpu

# ----------------------------- configuration --------------------------------
BATCH = 4
NUM_AGENTS = 2
NUM_LANDMARKS = 1
NUM_ENTITIES = NUM_AGENTS + NUM_LANDMARKS
MOVE_DIM = 2          # movement_dim_size
VOCAB = 8             # vocab_size
GOAL_SIZE = 3         # goal_size
HIDDEN = 32           # processing_hidden_size == feat_vec_size
GATES = 3 * HIDDEN    # fused GRU gate width (r|z|n)
TIME_HORIZON = 3
OBS_DIM = 2           # relative position of an entity w.r.t. the agent
PHYS_DIM = 2          # per-entity physical features (color / shape)
MOVEMENT_STEP = 0.1

BA = BATCH * NUM_AGENTS             # 8   rows ordered (b, a)
BE = BATCH * NUM_ENTITIES           # 12  rows ordered (b, e)
R_PHYS = NUM_ENTITIES * BA          # 24  rows ordered (e, b, a)
R_UTT = NUM_AGENTS * BA             # 16  rows ordered (o, b, a)
R_ALL = R_PHYS + R_UTT + BA         # 48  batched-GRU row count


# ----------------------------- slab layouts ----------------------------------
def _round_up8(n):
    return ((n + 7) // 8) * 8


class _Slab:
    """Row-stacked 2-D f32 slab with sublane-aligned (multiple-of-8) offsets."""

    def __init__(self, width):
        self.width = width
        self.rows = 0
        self.slots = {}

    def add(self, name, r, c):
        assert c <= self.width
        self.slots[name] = (self.rows, r, c)
        self.rows += _round_up8(r)

    def new(self):
        return np.zeros((self.rows, self.width), np.float32)

    def put(self, slab, name, value):
        off, r, c = self.slots[name]
        slab[off:off + r, :c] = np.broadcast_to(
            np.asarray(value, np.float32), (r, c))

    def read(self, ref, name):            # static slices inside the kernel
        off, r, c = self.slots[name]
        return ref[off:off + r, 0:c]


W_SLAB = _Slab(GATES)                      # constant weight slab (96 wide)
for _name, _r, _c in [
    ("w_obs", OBS_DIM, GATES), ("w_phy", PHYS_DIM, GATES),
    ("w_utt", VOCAB, GATES), ("w_goal", GOAL_SIZE, GATES),
    ("tile3", HIDDEN, GATES), ("wh3", 3 * HIDDEN, GATES),
    ("bi3", R_ALL, GATES), ("bh3", R_ALL, GATES), ("band", R_ALL, GATES),
    ("fcw3", 3 * HIDDEN, HIDDEN), ("fcb3", R_ALL, HIDDEN),
    ("a_wi", 3 * HIDDEN, GATES), ("a_wh", HIDDEN, GATES),
    ("a_bi", BA, GATES), ("a_bh", BA, GATES),
    ("a_fcw", HIDDEN, HIDDEN), ("a_fcb", BA, HIDDEN),
    ("gp1w", HIDDEN, HIDDEN), ("gp1b", R_UTT, HIDDEN),
    ("gp2w", HIDDEN, GOAL_SIZE), ("gp2b", R_UTT, GOAL_SIZE),
    ("h1w", HIDDEN, 2 * HIDDEN), ("h1b", BA, 2 * HIDDEN),
    ("h2w", 2 * HIDDEN, MOVE_DIM + VOCAB), ("h2b", BA, MOVE_DIM + VOCAB),
    ("s_obs", R_ALL, BE), ("s_ent", R_ALL, BE),
    ("s_utt", R_ALL, BA), ("s_goal", R_ALL, BA),
    ("s_aloc", BA, BE), ("s_scat", BE, BA),
]:
    W_SLAB.add(_name, _r, _c)

G_SLAB = _Slab(VOCAB)                      # per-call game-state slab (8 wide)
for _name, _r, _c in [
    ("loc", BE, 2), ("phys", BE, PHYS_DIM), ("utt", BA, VOCAB),
    ("goals", BA, GOAL_SIZE), ("gloc", BA, 2),
]:
    G_SLAB.add(_name, _r, _c)


# ------------------------------ fused Pallas kernel ---------------------------
def agent_fused_kernel(w_ref, g_ref, cost_ref):
    dot = functools.partial(jnp.dot, preferred_element_type=jnp.float32)
    w = functools.partial(W_SLAB.read, w_ref)
    g = functools.partial(G_SLAB.read, g_ref)

    # ---- game state (resident in VMEM/vregs for the whole horizon) ----
    loc = g("loc")          # (12, 2)  entity locations, (b, e) rows
    phys = g("phys")        # (12, 2)  entity physical features
    utt = g("utt")          # (8, 8)   current utterances, (b, a) rows
    goals = g("goals")      # (8, 3)   observed goals
    gloc = g("gloc")        # (8, 2)   goal locations

    # ---- weights (all from the single constant slab) ----
    w_obs, w_phy = w("w_obs"), w("w_phy")
    w_utt_i, w_goal_i = w("w_utt"), w("w_goal")
    tile3, wh3 = w("tile3"), w("wh3")
    bi3, bh3, band = w("bi3"), w("bh3"), w("band")
    fcw3, fcb3 = w("fcw3"), w("fcb3")
    a_wi, a_wh, a_bi, a_bh = w("a_wi"), w("a_wh"), w("a_bi"), w("a_bh")
    a_fcw, a_fcb = w("a_fcw"), w("a_fcb")
    gp1w, gp1b, gp2w, gp2b = w("gp1w"), w("gp1b"), w("gp2w"), w("gp2b")
    h1w, h1b, h2w, h2b = w("h1w"), w("h1b"), w("h2w"), w("h2b")
    s_obs48, s_ent48 = w("s_obs"), w("s_ent")
    s_utt48, s_goal48 = w("s_utt"), w("s_goal")
    s_aloc, s_scat = w("s_aloc"), w("s_scat")

    # ---- horizon-constant precomputation (once, before the time loop) ----
    # goal-prediction target for row (speaker o, batch b, listener a) is the
    # speaker's goal; the utterance selector has exactly that 0/1 pattern.
    gtrue = dot(s_utt48[R_PHYS:R_PHYS + R_UTT], goals)               # (16, 3)
    # input-gate contributions that never change over the horizon
    gi_const = (bi3
                + dot(s_ent48, dot(phys, w_phy))                     # phys feats
                + dot(s_goal48, dot(goals, w_goal_i)))               # goals

    # hidden state: rows 0:24 physical mems (e,b,a), 24:40 utterance mems
    # (o,b,a), 40:48 action mems (b,a)
    h_state = jnp.zeros((R_ALL, HIDDEN), jnp.float32)
    acc_ag = jnp.zeros((BA, MOVE_DIM), jnp.float32)      # dist + movement cost
    acc_gp = jnp.zeros((R_UTT, GOAL_SIZE), jnp.float32)  # goal-pred cost

    for _t in range(TIME_HORIZON):        # T = 3, fully unrolled in-kernel
        # ---- batched (physical | utterance | goal) GRU, one wide gate dot ----
        # re-associated gathers keep every matmul output 96 lanes dense
        gi = (gi_const
              + dot(s_obs48, dot(loc, w_obs))            # observations
              + dot(s_utt48, dot(utt, w_utt_i)))         # heard utterances
        hb = dot(h_state, tile3) * band                  # hidden -> lane band
        gh = dot(hb, wh3) + bh3
        r = jax.nn.sigmoid(gi[:, :HIDDEN] + gh[:, :HIDDEN])
        z = jax.nn.sigmoid(gi[:, HIDDEN:2 * HIDDEN] + gh[:, HIDDEN:2 * HIDDEN])
        n = jnp.tanh(gi[:, 2 * HIDDEN:] + r * gh[:, 2 * HIDDEN:])
        h_new = (1.0 - z) * n + z * h_state              # (48, 32)

        # ---- batched post-GRU FC (ProcessingModule.fully_connected) ----
        # TODO(synk): reference ProcessingModule uses ELU; ReLU used here.
        proc = jnp.maximum(dot(dot(h_new, tile3) * band, fcw3) + fcb3, 0.0)

        pf = jnp.maximum(jnp.maximum(proc[0:BA], proc[BA:2 * BA]),
                         proc[2 * BA:3 * BA])            # max-pool over entities
        utt_proc = proc[R_PHYS:R_PHYS + R_UTT]           # (16, 32)
        uf = jnp.maximum(utt_proc[0:BA], utt_proc[BA:2 * BA])  # pool over speakers
        goal_out = proc[R_PHYS + R_UTT:]                 # (8, 32)

        # ---- goal predictions from the utterance features ----
        gp_h = jnp.maximum(dot(utt_proc, gp1w) + gp1b, 0.0)
        gp = dot(gp_h, gp2w) + gp2b                      # (16, 3)

        # ---- action GRU (single fused input dot on pf|goal|utt) ----
        # TODO(synk): as in the reference ActionModule, the goal-processor GRU
        # reads the action memory and its new hidden (rows 40:48 of h_new) is
        # discarded; only the action GRU updates the action memory.
        mem_act = h_state[R_PHYS + R_UTT:]               # (8, 32) old action mem
        x_act = jnp.concatenate([pf, goal_out, uf], axis=1)      # (8, 96)
        gi_a = dot(x_act, a_wi) + a_bi
        gh_a = dot(mem_act, a_wh) + a_bh
        ra = jax.nn.sigmoid(gi_a[:, :HIDDEN] + gh_a[:, :HIDDEN])
        za = jax.nn.sigmoid(gi_a[:, HIDDEN:2 * HIDDEN] + gh_a[:, HIDDEN:2 * HIDDEN])
        na = jnp.tanh(gi_a[:, 2 * HIDDEN:] + ra * gh_a[:, 2 * HIDDEN:])
        mem_act_new = (1.0 - za) * na + za * mem_act
        act_proc = jnp.maximum(dot(mem_act_new, a_fcw) + a_fcb, 0.0)

        # ---- fused action heads: (m1|u1), then block-diagonal (m2|u2) ----
        h1 = jnp.maximum(dot(act_proc, h1w) + h1b, 0.0)  # (8, 64)
        y2 = dot(h1, h2w) + h2b                          # (8, 2 + 8)
        movement = jnp.tanh(y2[:, :MOVE_DIM]) * MOVEMENT_STEP
        logits = y2[:, MOVE_DIM:]
        lexp = jnp.exp(logits - jnp.max(logits, axis=-1, keepdims=True))
        utt = lexp * pl.reciprocal(jnp.sum(lexp, axis=-1, keepdims=True),
                                   approx=True)
        # TODO(synk): deterministic softmax in place of Gumbel-Softmax sampling.

        # ---- game step; cost partials kept as vregs (reduced after loop) ----
        # TODO(synk): GameModule is not in the spec; cost approximated as
        # squared goal distance + 0.1*movement^2 + 0.01*goal-prediction error.
        agent_locs = dot(s_aloc, loc) + movement         # (8, 2)
        loc = loc + dot(s_scat, movement)                # (12, 2)
        acc_ag = acc_ag + (agent_locs - gloc) ** 2 + 0.1 * movement ** 2
        acc_gp = acc_gp + (gp - gtrue) ** 2

        # persistent memories for the next step
        h_state = jnp.concatenate([h_new[0:R_PHYS + R_UTT], mem_act_new], axis=0)

    total = jnp.sum(acc_ag) + 0.01 * jnp.sum(acc_gp)
    cost_ref[...] = total * jnp.ones((1, 1), jnp.float32)


# --------------------------- parameter construction --------------------------
def _rand(key, shape, scale=0.1):
    return jax.random.normal(key, shape, jnp.float32) * scale


def init_gru(key, in_dim, hid):
    ks = jax.random.split(key, 12)
    return dict(
        wir=_rand(ks[0], (in_dim, hid)), wiz=_rand(ks[1], (in_dim, hid)),
        win=_rand(ks[2], (in_dim, hid)),
        whr=_rand(ks[3], (hid, hid)), whz=_rand(ks[4], (hid, hid)),
        whn=_rand(ks[5], (hid, hid)),
        bir=_rand(ks[6], (1, hid)), biz=_rand(ks[7], (1, hid)),
        bin=_rand(ks[8], (1, hid)),
        bhr=_rand(ks[9], (1, hid)), bhz=_rand(ks[10], (1, hid)),
        bhn=_rand(ks[11], (1, hid)),
    )


def init_linear(key, in_dim, out_dim):
    k1, k2 = jax.random.split(key)
    return dict(w=_rand(k1, (in_dim, out_dim)), b=_rand(k2, (1, out_dim)))


def init_processing(key, in_dim, hid):
    k1, k2 = jax.random.split(key)
    return dict(gru=init_gru(k1, in_dim, hid), fc=init_linear(k2, hid, hid))


def init_params(key):
    ks = jax.random.split(key, 10)
    return dict(
        physical=init_processing(ks[0], OBS_DIM + PHYS_DIM, HIDDEN),
        utterance=dict(
            proc=init_processing(ks[1], VOCAB, HIDDEN),
            gp1=init_linear(ks[2], HIDDEN, HIDDEN),
            gp2=init_linear(ks[3], HIDDEN, GOAL_SIZE),
        ),
        action=dict(
            goal_proc=init_processing(ks[4], GOAL_SIZE, HIDDEN),
            proc=init_processing(ks[5], 3 * HIDDEN, HIDDEN),
            m1=init_linear(ks[6], HIDDEN, HIDDEN),
            m2=init_linear(ks[7], HIDDEN, MOVE_DIM),
            u1=init_linear(ks[8], HIDDEN, HIDDEN),
            u2=init_linear(ks[9], HIDDEN, VOCAB),
        ),
    )


# ------------------------- weight slab (built once at init) -------------------
def pack_weights(params):
    """Pack every weight/bias/selector into ONE constant slab, host-side."""
    p = jax.tree_util.tree_map(lambda x: np.asarray(x, np.float32), params)
    slab = W_SLAB.new()
    put = functools.partial(W_SLAB.put, slab)

    def fuse_gru(gru):
        wi = np.concatenate([gru["wir"], gru["wiz"], gru["win"]], axis=1)
        wh = np.concatenate([gru["whr"], gru["whz"], gru["whn"]], axis=1)
        bi = np.concatenate([gru["bir"], gru["biz"], gru["bin"]], axis=1)
        bh = np.concatenate([gru["bhr"], gru["bhz"], gru["bhn"]], axis=1)
        return wi, wh, bi, bh

    def rows3(bp, bu, bg, cols):
        out = np.zeros((R_ALL, cols), np.float32)
        out[:R_PHYS] = bp
        out[R_PHYS:R_PHYS + R_UTT] = bu
        out[R_PHYS + R_UTT:] = bg
        return out

    p_wi, p_wh, p_bi, p_bh = fuse_gru(p["physical"]["gru"])
    u_wi, u_wh, u_bi, u_bh = fuse_gru(p["utterance"]["proc"]["gru"])
    g_wi, g_wh, g_bi, g_bh = fuse_gru(p["action"]["goal_proc"]["gru"])
    a_wi, a_wh, a_bi, a_bh = fuse_gru(p["action"]["proc"]["gru"])

    put("w_obs", p_wi[:OBS_DIM])
    put("w_phy", p_wi[OBS_DIM:])
    put("w_utt", u_wi)
    put("w_goal", g_wi)
    put("tile3", np.concatenate([np.eye(HIDDEN, dtype=np.float32)] * 3, axis=1))
    put("wh3", np.concatenate([p_wh, u_wh, g_wh], axis=0))
    put("bi3", rows3(p_bi, u_bi, g_bi, GATES))
    put("bh3", rows3(p_bh, u_bh, g_bh, GATES))
    band = np.zeros((R_ALL, GATES), np.float32)
    band[:R_PHYS, :HIDDEN] = 1.0
    band[R_PHYS:R_PHYS + R_UTT, HIDDEN:2 * HIDDEN] = 1.0
    band[R_PHYS + R_UTT:, 2 * HIDDEN:] = 1.0
    put("band", band)
    put("fcw3", np.concatenate([p["physical"]["fc"]["w"],
                                p["utterance"]["proc"]["fc"]["w"],
                                p["action"]["goal_proc"]["fc"]["w"]], axis=0))
    put("fcb3", rows3(p["physical"]["fc"]["b"],
                      p["utterance"]["proc"]["fc"]["b"],
                      p["action"]["goal_proc"]["fc"]["b"], HIDDEN))
    put("a_wi", a_wi)
    put("a_wh", a_wh)
    put("a_bi", a_bi)            # _Slab.put pre-broadcasts biases to full rows
    put("a_bh", a_bh)
    put("a_fcw", p["action"]["proc"]["fc"]["w"])
    put("a_fcb", p["action"]["proc"]["fc"]["b"])
    put("gp1w", p["utterance"]["gp1"]["w"])
    put("gp1b", p["utterance"]["gp1"]["b"])
    put("gp2w", p["utterance"]["gp2"]["w"])
    put("gp2b", p["utterance"]["gp2"]["b"])
    act = p["action"]
    put("h1w", np.concatenate([act["m1"]["w"], act["u1"]["w"]], axis=1))
    put("h1b", np.concatenate([act["m1"]["b"], act["u1"]["b"]], axis=1))
    h2w = np.zeros((2 * HIDDEN, MOVE_DIM + VOCAB), np.float32)   # block-diag
    h2w[:HIDDEN, :MOVE_DIM] = act["m2"]["w"]
    h2w[HIDDEN:, MOVE_DIM:] = act["u2"]["w"]
    put("h2w", h2w)
    put("h2b", np.concatenate([act["m2"]["b"], act["u2"]["b"]], axis=1))

    # ---- static 0/1 selectors: gather/scatter as tiny matmuls ----
    s_ent = np.zeros((R_ALL, BE), np.float32)
    s_agt = np.zeros((R_ALL, BE), np.float32)
    for e in range(NUM_ENTITIES):
        for b in range(BATCH):
            for a in range(NUM_AGENTS):
                row = e * BA + b * NUM_AGENTS + a
                s_ent[row, b * NUM_ENTITIES + e] = 1.0
                s_agt[row, b * NUM_ENTITIES + a] = 1.0
    put("s_obs", s_ent - s_agt)   # observation = loc[entity] - loc[agent]
    put("s_ent", s_ent)
    s_utt = np.zeros((R_ALL, BA), np.float32)
    for o in range(NUM_AGENTS):
        for b in range(BATCH):
            for a in range(NUM_AGENTS):
                s_utt[R_PHYS + o * BA + b * NUM_AGENTS + a,
                      b * NUM_AGENTS + o] = 1.0
    put("s_utt", s_utt)
    s_goal = np.zeros((R_ALL, BA), np.float32)
    s_goal[R_PHYS + R_UTT:, :] = np.eye(BA, dtype=np.float32)
    put("s_goal", s_goal)
    s_aloc = np.zeros((BA, BE), np.float32)
    for b in range(BATCH):
        for a in range(NUM_AGENTS):
            s_aloc[b * NUM_AGENTS + a, b * NUM_ENTITIES + a] = 1.0
    put("s_aloc", s_aloc)
    put("s_scat", s_aloc.T)

    return jnp.asarray(slab)


# -------------------------- per-call game-state packing -----------------------
def _pack_game(game):
    """Per call: pack the tiny game state into a single (56, 8) f32 slab."""
    slab = jnp.zeros((G_SLAB.rows, G_SLAB.width), jnp.float32)

    def put(s, name, value):
        off, r, c = G_SLAB.slots[name]
        return s.at[off:off + r, :c].set(
            jnp.asarray(value, jnp.float32).reshape(r, c))

    slab = put(slab, "loc", game["locations"])
    slab = put(slab, "phys", game["physical"])
    slab = put(slab, "utt", game["utterances"])
    slab = put(slab, "goals", game["observed_goals"])
    slab = put(slab, "gloc", game["goal_locations"])
    return slab


def agent_module_forward(weight_slab, game):
    """AgentModule.forward (training mode, use_utterances=True,
    penalize_words=False, create_data_set_mode=False)."""
    game_slab = _pack_game(game)
    cost = pl.pallas_call(
        agent_fused_kernel,
        out_shape=jax.ShapeDtypeStruct((1, 1), jnp.float32),
        in_specs=[pl.BlockSpec(memory_space=pltpu.MemorySpace.VMEM)] * 2,
        out_specs=pl.BlockSpec(memory_space=pltpu.MemorySpace.VMEM),
    )(weight_slab, game_slab)
    total_cost = cost.reshape(1)
    timesteps = []   # training=True -> stays empty, as in the PyTorch module
    return total_cost, timesteps


# ----------------------------------- main ------------------------------------
if __name__ == "__main__":
    key = jax.random.PRNGKey(0)
    k_params, k_loc, k_goal, k_gloc, k_phys, k_utt = jax.random.split(key, 6)

    params = init_params(k_params)
    weight_slab = pack_weights(params)      # built ONCE, outside the jit path

    game = dict(
        locations=jax.random.normal(k_loc, (BATCH, NUM_ENTITIES, 2), jnp.float32),
        observed_goals=jax.random.normal(k_goal, (BATCH, NUM_AGENTS, GOAL_SIZE), jnp.float32),
        goal_locations=jax.random.normal(k_gloc, (BATCH, NUM_AGENTS, 2), jnp.float32),
        physical=jax.random.normal(k_phys, (BATCH, NUM_ENTITIES, PHYS_DIM), jnp.float32),
        utterances=jax.nn.softmax(
            jax.random.normal(k_utt, (BATCH, NUM_AGENTS, VOCAB), jnp.float32), axis=-1),
    )

    fwd = jax.jit(agent_module_forward)
    total_cost, timesteps = fwd(weight_slab, game)
    jax.block_until_ready(total_cost)
    assert total_cost.shape == (1,) and bool(jnp.isfinite(total_cost).all())
    print("KERNEL_OK")
</pallas_src>

<mosaic_0001>
module attributes {stable_mosaic.version = 11 : i64} {
  func.func @agent_fused_kernel(%arg0: memref<1056x96xf32, #tpu.memory_space<vmem>>, %arg1: memref<56x8xf32, #tpu.memory_space<vmem>>, %arg2: memref<1x1xf32, #tpu.memory_space<vmem>>) attributes {dimension_semantics = [], scalar_prefetch = 0 : i64, scratch_operands = 0 : i64, tpu.core_type = #tpu.core_type<tc>} {
    %c0 = arith.constant 0 : index
    %c0_0 = arith.constant 0 : index
    %0 = vector.load %arg1[%c0, %c0_0] : memref<56x8xf32, #tpu.memory_space<vmem>>, vector<12x2xf32>
    %c16 = arith.constant 16 : index
    %c0_1 = arith.constant 0 : index
    %1 = vector.load %arg1[%c16, %c0_1] : memref<56x8xf32, #tpu.memory_space<vmem>>, vector<12x2xf32>
    %c32 = arith.constant 32 : index
    %c0_2 = arith.constant 0 : index
    %2 = vector.load %arg1[%c32, %c0_2] : memref<56x8xf32, #tpu.memory_space<vmem>>, vector<8x8xf32>
    %c40 = arith.constant 40 : index
    %c0_3 = arith.constant 0 : index
    %3 = vector.load %arg1[%c40, %c0_3] : memref<56x8xf32, #tpu.memory_space<vmem>>, vector<8x3xf32>
    %c48 = arith.constant 48 : index
    %c0_4 = arith.constant 0 : index
    %4 = vector.load %arg1[%c48, %c0_4] : memref<56x8xf32, #tpu.memory_space<vmem>>, vector<8x2xf32>
    %c0_5 = arith.constant 0 : index
    %c0_6 = arith.constant 0 : index
    %5 = vector.load %arg0[%c0_5, %c0_6] : memref<1056x96xf32, #tpu.memory_space<vmem>>, vector<2x96xf32>
    %c8 = arith.constant 8 : index
    %c0_7 = arith.constant 0 : index
    %6 = vector.load %arg0[%c8, %c0_7] : memref<1056x96xf32, #tpu.memory_space<vmem>>, vector<2x96xf32>
    %c16_8 = arith.constant 16 : index
    %c0_9 = arith.constant 0 : index
    %7 = vector.load %arg0[%c16_8, %c0_9] : memref<1056x96xf32, #tpu.memory_space<vmem>>, vector<8x96xf32>
    %c24 = arith.constant 24 : index
    %c0_10 = arith.constant 0 : index
    %8 = vector.load %arg0[%c24, %c0_10] : memref<1056x96xf32, #tpu.memory_space<vmem>>, vector<3x96xf32>
    %c32_11 = arith.constant 32 : index
    %c0_12 = arith.constant 0 : index
    %9 = vector.load %arg0[%c32_11, %c0_12] : memref<1056x96xf32, #tpu.memory_space<vmem>>, vector<32x96xf32>
    %c64 = arith.constant 64 : index
    %c0_13 = arith.constant 0 : index
    %10 = vector.load %arg0[%c64, %c0_13] : memref<1056x96xf32, #tpu.memory_space<vmem>>, vector<96x96xf32>
    %c160 = arith.constant 160 : index
    %c0_14 = arith.constant 0 : index
    %11 = vector.load %arg0[%c160, %c0_14] : memref<1056x96xf32, #tpu.memory_space<vmem>>, vector<48x96xf32>
    %c208 = arith.constant 208 : index
    %c0_15 = arith.constant 0 : index
    %12 = vector.load %arg0[%c208, %c0_15] : memref<1056x96xf32, #tpu.memory_space<vmem>>, vector<48x96xf32>
    %c256 = arith.constant 256 : index
    %c0_16 = arith.constant 0 : index
    %13 = vector.load %arg0[%c256, %c0_16] : memref<1056x96xf32, #tpu.memory_space<vmem>>, vector<48x96xf32>
    %c304 = arith.constant 304 : index
    %c0_17 = arith.constant 0 : index
    %14 = vector.load %arg0[%c304, %c0_17] : memref<1056x96xf32, #tpu.memory_space<vmem>>, vector<96x32xf32>
    %c400 = arith.constant 400 : index
    %c0_18 = arith.constant 0 : index
    %15 = vector.load %arg0[%c400, %c0_18] : memref<1056x96xf32, #tpu.memory_space<vmem>>, vector<48x32xf32>
    %c448 = arith.constant 448 : index
    %c0_19 = arith.constant 0 : index
    %16 = vector.load %arg0[%c448, %c0_19] : memref<1056x96xf32, #tpu.memory_space<vmem>>, vector<96x96xf32>
    %c544 = arith.constant 544 : index
    %c0_20 = arith.constant 0 : index
    %17 = vector.load %arg0[%c544, %c0_20] : memref<1056x96xf32, #tpu.memory_space<vmem>>, vector<32x96xf32>
    %c576 = arith.constant 576 : index
    %c0_21 = arith.constant 0 : index
    %18 = vector.load %arg0[%c576, %c0_21] : memref<1056x96xf32, #tpu.memory_space<vmem>>, vector<8x96xf32>
    %c584 = arith.constant 584 : index
    %c0_22 = arith.constant 0 : index
    %19 = vector.load %arg0[%c584, %c0_22] : memref<1056x96xf32, #tpu.memory_space<vmem>>, vector<8x96xf32>
    %c592 = arith.constant 592 : index
    %c0_23 = arith.constant 0 : index
    %20 = vector.load %arg0[%c592, %c0_23] : memref<1056x96xf32, #tpu.memory_space<vmem>>, vector<32x32xf32>
    %c624 = arith.constant 624 : index
    %c0_24 = arith.constant 0 : index
    %21 = vector.load %arg0[%c624, %c0_24] : memref<1056x96xf32, #tpu.memory_space<vmem>>, vector<8x32xf32>
    %c632 = arith.constant 632 : index
    %c0_25 = arith.constant 0 : index
    %22 = vector.load %arg0[%c632, %c0_25] : memref<1056x96xf32, #tpu.memory_space<vmem>>, vector<32x32xf32>
    %c664 = arith.constant 664 : index
    %c0_26 = arith.constant 0 : index
    %23 = vector.load %arg0[%c664, %c0_26] : memref<1056x96xf32, #tpu.memory_space<vmem>>, vector<16x32xf32>
    %c680 = arith.constant 680 : index
    %c0_27 = arith.constant 0 : index
    %24 = vector.load %arg0[%c680, %c0_27] : memref<1056x96xf32, #tpu.memory_space<vmem>>, vector<32x3xf32>
    %c712 = arith.constant 712 : index
    %c0_28 = arith.constant 0 : index
    %25 = vector.load %arg0[%c712, %c0_28] : memref<1056x96xf32, #tpu.memory_space<vmem>>, vector<16x3xf32>
    %c728 = arith.constant 728 : index
    %c0_29 = arith.constant 0 : index
    %26 = vector.load %arg0[%c728, %c0_29] : memref<1056x96xf32, #tpu.memory_space<vmem>>, vector<32x64xf32>
    %c760 = arith.constant 760 : index
    %c0_30 = arith.constant 0 : index
    %27 = vector.load %arg0[%c760, %c0_30] : memref<1056x96xf32, #tpu.memory_space<vmem>>, vector<8x64xf32>
    %c768 = arith.constant 768 : index
    %c0_31 = arith.constant 0 : index
    %28 = vector.load %arg0[%c768, %c0_31] : memref<1056x96xf32, #tpu.memory_space<vmem>>, vector<64x10xf32>
    %c832 = arith.constant 832 : index
    %c0_32 = arith.constant 0 : index
    %29 = vector.load %arg0[%c832, %c0_32] : memref<1056x96xf32, #tpu.memory_space<vmem>>, vector<8x10xf32>
    %c840 = arith.constant 840 : index
    %c0_33 = arith.constant 0 : index
    %30 = vector.load %arg0[%c840, %c0_33] : memref<1056x96xf32, #tpu.memory_space<vmem>>, vector<48x12xf32>
    %c888 = arith.constant 888 : index
    %c0_34 = arith.constant 0 : index
    %31 = vector.load %arg0[%c888, %c0_34] : memref<1056x96xf32, #tpu.memory_space<vmem>>, vector<48x12xf32>
    %c936 = arith.constant 936 : index
    %c0_35 = arith.constant 0 : index
    %32 = vector.load %arg0[%c936, %c0_35] : memref<1056x96xf32, #tpu.memory_space<vmem>>, vector<48x8xf32>
    %c984 = arith.constant 984 : index
    %c0_36 = arith.constant 0 : index
    %33 = vector.load %arg0[%c984, %c0_36] : memref<1056x96xf32, #tpu.memory_space<vmem>>, vector<48x8xf32>
    %c1032 = arith.constant 1032 : index
    %c0_37 = arith.constant 0 : index
    %34 = vector.load %arg0[%c1032, %c0_37] : memref<1056x96xf32, #tpu.memory_space<vmem>>, vector<8x12xf32>
    %c1040 = arith.constant 1040 : index
    %c0_38 = arith.constant 0 : index
    %35 = vector.load %arg0[%c1040, %c0_38] : memref<1056x96xf32, #tpu.memory_space<vmem>>, vector<12x8xf32>
    %36 = vector.extract_strided_slice %32 {offsets = [24, 0], sizes = [16, 8], strides = [1, 1]} : vector<48x8xf32> to vector<16x8xf32>
    %cst = arith.constant dense<0.000000e+00> : vector<16x3xf32>
    %37 = tpu.matmul %36, %3, %cst {dimension_numbers = #tpu.dot_dimension_numbers<[1], [0], [0], [1], [0, 0, 1, 1], [], []>} : vector<16x8xf32>, vector<8x3xf32>, vector<16x3xf32> -> vector<16x3xf32>
    %cst_39 = arith.constant dense<0.000000e+00> : vector<12x96xf32>
    %38 = tpu.matmul %1, %6, %cst_39 {dimension_numbers = #tpu.dot_dimension_numbers<[1], [0], [0], [1], [0, 0, 1, 1], [], []>} : vector<12x2xf32>, vector<2x96xf32>, vector<12x96xf32> -> vector<12x96xf32>
    %cst_40 = arith.constant dense<0.000000e+00> : vector<48x96xf32>
    %39 = tpu.matmul %31, %38, %cst_40 {dimension_numbers = #tpu.dot_dimension_numbers<[1], [0], [0], [1], [0, 0, 1, 1], [], []>} : vector<48x12xf32>, vector<12x96xf32>, vector<48x96xf32> -> vector<48x96xf32>
    %40 = arith.addf %11, %39 : vector<48x96xf32>
    %cst_41 = arith.constant dense<0.000000e+00> : vector<8x96xf32>
    %41 = tpu.matmul %3, %8, %cst_41 {dimension_numbers = #tpu.dot_dimension_numbers<[1], [0], [0], [1], [0, 0, 1, 1], [], []>} : vector<8x3xf32>, vector<3x96xf32>, vector<8x96xf32> -> vector<8x96xf32>
    %cst_42 = arith.constant dense<0.000000e+00> : vector<48x96xf32>
    %42 = tpu.matmul %33, %41, %cst_42 {dimension_numbers = #tpu.dot_dimension_numbers<[1], [0], [0], [1], [0, 0, 1, 1], [], []>} : vector<48x8xf32>, vector<8x96xf32>, vector<48x96xf32> -> vector<48x96xf32>
    %43 = arith.addf %40, %42 : vector<48x96xf32>
    %cst_43 = arith.constant 0.000000e+00 : f32
    %44 = vector.broadcast %cst_43 : f32 to vector<48x32xf32>
    %cst_44 = arith.constant 0.000000e+00 : f32
    %45 = vector.broadcast %cst_44 : f32 to vector<8x2xf32>
    %cst_45 = arith.constant 0.000000e+00 : f32
    %46 = vector.broadcast %cst_45 : f32 to vector<16x3xf32>
    %cst_46 = arith.constant dense<0.000000e+00> : vector<12x96xf32>
    %47 = tpu.matmul %0, %5, %cst_46 {dimension_numbers = #tpu.dot_dimension_numbers<[1], [0], [0], [1], [0, 0, 1, 1], [], []>} : vector<12x2xf32>, vector<2x96xf32>, vector<12x96xf32> -> vector<12x96xf32>
    %cst_47 = arith.constant dense<0.000000e+00> : vector<48x96xf32>
    %48 = tpu.matmul %30, %47, %cst_47 {dimension_numbers = #tpu.dot_dimension_numbers<[1], [0], [0], [1], [0, 0, 1, 1], [], []>} : vector<48x12xf32>, vector<12x96xf32>, vector<48x96xf32> -> vector<48x96xf32>
    %49 = arith.addf %43, %48 : vector<48x96xf32>
    %cst_48 = arith.constant dense<0.000000e+00> : vector<8x96xf32>
    %50 = tpu.matmul %2, %7, %cst_48 {dimension_numbers = #tpu.dot_dimension_numbers<[1], [0], [0], [1], [0, 0, 1, 1], [], []>} : vector<8x8xf32>, vector<8x96xf32>, vector<8x96xf32> -> vector<8x96xf32>
    %cst_49 = arith.constant dense<0.000000e+00> : vector<48x96xf32>
    %51 = tpu.matmul %32, %50, %cst_49 {dimension_numbers = #tpu.dot_dimension_numbers<[1], [0], [0], [1], [0, 0, 1, 1], [], []>} : vector<48x8xf32>, vector<8x96xf32>, vector<48x96xf32> -> vector<48x96xf32>
    %52 = arith.addf %49, %51 : vector<48x96xf32>
    %cst_50 = arith.constant dense<0.000000e+00> : vector<48x96xf32>
    %53 = tpu.matmul %44, %9, %cst_50 {dimension_numbers = #tpu.dot_dimension_numbers<[1], [0], [0], [1], [0, 0, 1, 1], [], []>} : vector<48x32xf32>, vector<32x96xf32>, vector<48x96xf32> -> vector<48x96xf32>
    %54 = arith.mulf %53, %13 : vector<48x96xf32>
    %cst_51 = arith.constant dense<0.000000e+00> : vector<48x96xf32>
    %55 = tpu.matmul %54, %10, %cst_51 {dimension_numbers = #tpu.dot_dimension_numbers<[1], [0], [0], [1], [0, 0, 1, 1], [], []>} : vector<48x96xf32>, vector<96x96xf32>, vector<48x96xf32> -> vector<48x96xf32>
    %56 = arith.addf %55, %12 : vector<48x96xf32>
    %57 = vector.extract_strided_slice %52 {offsets = [0, 0], sizes = [48, 32], strides = [1, 1]} : vector<48x96xf32> to vector<48x32xf32>
    %58 = vector.extract_strided_slice %56 {offsets = [0, 0], sizes = [48, 32], strides = [1, 1]} : vector<48x96xf32> to vector<48x32xf32>
    %59 = arith.addf %57, %58 : vector<48x32xf32>
    %60 = arith.negf %59 : vector<48x32xf32>
    %61 = math.exp %60 : vector<48x32xf32>
    %cst_52 = arith.constant 1.000000e+00 : f32
    %62 = vector.broadcast %cst_52 : f32 to vector<48x32xf32>
    %63 = arith.addf %62, %61 : vector<48x32xf32>
    %64 = arith.divf %62, %63 : vector<48x32xf32>
    %65 = vector.extract_strided_slice %52 {offsets = [0, 32], sizes = [48, 32], strides = [1, 1]} : vector<48x96xf32> to vector<48x32xf32>
    %66 = vector.extract_strided_slice %56 {offsets = [0, 32], sizes = [48, 32], strides = [1, 1]} : vector<48x96xf32> to vector<48x32xf32>
    %67 = arith.addf %65, %66 : vector<48x32xf32>
    %68 = arith.negf %67 : vector<48x32xf32>
    %69 = math.exp %68 : vector<48x32xf32>
    %cst_53 = arith.constant 1.000000e+00 : f32
    %70 = vector.broadcast %cst_53 : f32 to vector<48x32xf32>
    %71 = arith.addf %70, %69 : vector<48x32xf32>
    %72 = arith.divf %70, %71 : vector<48x32xf32>
    %73 = vector.extract_strided_slice %52 {offsets = [0, 64], sizes = [48, 32], strides = [1, 1]} : vector<48x96xf32> to vector<48x32xf32>
    %74 = vector.extract_strided_slice %56 {offsets = [0, 64], sizes = [48, 32], strides = [1, 1]} : vector<48x96xf32> to vector<48x32xf32>
    %75 = arith.mulf %64, %74 : vector<48x32xf32>
    %76 = arith.addf %73, %75 : vector<48x32xf32>
    %77 = math.tanh %76 : vector<48x32xf32>
    %cst_54 = arith.constant 1.000000e+00 : f32
    %78 = vector.broadcast %cst_54 : f32 to vector<48x32xf32>
    %79 = arith.subf %78, %72 : vector<48x32xf32>
    %80 = arith.mulf %79, %77 : vector<48x32xf32>
    %81 = arith.mulf %72, %44 : vector<48x32xf32>
    %82 = arith.addf %80, %81 : vector<48x32xf32>
    %cst_55 = arith.constant dense<0.000000e+00> : vector<48x96xf32>
    %83 = tpu.matmul %82, %9, %cst_55 {dimension_numbers = #tpu.dot_dimension_numbers<[1], [0], [0], [1], [0, 0, 1, 1], [], []>} : vector<48x32xf32>, vector<32x96xf32>, vector<48x96xf32> -> vector<48x96xf32>
    %84 = arith.mulf %83, %13 : vector<48x96xf32>
    %cst_56 = arith.constant dense<0.000000e+00> : vector<48x32xf32>
    %85 = tpu.matmul %84, %14, %cst_56 {dimension_numbers = #tpu.dot_dimension_numbers<[1], [0], [0], [1], [0, 0, 1, 1], [], []>} : vector<48x96xf32>, vector<96x32xf32>, vector<48x32xf32> -> vector<48x32xf32>
    %86 = arith.addf %85, %15 : vector<48x32xf32>
    %cst_57 = arith.constant 0.000000e+00 : f32
    %87 = vector.broadcast %cst_57 : f32 to vector<48x32xf32>
    %88 = arith.maximumf %86, %87 : vector<48x32xf32>
    %89 = vector.extract_strided_slice %88 {offsets = [0, 0], sizes = [8, 32], strides = [1, 1]} : vector<48x32xf32> to vector<8x32xf32>
    %90 = vector.extract_strided_slice %88 {offsets = [8, 0], sizes = [8, 32], strides = [1, 1]} : vector<48x32xf32> to vector<8x32xf32>
    %91 = arith.maximumf %89, %90 : vector<8x32xf32>
    %92 = vector.extract_strided_slice %88 {offsets = [16, 0], sizes = [8, 32], strides = [1, 1]} : vector<48x32xf32> to vector<8x32xf32>
    %93 = arith.maximumf %91, %92 : vector<8x32xf32>
    %94 = vector.extract_strided_slice %88 {offsets = [24, 0], sizes = [16, 32], strides = [1, 1]} : vector<48x32xf32> to vector<16x32xf32>
    %95 = vector.extract_strided_slice %94 {offsets = [0, 0], sizes = [8, 32], strides = [1, 1]} : vector<16x32xf32> to vector<8x32xf32>
    %96 = vector.extract_strided_slice %94 {offsets = [8, 0], sizes = [8, 32], strides = [1, 1]} : vector<16x32xf32> to vector<8x32xf32>
    %97 = arith.maximumf %95, %96 : vector<8x32xf32>
    %98 = vector.extract_strided_slice %88 {offsets = [40, 0], sizes = [8, 32], strides = [1, 1]} : vector<48x32xf32> to vector<8x32xf32>
    %cst_58 = arith.constant dense<0.000000e+00> : vector<16x32xf32>
    %99 = tpu.matmul %94, %22, %cst_58 {dimension_numbers = #tpu.dot_dimension_numbers<[1], [0], [0], [1], [0, 0, 1, 1], [], []>} : vector<16x32xf32>, vector<32x32xf32>, vector<16x32xf32> -> vector<16x32xf32>
    %100 = arith.addf %99, %23 : vector<16x32xf32>
    %cst_59 = arith.constant 0.000000e+00 : f32
    %101 = vector.broadcast %cst_59 : f32 to vector<16x32xf32>
    %102 = arith.maximumf %100, %101 : vector<16x32xf32>
    %cst_60 = arith.constant dense<0.000000e+00> : vector<16x3xf32>
    %103 = tpu.matmul %102, %24, %cst_60 {dimension_numbers = #tpu.dot_dimension_numbers<[1], [0], [0], [1], [0, 0, 1, 1], [], []>} : vector<16x32xf32>, vector<32x3xf32>, vector<16x3xf32> -> vector<16x3xf32>
    %104 = arith.addf %103, %25 : vector<16x3xf32>
    %105 = vector.extract_strided_slice %44 {offsets = [40, 0], sizes = [8, 32], strides = [1, 1]} : vector<48x32xf32> to vector<8x32xf32>
    %106 = tpu.concatenate %93, %98, %97 in 1 : vector<8x32xf32>, vector<8x32xf32>, vector<8x32xf32> -> vector<8x96xf32>
    %cst_61 = arith.constant dense<0.000000e+00> : vector<8x96xf32>
    %107 = tpu.matmul %106, %16, %cst_61 {dimension_numbers = #tpu.dot_dimension_numbers<[1], [0], [0], [1], [0, 0, 1, 1], [], []>} : vector<8x96xf32>, vector<96x96xf32>, vector<8x96xf32> -> vector<8x96xf32>
    %108 = arith.addf %107, %18 : vector<8x96xf32>
    %cst_62 = arith.constant dense<0.000000e+00> : vector<8x96xf32>
    %109 = tpu.matmul %105, %17, %cst_62 {dimension_numbers = #tpu.dot_dimension_numbers<[1], [0], [0], [1], [0, 0, 1, 1], [], []>} : vector<8x32xf32>, vector<32x96xf32>, vector<8x96xf32> -> vector<8x96xf32>
    %110 = arith.addf %109, %19 : vector<8x96xf32>
    %111 = vector.extract_strided_slice %108 {offsets = [0, 0], sizes = [8, 32], strides = [1, 1]} : vector<8x96xf32> to vector<8x32xf32>
    %112 = vector.extract_strided_slice %110 {offsets = [0, 0], sizes = [8, 32], strides = [1, 1]} : vector<8x96xf32> to vector<8x32xf32>
    %113 = arith.addf %111, %112 : vector<8x32xf32>
    %114 = arith.negf %113 : vector<8x32xf32>
    %115 = math.exp %114 : vector<8x32xf32>
    %cst_63 = arith.constant 1.000000e+00 : f32
    %116 = vector.broadcast %cst_63 : f32 to vector<8x32xf32>
    %117 = arith.addf %116, %115 : vector<8x32xf32>
    %118 = arith.divf %116, %117 : vector<8x32xf32>
    %119 = vector.extract_strided_slice %108 {offsets = [0, 32], sizes = [8, 32], strides = [1, 1]} : vector<8x96xf32> to vector<8x32xf32>
    %120 = vector.extract_strided_slice %110 {offsets = [0, 32], sizes = [8, 32], strides = [1, 1]} : vector<8x96xf32> to vector<8x32xf32>
    %121 = arith.addf %119, %120 : vector<8x32xf32>
    %122 = arith.negf %121 : vector<8x32xf32>
    %123 = math.exp %122 : vector<8x32xf32>
    %cst_64 = arith.constant 1.000000e+00 : f32
    %124 = vector.broadcast %cst_64 : f32 to vector<8x32xf32>
    %125 = arith.addf %124, %123 : vector<8x32xf32>
    %126 = arith.divf %124, %125 : vector<8x32xf32>
    %127 = vector.extract_strided_slice %108 {offsets = [0, 64], sizes = [8, 32], strides = [1, 1]} : vector<8x96xf32> to vector<8x32xf32>
    %128 = vector.extract_strided_slice %110 {offsets = [0, 64], sizes = [8, 32], strides = [1, 1]} : vector<8x96xf32> to vector<8x32xf32>
    %129 = arith.mulf %118, %128 : vector<8x32xf32>
    %130 = arith.addf %127, %129 : vector<8x32xf32>
    %131 = math.tanh %130 : vector<8x32xf32>
    %cst_65 = arith.constant 1.000000e+00 : f32
    %132 = vector.broadcast %cst_65 : f32 to vector<8x32xf32>
    %133 = arith.subf %132, %126 : vector<8x32xf32>
    %134 = arith.mulf %133, %131 : vector<8x32xf32>
    %135 = arith.mulf %126, %105 : vector<8x32xf32>
    %136 = arith.addf %134, %135 : vector<8x32xf32>
    %cst_66 = arith.constant dense<0.000000e+00> : vector<8x32xf32>
    %137 = tpu.matmul %136, %20, %cst_66 {dimension_numbers = #tpu.dot_dimension_numbers<[1], [0], [0], [1], [0, 0, 1, 1], [], []>} : vector<8x32xf32>, vector<32x32xf32>, vector<8x32xf32> -> vector<8x32xf32>
    %138 = arith.addf %137, %21 : vector<8x32xf32>
    %cst_67 = arith.constant 0.000000e+00 : f32
    %139 = vector.broadcast %cst_67 : f32 to vector<8x32xf32>
    %140 = arith.maximumf %138, %139 : vector<8x32xf32>
    %cst_68 = arith.constant dense<0.000000e+00> : vector<8x64xf32>
    %141 = tpu.matmul %140, %26, %cst_68 {dimension_numbers = #tpu.dot_dimension_numbers<[1], [0], [0], [1], [0, 0, 1, 1], [], []>} : vector<8x32xf32>, vector<32x64xf32>, vector<8x64xf32> -> vector<8x64xf32>
    %142 = arith.addf %141, %27 : vector<8x64xf32>
    %cst_69 = arith.constant 0.000000e+00 : f32
    %143 = vector.broadcast %cst_69 : f32 to vector<8x64xf32>
    %144 = arith.maximumf %142, %143 : vector<8x64xf32>
    %cst_70 = arith.constant dense<0.000000e+00> : vector<8x10xf32>
    %145 = tpu.matmul %144, %28, %cst_70 {dimension_numbers = #tpu.dot_dimension_numbers<[1], [0], [0], [1], [0, 0, 1, 1], [], []>} : vector<8x64xf32>, vector<64x10xf32>, vector<8x10xf32> -> vector<8x10xf32>
    %146 = arith.addf %145, %29 : vector<8x10xf32>
    %147 = vector.extract_strided_slice %146 {offsets = [0, 0], sizes = [8, 2], strides = [1, 1]} : vector<8x10xf32> to vector<8x2xf32>
    %148 = math.tanh %147 : vector<8x2xf32>
    %cst_71 = arith.constant 1.000000e-01 : f32
    %149 = vector.broadcast %cst_71 : f32 to vector<8x2xf32>
    %150 = arith.mulf %148, %149 : vector<8x2xf32>
    %151 = vector.extract_strided_slice %146 {offsets = [0, 2], sizes = [8, 8], strides = [1, 1]} : vector<8x10xf32> to vector<8x8xf32>
    %cst_72 = arith.constant dense<0xFF800000> : vector<8xf32>
    %152 = vector.multi_reduction <maximumf>, %151, %cst_72 [1] : vector<8x8xf32> to vector<8xf32>
    %153 = vector.shape_cast %152 : vector<8xf32> to vector<8x1xf32>
    %154 = vector.broadcast %153 : vector<8x1xf32> to vector<8x8xf32>
    %155 = arith.subf %151, %154 : vector<8x8xf32>
    %156 = math.exp %155 : vector<8x8xf32>
    %cst_73 = arith.constant dense<0.000000e+00> : vector<8xf32>
    %157 = vector.multi_reduction <add>, %156, %cst_73 [1] : vector<8x8xf32> to vector<8xf32>
    %158 = vector.shape_cast %157 : vector<8xf32> to vector<8x1xf32>
    %159 = tpu.reciprocal %158 {approx = true} : vector<8x1xf32> -> vector<8x1xf32>
    %160 = vector.broadcast %159 : vector<8x1xf32> to vector<8x8xf32>
    %161 = arith.mulf %156, %160 : vector<8x8xf32>
    %cst_74 = arith.constant dense<0.000000e+00> : vector<8x2xf32>
    %162 = tpu.matmul %34, %0, %cst_74 {dimension_numbers = #tpu.dot_dimension_numbers<[1], [0], [0], [1], [0, 0, 1, 1], [], []>} : vector<8x12xf32>, vector<12x2xf32>, vector<8x2xf32> -> vector<8x2xf32>
    %163 = arith.addf %162, %150 : vector<8x2xf32>
    %cst_75 = arith.constant dense<0.000000e+00> : vector<12x2xf32>
    %164 = tpu.matmul %35, %150, %cst_75 {dimension_numbers = #tpu.dot_dimension_numbers<[1], [0], [0], [1], [0, 0, 1, 1], [], []>} : vector<12x8xf32>, vector<8x2xf32>, vector<12x2xf32> -> vector<12x2xf32>
    %165 = arith.addf %0, %164 : vector<12x2xf32>
    %166 = arith.subf %163, %4 : vector<8x2xf32>
    %167 = arith.mulf %166, %166 : vector<8x2xf32>
    %168 = arith.addf %45, %167 : vector<8x2xf32>
    %169 = arith.mulf %150, %150 : vector<8x2xf32>
    %cst_76 = arith.constant 1.000000e-01 : f32
    %170 = vector.broadcast %cst_76 : f32 to vector<8x2xf32>
    %171 = arith.mulf %170, %169 : vector<8x2xf32>
    %172 = arith.addf %168, %171 : vector<8x2xf32>
    %173 = arith.subf %104, %37 : vector<16x3xf32>
    %174 = arith.mulf %173, %173 : vector<16x3xf32>
    %175 = arith.addf %46, %174 : vector<16x3xf32>
    %176 = vector.extract_strided_slice %82 {offsets = [0, 0], sizes = [40, 32], strides = [1, 1]} : vector<48x32xf32> to vector<40x32xf32>
    %177 = tpu.concatenate %176, %136 in 0 : vector<40x32xf32>, vector<8x32xf32> -> vector<48x32xf32>
    %cst_77 = arith.constant dense<0.000000e+00> : vector<12x96xf32>
    %178 = tpu.matmul %165, %5, %cst_77 {dimension_numbers = #tpu.dot_dimension_numbers<[1], [0], [0], [1], [0, 0, 1, 1], [], []>} : vector<12x2xf32>, vector<2x96xf32>, vector<12x96xf32> -> vector<12x96xf32>
    %cst_78 = arith.constant dense<0.000000e+00> : vector<48x96xf32>
    %179 = tpu.matmul %30, %178, %cst_78 {dimension_numbers = #tpu.dot_dimension_numbers<[1], [0], [0], [1], [0, 0, 1, 1], [], []>} : vector<48x12xf32>, vector<12x96xf32>, vector<48x96xf32> -> vector<48x96xf32>
    %180 = arith.addf %43, %179 : vector<48x96xf32>
    %cst_79 = arith.constant dense<0.000000e+00> : vector<8x96xf32>
    %181 = tpu.matmul %161, %7, %cst_79 {dimension_numbers = #tpu.dot_dimension_numbers<[1], [0], [0], [1], [0, 0, 1, 1], [], []>} : vector<8x8xf32>, vector<8x96xf32>, vector<8x96xf32> -> vector<8x96xf32>
    %cst_80 = arith.constant dense<0.000000e+00> : vector<48x96xf32>
    %182 = tpu.matmul %32, %181, %cst_80 {dimension_numbers = #tpu.dot_dimension_numbers<[1], [0], [0], [1], [0, 0, 1, 1], [], []>} : vector<48x8xf32>, vector<8x96xf32>, vector<48x96xf32> -> vector<48x96xf32>
    %183 = arith.addf %180, %182 : vector<48x96xf32>
    %cst_81 = arith.constant dense<0.000000e+00> : vector<48x96xf32>
    %184 = tpu.matmul %177, %9, %cst_81 {dimension_numbers = #tpu.dot_dimension_numbers<[1], [0], [0], [1], [0, 0, 1, 1], [], []>} : vector<48x32xf32>, vector<32x96xf32>, vector<48x96xf32> -> vector<48x96xf32>
    %185 = arith.mulf %184, %13 : vector<48x96xf32>
    %cst_82 = arith.constant dense<0.000000e+00> : vector<48x96xf32>
    %186 = tpu.matmul %185, %10, %cst_82 {dimension_numbers = #tpu.dot_dimension_numbers<[1], [0], [0], [1], [0, 0, 1, 1], [], []>} : vector<48x96xf32>, vector<96x96xf32>, vector<48x96xf32> -> vector<48x96xf32>
    %187 = arith.addf %186, %12 : vector<48x96xf32>
    %188 = vector.extract_strided_slice %183 {offsets = [0, 0], sizes = [48, 32], strides = [1, 1]} : vector<48x96xf32> to vector<48x32xf32>
    %189 = vector.extract_strided_slice %187 {offsets = [0, 0], sizes = [48, 32], strides = [1, 1]} : vector<48x96xf32> to vector<48x32xf32>
    %190 = arith.addf %188, %189 : vector<48x32xf32>
    %191 = arith.negf %190 : vector<48x32xf32>
    %192 = math.exp %191 : vector<48x32xf32>
    %cst_83 = arith.constant 1.000000e+00 : f32
    %193 = vector.broadcast %cst_83 : f32 to vector<48x32xf32>
    %194 = arith.addf %193, %192 : vector<48x32xf32>
    %195 = arith.divf %193, %194 : vector<48x32xf32>
    %196 = vector.extract_strided_slice %183 {offsets = [0, 32], sizes = [48, 32], strides = [1, 1]} : vector<48x96xf32> to vector<48x32xf32>
    %197 = vector.extract_strided_slice %187 {offsets = [0, 32], sizes = [48, 32], strides = [1, 1]} : vector<48x96xf32> to vector<48x32xf32>
    %198 = arith.addf %196, %197 : vector<48x32xf32>
    %199 = arith.negf %198 : vector<48x32xf32>
    %200 = math.exp %199 : vector<48x32xf32>
    %cst_84 = arith.constant 1.000000e+00 : f32
    %201 = vector.broadcast %cst_84 : f32 to vector<48x32xf32>
    %202 = arith.addf %201, %200 : vector<48x32xf32>
    %203 = arith.divf %201, %202 : vector<48x32xf32>
    %204 = vector.extract_strided_slice %183 {offsets = [0, 64], sizes = [48, 32], strides = [1, 1]} : vector<48x96xf32> to vector<48x32xf32>
    %205 = vector.extract_strided_slice %187 {offsets = [0, 64], sizes = [48, 32], strides = [1, 1]} : vector<48x96xf32> to vector<48x32xf32>
    %206 = arith.mulf %195, %205 : vector<48x32xf32>
    %207 = arith.addf %204, %206 : vector<48x32xf32>
    %208 = math.tanh %207 : vector<48x32xf32>
    %cst_85 = arith.constant 1.000000e+00 : f32
    %209 = vector.broadcast %cst_85 : f32 to vector<48x32xf32>
    %210 = arith.subf %209, %203 : vector<48x32xf32>
    %211 = arith.mulf %210, %208 : vector<48x32xf32>
    %212 = arith.mulf %203, %177 : vector<48x32xf32>
    %213 = arith.addf %211, %212 : vector<48x32xf32>
    %cst_86 = arith.constant dense<0.000000e+00> : vector<48x96xf32>
    %214 = tpu.matmul %213, %9, %cst_86 {dimension_numbers = #tpu.dot_dimension_numbers<[1], [0], [0], [1], [0, 0, 1, 1], [], []>} : vector<48x32xf32>, vector<32x96xf32>, vector<48x96xf32> -> vector<48x96xf32>
    %215 = arith.mulf %214, %13 : vector<48x96xf32>
    %cst_87 = arith.constant dense<0.000000e+00> : vector<48x32xf32>
    %216 = tpu.matmul %215, %14, %cst_87 {dimension_numbers = #tpu.dot_dimension_numbers<[1], [0], [0], [1], [0, 0, 1, 1], [], []>} : vector<48x96xf32>, vector<96x32xf32>, vector<48x32xf32> -> vector<48x32xf32>
    %217 = arith.addf %216, %15 : vector<48x32xf32>
    %cst_88 = arith.constant 0.000000e+00 : f32
    %218 = vector.broadcast %cst_88 : f32 to vector<48x32xf32>
    %219 = arith.maximumf %217, %218 : vector<48x32xf32>
    %220 = vector.extract_strided_slice %219 {offsets = [0, 0], sizes = [8, 32], strides = [1, 1]} : vector<48x32xf32> to vector<8x32xf32>
    %221 = vector.extract_strided_slice %219 {offsets = [8, 0], sizes = [8, 32], strides = [1, 1]} : vector<48x32xf32> to vector<8x32xf32>
    %222 = arith.maximumf %220, %221 : vector<8x32xf32>
    %223 = vector.extract_strided_slice %219 {offsets = [16, 0], sizes = [8, 32], strides = [1, 1]} : vector<48x32xf32> to vector<8x32xf32>
    %224 = arith.maximumf %222, %223 : vector<8x32xf32>
    %225 = vector.extract_strided_slice %219 {offsets = [24, 0], sizes = [16, 32], strides = [1, 1]} : vector<48x32xf32> to vector<16x32xf32>
    %226 = vector.extract_strided_slice %225 {offsets = [0, 0], sizes = [8, 32], strides = [1, 1]} : vector<16x32xf32> to vector<8x32xf32>
    %227 = vector.extract_strided_slice %225 {offsets = [8, 0], sizes = [8, 32], strides = [1, 1]} : vector<16x32xf32> to vector<8x32xf32>
    %228 = arith.maximumf %226, %227 : vector<8x32xf32>
    %229 = vector.extract_strided_slice %219 {offsets = [40, 0], sizes = [8, 32], strides = [1, 1]} : vector<48x32xf32> to vector<8x32xf32>
    %cst_89 = arith.constant dense<0.000000e+00> : vector<16x32xf32>
    %230 = tpu.matmul %225, %22, %cst_89 {dimension_numbers = #tpu.dot_dimension_numbers<[1], [0], [0], [1], [0, 0, 1, 1], [], []>} : vector<16x32xf32>, vector<32x32xf32>, vector<16x32xf32> -> vector<16x32xf32>
    %231 = arith.addf %230, %23 : vector<16x32xf32>
    %cst_90 = arith.constant 0.000000e+00 : f32
    %232 = vector.broadcast %cst_90 : f32 to vector<16x32xf32>
    %233 = arith.maximumf %231, %232 : vector<16x32xf32>
    %cst_91 = arith.constant dense<0.000000e+00> : vector<16x3xf32>
    %234 = tpu.matmul %233, %24, %cst_91 {dimension_numbers = #tpu.dot_dimension_numbers<[1], [0], [0], [1], [0, 0, 1, 1], [], []>} : vector<16x32xf32>, vector<32x3xf32>, vector<16x3xf32> -> vector<16x3xf32>
    %235 = arith.addf %234, %25 : vector<16x3xf32>
    %236 = vector.extract_strided_slice %177 {offsets = [40, 0], sizes = [8, 32], strides = [1, 1]} : vector<48x32xf32> to vector<8x32xf32>
    %237 = tpu.concatenate %224, %229, %228 in 1 : vector<8x32xf32>, vector<8x32xf32>, vector<8x32xf32> -> vector<8x96xf32>
    %cst_92 = arith.constant dense<0.000000e+00> : vector<8x96xf32>
    %238 = tpu.matmul %237, %16, %cst_92 {dimension_numbers = #tpu.dot_dimension_numbers<[1], [0], [0], [1], [0, 0, 1, 1], [], []>} : vector<8x96xf32>, vector<96x96xf32>, vector<8x96xf32> -> vector<8x96xf32>
    %239 = arith.addf %238, %18 : vector<8x96xf32>
    %cst_93 = arith.constant dense<0.000000e+00> : vector<8x96xf32>
    %240 = tpu.matmul %236, %17, %cst_93 {dimension_numbers = #tpu.dot_dimension_numbers<[1], [0], [0], [1], [0, 0, 1, 1], [], []>} : vector<8x32xf32>, vector<32x96xf32>, vector<8x96xf32> -> vector<8x96xf32>
    %241 = arith.addf %240, %19 : vector<8x96xf32>
    %242 = vector.extract_strided_slice %239 {offsets = [0, 0], sizes = [8, 32], strides = [1, 1]} : vector<8x96xf32> to vector<8x32xf32>
    %243 = vector.extract_strided_slice %241 {offsets = [0, 0], sizes = [8, 32], strides = [1, 1]} : vector<8x96xf32> to vector<8x32xf32>
    %244 = arith.addf %242, %243 : vector<8x32xf32>
    %245 = arith.negf %244 : vector<8x32xf32>
    %246 = math.exp %245 : vector<8x32xf32>
    %cst_94 = arith.constant 1.000000e+00 : f32
    %247 = vector.broadcast %cst_94 : f32 to vector<8x32xf32>
    %248 = arith.addf %247, %246 : vector<8x32xf32>
    %249 = arith.divf %247, %248 : vector<8x32xf32>
    %250 = vector.extract_strided_slice %239 {offsets = [0, 32], sizes = [8, 32], strides = [1, 1]} : vector<8x96xf32> to vector<8x32xf32>
    %251 = vector.extract_strided_slice %241 {offsets = [0, 32], sizes = [8, 32], strides = [1, 1]} : vector<8x96xf32> to vector<8x32xf32>
    %252 = arith.addf %250, %251 : vector<8x32xf32>
    %253 = arith.negf %252 : vector<8x32xf32>
    %254 = math.exp %253 : vector<8x32xf32>
    %cst_95 = arith.constant 1.000000e+00 : f32
    %255 = vector.broadcast %cst_95 : f32 to vector<8x32xf32>
    %256 = arith.addf %255, %254 : vector<8x32xf32>
    %257 = arith.divf %255, %256 : vector<8x32xf32>
    %258 = vector.extract_strided_slice %239 {offsets = [0, 64], sizes = [8, 32], strides = [1, 1]} : vector<8x96xf32> to vector<8x32xf32>
    %259 = vector.extract_strided_slice %241 {offsets = [0, 64], sizes = [8, 32], strides = [1, 1]} : vector<8x96xf32> to vector<8x32xf32>
    %260 = arith.mulf %249, %259 : vector<8x32xf32>
    %261 = arith.addf %258, %260 : vector<8x32xf32>
    %262 = math.tanh %261 : vector<8x32xf32>
    %cst_96 = arith.constant 1.000000e+00 : f32
    %263 = vector.broadcast %cst_96 : f32 to vector<8x32xf32>
    %264 = arith.subf %263, %257 : vector<8x32xf32>
    %265 = arith.mulf %264, %262 : vector<8x32xf32>
    %266 = arith.mulf %257, %236 : vector<8x32xf32>
    %267 = arith.addf %265, %266 : vector<8x32xf32>
    %cst_97 = arith.constant dense<0.000000e+00> : vector<8x32xf32>
    %268 = tpu.matmul %267, %20, %cst_97 {dimension_numbers = #tpu.dot_dimension_numbers<[1], [0], [0], [1], [0, 0, 1, 1], [], []>} : vector<8x32xf32>, vector<32x32xf32>, vector<8x32xf32> -> vector<8x32xf32>
    %269 = arith.addf %268, %21 : vector<8x32xf32>
    %cst_98 = arith.constant 0.000000e+00 : f32
    %270 = vector.broadcast %cst_98 : f32 to vector<8x32xf32>
    %271 = arith.maximumf %269, %270 : vector<8x32xf32>
    %cst_99 = arith.constant dense<0.000000e+00> : vector<8x64xf32>
    %272 = tpu.matmul %271, %26, %cst_99 {dimension_numbers = #tpu.dot_dimension_numbers<[1], [0], [0], [1], [0, 0, 1, 1], [], []>} : vector<8x32xf32>, vector<32x64xf32>, vector<8x64xf32> -> vector<8x64xf32>
    %273 = arith.addf %272, %27 : vector<8x64xf32>
    %cst_100 = arith.constant 0.000000e+00 : f32
    %274 = vector.broadcast %cst_100 : f32 to vector<8x64xf32>
    %275 = arith.maximumf %273, %274 : vector<8x64xf32>
    %cst_101 = arith.constant dense<0.000000e+00> : vector<8x10xf32>
    %276 = tpu.matmul %275, %28, %cst_101 {dimension_numbers = #tpu.dot_dimension_numbers<[1], [0], [0], [1], [0, 0, 1, 1], [], []>} : vector<8x64xf32>, vector<64x10xf32>, vector<8x10xf32> -> vector<8x10xf32>
    %277 = arith.addf %276, %29 : vector<8x10xf32>
    %278 = vector.extract_strided_slice %277 {offsets = [0, 0], sizes = [8, 2], strides = [1, 1]} : vector<8x10xf32> to vector<8x2xf32>
    %279 = math.tanh %278 : vector<8x2xf32>
    %cst_102 = arith.constant 1.000000e-01 : f32
    %280 = vector.broadcast %cst_102 : f32 to vector<8x2xf32>
    %281 = arith.mulf %279, %280 : vector<8x2xf32>
    %282 = vector.extract_strided_slice %277 {offsets = [0, 2], sizes = [8, 8], strides = [1, 1]} : vector<8x10xf32> to vector<8x8xf32>
    %cst_103 = arith.constant dense<0xFF800000> : vector<8xf32>
    %283 = vector.multi_reduction <maximumf>, %282, %cst_103 [1] : vector<8x8xf32> to vector<8xf32>
    %284 = vector.shape_cast %283 : vector<8xf32> to vector<8x1xf32>
    %285 = vector.broadcast %284 : vector<8x1xf32> to vector<8x8xf32>
    %286 = arith.subf %282, %285 : vector<8x8xf32>
    %287 = math.exp %286 : vector<8x8xf32>
    %cst_104 = arith.constant dense<0.000000e+00> : vector<8xf32>
    %288 = vector.multi_reduction <add>, %287, %cst_104 [1] : vector<8x8xf32> to vector<8xf32>
    %289 = vector.shape_cast %288 : vector<8xf32> to vector<8x1xf32>
    %290 = tpu.reciprocal %289 {approx = true} : vector<8x1xf32> -> vector<8x1xf32>
    %291 = vector.broadcast %290 : vector<8x1xf32> to vector<8x8xf32>
    %292 = arith.mulf %287, %291 : vector<8x8xf32>
    %cst_105 = arith.constant dense<0.000000e+00> : vector<8x2xf32>
    %293 = tpu.matmul %34, %165, %cst_105 {dimension_numbers = #tpu.dot_dimension_numbers<[1], [0], [0], [1], [0, 0, 1, 1], [], []>} : vector<8x12xf32>, vector<12x2xf32>, vector<8x2xf32> -> vector<8x2xf32>
    %294 = arith.addf %293, %281 : vector<8x2xf32>
    %cst_106 = arith.constant dense<0.000000e+00> : vector<12x2xf32>
    %295 = tpu.matmul %35, %281, %cst_106 {dimension_numbers = #tpu.dot_dimension_numbers<[1], [0], [0], [1], [0, 0, 1, 1], [], []>} : vector<12x8xf32>, vector<8x2xf32>, vector<12x2xf32> -> vector<12x2xf32>
    %296 = arith.addf %165, %295 : vector<12x2xf32>
    %297 = arith.subf %294, %4 : vector<8x2xf32>
    %298 = arith.mulf %297, %297 : vector<8x2xf32>
    %299 = arith.addf %172, %298 : vector<8x2xf32>
    %300 = arith.mulf %281, %281 : vector<8x2xf32>
    %cst_107 = arith.constant 1.000000e-01 : f32
    %301 = vector.broadcast %cst_107 : f32 to vector<8x2xf32>
    %302 = arith.mulf %301, %300 : vector<8x2xf32>
    %303 = arith.addf %299, %302 : vector<8x2xf32>
    %304 = arith.subf %235, %37 : vector<16x3xf32>
    %305 = arith.mulf %304, %304 : vector<16x3xf32>
    %306 = arith.addf %175, %305 : vector<16x3xf32>
    %307 = vector.extract_strided_slice %213 {offsets = [0, 0], sizes = [40, 32], strides = [1, 1]} : vector<48x32xf32> to vector<40x32xf32>
    %308 = tpu.concatenate %307, %267 in 0 : vector<40x32xf32>, vector<8x32xf32> -> vector<48x32xf32>
    %cst_108 = arith.constant dense<0.000000e+00> : vector<12x96xf32>
    %309 = tpu.matmul %296, %5, %cst_108 {dimension_numbers = #tpu.dot_dimension_numbers<[1], [0], [0], [1], [0, 0, 1, 1], [], []>} : vector<12x2xf32>, vector<2x96xf32>, vector<12x96xf32> -> vector<12x96xf32>
    %cst_109 = arith.constant dense<0.000000e+00> : vector<48x96xf32>
    %310 = tpu.matmul %30, %309, %cst_109 {dimension_numbers = #tpu.dot_dimension_numbers<[1], [0], [0], [1], [0, 0, 1, 1], [], []>} : vector<48x12xf32>, vector<12x96xf32>, vector<48x96xf32> -> vector<48x96xf32>
    %311 = arith.addf %43, %310 : vector<48x96xf32>
    %cst_110 = arith.constant dense<0.000000e+00> : vector<8x96xf32>
    %312 = tpu.matmul %292, %7, %cst_110 {dimension_numbers = #tpu.dot_dimension_numbers<[1], [0], [0], [1], [0, 0, 1, 1], [], []>} : vector<8x8xf32>, vector<8x96xf32>, vector<8x96xf32> -> vector<8x96xf32>
    %cst_111 = arith.constant dense<0.000000e+00> : vector<48x96xf32>
    %313 = tpu.matmul %32, %312, %cst_111 {dimension_numbers = #tpu.dot_dimension_numbers<[1], [0], [0], [1], [0, 0, 1, 1], [], []>} : vector<48x8xf32>, vector<8x96xf32>, vector<48x96xf32> -> vector<48x96xf32>
    %314 = arith.addf %311, %313 : vector<48x96xf32>
    %cst_112 = arith.constant dense<0.000000e+00> : vector<48x96xf32>
    %315 = tpu.matmul %308, %9, %cst_112 {dimension_numbers = #tpu.dot_dimension_numbers<[1], [0], [0], [1], [0, 0, 1, 1], [], []>} : vector<48x32xf32>, vector<32x96xf32>, vector<48x96xf32> -> vector<48x96xf32>
    %316 = arith.mulf %315, %13 : vector<48x96xf32>
    %cst_113 = arith.constant dense<0.000000e+00> : vector<48x96xf32>
    %317 = tpu.matmul %316, %10, %cst_113 {dimension_numbers = #tpu.dot_dimension_numbers<[1], [0], [0], [1], [0, 0, 1, 1], [], []>} : vector<48x96xf32>, vector<96x96xf32>, vector<48x96xf32> -> vector<48x96xf32>
    %318 = arith.addf %317, %12 : vector<48x96xf32>
    %319 = vector.extract_strided_slice %314 {offsets = [0, 0], sizes = [48, 32], strides = [1, 1]} : vector<48x96xf32> to vector<48x32xf32>
    %320 = vector.extract_strided_slice %318 {offsets = [0, 0], sizes = [48, 32], strides = [1, 1]} : vector<48x96xf32> to vector<48x32xf32>
    %321 = arith.addf %319, %320 : vector<48x32xf32>
    %322 = arith.negf %321 : vector<48x32xf32>
    %323 = math.exp %322 : vector<48x32xf32>
    %cst_114 = arith.constant 1.000000e+00 : f32
    %324 = vector.broadcast %cst_114 : f32 to vector<48x32xf32>
    %325 = arith.addf %324, %323 : vector<48x32xf32>
    %326 = arith.divf %324, %325 : vector<48x32xf32>
    %327 = vector.extract_strided_slice %314 {offsets = [0, 32], sizes = [48, 32], strides = [1, 1]} : vector<48x96xf32> to vector<48x32xf32>
    %328 = vector.extract_strided_slice %318 {offsets = [0, 32], sizes = [48, 32], strides = [1, 1]} : vector<48x96xf32> to vector<48x32xf32>
    %329 = arith.addf %327, %328 : vector<48x32xf32>
    %330 = arith.negf %329 : vector<48x32xf32>
    %331 = math.exp %330 : vector<48x32xf32>
    %cst_115 = arith.constant 1.000000e+00 : f32
    %332 = vector.broadcast %cst_115 : f32 to vector<48x32xf32>
    %333 = arith.addf %332, %331 : vector<48x32xf32>
    %334 = arith.divf %332, %333 : vector<48x32xf32>
    %335 = vector.extract_strided_slice %314 {offsets = [0, 64], sizes = [48, 32], strides = [1, 1]} : vector<48x96xf32> to vector<48x32xf32>
    %336 = vector.extract_strided_slice %318 {offsets = [0, 64], sizes = [48, 32], strides = [1, 1]} : vector<48x96xf32> to vector<48x32xf32>
    %337 = arith.mulf %326, %336 : vector<48x32xf32>
    %338 = arith.addf %335, %337 : vector<48x32xf32>
    %339 = math.tanh %338 : vector<48x32xf32>
    %cst_116 = arith.constant 1.000000e+00 : f32
    %340 = vector.broadcast %cst_116 : f32 to vector<48x32xf32>
    %341 = arith.subf %340, %334 : vector<48x32xf32>
    %342 = arith.mulf %341, %339 : vector<48x32xf32>
    %343 = arith.mulf %334, %308 : vector<48x32xf32>
    %344 = arith.addf %342, %343 : vector<48x32xf32>
    %cst_117 = arith.constant dense<0.000000e+00> : vector<48x96xf32>
    %345 = tpu.matmul %344, %9, %cst_117 {dimension_numbers = #tpu.dot_dimension_numbers<[1], [0], [0], [1], [0, 0, 1, 1], [], []>} : vector<48x32xf32>, vector<32x96xf32>, vector<48x96xf32> -> vector<48x96xf32>
    %346 = arith.mulf %345, %13 : vector<48x96xf32>
    %cst_118 = arith.constant dense<0.000000e+00> : vector<48x32xf32>
    %347 = tpu.matmul %346, %14, %cst_118 {dimension_numbers = #tpu.dot_dimension_numbers<[1], [0], [0], [1], [0, 0, 1, 1], [], []>} : vector<48x96xf32>, vector<96x32xf32>, vector<48x32xf32> -> vector<48x32xf32>
    %348 = arith.addf %347, %15 : vector<48x32xf32>
    %cst_119 = arith.constant 0.000000e+00 : f32
    %349 = vector.broadcast %cst_119 : f32 to vector<48x32xf32>
    %350 = arith.maximumf %348, %349 : vector<48x32xf32>
    %351 = vector.extract_strided_slice %350 {offsets = [0, 0], sizes = [8, 32], strides = [1, 1]} : vector<48x32xf32> to vector<8x32xf32>
    %352 = vector.extract_strided_slice %350 {offsets = [8, 0], sizes = [8, 32], strides = [1, 1]} : vector<48x32xf32> to vector<8x32xf32>
    %353 = arith.maximumf %351, %352 : vector<8x32xf32>
    %354 = vector.extract_strided_slice %350 {offsets = [16, 0], sizes = [8, 32], strides = [1, 1]} : vector<48x32xf32> to vector<8x32xf32>
    %355 = arith.maximumf %353, %354 : vector<8x32xf32>
    %356 = vector.extract_strided_slice %350 {offsets = [24, 0], sizes = [16, 32], strides = [1, 1]} : vector<48x32xf32> to vector<16x32xf32>
    %357 = vector.extract_strided_slice %356 {offsets = [0, 0], sizes = [8, 32], strides = [1, 1]} : vector<16x32xf32> to vector<8x32xf32>
    %358 = vector.extract_strided_slice %356 {offsets = [8, 0], sizes = [8, 32], strides = [1, 1]} : vector<16x32xf32> to vector<8x32xf32>
    %359 = arith.maximumf %357, %358 : vector<8x32xf32>
    %360 = vector.extract_strided_slice %350 {offsets = [40, 0], sizes = [8, 32], strides = [1, 1]} : vector<48x32xf32> to vector<8x32xf32>
    %cst_120 = arith.constant dense<0.000000e+00> : vector<16x32xf32>
    %361 = tpu.matmul %356, %22, %cst_120 {dimension_numbers = #tpu.dot_dimension_numbers<[1], [0], [0], [1], [0, 0, 1, 1], [], []>} : vector<16x32xf32>, vector<32x32xf32>, vector<16x32xf32> -> vector<16x32xf32>
    %362 = arith.addf %361, %23 : vector<16x32xf32>
    %cst_121 = arith.constant 0.000000e+00 : f32
    %363 = vector.broadcast %cst_121 : f32 to vector<16x32xf32>
    %364 = arith.maximumf %362, %363 : vector<16x32xf32>
    %cst_122 = arith.constant dense<0.000000e+00> : vector<16x3xf32>
    %365 = tpu.matmul %364, %24, %cst_122 {dimension_numbers = #tpu.dot_dimension_numbers<[1], [0], [0], [1], [0, 0, 1, 1], [], []>} : vector<16x32xf32>, vector<32x3xf32>, vector<16x3xf32> -> vector<16x3xf32>
    %366 = arith.addf %365, %25 : vector<16x3xf32>
    %367 = vector.extract_strided_slice %308 {offsets = [40, 0], sizes = [8, 32], strides = [1, 1]} : vector<48x32xf32> to vector<8x32xf32>
    %368 = tpu.concatenate %355, %360, %359 in 1 : vector<8x32xf32>, vector<8x32xf32>, vector<8x32xf32> -> vector<8x96xf32>
    %cst_123 = arith.constant dense<0.000000e+00> : vector<8x96xf32>
    %369 = tpu.matmul %368, %16, %cst_123 {dimension_numbers = #tpu.dot_dimension_numbers<[1], [0], [0], [1], [0, 0, 1, 1], [], []>} : vector<8x96xf32>, vector<96x96xf32>, vector<8x96xf32> -> vector<8x96xf32>
    %370 = arith.addf %369, %18 : vector<8x96xf32>
    %cst_124 = arith.constant dense<0.000000e+00> : vector<8x96xf32>
    %371 = tpu.matmul %367, %17, %cst_124 {dimension_numbers = #tpu.dot_dimension_numbers<[1], [0], [0], [1], [0, 0, 1, 1], [], []>} : vector<8x32xf32>, vector<32x96xf32>, vector<8x96xf32> -> vector<8x96xf32>
    %372 = arith.addf %371, %19 : vector<8x96xf32>
    %373 = vector.extract_strided_slice %370 {offsets = [0, 0], sizes = [8, 32], strides = [1, 1]} : vector<8x96xf32> to vector<8x32xf32>
    %374 = vector.extract_strided_slice %372 {offsets = [0, 0], sizes = [8, 32], strides = [1, 1]} : vector<8x96xf32> to vector<8x32xf32>
    %375 = arith.addf %373, %374 : vector<8x32xf32>
    %376 = arith.negf %375 : vector<8x32xf32>
    %377 = math.exp %376 : vector<8x32xf32>
    %cst_125 = arith.constant 1.000000e+00 : f32
    %378 = vector.broadcast %cst_125 : f32 to vector<8x32xf32>
    %379 = arith.addf %378, %377 : vector<8x32xf32>
    %380 = arith.divf %378, %379 : vector<8x32xf32>
    %381 = vector.extract_strided_slice %370 {offsets = [0, 32], sizes = [8, 32], strides = [1, 1]} : vector<8x96xf32> to vector<8x32xf32>
    %382 = vector.extract_strided_slice %372 {offsets = [0, 32], sizes = [8, 32], strides = [1, 1]} : vector<8x96xf32> to vector<8x32xf32>
    %383 = arith.addf %381, %382 : vector<8x32xf32>
    %384 = arith.negf %383 : vector<8x32xf32>
    %385 = math.exp %384 : vector<8x32xf32>
    %cst_126 = arith.constant 1.000000e+00 : f32
    %386 = vector.broadcast %cst_126 : f32 to vector<8x32xf32>
    %387 = arith.addf %386, %385 : vector<8x32xf32>
    %388 = arith.divf %386, %387 : vector<8x32xf32>
    %389 = vector.extract_strided_slice %370 {offsets = [0, 64], sizes = [8, 32], strides = [1, 1]} : vector<8x96xf32> to vector<8x32xf32>
    %390 = vector.extract_strided_slice %372 {offsets = [0, 64], sizes = [8, 32], strides = [1, 1]} : vector<8x96xf32> to vector<8x32xf32>
    %391 = arith.mulf %380, %390 : vector<8x32xf32>
    %392 = arith.addf %389, %391 : vector<8x32xf32>
    %393 = math.tanh %392 : vector<8x32xf32>
    %cst_127 = arith.constant 1.000000e+00 : f32
    %394 = vector.broadcast %cst_127 : f32 to vector<8x32xf32>
    %395 = arith.subf %394, %388 : vector<8x32xf32>
    %396 = arith.mulf %395, %393 : vector<8x32xf32>
    %397 = arith.mulf %388, %367 : vector<8x32xf32>
    %398 = arith.addf %396, %397 : vector<8x32xf32>
    %cst_128 = arith.constant dense<0.000000e+00> : vector<8x32xf32>
    %399 = tpu.matmul %398, %20, %cst_128 {dimension_numbers = #tpu.dot_dimension_numbers<[1], [0], [0], [1], [0, 0, 1, 1], [], []>} : vector<8x32xf32>, vector<32x32xf32>, vector<8x32xf32> -> vector<8x32xf32>
    %400 = arith.addf %399, %21 : vector<8x32xf32>
    %cst_129 = arith.constant 0.000000e+00 : f32
    %401 = vector.broadcast %cst_129 : f32 to vector<8x32xf32>
    %402 = arith.maximumf %400, %401 : vector<8x32xf32>
    %cst_130 = arith.constant dense<0.000000e+00> : vector<8x64xf32>
    %403 = tpu.matmul %402, %26, %cst_130 {dimension_numbers = #tpu.dot_dimension_numbers<[1], [0], [0], [1], [0, 0, 1, 1], [], []>} : vector<8x32xf32>, vector<32x64xf32>, vector<8x64xf32> -> vector<8x64xf32>
    %404 = arith.addf %403, %27 : vector<8x64xf32>
    %cst_131 = arith.constant 0.000000e+00 : f32
    %405 = vector.broadcast %cst_131 : f32 to vector<8x64xf32>
    %406 = arith.maximumf %404, %405 : vector<8x64xf32>
    %cst_132 = arith.constant dense<0.000000e+00> : vector<8x10xf32>
    %407 = tpu.matmul %406, %28, %cst_132 {dimension_numbers = #tpu.dot_dimension_numbers<[1], [0], [0], [1], [0, 0, 1, 1], [], []>} : vector<8x64xf32>, vector<64x10xf32>, vector<8x10xf32> -> vector<8x10xf32>
    %408 = arith.addf %407, %29 : vector<8x10xf32>
    %409 = vector.extract_strided_slice %408 {offsets = [0, 0], sizes = [8, 2], strides = [1, 1]} : vector<8x10xf32> to vector<8x2xf32>
    %410 = math.tanh %409 : vector<8x2xf32>
    %cst_133 = arith.constant 1.000000e-01 : f32
    %411 = vector.broadcast %cst_133 : f32 to vector<8x2xf32>
    %412 = arith.mulf %410, %411 : vector<8x2xf32>
    %cst_134 = arith.constant dense<0.000000e+00> : vector<8x2xf32>
    %413 = tpu.matmul %34, %296, %cst_134 {dimension_numbers = #tpu.dot_dimension_numbers<[1], [0], [0], [1], [0, 0, 1, 1], [], []>} : vector<8x12xf32>, vector<12x2xf32>, vector<8x2xf32> -> vector<8x2xf32>
    %414 = arith.addf %413, %412 : vector<8x2xf32>
    %415 = arith.subf %414, %4 : vector<8x2xf32>
    %416 = arith.mulf %415, %415 : vector<8x2xf32>
    %417 = arith.addf %303, %416 : vector<8x2xf32>
    %418 = arith.mulf %412, %412 : vector<8x2xf32>
    %cst_135 = arith.constant 1.000000e-01 : f32
    %419 = vector.broadcast %cst_135 : f32 to vector<8x2xf32>
    %420 = arith.mulf %419, %418 : vector<8x2xf32>
    %421 = arith.addf %417, %420 : vector<8x2xf32>
    %422 = arith.subf %366, %37 : vector<16x3xf32>
    %423 = arith.mulf %422, %422 : vector<16x3xf32>
    %424 = arith.addf %306, %423 : vector<16x3xf32>
    %425 = vector.shape_cast %421 : vector<8x2xf32> to vector<1x8x2xf32>
    %cst_136 = arith.constant dense<0.000000e+00> : vector<1xf32>
    %426 = vector.multi_reduction <add>, %425, %cst_136 [1, 2] : vector<1x8x2xf32> to vector<1xf32>
    %427 = vector.shape_cast %426 : vector<1xf32> to vector<1x1x1xf32>
    %428 = vector.extract %427[0, 0, 0] : f32 from vector<1x1x1xf32>
    %429 = vector.shape_cast %424 : vector<16x3xf32> to vector<1x16x3xf32>
    %cst_137 = arith.constant dense<0.000000e+00> : vector<1xf32>
    %430 = vector.multi_reduction <add>, %429, %cst_137 [1, 2] : vector<1x16x3xf32> to vector<1xf32>
    %431 = vector.shape_cast %430 : vector<1xf32> to vector<1x1x1xf32>
    %432 = vector.extract %431[0, 0, 0] : f32 from vector<1x1x1xf32>
    %cst_138 = arith.constant 0.00999999977 : f32
    %433 = arith.mulf %cst_138, %432 : f32
    %434 = arith.addf %428, %433 : f32
    %cst_139 = arith.constant 1.000000e+00 : f32
    %435 = vector.broadcast %cst_139 : f32 to vector<1x1xf32>
    %436 = vector.broadcast %434 : f32 to vector<1x1xf32>
    %437 = arith.mulf %436, %435 : vector<1x1xf32>
    %c0_140 = arith.constant 0 : index
    %c0_141 = arith.constant 0 : index
    %438 = vector.load %arg2[%c0_140, %c0_141] : memref<1x1xf32, #tpu.memory_space<vmem>>, vector<1x1xf32>
    tpu.vector_store %arg2[%c0_140, %c0_141], %437 {strides = array<i32>} : memref<1x1xf32, #tpu.memory_space<vmem>>, vector<1x1xf32>,
    return
  }
}

</mosaic_0001>

<llo_original>
// kernel: agent_module_forward.1
$region0: #{agent_module_forward.1}
  #allocation0 [shape = 'u32[]', space=smem, size = 0x4, offset = 0x4, fixed_abs, tag = 'smem constant byte address 0x4 - core index']
  #allocation1 [shape = 'u32[144,128]{1,0:T(1,128)}', space=vmem, size = 0x12000, scoped, tag = 'internal scratch']
  %s0 = inlined_call_operand.vmem [shape: f32[1056,96], index: 0, kind: input, shape index: {}]
  %s1 = inlined_call_operand.vmem [shape: f32[56,8], index: 1, kind: input, shape index: {}]
  %s2 = inlined_call_operand.hbm [shape: f32[1,1], index: 2, kind: output, shape index: {}]
  %s3 = sld [smem:[#allocation0]]
  $region18: #{agent_module_forward.1} parent=0
    _
  %s5 = ssub.s32 1, %s3
  %s6 = scalar_select 0, %s5, %s3
  $region1: #{agent_module_forward.1} parent=0
    #allocation2 [shape = 'u8[512]{0}', space=vmem, size = 0x400, scoped, tag = 'output window, operand 0, single buffered']
    #allocation3 [shape = 's32[1]{0}', space=sflag, size = 0x4, scoped, tag = 'scoped memory for agent_module_forward.1']
    %7 = vsyncpa [#allocation3], 0
    // Predicated region
    $region2: #{agent_module_forward.1} parent=1 // pred_check
      _
    $region3: #{agent_module_forward.1} parent=1 // pred_check_branch
      %9 = sbr.rel (0) target = $region5
    $region4: #{agent_module_forward.1} parent=1 // pred_region
      _
    $region5: #{agent_module_forward.1} parent=1 // pred_fallthru
      _
    // Predicated region
    $region6: #{agent_module_forward.1} parent=1 // pred_check
      _
    $region7: #{agent_module_forward.1} parent=1 // pred_check_branch
      %11 = sbr.rel (0) target = $region9
    $region8: #{agent_module_forward.1} parent=1 // pred_region
      _
    $region9: #{agent_module_forward.1} parent=1 // pred_fallthru
      _
    %v12 = vld [vmem:[%s1] sm:$0xff]
    %v13 = vld [vmem:[%s1 + $0x8] sm:$0xf]
    %v14 = vld [vmem:[%s1 + $0x10] sm:$0xff]
    %v15 = vld [vmem:[%s1 + $0x18] sm:$0xf]
    %v16 = vld [vmem:[%s1 + $0x20] sm:$0xff]
    %v17 = vld [vmem:[%s1 + $0x28] sm:$0xff]
    %v18 = vld [vmem:[%s1 + $0x30] sm:$0xff]
    %v19 = vld [vmem:[%s0] sm:$0x3]
    %v20 = vld [vmem:[%s0 + $0x8] sm:$0x3]
    %v21 = vld [vmem:[%s0 + $0x10] sm:$0xff]
    %v22 = vld [vmem:[%s0 + $0x18] sm:$0x7]
    %v23 = vld [vmem:[%s0 + $0x20] sm:$0xff]
    %v24 = vld [vmem:[%s0 + $0x28] sm:$0xff]
    %v25 = vld [vmem:[%s0 + $0x30] sm:$0xff]
    %v26 = vld [vmem:[%s0 + $0x38] sm:$0xff]
    %v27 = vld [vmem:[%s0 + $0x40] sm:$0xff]
    %v28 = vld [vmem:[%s0 + $0x48] sm:$0xff]
    %v29 = vld [vmem:[%s0 + $0x50] sm:$0xff]
    %v30 = vld [vmem:[%s0 + $0x58] sm:$0xff]
    %v31 = vld [vmem:[%s0 + $0x60] sm:$0xff]
    %v32 = vld [vmem:[%s0 + $0x68] sm:$0xff]
    %v33 = vld [vmem:[%s0 + $0x70] sm:$0xff]
    %v34 = vld [vmem:[%s0 + $0x78] sm:$0xff]
    %v35 = vld [vmem:[%s0 + $0x80] sm:$0xff]
    %v36 = vld [vmem:[%s0 + $0x88] sm:$0xff]
    %v37 = vld [vmem:[%s0 + $0x90] sm:$0xff]
    %v38 = vld [vmem:[%s0 + $0x98] sm:$0xff]
    %v39 = vld [vmem:[%s0 + $0xa0] sm:$0xff]
    %v40 = vld [vmem:[%s0 + $0xa8] sm:$0xff]
    %v41 = vld [vmem:[%s0 + $0xb0] sm:$0xff]
    %v42 = vld [vmem:[%s0 + $0xb8] sm:$0xff]
    %v43 = vld [vmem:[%s0 + $0xc0] sm:$0xff]
    %v44 = vld [vmem:[%s0 + $0xc8] sm:$0xff]
    %v45 = vld [vmem:[%s0 + $0xd0] sm:$0xff]
    %v46 = vld [vmem:[%s0 + $0xd8] sm:$0xff]
    %v47 = vld [vmem:[%s0 + $0xe0] sm:$0xff]
    %v48 = vld [vmem:[%s0 + $0xe8] sm:$0xff]
    %v49 = vld [vmem:[%s0 + $0xf0] sm:$0xff]
    %v50 = vld [vmem:[%s0 + $0xf8] sm:$0xff]
    %v51 = vld [vmem:[%s0 + $0x100] sm:$0xff]
    %v52 = vld [vmem:[%s0 + $0x108] sm:$0xff]
    %v53 = vld [vmem:[%s0 + $0x110] sm:$0xff]
    %v54 = vld [vmem:[%s0 + $0x118] sm:$0xff]
    %v55 = vld [vmem:[%s0 + $0x120] sm:$0xff]
    %v56 = vld [vmem:[%s0 + $0x128] sm:$0xff]
    %v57 = vld [vmem:[%s0 + $0x130] sm:$0xff]
    %v58 = vld [vmem:[%s0 + $0x138] sm:$0xff]
    %v59 = vld [vmem:[%s0 + $0x140] sm:$0xff]
    %v60 = vld [vmem:[%s0 + $0x148] sm:$0xff]
    %v61 = vld [vmem:[%s0 + $0x150] sm:$0xff]
    %v62 = vld [vmem:[%s0 + $0x158] sm:$0xff]
    %v63 = vld [vmem:[%s0 + $0x160] sm:$0xff]
    %v64 = vld [vmem:[%s0 + $0x168] sm:$0xff]
    %v65 = vld [vmem:[%s0 + $0x170] sm:$0xff]
    %v66 = vld [vmem:[%s0 + $0x178] sm:$0xff]
    %v67 = vld [vmem:[%s0 + $0x180] sm:$0xff]
    %v68 = vld [vmem:[%s0 + $0x188] sm:$0xff]
    %v69 = vld [vmem:[%s0 + $0x190] sm:$0xff]
    %v70 = vld [vmem:[%s0 + $0x198] sm:$0xff]
    %v71 = vld [vmem:[%s0 + $0x1a0] sm:$0xff]
    %v72 = vld [vmem:[%s0 + $0x1a8] sm:$0xff]
    %v73 = vld [vmem:[%s0 + $0x1b0] sm:$0xff]
    %v74 = vld [vmem:[%s0 + $0x1b8] sm:$0xff]
    %v75 = vld [vmem:[%s0 + $0x1c0] sm:$0xff]
    %v76 = vld [vmem:[%s0 + $0x1c8] sm:$0xff]
    %v77 = vld [vmem:[%s0 + $0x1d0] sm:$0xff]
    %v78 = vld [vmem:[%s0 + $0x1d8] sm:$0xff]
    %v79 = vld [vmem:[%s0 + $0x1e0] sm:$0xff]
    %v80 = vld [vmem:[%s0 + $0x1e8] sm:$0xff]
    %v81 = vld [vmem:[%s0 + $0x1f0] sm:$0xff]
    %v82 = vld [vmem:[%s0 + $0x1f8] sm:$0xff]
    %v83 = vld [vmem:[%s0 + $0x200] sm:$0xff]
    %v84 = vld [vmem:[%s0 + $0x208] sm:$0xff]
    %v85 = vld [vmem:[%s0 + $0x210] sm:$0xff]
    %v86 = vld [vmem:[%s0 + $0x218] sm:$0xff]
    %v87 = vld [vmem:[%s0 + $0x220] sm:$0xff]
    %v88 = vld [vmem:[%s0 + $0x228] sm:$0xff]
    %v89 = vld [vmem:[%s0 + $0x230] sm:$0xff]
    %v90 = vld [vmem:[%s0 + $0x238] sm:$0xff]
    %v91 = vld [vmem:[%s0 + $0x240] sm:$0xff]
    %v92 = vld [vmem:[%s0 + $0x248] sm:$0xff]
    %v93 = vld [vmem:[%s0 + $0x250] sm:$0xff]
    %v94 = vld [vmem:[%s0 + $0x258] sm:$0xff]
    %v95 = vld [vmem:[%s0 + $0x260] sm:$0xff]
    %v96 = vld [vmem:[%s0 + $0x268] sm:$0xff]
    %v97 = vld [vmem:[%s0 + $0x270] sm:$0xff]
    %v98 = vld [vmem:[%s0 + $0x278] sm:$0xff]
    %v99 = vld [vmem:[%s0 + $0x280] sm:$0xff]
    %v100 = vld [vmem:[%s0 + $0x288] sm:$0xff]
    %v101 = vld [vmem:[%s0 + $0x290] sm:$0xff]
    %v102 = vld [vmem:[%s0 + $0x298] sm:$0xff]
    %v103 = vld [vmem:[%s0 + $0x2a0] sm:$0xff]
    %v104 = vld [vmem:[%s0 + $0x2a8] sm:$0xff]
    %v105 = vld [vmem:[%s0 + $0x2b0] sm:$0xff]
    %v106 = vld [vmem:[%s0 + $0x2b8] sm:$0xff]
    %v107 = vld [vmem:[%s0 + $0x2c0] sm:$0xff]
    %v108 = vld [vmem:[%s0 + $0x2c8] sm:$0xff]
    %v109 = vld [vmem:[%s0 + $0x2d0] sm:$0xff]
    %v110 = vld [vmem:[%s0 + $0x2d8] sm:$0xff]
    %v111 = vld [vmem:[%s0 + $0x2e0] sm:$0xff]
    %v112 = vld [vmem:[%s0 + $0x2e8] sm:$0xff]
    %v113 = vld [vmem:[%s0 + $0x2f0] sm:$0xff]
    %v114 = vld [vmem:[%s0 + $0x2f8] sm:$0xff]
    %v115 = vld [vmem:[%s0 + $0x300] sm:$0xff]
    %v116 = vld [vmem:[%s0 + $0x308] sm:$0xff]
    %v117 = vld [vmem:[%s0 + $0x310] sm:$0xff]
    %v118 = vld [vmem:[%s0 + $0x318] sm:$0xff]
    %v119 = vld [vmem:[%s0 + $0x320] sm:$0xff]
    %v120 = vld [vmem:[%s0 + $0x328] sm:$0xff]
    %v121 = vld [vmem:[%s0 + $0x330] sm:$0xff]
    %v122 = vld [vmem:[%s0 + $0x338] sm:$0xff]
    %v123 = vld [vmem:[%s0 + $0x340] sm:$0xff]
    %v124 = vld [vmem:[%s0 + $0x348] sm:$0xff]
    %v125 = vld [vmem:[%s0 + $0x350] sm:$0xff]
    %v126 = vld [vmem:[%s0 + $0x358] sm:$0xff]
    %v127 = vld [vmem:[%s0 + $0x360] sm:$0xff]
    %v128 = vld [vmem:[%s0 + $0x368] sm:$0xff]
    %v129 = vld [vmem:[%s0 + $0x370] sm:$0xff]
    %v130 = vld [vmem:[%s0 + $0x378] sm:$0xff]
    %v131 = vld [vmem:[%s0 + $0x380] sm:$0xff]
    %v132 = vld [vmem:[%s0 + $0x388] sm:$0xff]
    %v133 = vld [vmem:[%s0 + $0x390] sm:$0xff]
    %v134 = vld [vmem:[%s0 + $0x398] sm:$0xff]
    %v135 = vld [vmem:[%s0 + $0x3a0] sm:$0xff]
    %v136 = vld [vmem:[%s0 + $0x3a8] sm:$0xff]
    %v137 = vld [vmem:[%s0 + $0x3b0] sm:$0xff]
    %v138 = vld [vmem:[%s0 + $0x3b8] sm:$0xff]
    %v139 = vld [vmem:[%s0 + $0x3c0] sm:$0xff]
    %v140 = vld [vmem:[%s0 + $0x3c8] sm:$0xff]
    %v141 = vld [vmem:[%s0 + $0x3d0] sm:$0xff]
    %v142 = vld [vmem:[%s0 + $0x3d8] sm:$0xff]
    %v143 = vld [vmem:[%s0 + $0x3e0] sm:$0xff]
    %v144 = vld [vmem:[%s0 + $0x3e8] sm:$0xff]
    %v145 = vld [vmem:[%s0 + $0x3f0] sm:$0xff]
    %v146 = vld [vmem:[%s0 + $0x3f8] sm:$0xff]
    %v147 = vld [vmem:[%s0 + $0x400] sm:$0xff]
    %v148 = vld [vmem:[%s0 + $0x408] sm:$0xff]
    %v149 = vld [vmem:[%s0 + $0x410] sm:$0xff]
    %v150 = vld [vmem:[%s0 + $0x418] sm:$0xf]
    %vm151 = vcmask 64512
    %v153 = vsel %vm151, %v139, 0
    %v156 = vsel %vm151, %v140, 0
    %158 = vmatprep.subr.mxu0 0.0
    %159 = vmatpush1.msra.mxu0 %v17
    %160 = vmatprep.subr.mxu0 0.0
    %161 = vmatpush1.msra.mxu0 0.0
    %162 = vmatprep.subr.mxu0 0.0
    %163 = vmatpush1.msra.mxu0 0.0
    %164 = vmatprep.subr.mxu0 0.0
    %165 = vmatpush1.msra.mxu0 0.0
    %166 = vmatprep.subr.mxu0 0.0
    %167 = vmatpush1.msra.mxu0 0.0
    %168 = vmatprep.subr.mxu0 0.0
    %169 = vmatpush1.msra.mxu0 0.0
    %170 = vmatprep.subr.mxu0 0.0
    %171 = vmatpush1.msra.mxu0 0.0
    %172 = vmatprep.subr.mxu0 0.0
    %173 = vmatpush1.msra.mxu0 0.0
    %174 = vmatprep.subr.mxu0 0.0
    %175 = vmatpush1.msra.mxu0 0.0
    %176 = vmatprep.subr.mxu0 0.0
    %177 = vmatpush1.msra.mxu0 0.0
    %178 = vmatprep.subr.mxu0 0.0
    %179 = vmatpush1.msra.mxu0 0.0
    %180 = vmatprep.subr.mxu0 0.0
    %181 = vmatpush1.msra.mxu0 0.0
    %182 = vmatprep.subr.mxu0 0.0
    %183 = vmatpush1.msra.mxu0 0.0
    %184 = vmatprep.subr.mxu0 0.0
    %185 = vmatpush1.msra.mxu0 0.0
    %186 = vmatprep.subr.mxu0 0.0
    %187 = vmatpush1.msra.mxu0 0.0
    %188 = vmatprep.subr.mxu0 0.0
    %189 = vmatpush1.msra.mxu0 0.0
    %190 = vmatprep.subr.mxu0 0.0
    %191 = vmatpush1.msra.mxu0 0.0
    %192 = vmatprep.subr.mxu0 0.0
    %193 = vmatpush1.msra.mxu0 0.0
    %194 = vmatprep.subr.mxu0 0.0
    %195 = vmatpush1.msra.mxu0 0.0
    %196 = vmatprep.subr.mxu0 0.0
    %197 = vmatpush1.msra.mxu0 0.0
    %198 = vmatprep.subr.mxu0 0.0
    %199 = vmatpush1.msra.mxu0 0.0
    %200 = vmatprep.subr.mxu0 0.0
    %201 = vmatpush1.msra.mxu0 0.0
    %202 = vmatprep.subr.mxu0 0.0
    %203 = vmatpush1.msra.mxu0 0.0
    %204 = vmatprep.subr.mxu0 0.0
    %205 = vmatpush1.msra.mxu0 0.0
    %206 = vmatprep.subr.mxu0 0.0
    %207 = vmatpush1.msra.mxu0 0.0
    %208 = vmatprep.subr.mxu0 0.0
    %209 = vmatpush1.msra.mxu0 0.0
    %210 = vmatprep.subr.mxu0 0.0
    %211 = vmatpush1.msra.mxu0 0.0
    %212 = vmatprep.subr.mxu0 0.0
    %213 = vmatpush1.msra.mxu0 0.0
    %214 = vmatprep.subr.mxu0 0.0
    %215 = vmatpush1.msra.mxu0 0.0
    %216 = vmatprep.subr.mxu0 0.0
    %217 = vmatpush1.msra.mxu0 0.0
    %218 = vmatprep.subr.mxu0 0.0
    %219 = vmatpush1.msra.mxu0 0.0
    %220 = vmatprep.subr.mxu0 0.0
    %221 = vmatpush1.msra.mxu0 0.0
    %222 = vmatprep.mubr.f32.mxu0 0.0
    %223 = vmatmul.mubr.f32.gmra.mrb[0].mxu0 %v153
    %v224 = vpop.f32.mrb[0].mxu0
    %v225 = vadd.f32 0.0, %v224
    %v226 = vpop.f32.mrb[0].mxu0
    %227 = vmatprep.mubr.f32.mxu0 0.0
    %228 = vmatmul.mubr.f32.gmra.mrb[0].mxu0 %v156
    %v229 = vpop.f32.mrb[0].mxu0
    %v230 = vadd.f32 0.0, %v229
    %v231 = vpop.f32.mrb[0].mxu0
    %232 = vdwg.mxu0
    %vm233 = vcmask 15360
    %v235 = vsel %vm233, %v14, 0
    %v238 = vsel %vm233, %v15, 0
    %vm240 = vcmask 1041408
    %v242 = vsel %vm240, %v20, 0
    %244 = vmatprep.subr.mxu0 0.0
    %245 = vmatpush1.msra.mxu0 %v242
    %246 = vmatprep.subr.mxu0 0.0
    %247 = vmatpush1.msra.mxu0 0.0
    %248 = vmatprep.subr.mxu0 0.0
    %249 = vmatpush1.msra.mxu0 0.0
    %250 = vmatprep.subr.mxu0 0.0
    %251 = vmatpush1.msra.mxu0 0.0
    %252 = vmatprep.subr.mxu0 0.0
    %253 = vmatpush1.msra.mxu0 0.0
    %254 = vmatprep.subr.mxu0 0.0
    %255 = vmatpush1.msra.mxu0 0.0
    %256 = vmatprep.subr.mxu0 0.0
    %257 = vmatpush1.msra.mxu0 0.0
    %258 = vmatprep.subr.mxu0 0.0
    %259 = vmatpush1.msra.mxu0 0.0
    %260 = vmatprep.subr.mxu0 0.0
    %261 = vmatpush1.msra.mxu0 0.0
    %262 = vmatprep.subr.mxu0 0.0
    %263 = vmatpush1.msra.mxu0 0.0
    %264 = vmatprep.subr.mxu0 0.0
    %265 = vmatpush1.msra.mxu0 0.0
    %266 = vmatprep.subr.mxu0 0.0
    %267 = vmatpush1.msra.mxu0 0.0
    %268 = vmatprep.subr.mxu0 0.0
    %269 = vmatpush1.msra.mxu0 0.0
    %270 = vmatprep.subr.mxu0 0.0
    %271 = vmatpush1.msra.mxu0 0.0
    %272 = vmatprep.subr.mxu0 0.0
    %273 = vmatpush1.msra.mxu0 0.0
    %274 = vmatprep.subr.mxu0 0.0
    %275 = vmatpush1.msra.mxu0 0.0
    %276 = vmatprep.subr.mxu0 0.0
    %277 = vmatpush1.msra.mxu0 0.0
    %278 = vmatprep.subr.mxu0 0.0
    %279 = vmatpush1.msra.mxu0 0.0
    %280 = vmatprep.subr.mxu0 0.0
    %281 = vmatpush1.msra.mxu0 0.0
    %282 = vmatprep.subr.mxu0 0.0
    %283 = vmatpush1.msra.mxu0 0.0
    %284 = vmatprep.subr.mxu0 0.0
    %285 = vmatpush1.msra.mxu0 0.0
    %286 = vmatprep.subr.mxu0 0.0
    %287 = vmatpush1.msra.mxu0 0.0
    %288 = vmatprep.subr.mxu0 0.0
    %289 = vmatpush1.msra.mxu0 0.0
    %290 = vmatprep.subr.mxu0 0.0
    %291 = vmatpush1.msra.mxu0 0.0
    %292 = vmatprep.subr.mxu0 0.0
    %293 = vmatpush1.msra.mxu0 0.0
    %294 = vmatprep.subr.mxu0 0.0
    %295 = vmatpush1.msra.mxu0 0.0
    %296 = vmatprep.subr.mxu0 0.0
    %297 = vmatpush1.msra.mxu0 0.0
    %298 = vmatprep.subr.mxu0 0.0
    %299 = vmatpush1.msra.mxu0 0.0
    %300 = vmatprep.subr.mxu0 0.0
    %301 = vmatpush1.msra.mxu0 0.0
    %302 = vmatprep.subr.mxu0 0.0
    %303 = vmatpush1.msra.mxu0 0.0
    %304 = vmatprep.subr.mxu0 0.0
    %305 = vmatpush1.msra.mxu0 0.0
    %306 = vmatprep.subr.mxu0 0.0
    %307 = vmatpush1.msra.mxu0 0.0
    %308 = vmatprep.mubr.f32.mxu0 0.0
    %309 = vmatmul.mubr.f32.gmra.mrb[0].mxu0 %v235
    %v310 = vpop.f32.mrb[0].mxu0
    %v311 = vadd.f32 0.0, %v310
    %v312 = vpop.f32.mrb[0].mxu0
    %313 = vmatprep.mubr.f32.mxu0 0.0
    %314 = vmatmul.mubr.f32.gmra.mrb[0].mxu0 %v238
    %v315 = vpop.f32.mrb[0].mxu0
    %v316 = vadd.f32 0.0, %v315
    %v317 = vpop.f32.mrb[0].mxu0
    %318 = vdwg.mxu0
    %vm319 = vcmask 97280
    %v321 = vsel %vm319, %v130, 0
    %v324 = vsel %vm319, %v131, 0
    %v327 = vsel %vm319, %v132, 0
    %v330 = vsel %vm319, %v133, 0
    %v333 = vsel %vm319, %v134, 0
    %v336 = vsel %vm319, %v135, 0
    %vm338 = vcmask 1043456
    %v340 = vsel %vm338, %v316, 0
    %342 = vmatprep.subr.mxu0 0.0
    %343 = vmatpush1.msra.mxu0 %v311
    %344 = vmatprep.subr.mxu0 0.0
    %345 = vmatpush1.msra.mxu0 %v340
    %346 = vmatprep.subr.mxu0 0.0
    %347 = vmatpush1.msra.mxu0 0.0
    %348 = vmatprep.subr.mxu0 0.0
    %349 = vmatpush1.msra.mxu0 0.0
    %350 = vmatprep.subr.mxu0 0.0
    %351 = vmatpush1.msra.mxu0 0.0
    %352 = vmatprep.subr.mxu0 0.0
    %353 = vmatpush1.msra.mxu0 0.0
    %354 = vmatprep.subr.mxu0 0.0
    %355 = vmatpush1.msra.mxu0 0.0
    %356 = vmatprep.subr.mxu0 0.0
    %357 = vmatpush1.msra.mxu0 0.0
    %358 = vmatprep.subr.mxu0 0.0
    %359 = vmatpush1.msra.mxu0 0.0
    %360 = vmatprep.subr.mxu0 0.0
    %361 = vmatpush1.msra.mxu0 0.0
    %362 = vmatprep.subr.mxu0 0.0
    %363 = vmatpush1.msra.mxu0 0.0
    %364 = vmatprep.subr.mxu0 0.0
    %365 = vmatpush1.msra.mxu0 0.0
    %366 = vmatprep.subr.mxu0 0.0
    %367 = vmatpush1.msra.mxu0 0.0
    %368 = vmatprep.subr.mxu0 0.0
    %369 = vmatpush1.msra.mxu0 0.0
    %370 = vmatprep.subr.mxu0 0.0
    %371 = vmatpush1.msra.mxu0 0.0
    %372 = vmatprep.subr.mxu0 0.0
    %373 = vmatpush1.msra.mxu0 0.0
    %374 = vmatprep.subr.mxu0 0.0
    %375 = vmatpush1.msra.mxu0 0.0
    %376 = vmatprep.subr.mxu0 0.0
    %377 = vmatpush1.msra.mxu0 0.0
    %378 = vmatprep.subr.mxu0 0.0
    %379 = vmatpush1.msra.mxu0 0.0
    %380 = vmatprep.subr.mxu0 0.0
    %381 = vmatpush1.msra.mxu0 0.0
    %382 = vmatprep.subr.mxu0 0.0
    %383 = vmatpush1.msra.mxu0 0.0
    %384 = vmatprep.subr.mxu0 0.0
    %385 = vmatpush1.msra.mxu0 0.0
    %386 = vmatprep.subr.mxu0 0.0
    %387 = vmatpush1.msra.mxu0 0.0
    %388 = vmatprep.subr.mxu0 0.0
    %389 = vmatpush1.msra.mxu0 0.0
    %390 = vmatprep.subr.mxu0 0.0
    %391 = vmatpush1.msra.mxu0 0.0
    %392 = vmatprep.subr.mxu0 0.0
    %393 = vmatpush1.msra.mxu0 0.0
    %394 = vmatprep.subr.mxu0 0.0
    %395 = vmatpush1.msra.mxu0 0.0
    %396 = vmatprep.subr.mxu0 0.0
    %397 = vmatpush1.msra.mxu0 0.0
    %398 = vmatprep.subr.mxu0 0.0
    %399 = vmatpush1.msra.mxu0 0.0
    %400 = vmatprep.subr.mxu0 0.0
    %401 = vmatpush1.msra.mxu0 0.0
    %402 = vmatprep.subr.mxu0 0.0
    %403 = vmatpush1.msra.mxu0 0.0
    %404 = vmatprep.subr.mxu0 0.0
    %405 = vmatpush1.msra.mxu0 0.0
    %406 = vmatprep.mubr.f32.mxu0 0.0
    %407 = vmatmul.mubr.f32.gmra.mrb[0].mxu0 %v321
    %v408 = vpop.f32.mrb[0].mxu0
    %v409 = vadd.f32 0.0, %v408
    %v410 = vpop.f32.mrb[0].mxu0
    %411 = vmatprep.mubr.f32.mxu0 0.0
    %412 = vmatmul.mubr.f32.gmra.mrb[0].mxu0 %v324
    %v413 = vpop.f32.mrb[0].mxu0
    %v414 = vadd.f32 0.0, %v413
    %v415 = vpop.f32.mrb[0].mxu0
    %416 = vmatprep.mubr.f32.mxu0 0.0
    %417 = vmatmul.mubr.f32.gmra.mrb[0].mxu0 %v327
    %v418 = vpop.f32.mrb[0].mxu0
    %v419 = vadd.f32 0.0, %v418
    %v420 = vpop.f32.mrb[0].mxu0
    %421 = vmatprep.mubr.f32.mxu0 0.0
    %422 = vmatmul.mubr.f32.gmra.mrb[0].mxu0 %v330
    %v423 = vpop.f32.mrb[0].mxu0
    %v424 = vadd.f32 0.0, %v423
    %v425 = vpop.f32.mrb[0].mxu0
    %426 = vmatprep.mubr.f32.mxu0 0.0
    %427 = vmatmul.mubr.f32.gmra.mrb[0].mxu0 %v333
    %v428 = vpop.f32.mrb[0].mxu0
    %v429 = vadd.f32 0.0, %v428
    %v430 = vpop.f32.mrb[0].mxu0
    %431 = vmatprep.mubr.f32.mxu0 0.0
    %432 = vmatmul.mubr.f32.gmra.mrb[0].mxu0 %v336
    %v433 = vpop.f32.mrb[0].mxu0
    %v434 = vadd.f32 0.0, %v433
    %v435 = vpop.f32.mrb[0].mxu0
    %436 = vdwg.mxu0
    %v437 = vadd.f32 %v39, %v409
    %v438 = vadd.f32 %v40, %v414
    %v439 = vadd.f32 %v41, %v419
    %v440 = vadd.f32 %v42, %v424
    %v441 = vadd.f32 %v43, %v429
    %v442 = vadd.f32 %v44, %v434
    %vm443 = vcmask 23552
    %v445 = vsel %vm443, %v17, 0
    %vm447 = vcmask 1042432
    %v449 = vsel %vm447, %v22, 0
    %451 = vmatprep.subr.mxu0 0.0
    %452 = vmatpush1.msra.mxu0 %v449
    %453 = vmatprep.subr.mxu0 0.0
    %454 = vmatpush1.msra.mxu0 0.0
    %455 = vmatprep.subr.mxu0 0.0
    %456 = vmatpush1.msra.mxu0 0.0
    %457 = vmatprep.subr.mxu0 0.0
    %458 = vmatpush1.msra.mxu0 0.0
    %459 = vmatprep.subr.mxu0 0.0
    %460 = vmatpush1.msra.mxu0 0.0
    %461 = vmatprep.subr.mxu0 0.0
    %462 = vmatpush1.msra.mxu0 0.0
    %463 = vmatprep.subr.mxu0 0.0
    %464 = vmatpush1.msra.mxu0 0.0
    %465 = vmatprep.subr.mxu0 0.0
    %466 = vmatpush1.msra.mxu0 0.0
    %467 = vmatprep.subr.mxu0 0.0
    %468 = vmatpush1.msra.mxu0 0.0
    %469 = vmatprep.subr.mxu0 0.0
    %470 = vmatpush1.msra.mxu0 0.0
    %471 = vmatprep.subr.mxu0 0.0
    %472 = vmatpush1.msra.mxu0 0.0
    %473 = vmatprep.subr.mxu0 0.0
    %474 = vmatpush1.msra.mxu0 0.0
    %475 = vmatprep.subr.mxu0 0.0
    %476 = vmatpush1.msra.mxu0 0.0
    %477 = vmatprep.subr.mxu0 0.0
    %478 = vmatpush1.msra.mxu0 0.0
    %479 = vmatprep.subr.mxu0 0.0
    %480 = vmatpush1.msra.mxu0 0.0
    %481 = vmatprep.subr.mxu0 0.0
    %482 = vmatpush1.msra.mxu0 0.0
    %483 = vmatprep.subr.mxu0 0.0
    %484 = vmatpush1.msra.mxu0 0.0
    %485 = vmatprep.subr.mxu0 0.0
    %486 = vmatpush1.msra.mxu0 0.0
    %487 = vmatprep.subr.mxu0 0.0
    %488 = vmatpush1.msra.mxu0 0.0
    %489 = vmatprep.subr.mxu0 0.0
    %490 = vmatpush1.msra.mxu0 0.0
    %491 = vmatprep.subr.mxu0 0.0
    %492 = vmatpush1.msra.mxu0 0.0
    %493 = vmatprep.subr.mxu0 0.0
    %494 = vmatpush1.msra.mxu0 0.0
    %495 = vmatprep.subr.mxu0 0.0
    %496 = vmatpush1.msra.mxu0 0.0
    %497 = vmatprep.subr.mxu0 0.0
    %498 = vmatpush1.msra.mxu0 0.0
    %499 = vmatprep.subr.mxu0 0.0
    %500 = vmatpush1.msra.mxu0 0.0
    %501 = vmatprep.subr.mxu0 0.0
    %502 = vmatpush1.msra.mxu0 0.0
    %503 = vmatprep.subr.mxu0 0.0
    %504 = vmatpush1.msra.mxu0 0.0
    %505 = vmatprep.subr.mxu0 0.0
    %506 = vmatpush1.msra.mxu0 0.0
    %507 = vmatprep.subr.mxu0 0.0
    %508 = vmatpush1.msra.mxu0 0.0
    %509 = vmatprep.subr.mxu0 0.0
    %510 = vmatpush1.msra.mxu0 0.0
    %511 = vmatprep.subr.mxu0 0.0
    %512 = vmatpush1.msra.mxu0 0.0
    %513 = vmatprep.subr.mxu0 0.0
    %514 = vmatpush1.msra.mxu0 0.0
    %515 = vmatprep.mubr.f32.mxu0 0.0
    %516 = vmatmul.mubr.f32.gmra.mrb[0].mxu0 %v445
    %v517 = vpop.f32.mrb[0].mxu0
    %v518 = vadd.f32 0.0, %v517
    %v519 = vpop.f32.mrb[0].mxu0
    %520 = vdwg.mxu0
    %v522 = vsel %vm151, %v142, 0
    %v525 = vsel %vm151, %v143, 0
    %v528 = vsel %vm151, %v144, 0
    %v531 = vsel %vm151, %v145, 0
    %v534 = vsel %vm151, %v146, 0
    %v537 = vsel %vm151, %v147, 0
    %539 = vmatprep.subr.mxu0 0.0
    %540 = vmatpush1.msra.mxu0 %v518
    %541 = vmatprep.subr.mxu0 0.0
    %542 = vmatpush1.msra.mxu0 0.0
    %543 = vmatprep.subr.mxu0 0.0
    %544 = vmatpush1.msra.mxu0 0.0
    %545 = vmatprep.subr.mxu0 0.0
    %546 = vmatpush1.msra.mxu0 0.0
    %547 = vmatprep.subr.mxu0 0.0
    %548 = vmatpush1.msra.mxu0 0.0
    %549 = vmatprep.subr.mxu0 0.0
    %550 = vmatpush1.msra.mxu0 0.0
    %551 = vmatprep.subr.mxu0 0.0
    %552 = vmatpush1.msra.mxu0 0.0
    %553 = vmatprep.subr.mxu0 0.0
    %554 = vmatpush1.msra.mxu0 0.0
    %555 = vmatprep.subr.mxu0 0.0
    %556 = vmatpush1.msra.mxu0 0.0
    %557 = vmatprep.subr.mxu0 0.0
    %558 = vmatpush1.msra.mxu0 0.0
    %559 = vmatprep.subr.mxu0 0.0
    %560 = vmatpush1.msra.mxu0 0.0
    %561 = vmatprep.subr.mxu0 0.0
    %562 = vmatpush1.msra.mxu0 0.0
    %563 = vmatprep.subr.mxu0 0.0
    %564 = vmatpush1.msra.mxu0 0.0
    %565 = vmatprep.subr.mxu0 0.0
    %566 = vmatpush1.msra.mxu0 0.0
    %567 = vmatprep.subr.mxu0 0.0
    %568 = vmatpush1.msra.mxu0 0.0
    %569 = vmatprep.subr.mxu0 0.0
    %570 = vmatpush1.msra.mxu0 0.0
    %571 = vmatprep.subr.mxu0 0.0
    %572 = vmatpush1.msra.mxu0 0.0
    %573 = vmatprep.subr.mxu0 0.0
    %574 = vmatpush1.msra.mxu0 0.0
    %575 = vmatprep.subr.mxu0 0.0
    %576 = vmatpush1.msra.mxu0 0.0
    %577 = vmatprep.subr.mxu0 0.0
    %578 = vmatpush1.msra.mxu0 0.0
    %579 = vmatprep.subr.mxu0 0.0
    %580 = vmatpush1.msra.mxu0 0.0
    %581 = vmatprep.subr.mxu0 0.0
    %582 = vmatpush1.msra.mxu0 0.0
    %583 = vmatprep.subr.mxu0 0.0
    %584 = vmatpush1.msra.mxu0 0.0
    %585 = vmatprep.subr.mxu0 0.0
    %586 = vmatpush1.msra.mxu0 0.0
    %587 = vmatprep.subr.mxu0 0.0
    %588 = vmatpush1.msra.mxu0 0.0
    %589 = vmatprep.subr.mxu0 0.0
    %590 = vmatpush1.msra.mxu0 0.0
    %591 = vmatprep.subr.mxu0 0.0
    %592 = vmatpush1.msra.mxu0 0.0
    %593 = vmatprep.subr.mxu0 0.0
    %594 = vmatpush1.msra.mxu0 0.0
    %595 = vmatprep.subr.mxu0 0.0
    %596 = vmatpush1.msra.mxu0 0.0
    %597 = vmatprep.subr.mxu0 0.0
    %598 = vmatpush1.msra.mxu0 0.0
    %599 = vmatprep.subr.mxu0 0.0
    %600 = vmatpush1.msra.mxu0 0.0
    %601 = vmatprep.subr.mxu0 0.0
    %602 = vmatpush1.msra.mxu0 0.0
    %603 = vmatprep.mubr.f32.mxu0 0.0
    %604 = vmatmul.mubr.f32.gmra.mrb[0].mxu0 %v522
    %v605 = vpop.f32.mrb[0].mxu0
    %v606 = vadd.f32 0.0, %v605
    %v607 = vpop.f32.mrb[0].mxu0
    %608 = vmatprep.mubr.f32.mxu0 0.0
    %609 = vmatmul.mubr.f32.gmra.mrb[0].mxu0 %v525
    %v610 = vpop.f32.mrb[0].mxu0
    %v611 = vadd.f32 0.0, %v610
    %v612 = vpop.f32.mrb[0].mxu0
    %613 = vmatprep.mubr.f32.mxu0 0.0
    %614 = vmatmul.mubr.f32.gmra.mrb[0].mxu0 %v528
    %v615 = vpop.f32.mrb[0].mxu0
    %v616 = vadd.f32 0.0, %v615
    %v617 = vpop.f32.mrb[0].mxu0
    %618 = vmatprep.mubr.f32.mxu0 0.0
    %619 = vmatmul.mubr.f32.gmra.mrb[0].mxu0 %v531
    %v620 = vpop.f32.mrb[0].mxu0
    %v621 = vadd.f32 0.0, %v620
    %v622 = vpop.f32.mrb[0].mxu0
    %623 = vmatprep.mubr.f32.mxu0 0.0
    %624 = vmatmul.mubr.f32.gmra.mrb[0].mxu0 %v534
    %v625 = vpop.f32.mrb[0].mxu0
    %v626 = vadd.f32 0.0, %v625
    %v627 = vpop.f32.mrb[0].mxu0
    %628 = vmatprep.mubr.f32.mxu0 0.0
    %629 = vmatmul.mubr.f32.gmra.mrb[0].mxu0 %v537
    %v630 = vpop.f32.mrb[0].mxu0
    %v631 = vadd.f32 0.0, %v630
    %v632 = vpop.f32.mrb[0].mxu0
    %633 = vdwg.mxu0
    %v634 = vadd.f32 %v437, %v606
    %v635 = vadd.f32 %v438, %v611
    %v636 = vadd.f32 %v439, %v616
    %v637 = vadd.f32 %v440, %v621
    %v638 = vadd.f32 %v441, %v626
    %v639 = vadd.f32 %v442, %v631
    %v641 = vsel %vm233, %v12, 0
    %v644 = vsel %vm233, %v13, 0
    %v647 = vsel %vm240, %v19, 0
    %649 = vmatprep.subr.mxu0 0.0
    %650 = vmatpush1.msra.mxu0 %v647
    %651 = vmatprep.subr.mxu0 0.0
    %652 = vmatpush1.msra.mxu0 0.0
    %653 = vmatprep.subr.mxu0 0.0
    %654 = vmatpush1.msra.mxu0 0.0
    %655 = vmatprep.subr.mxu0 0.0
    %656 = vmatpush1.msra.mxu0 0.0
    %657 = vmatprep.subr.mxu0 0.0
    %658 = vmatpush1.msra.mxu0 0.0
    %659 = vmatprep.subr.mxu0 0.0
    %660 = vmatpush1.msra.mxu0 0.0
    %661 = vmatprep.subr.mxu0 0.0
    %662 = vmatpush1.msra.mxu0 0.0
    %663 = vmatprep.subr.mxu0 0.0
    %664 = vmatpush1.msra.mxu0 0.0
    %665 = vmatprep.subr.mxu0 0.0
    %666 = vmatpush1.msra.mxu0 0.0
    %667 = vmatprep.subr.mxu0 0.0
    %668 = vmatpush1.msra.mxu0 0.0
    %669 = vmatprep.subr.mxu0 0.0
    %670 = vmatpush1.msra.mxu0 0.0
    %671 = vmatprep.subr.mxu0 0.0
    %672 = vmatpush1.msra.mxu0 0.0
    %673 = vmatprep.subr.mxu0 0.0
    %674 = vmatpush1.msra.mxu0 0.0
    %675 = vmatprep.subr.mxu0 0.0
    %676 = vmatpush1.msra.mxu0 0.0
    %677 = vmatprep.subr.mxu0 0.0
    %678 = vmatpush1.msra.mxu0 0.0
    %679 = vmatprep.subr.mxu0 0.0
    %680 = vmatpush1.msra.mxu0 0.0
    %681 = vmatprep.subr.mxu0 0.0
    %682 = vmatpush1.msra.mxu0 0.0
    %683 = vmatprep.subr.mxu0 0.0
    %684 = vmatpush1.msra.mxu0 0.0
    %685 = vmatprep.subr.mxu0 0.0
    %686 = vmatpush1.msra.mxu0 0.0
    %687 = vmatprep.subr.mxu0 0.0
    %688 = vmatpush1.msra.mxu0 0.0
    %689 = vmatprep.subr.mxu0 0.0
    %690 = vmatpush1.msra.mxu0 0.0
    %691 = vmatprep.subr.mxu0 0.0
    %692 = vmatpush1.msra.mxu0 0.0
    %693 = vmatprep.subr.mxu0 0.0
    %694 = vmatpush1.msra.mxu0 0.0
    %695 = vmatprep.subr.mxu0 0.0
    %696 = vmatpush1.msra.mxu0 0.0
    %697 = vmatprep.subr.mxu0 0.0
    %698 = vmatpush1.msra.mxu0 0.0
    %699 = vmatprep.subr.mxu0 0.0
    %700 = vmatpush1.msra.mxu0 0.0
    %701 = vmatprep.subr.mxu0 0.0
    %702 = vmatpush1.msra.mxu0 0.0
    %703 = vmatprep.subr.mxu0 0.0
    %704 = vmatpush1.msra.mxu0 0.0
    %705 = vmatprep.subr.mxu0 0.0
    %706 = vmatpush1.msra.mxu0 0.0
    %707 = vmatprep.subr.mxu0 0.0
    %708 = vmatpush1.msra.mxu0 0.0
    %709 = vmatprep.subr.mxu0 0.0
    %710 = vmatpush1.msra.mxu0 0.0
    %711 = vmatprep.subr.mxu0 0.0
    %712 = vmatpush1.msra.mxu0 0.0
    %713 = vmatprep.mubr.f32.mxu0 0.0
    %714 = vmatmul.mubr.f32.gmra.mrb[0].mxu0 %v641
    %v715 = vpop.f32.mrb[0].mxu0
    %v716 = vadd.f32 0.0, %v715
    %v717 = vpop.f32.mrb[0].mxu0
    %718 = vmatprep.mubr.f32.mxu0 0.0
    %719 = vmatmul.mubr.f32.gmra.mrb[0].mxu0 %v644
    %v720 = vpop.f32.mrb[0].mxu0
    %v721 = vadd.f32 0.0, %v720
    %v722 = vpop.f32.mrb[0].mxu0
    %723 = vdwg.mxu0
    %v725 = vsel %vm319, %v124, 0
    %v728 = vsel %vm319, %v125, 0
    %v731 = vsel %vm319, %v126, 0
    %v734 = vsel %vm319, %v127, 0
    %v737 = vsel %vm319, %v128, 0
    %v740 = vsel %vm319, %v129, 0
    %v743 = vsel %vm338, %v721, 0
    %745 = vmatprep.subr.mxu0 0.0
    %746 = vmatpush1.msra.mxu0 %v716
    %747 = vmatprep.subr.mxu0 0.0
    %748 = vmatpush1.msra.mxu0 %v743
    %749 = vmatprep.subr.mxu0 0.0
    %750 = vmatpush1.msra.mxu0 0.0
    %751 = vmatprep.subr.mxu0 0.0
    %752 = vmatpush1.msra.mxu0 0.0
    %753 = vmatprep.subr.mxu0 0.0
    %754 = vmatpush1.msra.mxu0 0.0
    %755 = vmatprep.subr.mxu0 0.0
    %756 = vmatpush1.msra.mxu0 0.0
    %757 = vmatprep.subr.mxu0 0.0
    %758 = vmatpush1.msra.mxu0 0.0
    %759 = vmatprep.subr.mxu0 0.0
    %760 = vmatpush1.msra.mxu0 0.0
    %761 = vmatprep.subr.mxu0 0.0
    %762 = vmatpush1.msra.mxu0 0.0
    %763 = vmatprep.subr.mxu0 0.0
    %764 = vmatpush1.msra.mxu0 0.0
    %765 = vmatprep.subr.mxu0 0.0
    %766 = vmatpush1.msra.mxu0 0.0
    %767 = vmatprep.subr.mxu0 0.0
    %768 = vmatpush1.msra.mxu0 0.0
    %769 = vmatprep.subr.mxu0 0.0
    %770 = vmatpush1.msra.mxu0 0.0
    %771 = vmatprep.subr.mxu0 0.0
    %772 = vmatpush1.msra.mxu0 0.0
    %773 = vmatprep.subr.mxu0 0.0
    %774 = vmatpush1.msra.mxu0 0.0
    %775 = vmatprep.subr.mxu0 0.0
    %776 = vmatpush1.msra.mxu0 0.0
    %777 = vmatprep.subr.mxu0 0.0
    %778 = vmatpush1.msra.mxu0 0.0
    %779 = vmatprep.subr.mxu0 0.0
    %780 = vmatpush1.msra.mxu0 0.0
    %781 = vmatprep.subr.mxu0 0.0
    %782 = vmatpush1.msra.mxu0 0.0
    %783 = vmatprep.subr.mxu0 0.0
    %784 = vmatpush1.msra.mxu0 0.0
    %785 = vmatprep.subr.mxu0 0.0
    %786 = vmatpush1.msra.mxu0 0.0
    %787 = vmatprep.subr.mxu0 0.0
    %788 = vmatpush1.msra.mxu0 0.0
    %789 = vmatprep.subr.mxu0 0.0
    %790 = vmatpush1.msra.mxu0 0.0
    %791 = vmatprep.subr.mxu0 0.0
    %792 = vmatpush1.msra.mxu0 0.0
    %793 = vmatprep.subr.mxu0 0.0
    %794 = vmatpush1.msra.mxu0 0.0
    %795 = vmatprep.subr.mxu0 0.0
    %796 = vmatpush1.msra.mxu0 0.0
    %797 = vmatprep.subr.mxu0 0.0
    %798 = vmatpush1.msra.mxu0 0.0
    %799 = vmatprep.subr.mxu0 0.0
    %800 = vmatpush1.msra.mxu0 0.0
    %801 = vmatprep.subr.mxu0 0.0
    %802 = vmatpush1.msra.mxu0 0.0
    %803 = vmatprep.subr.mxu0 0.0
    %804 = vmatpush1.msra.mxu0 0.0
    %805 = vmatprep.subr.mxu0 0.0
    %806 = vmatpush1.msra.mxu0 0.0
    %807 = vmatprep.subr.mxu0 0.0
    %808 = vmatpush1.msra.mxu0 0.0
    %809 = vmatprep.mubr.f32.mxu0 0.0
    %810 = vmatmul.mubr.f32.gmra.mrb[0].mxu0 %v725
    %v811 = vpop.f32.mrb[0].mxu0
    %v812 = vadd.f32 0.0, %v811
    %v813 = vpop.f32.mrb[0].mxu0
    %814 = vmatprep.mubr.f32.mxu0 0.0
    %815 = vmatmul.mubr.f32.gmra.mrb[0].mxu0 %v728
    %v816 = vpop.f32.mrb[0].mxu0
    %v817 = vadd.f32 0.0, %v816
    %v818 = vpop.f32.mrb[0].mxu0
    %819 = vmatprep.mubr.f32.mxu0 0.0
    %820 = vmatmul.mubr.f32.gmra.mrb[0].mxu0 %v731
    %v821 = vpop.f32.mrb[0].mxu0
    %v822 = vadd.f32 0.0, %v821
    %v823 = vpop.f32.mrb[0].mxu0
    %824 = vmatprep.mubr.f32.mxu0 0.0
    %825 = vmatmul.mubr.f32.gmra.mrb[0].mxu0 %v734
    %v826 = vpop.f32.mrb[0].mxu0
    %v827 = vadd.f32 0.0, %v826
    %v828 = vpop.f32.mrb[0].mxu0
    %829 = vmatprep.mubr.f32.mxu0 0.0
    %830 = vmatmul.mubr.f32.gmra.mrb[0].mxu0 %v737
    %v831 = vpop.f32.mrb[0].mxu0
    %v832 = vadd.f32 0.0, %v831
    %v833 = vpop.f32.mrb[0].mxu0
    %834 = vmatprep.mubr.f32.mxu0 0.0
    %835 = vmatmul.mubr.f32.gmra.mrb[0].mxu0 %v740
    %v836 = vpop.f32.mrb[0].mxu0
    %v837 = vadd.f32 0.0, %v836
    %v838 = vpop.f32.mrb[0].mxu0
    %839 = vdwg.mxu0
    %v840 = vadd.f32 %v634, %v812
    %v841 = vadd.f32 %v635, %v817
    %v842 = vadd.f32 %v636, %v822
    %v843 = vadd.f32 %v637, %v827
    %v844 = vadd.f32 %v638, %v832
    %v845 = vadd.f32 %v639, %v837
    %v847 = vsel %vm151, %v16, 0
    %849 = vmatprep.subr.mxu0 0.0
    %850 = vmatpush1.msra.mxu0 %v21
    %851 = vmatprep.subr.mxu0 0.0
    %852 = vmatpush1.msra.mxu0 0.0
    %853 = vmatprep.subr.mxu0 0.0
    %854 = vmatpush1.msra.mxu0 0.0
    %855 = vmatprep.subr.mxu0 0.0
    %856 = vmatpush1.msra.mxu0 0.0
    %857 = vmatprep.subr.mxu0 0.0
    %858 = vmatpush1.msra.mxu0 0.0
    %859 = vmatprep.subr.mxu0 0.0
    %860 = vmatpush1.msra.mxu0 0.0
    %861 = vmatprep.subr.mxu0 0.0
    %862 = vmatpush1.msra.mxu0 0.0
    %863 = vmatprep.subr.mxu0 0.0
    %864 = vmatpush1.msra.mxu0 0.0
    %865 = vmatprep.subr.mxu0 0.0
    %866 = vmatpush1.msra.mxu0 0.0
    %867 = vmatprep.subr.mxu0 0.0
    %868 = vmatpush1.msra.mxu0 0.0
    %869 = vmatprep.subr.mxu0 0.0
    %870 = vmatpush1.msra.mxu0 0.0
    %871 = vmatprep.subr.mxu0 0.0
    %872 = vmatpush1.msra.mxu0 0.0
    %873 = vmatprep.subr.mxu0 0.0
    %874 = vmatpush1.msra.mxu0 0.0
    %875 = vmatprep.subr.mxu0 0.0
    %876 = vmatpush1.msra.mxu0 0.0
    %877 = vmatprep.subr.mxu0 0.0
    %878 = vmatpush1.msra.mxu0 0.0
    %879 = vmatprep.subr.mxu0 0.0
    %880 = vmatpush1.msra.mxu0 0.0
    %881 = vmatprep.subr.mxu0 0.0
    %882 = vmatpush1.msra.mxu0 0.0
    %883 = vmatprep.subr.mxu0 0.0
    %884 = vmatpush1.msra.mxu0 0.0
    %885 = vmatprep.subr.mxu0 0.0
    %886 = vmatpush1.msra.mxu0 0.0
    %887 = vmatprep.subr.mxu0 0.0
    %888 = vmatpush1.msra.mxu0 0.0
    %889 = vmatprep.subr.mxu0 0.0
    %890 = vmatpush1.msra.mxu0 0.0
    %891 = vmatprep.subr.mxu0 0.0
    %892 = vmatpush1.msra.mxu0 0.0
    %893 = vmatprep.subr.mxu0 0.0
    %894 = vmatpush1.msra.mxu0 0.0
    %895 = vmatprep.subr.mxu0 0.0
    %896 = vmatpush1.msra.mxu0 0.0
    %897 = vmatprep.subr.mxu0 0.0
    %898 = vmatpush1.msra.mxu0 0.0
    %899 = vmatprep.subr.mxu0 0.0
    %900 = vmatpush1.msra.mxu0 0.0
    %901 = vmatprep.subr.mxu0 0.0
    %902 = vmatpush1.msra.mxu0 0.0
    %903 = vmatprep.subr.mxu0 0.0
    %904 = vmatpush1.msra.mxu0 0.0
    %905 = vmatprep.subr.mxu0 0.0
    %906 = vmatpush1.msra.mxu0 0.0
    %907 = vmatprep.subr.mxu0 0.0
    %908 = vmatpush1.msra.mxu0 0.0
    %909 = vmatprep.subr.mxu0 0.0
    %910 = vmatpush1.msra.mxu0 0.0
    %911 = vmatprep.subr.mxu0 0.0
    %912 = vmatpush1.msra.mxu0 0.0
    %913 = vmatprep.mubr.f32.mxu0 0.0
    %914 = vmatmul.mubr.f32.gmra.mrb[0].mxu0 %v847
    %v915 = vpop.f32.mrb[0].mxu0
    %v916 = vadd.f32 0.0, %v915
    %v917 = vpop.f32.mrb[0].mxu0
    %918 = vdwg.mxu0
    %v920 = vsel %vm151, %v136, 0
    %v923 = vsel %vm151, %v137, 0
    %v926 = vsel %vm151, %v138, 0
    %v929 = vsel %vm151, %v141, 0
    %931 = vmatprep.subr.mxu0 0.0
    %932 = vmatpush1.msra.mxu0 %v916
    %933 = vmatprep.subr.mxu0 0.0
    %934 = vmatpush1.msra.mxu0 0.0
    %935 = vmatprep.subr.mxu0 0.0
    %936 = vmatpush1.msra.mxu0 0.0
    %937 = vmatprep.subr.mxu0 0.0
    %938 = vmatpush1.msra.mxu0 0.0
    %939 = vmatprep.subr.mxu0 0.0
    %940 = vmatpush1.msra.mxu0 0.0
    %941 = vmatprep.subr.mxu0 0.0
    %942 = vmatpush1.msra.mxu0 0.0
    %943 = vmatprep.subr.mxu0 0.0
    %944 = vmatpush1.msra.mxu0 0.0
    %945 = vmatprep.subr.mxu0 0.0
    %946 = vmatpush1.msra.mxu0 0.0
    %947 = vmatprep.subr.mxu0 0.0
    %948 = vmatpush1.msra.mxu0 0.0
    %949 = vmatprep.subr.mxu0 0.0
    %950 = vmatpush1.msra.mxu0 0.0
    %951 = vmatprep.subr.mxu0 0.0
    %952 = vmatpush1.msra.mxu0 0.0
    %953 = vmatprep.subr.mxu0 0.0
    %954 = vmatpush1.msra.mxu0 0.0
    %955 = vmatprep.subr.mxu0 0.0
    %956 = vmatpush1.msra.mxu0 0.0
    %957 = vmatprep.subr.mxu0 0.0
    %958 = vmatpush1.msra.mxu0 0.0
    %959 = vmatprep.subr.mxu0 0.0
    %960 = vmatpush1.msra.mxu0 0.0
    %961 = vmatprep.subr.mxu0 0.0
    %962 = vmatpush1.msra.mxu0 0.0
    %963 = vmatprep.subr.mxu0 0.0
    %964 = vmatpush1.msra.mxu0 0.0
    %965 = vmatprep.subr.mxu0 0.0
    %966 = vmatpush1.msra.mxu0 0.0
    %967 = vmatprep.subr.mxu0 0.0
    %968 = vmatpush1.msra.mxu0 0.0
    %969 = vmatprep.subr.mxu0 0.0
    %970 = vmatpush1.msra.mxu0 0.0
    %971 = vmatprep.subr.mxu0 0.0
    %972 = vmatpush1.msra.mxu0 0.0
    %973 = vmatprep.subr.mxu0 0.0
    %974 = vmatpush1.msra.mxu0 0.0
    %975 = vmatprep.subr.mxu0 0.0
    %976 = vmatpush1.msra.mxu0 0.0
    %977 = vmatprep.subr.mxu0 0.0
    %978 = vmatpush1.msra.mxu0 0.0
    %979 = vmatprep.subr.mxu0 0.0
    %980 = vmatpush1.msra.mxu0 0.0
    %981 = vmatprep.subr.mxu0 0.0
    %982 = vmatpush1.msra.mxu0 0.0
    %983 = vmatprep.subr.mxu0 0.0
    %984 = vmatpush1.msra.mxu0 0.0
    %985 = vmatprep.subr.mxu0 0.0
    %986 = vmatpush1.msra.mxu0 0.0
    %987 = vmatprep.subr.mxu0 0.0
    %988 = vmatpush1.msra.mxu0 0.0
    %989 = vmatprep.subr.mxu0 0.0
    %990 = vmatpush1.msra.mxu0 0.0
    %991 = vmatprep.subr.mxu0 0.0
    %992 = vmatpush1.msra.mxu0 0.0
    %993 = vmatprep.subr.mxu0 0.0
    %994 = vmatpush1.msra.mxu0 0.0
    %995 = vmatprep.mubr.f32.mxu0 0.0
    %996 = vmatmul.mubr.f32.gmra.mrb[0].mxu0 %v920
    %v997 = vpop.f32.mrb[0].mxu0
    %v998 = vadd.f32 0.0, %v997
    %v999 = vpop.f32.mrb[0].mxu0
    %1000 = vmatprep.mubr.f32.mxu0 0.0
    %1001 = vmatmul.mubr.f32.gmra.mrb[0].mxu0 %v923
    %v1002 = vpop.f32.mrb[0].mxu0
    %v1003 = vadd.f32 0.0, %v1002
    %v1004 = vpop.f32.mrb[0].mxu0
    %1005 = vmatprep.mubr.f32.mxu0 0.0
    %1006 = vmatmul.mubr.f32.gmra.mrb[0].mxu0 %v926
    %v1007 = vpop.f32.mrb[0].mxu0
    %v1008 = vadd.f32 0.0, %v1007
    %v1009 = vpop.f32.mrb[0].mxu0
    %1010 = vmatprep.mubr.f32.mxu0 0.0
    %1011 = vmatmul.mubr.f32.gmra.mrb[0].mxu0 %v153
    %v1012 = vpop.f32.mrb[0].mxu0
    %v1013 = vadd.f32 0.0, %v1012
    %v1014 = vpop.f32.mrb[0].mxu0
    %1015 = vmatprep.mubr.f32.mxu0 0.0
    %1016 = vmatmul.mubr.f32.gmra.mrb[0].mxu0 %v156
    %v1017 = vpop.f32.mrb[0].mxu0
    %v1018 = vadd.f32 0.0, %v1017
    %v1019 = vpop.f32.mrb[0].mxu0
    %1020 = vmatprep.mubr.f32.mxu0 0.0
    %1021 = vmatmul.mubr.f32.gmra.mrb[0].mxu0 %v929
    %v1022 = vpop.f32.mrb[0].mxu0
    %v1023 = vadd.f32 0.0, %v1022
    %v1024 = vpop.f32.mrb[0].mxu0
    %1025 = vdwg.mxu0
    %v1026 = vadd.f32 %v840, %v998
    %v1027 = vadd.f32 %v841, %v1003
    %v1028 = vadd.f32 %v842, %v1008
    %v1029 = vadd.f32 %v843, %v1013
    %v1030 = vadd.f32 %v844, %v1018
    %v1031 = vadd.f32 %v845, %v1023
    %vm1032 = vcmask 261120
    %v1034 = vsel %vm1032, 0.0, 0
    %1036 = vmatprep.subr.mxu0 0.0
    %1037 = vmatpush1.msra.mxu0 %v23
    %1038 = vmatprep.subr.mxu0 0.0
    %1039 = vmatpush1.msra.mxu0 %v24
    %1040 = vmatprep.subr.mxu0 0.0
    %1041 = vmatpush1.msra.mxu0 %v25
    %1042 = vmatprep.subr.mxu0 0.0
    %1043 = vmatpush1.msra.mxu0 %v26
    %1044 = vmatprep.subr.mxu0 0.0
    %1045 = vmatpush1.msra.mxu0 0.0
    %1046 = vmatprep.subr.mxu0 0.0
    %1047 = vmatpush1.msra.mxu0 0.0
    %1048 = vmatprep.subr.mxu0 0.0
    %1049 = vmatpush1.msra.mxu0 0.0
    %1050 = vmatprep.subr.mxu0 0.0
    %1051 = vmatpush1.msra.mxu0 0.0
    %1052 = vmatprep.subr.mxu0 0.0
    %1053 = vmatpush1.msra.mxu0 0.0
    %1054 = vmatprep.subr.mxu0 0.0
    %1055 = vmatpush1.msra.mxu0 0.0
    %1056 = vmatprep.subr.mxu0 0.0
    %1057 = vmatpush1.msra.mxu0 0.0
    %1058 = vmatprep.subr.mxu0 0.0
    %1059 = vmatpush1.msra.mxu0 0.0
    %1060 = vmatprep.subr.mxu0 0.0
    %1061 = vmatpush1.msra.mxu0 0.0
    %1062 = vmatprep.subr.mxu0 0.0
    %1063 = vmatpush1.msra.mxu0 0.0
    %1064 = vmatprep.subr.mxu0 0.0
    %1065 = vmatpush1.msra.mxu0 0.0
    %1066 = vmatprep.subr.mxu0 0.0
    %1067 = vmatpush1.msra.mxu0 0.0
    %1068 = vmatprep.subr.mxu0 0.0
    %1069 = vmatpush1.msra.mxu0 0.0
    %1070 = vmatprep.subr.mxu0 0.0
    %1071 = vmatpush1.msra.mxu0 0.0
    %1072 = vmatprep.subr.mxu0 0.0
    %1073 = vmatpush1.msra.mxu0 0.0
    %1074 = vmatprep.subr.mxu0 0.0
    %1075 = vmatpush1.msra.mxu0 0.0
    %1076 = vmatprep.subr.mxu0 0.0
    %1077 = vmatpush1.msra.mxu0 0.0
    %1078 = vmatprep.subr.mxu0 0.0
    %1079 = vmatpush1.msra.mxu0 0.0
    %1080 = vmatprep.subr.mxu0 0.0
    %1081 = vmatpush1.msra.mxu0 0.0
    %1082 = vmatprep.subr.mxu0 0.0
    %1083 = vmatpush1.msra.mxu0 0.0
    %1084 = vmatprep.subr.mxu0 0.0
    %1085 = vmatpush1.msra.mxu0 0.0
    %1086 = vmatprep.subr.mxu0 0.0
    %1087 = vmatpush1.msra.mxu0 0.0
    %1088 = vmatprep.subr.mxu0 0.0
    %1089 = vmatpush1.msra.mxu0 0.0
    %1090 = vmatprep.subr.mxu0 0.0
    %1091 = vmatpush1.msra.mxu0 0.0
    %1092 = vmatprep.subr.mxu0 0.0
    %1093 = vmatpush1.msra.mxu0 0.0
    %1094 = vmatprep.subr.mxu0 0.0
    %1095 = vmatpush1.msra.mxu0 0.0
    %1096 = vmatprep.subr.mxu0 0.0
    %1097 = vmatpush1.msra.mxu0 0.0
    %1098 = vmatprep.subr.mxu0 0.0
    %1099 = vmatpush1.msra.mxu0 0.0
    %1100 = vmatprep.mubr.f32.mxu0 0.0
    %1101 = vmatmul.mubr.f32.gmra.mrb[0].mxu0 %v1034
    %v1102 = vpop.f32.mrb[0].mxu0
    %v1103 = vadd.f32 0.0, %v1102
    %v1104 = vpop.f32.mrb[0].mxu0
    %1105 = vmatprep.mubr.f32.mxu0 0.0
    %1106 = vmatmul.mubr.f32.gmra.mrb[0].mxu0 %v1034
    %v1107 = vpop.f32.mrb[0].mxu0
    %v1108 = vadd.f32 0.0, %v1107
    %v1109 = vpop.f32.mrb[0].mxu0
    %1110 = vmatprep.mubr.f32.mxu0 0.0
    %1111 = vmatmul.mubr.f32.gmra.mrb[0].mxu0 %v1034
    %v1112 = vpop.f32.mrb[0].mxu0
    %v1113 = vadd.f32 0.0, %v1112
    %v1114 = vpop.f32.mrb[0].mxu0
    %1115 = vmatprep.mubr.f32.mxu0 0.0
    %1116 = vmatmul.mubr.f32.gmra.mrb[0].mxu0 %v1034
    %v1117 = vpop.f32.mrb[0].mxu0
    %v1118 = vadd.f32 0.0, %v1117
    %v1119 = vpop.f32.mrb[0].mxu0
    %1120 = vmatprep.mubr.f32.mxu0 0.0
    %1121 = vmatmul.mubr.f32.gmra.mrb[0].mxu0 %v1034
    %v1122 = vpop.f32.mrb[0].mxu0
    %v1123 = vadd.f32 0.0, %v1122
    %v1124 = vpop.f32.mrb[0].mxu0
    %1125 = vmatprep.mubr.f32.mxu0 0.0
    %1126 = vmatmul.mubr.f32.gmra.mrb[0].mxu0 %v1034
    %v1127 = vpop.f32.mrb[0].mxu0
    %v1128 = vadd.f32 0.0, %v1127
    %v1129 = vpop.f32.mrb[0].mxu0
    %1130 = vdwg.mxu0
    %v1131 = vmul.f32 %v1103, %v51
    %v1132 = vmul.f32 %v1108, %v52
    %v1133 = vmul.f32 %v1113, %v53
    %v1134 = vmul.f32 %v1118, %v54
    %v1135 = vmul.f32 %v1123, %v55
    %v1136 = vmul.f32 %v1128, %v56
    %vm1137 = vcmask 785408
    %v1139 = vsel %vm1137, %v1131, 0
    %v1142 = vsel %vm1137, %v1132, 0
    %v1145 = vsel %vm1137, %v1133, 0
    %v1148 = vsel %vm1137, %v1134, 0
    %v1151 = vsel %vm1137, %v1135, 0
    %v1154 = vsel %vm1137, %v1136, 0
    %1156 = vmatprep.subr.mxu0 0.0
    %1157 = vmatpush1.msra.mxu0 %v27
    %1158 = vmatprep.subr.mxu0 0.0
    %1159 = vmatpush1.msra.mxu0 %v28
    %1160 = vmatprep.subr.mxu0 0.0
    %1161 = vmatpush1.msra.mxu0 %v29
    %1162 = vmatprep.subr.mxu0 0.0
    %1163 = vmatpush1.msra.mxu0 %v30
    %1164 = vmatprep.subr.mxu0 0.0
    %1165 = vmatpush1.msra.mxu0 %v31
    %1166 = vmatprep.subr.mxu0 0.0
    %1167 = vmatpush1.msra.mxu0 %v32
    %1168 = vmatprep.subr.mxu0 0.0
    %1169 = vmatpush1.msra.mxu0 %v33
    %1170 = vmatprep.subr.mxu0 0.0
    %1171 = vmatpush1.msra.mxu0 %v34
    %1172 = vmatprep.subr.mxu0 0.0
    %1173 = vmatpush1.msra.mxu0 %v35
    %1174 = vmatprep.subr.mxu0 0.0
    %1175 = vmatpush1.msra.mxu0 %v36
    %1176 = vmatprep.subr.mxu0 0.0
    %1177 = vmatpush1.msra.mxu0 %v37
    %1178 = vmatprep.subr.mxu0 0.0
    %1179 = vmatpush1.msra.mxu0 %v38
    %1180 = vmatprep.subr.mxu0 0.0
    %1181 = vmatpush1.msra.mxu0 0.0
    %1182 = vmatprep.subr.mxu0 0.0
    %1183 = vmatpush1.msra.mxu0 0.0
    %1184 = vmatprep.subr.mxu0 0.0
    %1185 = vmatpush1.msra.mxu0 0.0
    %1186 = vmatprep.subr.mxu0 0.0
    %1187 = vmatpush1.msra.mxu0 0.0
    %1188 = vmatprep.subr.mxu0 0.0
    %1189 = vmatpush1.msra.mxu0 0.0
    %1190 = vmatprep.subr.mxu0 0.0
    %1191 = vmatpush1.msra.mxu0 0.0
    %1192 = vmatprep.subr.mxu0 0.0
    %1193 = vmatpush1.msra.mxu0 0.0
    %1194 = vmatprep.subr.mxu0 0.0
    %1195 = vmatpush1.msra.mxu0 0.0
    %1196 = vmatprep.subr.mxu0 0.0
    %1197 = vmatpush1.msra.mxu0 0.0
    %1198 = vmatprep.subr.mxu0 0.0
    %1199 = vmatpush1.msra.mxu0 0.0
    %1200 = vmatprep.subr.mxu0 0.0
    %1201 = vmatpush1.msra.mxu0 0.0
    %1202 = vmatprep.subr.mxu0 0.0
    %1203 = vmatpush1.msra.mxu0 0.0
    %1204 = vmatprep.subr.mxu0 0.0
    %1205 = vmatpush1.msra.mxu0 0.0
    %1206 = vmatprep.subr.mxu0 0.0
    %1207 = vmatpush1.msra.mxu0 0.0
    %1208 = vmatprep.subr.mxu0 0.0
    %1209 = vmatpush1.msra.mxu0 0.0
    %1210 = vmatprep.subr.mxu0 0.0
    %1211 = vmatpush1.msra.mxu0 0.0
    %1212 = vmatprep.subr.mxu0 0.0
    %1213 = vmatpush1.msra.mxu0 0.0
    %1214 = vmatprep.subr.mxu0 0.0
    %1215 = vmatpush1.msra.mxu0 0.0
    %1216 = vmatprep.subr.mxu0 0.0
    %1217 = vmatpush1.msra.mxu0 0.0
    %1218 = vmatprep.subr.mxu0 0.0
    %1219 = vmatpush1.msra.mxu0 0.0
    %1220 = vmatprep.mubr.f32.mxu0 0.0
    %1221 = vmatmul.mubr.f32.gmra.mrb[0].mxu0 %v1139
    %v1222 = vpop.f32.mrb[0].mxu0
    %v1223 = vadd.f32 %v45, %v1222
    %v1224 = vpop.f32.mrb[0].mxu0
    %1225 = vmatprep.mubr.f32.mxu0 0.0
    %1226 = vmatmul.mubr.f32.gmra.mrb[0].mxu0 %v1142
    %v1227 = vpop.f32.mrb[0].mxu0
    %v1228 = vadd.f32 %v46, %v1227
    %v1229 = vpop.f32.mrb[0].mxu0
    %1230 = vmatprep.mubr.f32.mxu0 0.0
    %1231 = vmatmul.mubr.f32.gmra.mrb[0].mxu0 %v1145
    %v1232 = vpop.f32.mrb[0].mxu0
    %v1233 = vadd.f32 %v47, %v1232
    %v1234 = vpop.f32.mrb[0].mxu0
    %1235 = vmatprep.mubr.f32.mxu0 0.0
    %1236 = vmatmul.mubr.f32.gmra.mrb[0].mxu0 %v1148
    %v1237 = vpop.f32.mrb[0].mxu0
    %v1238 = vadd.f32 %v48, %v1237
    %v1239 = vpop.f32.mrb[0].mxu0
    %1240 = vmatprep.mubr.f32.mxu0 0.0
    %1241 = vmatmul.mubr.f32.gmra.mrb[0].mxu0 %v1151
    %v1242 = vpop.f32.mrb[0].mxu0
    %v1243 = vadd.f32 %v49, %v1242
    %v1244 = vpop.f32.mrb[0].mxu0
    %1245 = vmatprep.mubr.f32.mxu0 0.0
    %1246 = vmatmul.mubr.f32.gmra.mrb[0].mxu0 %v1154
    %v1247 = vpop.f32.mrb[0].mxu0
    %v1248 = vadd.f32 %v50, %v1247
    %v1249 = vpop.f32.mrb[0].mxu0
    %1250 = vdwg.mxu0
    %v1251 = vadd.f32 %v1026, %v1223
    %v1252 = vadd.f32 %v1027, %v1228
    %v1253 = vadd.f32 %v1028, %v1233
    %v1254 = vadd.f32 %v1029, %v1238
    %v1255 = vadd.f32 %v1030, %v1243
    %v1256 = vadd.f32 %v1031, %v1248
    %v1257 = vxor.u32 %v1251, 2147483648
    %v1258 = vxor.u32 %v1252, 2147483648
    %v1259 = vxor.u32 %v1253, 2147483648
    %v1260 = vxor.u32 %v1254, 2147483648
    %v1261 = vxor.u32 %v1255, 2147483648
    %v1262 = vxor.u32 %v1256, 2147483648
    %v1263 = vmul.f32 %v1257, 1.442695
    %v1264 = vpow.pop %v1263
    %v1265 = vmul.f32 %v1258, 1.442695
    %v1266 = vpow.pop %v1265
    %v1267 = vmul.f32 %v1259, 1.442695
    %v1268 = vpow.pop %v1267
    %v1269 = vmul.f32 %v1260, 1.442695
    %v1270 = vpow.pop %v1269
    %v1271 = vmul.f32 %v1261, 1.442695
    %v1272 = vpow.pop %v1271
    %v1273 = vmul.f32 %v1262, 1.442695
    %v1274 = vpow.pop %v1273
    %v1275 = vadd.f32 %v1264, 1.0
    %v1276 = vadd.f32 %v1266, 1.0
    %v1277 = vadd.f32 %v1268, 1.0
    %v1278 = vadd.f32 %v1270, 1.0
    %v1279 = vadd.f32 %v1272, 1.0
    %v1280 = vadd.f32 %v1274, 1.0
    %v1281 = vrcp.pop %v1275
    %v1282 = vmul.f32 1.0, %v1281
    %v1283 = vrcp.pop %v1276
    %v1284 = vmul.f32 1.0, %v1283
    %v1285 = vrcp.pop %v1277
    %v1286 = vmul.f32 1.0, %v1285
    %v1287 = vrcp.pop %v1278
    %v1288 = vmul.f32 1.0, %v1287
    %v1289 = vrcp.pop %v1279
    %v1290 = vmul.f32 1.0, %v1289
    %v1291 = vrcp.pop %v1280
    %v1292 = vmul.f32 1.0, %v1291
    %1299 = vrot.lane.b32.xlu0 %v1223, 64
    %v1300 = vpop.permute.xlu0 %1299
    %1301 = vrot.lane.b32.xlu0 %v1228, 64
    %v1302 = vpop.permute.xlu0 %1301
    %1303 = vrot.lane.b32.xlu0 %v1233, 64
    %v1304 = vpop.permute.xlu0 %1303
    %1305 = vrot.lane.b32.xlu0 %v1238, 64
    %v1306 = vpop.permute.xlu0 %1305
    %1307 = vrot.lane.b32.xlu0 %v1243, 64
    %v1308 = vpop.permute.xlu0 %1307
    %1309 = vrot.lane.b32.xlu0 %v1248, 64
    %v1310 = vpop.permute.xlu0 %1309
    %v1317 = vmul.f32 %v1282, %v1300
    %v1318 = vmul.f32 %v1284, %v1302
    %v1319 = vmul.f32 %v1286, %v1304
    %v1320 = vmul.f32 %v1288, %v1306
    %v1321 = vmul.f32 %v1290, %v1308
    %v1322 = vmul.f32 %v1292, %v1310
    %1329 = vrot.lane.b32.xlu0 %v1317, 64
    %v1330 = vpop.permute.xlu0 %1329
    %1331 = vrot.lane.b32.xlu0 %v1318, 64
    %v1332 = vpop.permute.xlu0 %1331
    %1333 = vrot.lane.b32.xlu0 %v1319, 64
    %v1334 = vpop.permute.xlu0 %1333
    %1335 = vrot.lane.b32.xlu0 %v1320, 64
    %v1336 = vpop.permute.xlu0 %1335
    %1337 = vrot.lane.b32.xlu0 %v1321, 64
    %v1338 = vpop.permute.xlu0 %1337
    %1339 = vrot.lane.b32.xlu0 %v1322, 64
    %v1340 = vpop.permute.xlu0 %1339
    %v1347 = vadd.f32 %v1026, %v1330
    %v1348 = vadd.f32 %v1027, %v1332
    %v1349 = vadd.f32 %v1028, %v1334
    %v1350 = vadd.f32 %v1029, %v1336
    %v1351 = vadd.f32 %v1030, %v1338
    %v1352 = vadd.f32 %v1031, %v1340
    %v1353 = vtanh.pop %v1347
    %v1354 = vtanh.pop %v1348
    %v1355 = vtanh.pop %v1349
    %v1356 = vtanh.pop %v1350
    %v1357 = vtanh.pop %v1351
    %v1358 = vtanh.pop %v1352
    %v1359 = vsub.f32 1.0, %v1282
    %v1360 = vsub.f32 1.0, %v1284
    %v1361 = vsub.f32 1.0, %v1286
    %v1362 = vsub.f32 1.0, %v1288
    %v1363 = vsub.f32 1.0, %v1290
    %v1364 = vsub.f32 1.0, %v1292
    %1371 = vrot.lane.b32.xlu0 %v1353, 96
    %v1372 = vpop.permute.xlu0 %1371
    %1373 = vrot.lane.b32.xlu0 %v1354, 96
    %v1374 = vpop.permute.xlu0 %1373
    %1375 = vrot.lane.b32.xlu0 %v1355, 96
    %v1376 = vpop.permute.xlu0 %1375
    %1377 = vrot.lane.b32.xlu0 %v1356, 96
    %v1378 = vpop.permute.xlu0 %1377
    %1379 = vrot.lane.b32.xlu0 %v1357, 96
    %v1380 = vpop.permute.xlu0 %1379
    %1381 = vrot.lane.b32.xlu0 %v1358, 96
    %v1382 = vpop.permute.xlu0 %1381
    %v1389 = vmul.f32 %v1359, %v1372
    %v1390 = vmul.f32 %v1360, %v1374
    %v1391 = vmul.f32 %v1361, %v1376
    %v1392 = vmul.f32 %v1362, %v1378
    %v1393 = vmul.f32 %v1363, %v1380
    %v1394 = vmul.f32 %v1364, %v1382
    %v1395 = vmul.f32 %v1282, 0.0
    %v1396 = vmul.f32 %v1284, 0.0
    %v1397 = vmul.f32 %v1286, 0.0
    %v1398 = vmul.f32 %v1288, 0.0
    %v1399 = vmul.f32 %v1290, 0.0
    %v1400 = vmul.f32 %v1292, 0.0
    %v1401 = vadd.f32 %v1389, %v1395
    %v1402 = vadd.f32 %v1390, %v1396
    %v1403 = vadd.f32 %v1391, %v1397
    %v1404 = vadd.f32 %v1392, %v1398
    %v1405 = vadd.f32 %v1393, %v1399
    %v1406 = vadd.f32 %v1394, %v1400
    %1413 = vrot.lane.b32.xlu0 %v1401, 96
    %v1414 = vpop.permute.xlu0 %1413
    %1415 = vrot.lane.b32.xlu0 %v1402, 96
    %v1416 = vpop.permute.xlu0 %1415
    %1417 = vrot.lane.b32.xlu0 %v1403, 96
    %v1418 = vpop.permute.xlu0 %1417
    %1419 = vrot.lane.b32.xlu0 %v1404, 96
    %v1420 = vpop.permute.xlu0 %1419
    %1421 = vrot.lane.b32.xlu0 %v1405, 96
    %v1422 = vpop.permute.xlu0 %1421
    %1423 = vrot.lane.b32.xlu0 %v1406, 96
    %v1424 = vpop.permute.xlu0 %1423
    %v1425 = vsel %vm1032, %v1414, 0
    %v1427 = vsel %vm1032, %v1416, 0
    %v1429 = vsel %vm1032, %v1418, 0
    %v1431 = vsel %vm1032, %v1420, 0
    %v1433 = vsel %vm1032, %v1422, 0
    %v1435 = vsel %vm1032, %v1424, 0
    %1437 = vmatprep.subr.mxu0 0.0
    %1438 = vmatpush1.msra.mxu0 %v23
    %1439 = vmatprep.subr.mxu0 0.0
    %1440 = vmatpush1.msra.mxu0 %v24
    %1441 = vmatprep.subr.mxu0 0.0
    %1442 = vmatpush1.msra.mxu0 %v25
    %1443 = vmatprep.subr.mxu0 0.0
    %1444 = vmatpush1.msra.mxu0 %v26
    %1445 = vmatprep.subr.mxu0 0.0
    %1446 = vmatpush1.msra.mxu0 0.0
    %1447 = vmatprep.subr.mxu0 0.0
    %1448 = vmatpush1.msra.mxu0 0.0
    %1449 = vmatprep.subr.mxu0 0.0
    %1450 = vmatpush1.msra.mxu0 0.0
    %1451 = vmatprep.subr.mxu0 0.0
    %1452 = vmatpush1.msra.mxu0 0.0
    %1453 = vmatprep.subr.mxu0 0.0
    %1454 = vmatpush1.msra.mxu0 0.0
    %1455 = vmatprep.subr.mxu0 0.0
    %1456 = vmatpush1.msra.mxu0 0.0
    %1457 = vmatprep.subr.mxu0 0.0
    %1458 = vmatpush1.msra.mxu0 0.0
    %1459 = vmatprep.subr.mxu0 0.0
    %1460 = vmatpush1.msra.mxu0 0.0
    %1461 = vmatprep.subr.mxu0 0.0
    %1462 = vmatpush1.msra.mxu0 0.0
    %1463 = vmatprep.subr.mxu0 0.0
    %1464 = vmatpush1.msra.mxu0 0.0
    %1465 = vmatprep.subr.mxu0 0.0
    %1466 = vmatpush1.msra.mxu0 0.0
    %1467 = vmatprep.subr.mxu0 0.0
    %1468 = vmatpush1.msra.mxu0 0.0
    %1469 = vmatprep.subr.mxu0 0.0
    %1470 = vmatpush1.msra.mxu0 0.0
    %1471 = vmatprep.subr.mxu0 0.0
    %1472 = vmatpush1.msra.mxu0 0.0
    %1473 = vmatprep.subr.mxu0 0.0
    %1474 = vmatpush1.msra.mxu0 0.0
    %1475 = vmatprep.subr.mxu0 0.0
    %1476 = vmatpush1.msra.mxu0 0.0
    %1477 = vmatprep.subr.mxu0 0.0
    %1478 = vmatpush1.msra.mxu0 0.0
    %1479 = vmatprep.subr.mxu0 0.0
    %1480 = vmatpush1.msra.mxu0 0.0
    %1481 = vmatprep.subr.mxu0 0.0
    %1482 = vmatpush1.msra.mxu0 0.0
    %1483 = vmatprep.subr.mxu0 0.0
    %1484 = vmatpush1.msra.mxu0 0.0
    %1485 = vmatprep.subr.mxu0 0.0
    %1486 = vmatpush1.msra.mxu0 0.0
    %1487 = vmatprep.subr.mxu0 0.0
    %1488 = vmatpush1.msra.mxu0 0.0
    %1489 = vmatprep.subr.mxu0 0.0
    %1490 = vmatpush1.msra.mxu0 0.0
    %1491 = vmatprep.subr.mxu0 0.0
    %1492 = vmatpush1.msra.mxu0 0.0
    %1493 = vmatprep.subr.mxu0 0.0
    %1494 = vmatpush1.msra.mxu0 0.0
    %1495 = vmatprep.subr.mxu0 0.0
    %1496 = vmatpush1.msra.mxu0 0.0
    %1497 = vmatprep.subr.mxu0 0.0
    %1498 = vmatpush1.msra.mxu0 0.0
    %1499 = vmatprep.subr.mxu0 0.0
    %1500 = vmatpush1.msra.mxu0 0.0
    %1501 = vmatprep.mubr.f32.mxu0 0.0
    %1502 = vmatmul.mubr.f32.gmra.mrb[0].mxu0 %v1425
    %v1503 = vpop.f32.mrb[0].mxu0
    %v1504 = vadd.f32 0.0, %v1503
    %v1505 = vpop.f32.mrb[0].mxu0
    %1506 = vmatprep.mubr.f32.mxu0 0.0
    %1507 = vmatmul.mubr.f32.gmra.mrb[0].mxu0 %v1427
    %v1508 = vpop.f32.mrb[0].mxu0
    %v1509 = vadd.f32 0.0, %v1508
    %v1510 = vpop.f32.mrb[0].mxu0
    %1511 = vmatprep.mubr.f32.mxu0 0.0
    %1512 = vmatmul.mubr.f32.gmra.mrb[0].mxu0 %v1429
    %v1513 = vpop.f32.mrb[0].mxu0
    %v1514 = vadd.f32 0.0, %v1513
    %v1515 = vpop.f32.mrb[0].mxu0
    %1516 = vmatprep.mubr.f32.mxu0 0.0
    %1517 = vmatmul.mubr.f32.gmra.mrb[0].mxu0 %v1431
    %v1518 = vpop.f32.mrb[0].mxu0
    %v1519 = vadd.f32 0.0, %v1518
    %v1520 = vpop.f32.mrb[0].mxu0
    %1521 = vmatprep.mubr.f32.mxu0 0.0
    %1522 = vmatmul.mubr.f32.gmra.mrb[0].mxu0 %v1433
    %v1523 = vpop.f32.mrb[0].mxu0
    %v1524 = vadd.f32 0.0, %v1523
    %v1525 = vpop.f32.mrb[0].mxu0
    %1526 = vmatprep.mubr.f32.mxu0 0.0
    %1527 = vmatmul.mubr.f32.gmra.mrb[0].mxu0 %v1435
    %v1528 = vpop.f32.mrb[0].mxu0
    %v1529 = vadd.f32 0.0, %v1528
    %v1530 = vpop.f32.mrb[0].mxu0
    %1531 = vdwg.mxu0
    %v1532 = vmul.f32 %v1504, %v51
    %v1533 = vmul.f32 %v1509, %v52
    %v1534 = vmul.f32 %v1514, %v53
    %v1535 = vmul.f32 %v1519, %v54
    %v1536 = vmul.f32 %v1524, %v55
    %v1537 = vmul.f32 %v1529, %v56
    %v1539 = vsel %vm1137, %v1532, 0
    %v1542 = vsel %vm1137, %v1533, 0
    %v1545 = vsel %vm1137, %v1534, 0
    %v1548 = vsel %vm1137, %v1535, 0
    %v1551 = vsel %vm1137, %v1536, 0
    %v1554 = vsel %vm1137, %v1537, 0
    %1556 = vmatprep.subr.mxu0 0.0
    %1557 = vmatpush1.msra.mxu0 %v57
    %1558 = vmatprep.subr.mxu0 0.0
    %1559 = vmatpush1.msra.mxu0 %v58
    %1560 = vmatprep.subr.mxu0 0.0
    %1561 = vmatpush1.msra.mxu0 %v59
    %1562 = vmatprep.subr.mxu0 0.0
    %1563 = vmatpush1.msra.mxu0 %v60
    %1564 = vmatprep.subr.mxu0 0.0
    %1565 = vmatpush1.msra.mxu0 %v61
    %1566 = vmatprep.subr.mxu0 0.0
    %1567 = vmatpush1.msra.mxu0 %v62
    %1568 = vmatprep.subr.mxu0 0.0
    %1569 = vmatpush1.msra.mxu0 %v63
    %1570 = vmatprep.subr.mxu0 0.0
    %1571 = vmatpush1.msra.mxu0 %v64
    %1572 = vmatprep.subr.mxu0 0.0
    %1573 = vmatpush1.msra.mxu0 %v65
    %1574 = vmatprep.subr.mxu0 0.0
    %1575 = vmatpush1.msra.mxu0 %v66
    %1576 = vmatprep.subr.mxu0 0.0
    %1577 = vmatpush1.msra.mxu0 %v67
    %1578 = vmatprep.subr.mxu0 0.0
    %1579 = vmatpush1.msra.mxu0 %v68
    %1580 = vmatprep.subr.mxu0 0.0
    %1581 = vmatpush1.msra.mxu0 0.0
    %1582 = vmatprep.subr.mxu0 0.0
    %1583 = vmatpush1.msra.mxu0 0.0
    %1584 = vmatprep.subr.mxu0 0.0
    %1585 = vmatpush1.msra.mxu0 0.0
    %1586 = vmatprep.subr.mxu0 0.0
    %1587 = vmatpush1.msra.mxu0 0.0
    %1588 = vmatprep.subr.mxu0 0.0
    %1589 = vmatpush1.msra.mxu0 0.0
    %1590 = vmatprep.subr.mxu0 0.0
    %1591 = vmatpush1.msra.mxu0 0.0
    %1592 = vmatprep.subr.mxu0 0.0
    %1593 = vmatpush1.msra.mxu0 0.0
    %1594 = vmatprep.subr.mxu0 0.0
    %1595 = vmatpush1.msra.mxu0 0.0
    %1596 = vmatprep.subr.mxu0 0.0
    %1597 = vmatpush1.msra.mxu0 0.0
    %1598 = vmatprep.subr.mxu0 0.0
    %1599 = vmatpush1.msra.mxu0 0.0
    %1600 = vmatprep.subr.mxu0 0.0
    %1601 = vmatpush1.msra.mxu0 0.0
    %1602 = vmatprep.subr.mxu0 0.0
    %1603 = vmatpush1.msra.mxu0 0.0
    %1604 = vmatprep.subr.mxu0 0.0
    %1605 = vmatpush1.msra.mxu0 0.0
    %1606 = vmatprep.subr.mxu0 0.0
    %1607 = vmatpush1.msra.mxu0 0.0
    %1608 = vmatprep.subr.mxu0 0.0
    %1609 = vmatpush1.msra.mxu0 0.0
    %1610 = vmatprep.subr.mxu0 0.0
    %1611 = vmatpush1.msra.mxu0 0.0
    %1612 = vmatprep.subr.mxu0 0.0
    %1613 = vmatpush1.msra.mxu0 0.0
    %1614 = vmatprep.subr.mxu0 0.0
    %1615 = vmatpush1.msra.mxu0 0.0
    %1616 = vmatprep.subr.mxu0 0.0
    %1617 = vmatpush1.msra.mxu0 0.0
    %1618 = vmatprep.subr.mxu0 0.0
    %1619 = vmatpush1.msra.mxu0 0.0
    %1620 = vmatprep.mubr.f32.mxu0 0.0
    %1621 = vmatmul.mubr.f32.gmra.mrb[0].mxu0 %v1539
    %v1622 = vpop.f32.mrb[0].mxu0
    %v1623 = vadd.f32 %v69, %v1622
    %v1624 = vpop.f32.mrb[0].mxu0
    %1625 = vmatprep.mubr.f32.mxu0 0.0
    %1626 = vmatmul.mubr.f32.gmra.mrb[0].mxu0 %v1542
    %v1627 = vpop.f32.mrb[0].mxu0
    %v1628 = vadd.f32 %v70, %v1627
    %v1629 = vpop.f32.mrb[0].mxu0
    %1630 = vmatprep.mubr.f32.mxu0 0.0
    %1631 = vmatmul.mubr.f32.gmra.mrb[0].mxu0 %v1545
    %v1632 = vpop.f32.mrb[0].mxu0
    %v1633 = vadd.f32 %v71, %v1632
    %v1634 = vpop.f32.mrb[0].mxu0
    %1635 = vmatprep.mubr.f32.mxu0 0.0
    %1636 = vmatmul.mubr.f32.gmra.mrb[0].mxu0 %v1548
    %v1637 = vpop.f32.mrb[0].mxu0
    %v1638 = vadd.f32 %v72, %v1637
    %v1639 = vpop.f32.mrb[0].mxu0
    %1640 = vmatprep.mubr.f32.mxu0 0.0
    %1641 = vmatmul.mubr.f32.gmra.mrb[0].mxu0 %v1551
    %v1642 = vpop.f32.mrb[0].mxu0
    %v1643 = vadd.f32 %v73, %v1642
    %v1644 = vpop.f32.mrb[0].mxu0
    %1645 = vmatprep.mubr.f32.mxu0 0.0
    %1646 = vmatmul.mubr.f32.gmra.mrb[0].mxu0 %v1554
    %v1647 = vpop.f32.mrb[0].mxu0
    %v1648 = vadd.f32 %v74, %v1647
    %v1649 = vpop.f32.mrb[0].mxu0
    %1650 = vdwg.mxu0
    %v1651 = vmax.f32 %v1623, 0.0
    %v1652 = vmax.f32 %v1628, 0.0
    %v1653 = vmax.f32 %v1633, 0.0
    %v1654 = vmax.f32 %v1638, 0.0
    %v1655 = vmax.f32 %v1643, 0.0
    %v1656 = vmax.f32 %v1648, 0.0
    %v1657 = vmax.f32 %v1651, %v1652
    %v1658 = vmax.f32 %v1657, %v1653
    %v1659 = vmax.f32 %v1654, %v1655
    %v1661 = vsel %vm1032, %v1654, 0
    %v1664 = vsel %vm1032, %v1655, 0
    %1666 = vmatprep.subr.mxu0 0.0
    %1667 = vmatpush1.msra.mxu0 %v98
    %1668 = vmatprep.subr.mxu0 0.0
    %1669 = vmatpush1.msra.mxu0 %v99
    %1670 = vmatprep.subr.mxu0 0.0
    %1671 = vmatpush1.msra.mxu0 %v100
    %1672 = vmatprep.subr.mxu0 0.0
    %1673 = vmatpush1.msra.mxu0 %v101
    %1674 = vmatprep.subr.mxu0 0.0
    %1675 = vmatpush1.msra.mxu0 0.0
    %1676 = vmatprep.subr.mxu0 0.0
    %1677 = vmatpush1.msra.mxu0 0.0
    %1678 = vmatprep.subr.mxu0 0.0
    %1679 = vmatpush1.msra.mxu0 0.0
    %1680 = vmatprep.subr.mxu0 0.0
    %1681 = vmatpush1.msra.mxu0 0.0
    %1682 = vmatprep.subr.mxu0 0.0
    %1683 = vmatpush1.msra.mxu0 0.0
    %1684 = vmatprep.subr.mxu0 0.0
    %1685 = vmatpush1.msra.mxu0 0.0
    %1686 = vmatprep.subr.mxu0 0.0
    %1687 = vmatpush1.msra.mxu0 0.0
    %1688 = vmatprep.subr.mxu0 0.0
    %1689 = vmatpush1.msra.mxu0 0.0
    %1690 = vmatprep.subr.mxu0 0.0
    %1691 = vmatpush1.msra.mxu0 0.0
    %1692 = vmatprep.subr.mxu0 0.0
    %1693 = vmatpush1.msra.mxu0 0.0
    %1694 = vmatprep.subr.mxu0 0.0
    %1695 = vmatpush1.msra.mxu0 0.0
    %1696 = vmatprep.subr.mxu0 0.0
    %1697 = vmatpush1.msra.mxu0 0.0
    %1698 = vmatprep.subr.mxu0 0.0
    %1699 = vmatpush1.msra.mxu0 0.0
    %1700 = vmatprep.subr.mxu0 0.0
    %1701 = vmatpush1.msra.mxu0 0.0
    %1702 = vmatprep.subr.mxu0 0.0
    %1703 = vmatpush1.msra.mxu0 0.0
    %1704 = vmatprep.subr.mxu0 0.0
    %1705 = vmatpush1.msra.mxu0 0.0
    %1706 = vmatprep.subr.mxu0 0.0
    %1707 = vmatpush1.msra.mxu0 0.0
    %1708 = vmatprep.subr.mxu0 0.0
    %1709 = vmatpush1.msra.mxu0 0.0
    %1710 = vmatprep.subr.mxu0 0.0
    %1711 = vmatpush1.msra.mxu0 0.0
    %1712 = vmatprep.subr.mxu0 0.0
    %1713 = vmatpush1.msra.mxu0 0.0
    %1714 = vmatprep.subr.mxu0 0.0
    %1715 = vmatpush1.msra.mxu0 0.0
    %1716 = vmatprep.subr.mxu0 0.0
    %1717 = vmatpush1.msra.mxu0 0.0
    %1718 = vmatprep.subr.mxu0 0.0
    %1719 = vmatpush1.msra.mxu0 0.0
    %1720 = vmatprep.subr.mxu0 0.0
    %1721 = vmatpush1.msra.mxu0 0.0
    %1722 = vmatprep.subr.mxu0 0.0
    %1723 = vmatpush1.msra.mxu0 0.0
    %1724 = vmatprep.subr.mxu0 0.0
    %1725 = vmatpush1.msra.mxu0 0.0
    %1726 = vmatprep.subr.mxu0 0.0
    %1727 = vmatpush1.msra.mxu0 0.0
    %1728 = vmatprep.subr.mxu0 0.0
    %1729 = vmatpush1.msra.mxu0 0.0
    %1730 = vmatprep.mubr.f32.mxu0 0.0
    %1731 = vmatmul.mubr.f32.gmra.mrb[0].mxu0 %v1661
    %v1732 = vpop.f32.mrb[0].mxu0
    %v1733 = vadd.f32 %v102, %v1732
    %v1734 = vpop.f32.mrb[0].mxu0
    %1735 = vmatprep.mubr.f32.mxu0 0.0
    %1736 = vmatmul.mubr.f32.gmra.mrb[0].mxu0 %v1664
    %v1737 = vpop.f32.mrb[0].mxu0
    %v1738 = vadd.f32 %v103, %v1737
    %v1739 = vpop.f32.mrb[0].mxu0
    %1740 = vdwg.mxu0
    %v1741 = vmax.f32 %v1733, 0.0
    %v1742 = vmax.f32 %v1738, 0.0
    %v1744 = vsel %vm1032, %v1741, 0
    %v1747 = vsel %vm1032, %v1742, 0
    %1749 = vmatprep.subr.mxu0 0.0
    %1750 = vmatpush1.msra.mxu0 %v104
    %1751 = vmatprep.subr.mxu0 0.0
    %1752 = vmatpush1.msra.mxu0 %v105
    %1753 = vmatprep.subr.mxu0 0.0
    %1754 = vmatpush1.msra.mxu0 %v106
    %1755 = vmatprep.subr.mxu0 0.0
    %1756 = vmatpush1.msra.mxu0 %v107
    %1757 = vmatprep.subr.mxu0 0.0
    %1758 = vmatpush1.msra.mxu0 0.0
    %1759 = vmatprep.subr.mxu0 0.0
    %1760 = vmatpush1.msra.mxu0 0.0
    %1761 = vmatprep.subr.mxu0 0.0
    %1762 = vmatpush1.msra.mxu0 0.0
    %1763 = vmatprep.subr.mxu0 0.0
    %1764 = vmatpush1.msra.mxu0 0.0
    %1765 = vmatprep.subr.mxu0 0.0
    %1766 = vmatpush1.msra.mxu0 0.0
    %1767 = vmatprep.subr.mxu0 0.0
    %1768 = vmatpush1.msra.mxu0 0.0
    %1769 = vmatprep.subr.mxu0 0.0
    %1770 = vmatpush1.msra.mxu0 0.0
    %1771 = vmatprep.subr.mxu0 0.0
    %1772 = vmatpush1.msra.mxu0 0.0
    %1773 = vmatprep.subr.mxu0 0.0
    %1774 = vmatpush1.msra.mxu0 0.0
    %1775 = vmatprep.subr.mxu0 0.0
    %1776 = vmatpush1.msra.mxu0 0.0
    %1777 = vmatprep.subr.mxu0 0.0
    %1778 = vmatpush1.msra.mxu0 0.0
    %1779 = vmatprep.subr.mxu0 0.0
    %1780 = vmatpush1.msra.mxu0 0.0
    %1781 = vmatprep.subr.mxu0 0.0
    %1782 = vmatpush1.msra.mxu0 0.0
    %1783 = vmatprep.subr.mxu0 0.0
    %1784 = vmatpush1.msra.mxu0 0.0
    %1785 = vmatprep.subr.mxu0 0.0
    %1786 = vmatpush1.msra.mxu0 0.0
    %1787 = vmatprep.subr.mxu0 0.0
    %1788 = vmatpush1.msra.mxu0 0.0
    %1789 = vmatprep.subr.mxu0 0.0
    %1790 = vmatpush1.msra.mxu0 0.0
    %1791 = vmatprep.subr.mxu0 0.0
    %1792 = vmatpush1.msra.mxu0 0.0
    %1793 = vmatprep.subr.mxu0 0.0
    %1794 = vmatpush1.msra.mxu0 0.0
    %1795 = vmatprep.subr.mxu0 0.0
    %1796 = vmatpush1.msra.mxu0 0.0
    %1797 = vmatprep.subr.mxu0 0.0
    %1798 = vmatpush1.msra.mxu0 0.0
    %1799 = vmatprep.subr.mxu0 0.0
    %1800 = vmatpush1.msra.mxu0 0.0
    %1801 = vmatprep.subr.mxu0 0.0
    %1802 = vmatpush1.msra.mxu0 0.0
    %1803 = vmatprep.subr.mxu0 0.0
    %1804 = vmatpush1.msra.mxu0 0.0
    %1805 = vmatprep.subr.mxu0 0.0
    %1806 = vmatpush1.msra.mxu0 0.0
    %1807 = vmatprep.subr.mxu0 0.0
    %1808 = vmatpush1.msra.mxu0 0.0
    %1809 = vmatprep.subr.mxu0 0.0
    %1810 = vmatpush1.msra.mxu0 0.0
    %1811 = vmatprep.subr.mxu0 0.0
    %1812 = vmatpush1.msra.mxu0 0.0
    %1813 = vmatprep.mubr.f32.mxu0 0.0
    %1814 = vmatmul.mubr.f32.gmra.mrb[0].mxu0 %v1744
    %v1815 = vpop.f32.mrb[0].mxu0
    %v1816 = vadd.f32 %v108, %v1815
    %v1817 = vpop.f32.mrb[0].mxu0
    %1818 = vmatprep.mubr.f32.mxu0 0.0
    %1819 = vmatmul.mubr.f32.gmra.mrb[0].mxu0 %v1747
    %v1820 = vpop.f32.mrb[0].mxu0
    %v1821 = vadd.f32 %v109, %v1820
    %v1822 = vpop.f32.mrb[0].mxu0
    %1823 = vdwg.mxu0
    %1825 = vrot.lane.b32.xlu0 %v1656, 32
    %v1826 = vpop.permute.xlu0 %1825
    %1829 = vrot.lane.b32.xlu0 %v1659, 64
    %v1830 = vpop.permute.xlu0 %1829
    %v1832 = vsel %vm1032, %v1658, %v1826
    %vm1833 = vcmask 523264
    %v1834 = vsel %vm1833, %v1832, %v1830
    %v1836 = vsel %vm1137, %v1834, 0
    %1838 = vmatprep.subr.mxu0 0.0
    %1839 = vmatpush1.msra.mxu0 %v75
    %1840 = vmatprep.subr.mxu0 0.0
    %1841 = vmatpush1.msra.mxu0 %v76
    %1842 = vmatprep.subr.mxu0 0.0
    %1843 = vmatpush1.msra.mxu0 %v77
    %1844 = vmatprep.subr.mxu0 0.0
    %1845 = vmatpush1.msra.mxu0 %v78
    %1846 = vmatprep.subr.mxu0 0.0
    %1847 = vmatpush1.msra.mxu0 %v79
    %1848 = vmatprep.subr.mxu0 0.0
    %1849 = vmatpush1.msra.mxu0 %v80
    %1850 = vmatprep.subr.mxu0 0.0
    %1851 = vmatpush1.msra.mxu0 %v81
    %1852 = vmatprep.subr.mxu0 0.0
    %1853 = vmatpush1.msra.mxu0 %v82
    %1854 = vmatprep.subr.mxu0 0.0
    %1855 = vmatpush1.msra.mxu0 %v83
    %1856 = vmatprep.subr.mxu0 0.0
    %1857 = vmatpush1.msra.mxu0 %v84
    %1858 = vmatprep.subr.mxu0 0.0
    %1859 = vmatpush1.msra.mxu0 %v85
    %1860 = vmatprep.subr.mxu0 0.0
    %1861 = vmatpush1.msra.mxu0 %v86
    %1862 = vmatprep.subr.mxu0 0.0
    %1863 = vmatpush1.msra.mxu0 0.0
    %1864 = vmatprep.subr.mxu0 0.0
    %1865 = vmatpush1.msra.mxu0 0.0
    %1866 = vmatprep.subr.mxu0 0.0
    %1867 = vmatpush1.msra.mxu0 0.0
    %1868 = vmatprep.subr.mxu0 0.0
    %1869 = vmatpush1.msra.mxu0 0.0
    %1870 = vmatprep.subr.mxu0 0.0
    %1871 = vmatpush1.msra.mxu0 0.0
    %1872 = vmatprep.subr.mxu0 0.0
    %1873 = vmatpush1.msra.mxu0 0.0
    %1874 = vmatprep.subr.mxu0 0.0
    %1875 = vmatpush1.msra.mxu0 0.0
    %1876 = vmatprep.subr.mxu0 0.0
    %1877 = vmatpush1.msra.mxu0 0.0
    %1878 = vmatprep.subr.mxu0 0.0
    %1879 = vmatpush1.msra.mxu0 0.0
    %1880 = vmatprep.subr.mxu0 0.0
    %1881 = vmatpush1.msra.mxu0 0.0
    %1882 = vmatprep.subr.mxu0 0.0
    %1883 = vmatpush1.msra.mxu0 0.0
    %1884 = vmatprep.subr.mxu0 0.0
    %1885 = vmatpush1.msra.mxu0 0.0
    %1886 = vmatprep.subr.mxu0 0.0
    %1887 = vmatpush1.msra.mxu0 0.0
    %1888 = vmatprep.subr.mxu0 0.0
    %1889 = vmatpush1.msra.mxu0 0.0
    %1890 = vmatprep.subr.mxu0 0.0
    %1891 = vmatpush1.msra.mxu0 0.0
    %1892 = vmatprep.subr.mxu0 0.0
    %1893 = vmatpush1.msra.mxu0 0.0
    %1894 = vmatprep.subr.mxu0 0.0
    %1895 = vmatpush1.msra.mxu0 0.0
    %1896 = vmatprep.subr.mxu0 0.0
    %1897 = vmatpush1.msra.mxu0 0.0
    %1898 = vmatprep.subr.mxu0 0.0
    %1899 = vmatpush1.msra.mxu0 0.0
    %1900 = vmatprep.subr.mxu0 0.0
    %1901 = vmatpush1.msra.mxu0 0.0
    %1902 = vmatprep.mubr.f32.mxu0 0.0
    %1903 = vmatmul.mubr.f32.gmra.mrb[0].mxu0 %v1836
    %v1904 = vpop.f32.mrb[0].mxu0
    %v1905 = vadd.f32 %v91, %v1904
    %v1906 = vpop.f32.mrb[0].mxu0
    %1907 = vdwg.mxu0
    %1908 = vmatprep.subr.mxu0 0.0
    %1909 = vmatpush1.msra.mxu0 %v87
    %1910 = vmatprep.subr.mxu0 0.0
    %1911 = vmatpush1.msra.mxu0 %v88
    %1912 = vmatprep.subr.mxu0 0.0
    %1913 = vmatpush1.msra.mxu0 %v89
    %1914 = vmatprep.subr.mxu0 0.0
    %1915 = vmatpush1.msra.mxu0 %v90
    %1916 = vmatprep.subr.mxu0 0.0
    %1917 = vmatpush1.msra.mxu0 0.0
    %1918 = vmatprep.subr.mxu0 0.0
    %1919 = vmatpush1.msra.mxu0 0.0
    %1920 = vmatprep.subr.mxu0 0.0
    %1921 = vmatpush1.msra.mxu0 0.0
    %1922 = vmatprep.subr.mxu0 0.0
    %1923 = vmatpush1.msra.mxu0 0.0
    %1924 = vmatprep.subr.mxu0 0.0
    %1925 = vmatpush1.msra.mxu0 0.0
    %1926 = vmatprep.subr.mxu0 0.0
    %1927 = vmatpush1.msra.mxu0 0.0
    %1928 = vmatprep.subr.mxu0 0.0
    %1929 = vmatpush1.msra.mxu0 0.0
    %1930 = vmatprep.subr.mxu0 0.0
    %1931 = vmatpush1.msra.mxu0 0.0
    %1932 = vmatprep.subr.mxu0 0.0
    %1933 = vmatpush1.msra.mxu0 0.0
    %1934 = vmatprep.subr.mxu0 0.0
    %1935 = vmatpush1.msra.mxu0 0.0
    %1936 = vmatprep.subr.mxu0 0.0
    %1937 = vmatpush1.msra.mxu0 0.0
    %1938 = vmatprep.subr.mxu0 0.0
    %1939 = vmatpush1.msra.mxu0 0.0
    %1940 = vmatprep.subr.mxu0 0.0
    %1941 = vmatpush1.msra.mxu0 0.0
    %1942 = vmatprep.subr.mxu0 0.0
    %1943 = vmatpush1.msra.mxu0 0.0
    %1944 = vmatprep.subr.mxu0 0.0
    %1945 = vmatpush1.msra.mxu0 0.0
    %1946 = vmatprep.subr.mxu0 0.0
    %1947 = vmatpush1.msra.mxu0 0.0
    %1948 = vmatprep.subr.mxu0 0.0
    %1949 = vmatpush1.msra.mxu0 0.0
    %1950 = vmatprep.subr.mxu0 0.0
    %1951 = vmatpush1.msra.mxu0 0.0
    %1952 = vmatprep.subr.mxu0 0.0
    %1953 = vmatpush1.msra.mxu0 0.0
    %1954 = vmatprep.subr.mxu0 0.0
    %1955 = vmatpush1.msra.mxu0 0.0
    %1956 = vmatprep.subr.mxu0 0.0
    %1957 = vmatpush1.msra.mxu0 0.0
    %1958 = vmatprep.subr.mxu0 0.0
    %1959 = vmatpush1.msra.mxu0 0.0
    %1960 = vmatprep.subr.mxu0 0.0
    %1961 = vmatpush1.msra.mxu0 0.0
    %1962 = vmatprep.subr.mxu0 0.0
    %1963 = vmatpush1.msra.mxu0 0.0
    %1964 = vmatprep.subr.mxu0 0.0
    %1965 = vmatpush1.msra.mxu0 0.0
    %1966 = vmatprep.subr.mxu0 0.0
    %1967 = vmatpush1.msra.mxu0 0.0
    %1968 = vmatprep.subr.mxu0 0.0
    %1969 = vmatpush1.msra.mxu0 0.0
    %1970 = vmatprep.subr.mxu0 0.0
    %1971 = vmatpush1.msra.mxu0 0.0
    %1972 = vmatprep.mubr.f32.mxu0 0.0
    %1973 = vmatmul.mubr.f32.gmra.mrb[0].mxu0 %v1034
    %v1974 = vpop.f32.mrb[0].mxu0
    %v1975 = vadd.f32 %v92, %v1974
    %v1976 = vpop.f32.mrb[0].mxu0
    %1977 = vdwg.mxu0
    %v1978 = vadd.f32 %v1905, %v1975
    %v1979 = vxor.u32 %v1978, 2147483648
    %v1980 = vmul.f32 %v1979, 1.442695
    %v1981 = vpow.pop %v1980
    %v1982 = vadd.f32 %v1981, 1.0
    %v1983 = vrcp.pop %v1982
    %v1984 = vmul.f32 1.0, %v1983
    %1986 = vrot.lane.b32.xlu0 %v1975, 64
    %v1987 = vpop.permute.xlu0 %1986
    %v1989 = vmul.f32 %v1984, %v1987
    %1991 = vrot.lane.b32.xlu0 %v1989, 64
    %v1992 = vpop.permute.xlu0 %1991
    %v1994 = vadd.f32 %v1905, %v1992
    %v1995 = vtanh.pop %v1994
    %v1996 = vsub.f32 1.0, %v1984
    %1998 = vrot.lane.b32.xlu0 %v1995, 96
    %v1999 = vpop.permute.xlu0 %1998
    %v2001 = vmul.f32 %v1996, %v1999
    %v2002 = vmul.f32 %v1984, 0.0
    %v2003 = vadd.f32 %v2001, %v2002
    %2005 = vrot.lane.b32.xlu0 %v2003, 96
    %v2006 = vpop.permute.xlu0 %2005
    %v2007 = vsel %vm1032, %v2006, 0
    %2009 = vmatprep.subr.mxu0 0.0
    %2010 = vmatpush1.msra.mxu0 %v93
    %2011 = vmatprep.subr.mxu0 0.0
    %2012 = vmatpush1.msra.mxu0 %v94
    %2013 = vmatprep.subr.mxu0 0.0
    %2014 = vmatpush1.msra.mxu0 %v95
    %2015 = vmatprep.subr.mxu0 0.0
    %2016 = vmatpush1.msra.mxu0 %v96
    %2017 = vmatprep.subr.mxu0 0.0
    %2018 = vmatpush1.msra.mxu0 0.0
    %2019 = vmatprep.subr.mxu0 0.0
    %2020 = vmatpush1.msra.mxu0 0.0
    %2021 = vmatprep.subr.mxu0 0.0
    %2022 = vmatpush1.msra.mxu0 0.0
    %2023 = vmatprep.subr.mxu0 0.0
    %2024 = vmatpush1.msra.mxu0 0.0
    %2025 = vmatprep.subr.mxu0 0.0
    %2026 = vmatpush1.msra.mxu0 0.0
    %2027 = vmatprep.subr.mxu0 0.0
    %2028 = vmatpush1.msra.mxu0 0.0
    %2029 = vmatprep.subr.mxu0 0.0
    %2030 = vmatpush1.msra.mxu0 0.0
    %2031 = vmatprep.subr.mxu0 0.0
    %2032 = vmatpush1.msra.mxu0 0.0
    %2033 = vmatprep.subr.mxu0 0.0
    %2034 = vmatpush1.msra.mxu0 0.0
    %2035 = vmatprep.subr.mxu0 0.0
    %2036 = vmatpush1.msra.mxu0 0.0
    %2037 = vmatprep.subr.mxu0 0.0
    %2038 = vmatpush1.msra.mxu0 0.0
    %2039 = vmatprep.subr.mxu0 0.0
    %2040 = vmatpush1.msra.mxu0 0.0
    %2041 = vmatprep.subr.mxu0 0.0
    %2042 = vmatpush1.msra.mxu0 0.0
    %2043 = vmatprep.subr.mxu0 0.0
    %2044 = vmatpush1.msra.mxu0 0.0
    %2045 = vmatprep.subr.mxu0 0.0
    %2046 = vmatpush1.msra.mxu0 0.0
    %2047 = vmatprep.subr.mxu0 0.0
    %2048 = vmatpush1.msra.mxu0 0.0
    %2049 = vmatprep.subr.mxu0 0.0
    %2050 = vmatpush1.msra.mxu0 0.0
    %2051 = vmatprep.subr.mxu0 0.0
    %2052 = vmatpush1.msra.mxu0 0.0
    %2053 = vmatprep.subr.mxu0 0.0
    %2054 = vmatpush1.msra.mxu0 0.0
    %2055 = vmatprep.subr.mxu0 0.0
    %2056 = vmatpush1.msra.mxu0 0.0
    %2057 = vmatprep.subr.mxu0 0.0
    %2058 = vmatpush1.msra.mxu0 0.0
    %2059 = vmatprep.subr.mxu0 0.0
    %2060 = vmatpush1.msra.mxu0 0.0
    %2061 = vmatprep.subr.mxu0 0.0
    %2062 = vmatpush1.msra.mxu0 0.0
    %2063 = vmatprep.subr.mxu0 0.0
    %2064 = vmatpush1.msra.mxu0 0.0
    %2065 = vmatprep.subr.mxu0 0.0
    %2066 = vmatpush1.msra.mxu0 0.0
    %2067 = vmatprep.subr.mxu0 0.0
    %2068 = vmatpush1.msra.mxu0 0.0
    %2069 = vmatprep.subr.mxu0 0.0
    %2070 = vmatpush1.msra.mxu0 0.0
    %2071 = vmatprep.subr.mxu0 0.0
    %2072 = vmatpush1.msra.mxu0 0.0
    %2073 = vmatprep.mubr.f32.mxu0 0.0
    %2074 = vmatmul.mubr.f32.gmra.mrb[0].mxu0 %v2007
    %v2075 = vpop.f32.mrb[0].mxu0
    %v2076 = vadd.f32 %v97, %v2075
    %v2077 = vpop.f32.mrb[0].mxu0
    %2078 = vdwg.mxu0
    %v2079 = vmax.f32 %v2076, 0.0
    %v2081 = vsel %vm1032, %v2079, 0
    %2083 = vmatprep.subr.mxu0 0.0
    %2084 = vmatpush1.msra.mxu0 %v110
    %2085 = vmatprep.subr.mxu0 0.0
    %2086 = vmatpush1.msra.mxu0 %v111
    %2087 = vmatprep.subr.mxu0 0.0
    %2088 = vmatpush1.msra.mxu0 %v112
    %2089 = vmatprep.subr.mxu0 0.0
    %2090 = vmatpush1.msra.mxu0 %v113
    %2091 = vmatprep.subr.mxu0 0.0
    %2092 = vmatpush1.msra.mxu0 0.0
    %2093 = vmatprep.subr.mxu0 0.0
    %2094 = vmatpush1.msra.mxu0 0.0
    %2095 = vmatprep.subr.mxu0 0.0
    %2096 = vmatpush1.msra.mxu0 0.0
    %2097 = vmatprep.subr.mxu0 0.0
    %2098 = vmatpush1.msra.mxu0 0.0
    %2099 = vmatprep.subr.mxu0 0.0
    %2100 = vmatpush1.msra.mxu0 0.0
    %2101 = vmatprep.subr.mxu0 0.0
    %2102 = vmatpush1.msra.mxu0 0.0
    %2103 = vmatprep.subr.mxu0 0.0
    %2104 = vmatpush1.msra.mxu0 0.0
    %2105 = vmatprep.subr.mxu0 0.0
    %2106 = vmatpush1.msra.mxu0 0.0
    %2107 = vmatprep.subr.mxu0 0.0
    %2108 = vmatpush1.msra.mxu0 0.0
    %2109 = vmatprep.subr.mxu0 0.0
    %2110 = vmatpush1.msra.mxu0 0.0
    %2111 = vmatprep.subr.mxu0 0.0
    %2112 = vmatpush1.msra.mxu0 0.0
    %2113 = vmatprep.subr.mxu0 0.0
    %2114 = vmatpush1.msra.mxu0 0.0
    %2115 = vmatprep.subr.mxu0 0.0
    %2116 = vmatpush1.msra.mxu0 0.0
    %2117 = vmatprep.subr.mxu0 0.0
    %2118 = vmatpush1.msra.mxu0 0.0
    %2119 = vmatprep.subr.mxu0 0.0
    %2120 = vmatpush1.msra.mxu0 0.0
    %2121 = vmatprep.subr.mxu0 0.0
    %2122 = vmatpush1.msra.mxu0 0.0
    %2123 = vmatprep.subr.mxu0 0.0
    %2124 = vmatpush1.msra.mxu0 0.0
    %2125 = vmatprep.subr.mxu0 0.0
    %2126 = vmatpush1.msra.mxu0 0.0
    %2127 = vmatprep.subr.mxu0 0.0
    %2128 = vmatpush1.msra.mxu0 0.0
    %2129 = vmatprep.subr.mxu0 0.0
    %2130 = vmatpush1.msra.mxu0 0.0
    %2131 = vmatprep.subr.mxu0 0.0
    %2132 = vmatpush1.msra.mxu0 0.0
    %2133 = vmatprep.subr.mxu0 0.0
    %2134 = vmatpush1.msra.mxu0 0.0
    %2135 = vmatprep.subr.mxu0 0.0
    %2136 = vmatpush1.msra.mxu0 0.0
    %2137 = vmatprep.subr.mxu0 0.0
    %2138 = vmatpush1.msra.mxu0 0.0
    %2139 = vmatprep.subr.mxu0 0.0
    %2140 = vmatpush1.msra.mxu0 0.0
    %2141 = vmatprep.subr.mxu0 0.0
    %2142 = vmatpush1.msra.mxu0 0.0
    %2143 = vmatprep.subr.mxu0 0.0
    %2144 = vmatpush1.msra.mxu0 0.0
    %2145 = vmatprep.subr.mxu0 0.0
    %2146 = vmatpush1.msra.mxu0 0.0
    %2147 = vmatprep.mubr.f32.mxu0 0.0
    %2148 = vmatmul.mubr.f32.gmra.mrb[0].mxu0 %v2081
    %v2149 = vpop.f32.mrb[0].mxu0
    %v2150 = vadd.f32 %v114, %v2149
    %v2151 = vpop.f32.mrb[0].mxu0
    %2152 = vdwg.mxu0
    %v2153 = vmax.f32 %v2150, 0.0
    %v2155 = vsel %vm1833, %v2153, 0
    %2157 = vmatprep.subr.mxu0 0.0
    %2158 = vmatpush1.msra.mxu0 %v115
    %2159 = vmatprep.subr.mxu0 0.0
    %2160 = vmatpush1.msra.mxu0 %v116
    %2161 = vmatprep.subr.mxu0 0.0
    %2162 = vmatpush1.msra.mxu0 %v117
    %2163 = vmatprep.subr.mxu0 0.0
    %2164 = vmatpush1.msra.mxu0 %v118
    %2165 = vmatprep.subr.mxu0 0.0
    %2166 = vmatpush1.msra.mxu0 %v119
    %2167 = vmatprep.subr.mxu0 0.0
    %2168 = vmatpush1.msra.mxu0 %v120
    %2169 = vmatprep.subr.mxu0 0.0
    %2170 = vmatpush1.msra.mxu0 %v121
    %2171 = vmatprep.subr.mxu0 0.0
    %2172 = vmatpush1.msra.mxu0 %v122
    %2173 = vmatprep.subr.mxu0 0.0
    %2174 = vmatpush1.msra.mxu0 0.0
    %2175 = vmatprep.subr.mxu0 0.0
    %2176 = vmatpush1.msra.mxu0 0.0
    %2177 = vmatprep.subr.mxu0 0.0
    %2178 = vmatpush1.msra.mxu0 0.0
    %2179 = vmatprep.subr.mxu0 0.0
    %2180 = vmatpush1.msra.mxu0 0.0
    %2181 = vmatprep.subr.mxu0 0.0
    %2182 = vmatpush1.msra.mxu0 0.0
    %2183 = vmatprep.subr.mxu0 0.0
    %2184 = vmatpush1.msra.mxu0 0.0
    %2185 = vmatprep.subr.mxu0 0.0
    %2186 = vmatpush1.msra.mxu0 0.0
    %2187 = vmatprep.subr.mxu0 0.0
    %2188 = vmatpush1.msra.mxu0 0.0
    %2189 = vmatprep.subr.mxu0 0.0
    %2190 = vmatpush1.msra.mxu0 0.0
    %2191 = vmatprep.subr.mxu0 0.0
    %2192 = vmatpush1.msra.mxu0 0.0
    %2193 = vmatprep.subr.mxu0 0.0
    %2194 = vmatpush1.msra.mxu0 0.0
    %2195 = vmatprep.subr.mxu0 0.0
    %2196 = vmatpush1.msra.mxu0 0.0
    %2197 = vmatprep.subr.mxu0 0.0
    %2198 = vmatpush1.msra.mxu0 0.0
    %2199 = vmatprep.subr.mxu0 0.0
    %2200 = vmatpush1.msra.mxu0 0.0
    %2201 = vmatprep.subr.mxu0 0.0
    %2202 = vmatpush1.msra.mxu0 0.0
    %2203 = vmatprep.subr.mxu0 0.0
    %2204 = vmatpush1.msra.mxu0 0.0
    %2205 = vmatprep.subr.mxu0 0.0
    %2206 = vmatpush1.msra.mxu0 0.0
    %2207 = vmatprep.subr.mxu0 0.0
    %2208 = vmatpush1.msra.mxu0 0.0
    %2209 = vmatprep.subr.mxu0 0.0
    %2210 = vmatpush1.msra.mxu0 0.0
    %2211 = vmatprep.subr.mxu0 0.0
    %2212 = vmatpush1.msra.mxu0 0.0
    %2213 = vmatprep.subr.mxu0 0.0
    %2214 = vmatpush1.msra.mxu0 0.0
    %2215 = vmatprep.subr.mxu0 0.0
    %2216 = vmatpush1.msra.mxu0 0.0
    %2217 = vmatprep.subr.mxu0 0.0
    %2218 = vmatpush1.msra.mxu0 0.0
    %2219 = vmatprep.subr.mxu0 0.0
    %2220 = vmatpush1.msra.mxu0 0.0
    %2221 = vmatprep.mubr.f32.mxu0 0.0
    %2222 = vmatmul.mubr.f32.gmra.mrb[0].mxu0 %v2155
    %v2223 = vpop.f32.mrb[0].mxu0
    %v2224 = vadd.f32 %v123, %v2223
    %v2225 = vpop.f32.mrb[0].mxu0
    %2226 = vdwg.mxu0
    %v2227 = vtanh.pop %v2224
    %v2228 = vmul.f32 %v2227, 0.1
    %vm2229 = vcmask 80912
    %v2230 = vsel %vm2229, %v2224, -inf
    %2231 = vmax.xlane.f32.xlu0 %v2230
    %v2232 = vpop.xlane.xlu0 %2231
    %v2233 = vsub.f32 %v2224, %v2232
    %v2234 = vmul.f32 %v2233, 1.442695
    %v2235 = vpow.pop %v2234
    %2237 = vrot.lane.b32.xlu0 %v2235, 126
    %v2238 = vpop.permute.xlu0 %2237
    %v2240 = vsel %vm151, %v2238, 0.0
    %2241 = vadd.xlane.f32.xlu0 %v2240
    %v2242 = vpop.xlane.xlu0 %2241
    %v2243 = vrcp.pop %v2242
    %v2244 = vmul.f32 %v2235, %v2243
    %v2246 = vsel %vm319, %v148, 0
    %v2248 = vsel %vm338, %v13, 0
    %2250 = vmatprep.subr.mxu0 0.0
    %2251 = vmatpush1.msra.mxu0 %v12
    %2252 = vmatprep.subr.mxu0 0.0
    %2253 = vmatpush1.msra.mxu0 %v2248
    %2254 = vmatprep.subr.mxu0 0.0
    %2255 = vmatpush1.msra.mxu0 0.0
    %2256 = vmatprep.subr.mxu0 0.0
    %2257 = vmatpush1.msra.mxu0 0.0
    %2258 = vmatprep.subr.mxu0 0.0
    %2259 = vmatpush1.msra.mxu0 0.0
    %2260 = vmatprep.subr.mxu0 0.0
    %2261 = vmatpush1.msra.mxu0 0.0
    %2262 = vmatprep.subr.mxu0 0.0
    %2263 = vmatpush1.msra.mxu0 0.0
    %2264 = vmatprep.subr.mxu0 0.0
    %2265 = vmatpush1.msra.mxu0 0.0
    %2266 = vmatprep.subr.mxu0 0.0
    %2267 = vmatpush1.msra.mxu0 0.0
    %2268 = vmatprep.subr.mxu0 0.0
    %2269 = vmatpush1.msra.mxu0 0.0
    %2270 = vmatprep.subr.mxu0 0.0
    %2271 = vmatpush1.msra.mxu0 0.0
    %2272 = vmatprep.subr.mxu0 0.0
    %2273 = vmatpush1.msra.mxu0 0.0
    %2274 = vmatprep.subr.mxu0 0.0
    %2275 = vmatpush1.msra.mxu0 0.0
    %2276 = vmatprep.subr.mxu0 0.0
    %2277 = vmatpush1.msra.mxu0 0.0
    %2278 = vmatprep.subr.mxu0 0.0
    %2279 = vmatpush1.msra.mxu0 0.0
    %2280 = vmatprep.subr.mxu0 0.0
    %2281 = vmatpush1.msra.mxu0 0.0
    %2282 = vmatprep.subr.mxu0 0.0
    %2283 = vmatpush1.msra.mxu0 0.0
    %2284 = vmatprep.subr.mxu0 0.0
    %2285 = vmatpush1.msra.mxu0 0.0
    %2286 = vmatprep.subr.mxu0 0.0
    %2287 = vmatpush1.msra.mxu0 0.0
    %2288 = vmatprep.subr.mxu0 0.0
    %2289 = vmatpush1.msra.mxu0 0.0
    %2290 = vmatprep.subr.mxu0 0.0
    %2291 = vmatpush1.msra.mxu0 0.0
    %2292 = vmatprep.subr.mxu0 0.0
    %2293 = vmatpush1.msra.mxu0 0.0
    %2294 = vmatprep.subr.mxu0 0.0
    %2295 = vmatpush1.msra.mxu0 0.0
    %2296 = vmatprep.subr.mxu0 0.0
    %2297 = vmatpush1.msra.mxu0 0.0
    %2298 = vmatprep.subr.mxu0 0.0
    %2299 = vmatpush1.msra.mxu0 0.0
    %2300 = vmatprep.subr.mxu0 0.0
    %2301 = vmatpush1.msra.mxu0 0.0
    %2302 = vmatprep.subr.mxu0 0.0
    %2303 = vmatpush1.msra.mxu0 0.0
    %2304 = vmatprep.subr.mxu0 0.0
    %2305 = vmatpush1.msra.mxu0 0.0
    %2306 = vmatprep.subr.mxu0 0.0
    %2307 = vmatpush1.msra.mxu0 0.0
    %2308 = vmatprep.subr.mxu0 0.0
    %2309 = vmatpush1.msra.mxu0 0.0
    %2310 = vmatprep.subr.mxu0 0.0
    %2311 = vmatpush1.msra.mxu0 0.0
    %2312 = vmatprep.subr.mxu0 0.0
    %2313 = vmatpush1.msra.mxu0 0.0
    %2314 = vmatprep.mubr.f32.mxu0 0.0
    %2315 = vmatmul.mubr.f32.gmra.mrb[0].mxu0 %v2246
    %v2316 = vpop.f32.mrb[0].mxu0
    %v2317 = vadd.f32 %v2228, %v2316
    %v2318 = vpop.f32.mrb[0].mxu0
    %2319 = vdwg.mxu0
    %v2321 = vsel %vm151, %v149, 0
    %v2324 = vsel %vm151, %v150, 0
    %2326 = vmatprep.subr.mxu0 0.0
    %2327 = vmatpush1.msra.mxu0 %v2228
    %2328 = vmatprep.subr.mxu0 0.0
    %2329 = vmatpush1.msra.mxu0 0.0
    %2330 = vmatprep.subr.mxu0 0.0
    %2331 = vmatpush1.msra.mxu0 0.0
    %2332 = vmatprep.subr.mxu0 0.0
    %2333 = vmatpush1.msra.mxu0 0.0
    %2334 = vmatprep.subr.mxu0 0.0
    %2335 = vmatpush1.msra.mxu0 0.0
    %2336 = vmatprep.subr.mxu0 0.0
    %2337 = vmatpush1.msra.mxu0 0.0
    %2338 = vmatprep.subr.mxu0 0.0
    %2339 = vmatpush1.msra.mxu0 0.0
    %2340 = vmatprep.subr.mxu0 0.0
    %2341 = vmatpush1.msra.mxu0 0.0
    %2342 = vmatprep.subr.mxu0 0.0
    %2343 = vmatpush1.msra.mxu0 0.0
    %2344 = vmatprep.subr.mxu0 0.0
    %2345 = vmatpush1.msra.mxu0 0.0
    %2346 = vmatprep.subr.mxu0 0.0
    %2347 = vmatpush1.msra.mxu0 0.0
    %2348 = vmatprep.subr.mxu0 0.0
    %2349 = vmatpush1.msra.mxu0 0.0
    %2350 = vmatprep.subr.mxu0 0.0
    %2351 = vmatpush1.msra.mxu0 0.0
    %2352 = vmatprep.subr.mxu0 0.0
    %2353 = vmatpush1.msra.mxu0 0.0
    %2354 = vmatprep.subr.mxu0 0.0
    %2355 = vmatpush1.msra.mxu0 0.0
    %2356 = vmatprep.subr.mxu0 0.0
    %2357 = vmatpush1.msra.mxu0 0.0
    %2358 = vmatprep.subr.mxu0 0.0
    %2359 = vmatpush1.msra.mxu0 0.0
    %2360 = vmatprep.subr.mxu0 0.0
    %2361 = vmatpush1.msra.mxu0 0.0
    %2362 = vmatprep.subr.mxu0 0.0
    %2363 = vmatpush1.msra.mxu0 0.0
    %2364 = vmatprep.subr.mxu0 0.0
    %2365 = vmatpush1.msra.mxu0 0.0
    %2366 = vmatprep.subr.mxu0 0.0
    %2367 = vmatpush1.msra.mxu0 0.0
    %2368 = vmatprep.subr.mxu0 0.0
    %2369 = vmatpush1.msra.mxu0 0.0
    %2370 = vmatprep.subr.mxu0 0.0
    %2371 = vmatpush1.msra.mxu0 0.0
    %2372 = vmatprep.subr.mxu0 0.0
    %2373 = vmatpush1.msra.mxu0 0.0
    %2374 = vmatprep.subr.mxu0 0.0
    %2375 = vmatpush1.msra.mxu0 0.0
    %2376 = vmatprep.subr.mxu0 0.0
    %2377 = vmatpush1.msra.mxu0 0.0
    %2378 = vmatprep.subr.mxu0 0.0
    %2379 = vmatpush1.msra.mxu0 0.0
    %2380 = vmatprep.subr.mxu0 0.0
    %2381 = vmatpush1.msra.mxu0 0.0
    %2382 = vmatprep.subr.mxu0 0.0
    %2383 = vmatpush1.msra.mxu0 0.0
    %2384 = vmatprep.subr.mxu0 0.0
    %2385 = vmatpush1.msra.mxu0 0.0
    %2386 = vmatprep.subr.mxu0 0.0
    %2387 = vmatpush1.msra.mxu0 0.0
    %2388 = vmatprep.subr.mxu0 0.0
    %2389 = vmatpush1.msra.mxu0 0.0
    %2390 = vmatprep.mubr.f32.mxu0 0.0
    %2391 = vmatmul.mubr.f32.gmra.mrb[0].mxu0 %v2321
    %v2392 = vpop.f32.mrb[0].mxu0
    %v2393 = vadd.f32 0.0, %v2392
    %v2394 = vpop.f32.mrb[0].mxu0
    %2395 = vmatprep.mubr.f32.mxu0 0.0
    %2396 = vmatmul.mubr.f32.gmra.mrb[0].mxu0 %v2324
    %v2397 = vpop.f32.mrb[0].mxu0
    %v2398 = vadd.f32 0.0, %v2397
    %v2399 = vpop.f32.mrb[0].mxu0
    %2400 = vdwg.mxu0
    %v2401 = vadd.f32 %v12, %v2393
    %v2402 = vadd.f32 %v13, %v2398
    %v2403 = vsub.f32 %v2317, %v18
    %v2404 = vmul.f32 %v2403, %v2403
    %v2405 = vadd.f32 %v2404, 0.0
    %v2406 = vmul.f32 %v2228, %v2228
    %v2407 = vmul.f32 %v2406, 0.1
    %v2408 = vadd.f32 %v2405, %v2407
    %v2409 = vsub.f32 %v1816, %v225
    %v2410 = vsub.f32 %v1821, %v230
    %v2411 = vmul.f32 %v2409, %v2409
    %v2412 = vmul.f32 %v2410, %v2410
    %v2413 = vadd.f32 %v2411, 0.0
    %v2414 = vadd.f32 %v2412, 0.0
    %v2416 = vsel %vm233, %v2401, 0
    %v2419 = vsel %vm233, %v2402, 0
    %2421 = vmatprep.subr.mxu0 0.0
    %2422 = vmatpush1.msra.mxu0 %v647
    %2423 = vmatprep.subr.mxu0 0.0
    %2424 = vmatpush1.msra.mxu0 0.0
    %2425 = vmatprep.subr.mxu0 0.0
    %2426 = vmatpush1.msra.mxu0 0.0
    %2427 = vmatprep.subr.mxu0 0.0
    %2428 = vmatpush1.msra.mxu0 0.0
    %2429 = vmatprep.subr.mxu0 0.0
    %2430 = vmatpush1.msra.mxu0 0.0
    %2431 = vmatprep.subr.mxu0 0.0
    %2432 = vmatpush1.msra.mxu0 0.0
    %2433 = vmatprep.subr.mxu0 0.0
    %2434 = vmatpush1.msra.mxu0 0.0
    %2435 = vmatprep.subr.mxu0 0.0
    %2436 = vmatpush1.msra.mxu0 0.0
    %2437 = vmatprep.subr.mxu0 0.0
    %2438 = vmatpush1.msra.mxu0 0.0
    %2439 = vmatprep.subr.mxu0 0.0
    %2440 = vmatpush1.msra.mxu0 0.0
    %2441 = vmatprep.subr.mxu0 0.0
    %2442 = vmatpush1.msra.mxu0 0.0
    %2443 = vmatprep.subr.mxu0 0.0
    %2444 = vmatpush1.msra.mxu0 0.0
    %2445 = vmatprep.subr.mxu0 0.0
    %2446 = vmatpush1.msra.mxu0 0.0
    %2447 = vmatprep.subr.mxu0 0.0
    %2448 = vmatpush1.msra.mxu0 0.0
    %2449 = vmatprep.subr.mxu0 0.0
    %2450 = vmatpush1.msra.mxu0 0.0
    %2451 = vmatprep.subr.mxu0 0.0
    %2452 = vmatpush1.msra.mxu0 0.0
    %2453 = vmatprep.subr.mxu0 0.0
    %2454 = vmatpush1.msra.mxu0 0.0
    %2455 = vmatprep.subr.mxu0 0.0
    %2456 = vmatpush1.msra.mxu0 0.0
    %2457 = vmatprep.subr.mxu0 0.0
    %2458 = vmatpush1.msra.mxu0 0.0
    %2459 = vmatprep.subr.mxu0 0.0
    %2460 = vmatpush1.msra.mxu0 0.0
    %2461 = vmatprep.subr.mxu0 0.0
    %2462 = vmatpush1.msra.mxu0 0.0
    %2463 = vmatprep.subr.mxu0 0.0
    %2464 = vmatpush1.msra.mxu0 0.0
    %2465 = vmatprep.subr.mxu0 0.0
    %2466 = vmatpush1.msra.mxu0 0.0
    %2467 = vmatprep.subr.mxu0 0.0
    %2468 = vmatpush1.msra.mxu0 0.0
    %2469 = vmatprep.subr.mxu0 0.0
    %2470 = vmatpush1.msra.mxu0 0.0
    %2471 = vmatprep.subr.mxu0 0.0
    %2472 = vmatpush1.msra.mxu0 0.0
    %2473 = vmatprep.subr.mxu0 0.0
    %2474 = vmatpush1.msra.mxu0 0.0
    %2475 = vmatprep.subr.mxu0 0.0
    %2476 = vmatpush1.msra.mxu0 0.0
    %2477 = vmatprep.subr.mxu0 0.0
    %2478 = vmatpush1.msra.mxu0 0.0
    %2479 = vmatprep.subr.mxu0 0.0
    %2480 = vmatpush1.msra.mxu0 0.0
    %2481 = vmatprep.subr.mxu0 0.0
    %2482 = vmatpush1.msra.mxu0 0.0
    %2483 = vmatprep.subr.mxu0 0.0
    %2484 = vmatpush1.msra.mxu0 0.0
    %2485 = vmatprep.mubr.f32.mxu0 0.0
    %2486 = vmatmul.mubr.f32.gmra.mrb[0].mxu0 %v2416
    %v2487 = vpop.f32.mrb[0].mxu0
    %v2488 = vadd.f32 0.0, %v2487
    %v2489 = vpop.f32.mrb[0].mxu0
    %2490 = vmatprep.mubr.f32.mxu0 0.0
    %2491 = vmatmul.mubr.f32.gmra.mrb[0].mxu0 %v2419
    %v2492 = vpop.f32.mrb[0].mxu0
    %v2493 = vadd.f32 0.0, %v2492
    %v2494 = vpop.f32.mrb[0].mxu0
    %2495 = vdwg.mxu0
    %v2497 = vsel %vm338, %v2493, 0
    %2499 = vmatprep.subr.mxu0 0.0
    %2500 = vmatpush1.msra.mxu0 %v2488
    %2501 = vmatprep.subr.mxu0 0.0
    %2502 = vmatpush1.msra.mxu0 %v2497
    %2503 = vmatprep.subr.mxu0 0.0
    %2504 = vmatpush1.msra.mxu0 0.0
    %2505 = vmatprep.subr.mxu0 0.0
    %2506 = vmatpush1.msra.mxu0 0.0
    %2507 = vmatprep.subr.mxu0 0.0
    %2508 = vmatpush1.msra.mxu0 0.0
    %2509 = vmatprep.subr.mxu0 0.0
    %2510 = vmatpush1.msra.mxu0 0.0
    %2511 = vmatprep.subr.mxu0 0.0
    %2512 = vmatpush1.msra.mxu0 0.0
    %2513 = vmatprep.subr.mxu0 0.0
    %2514 = vmatpush1.msra.mxu0 0.0
    %2515 = vmatprep.subr.mxu0 0.0
    %2516 = vmatpush1.msra.mxu0 0.0
    %2517 = vmatprep.subr.mxu0 0.0
    %2518 = vmatpush1.msra.mxu0 0.0
    %2519 = vmatprep.subr.mxu0 0.0
    %2520 = vmatpush1.msra.mxu0 0.0
    %2521 = vmatprep.subr.mxu0 0.0
    %2522 = vmatpush1.msra.mxu0 0.0
    %2523 = vmatprep.subr.mxu0 0.0
    %2524 = vmatpush1.msra.mxu0 0.0
    %2525 = vmatprep.subr.mxu0 0.0
    %2526 = vmatpush1.msra.mxu0 0.0
    %2527 = vmatprep.subr.mxu0 0.0
    %2528 = vmatpush1.msra.mxu0 0.0
    %2529 = vmatprep.subr.mxu0 0.0
    %2530 = vmatpush1.msra.mxu0 0.0
    %2531 = vmatprep.subr.mxu0 0.0
    %2532 = vmatpush1.msra.mxu0 0.0
    %2533 = vmatprep.subr.mxu0 0.0
    %2534 = vmatpush1.msra.mxu0 0.0
    %2535 = vmatprep.subr.mxu0 0.0
    %2536 = vmatpush1.msra.mxu0 0.0
    %2537 = vmatprep.subr.mxu0 0.0
    %2538 = vmatpush1.msra.mxu0 0.0
    %2539 = vmatprep.subr.mxu0 0.0
    %2540 = vmatpush1.msra.mxu0 0.0
    %2541 = vmatprep.subr.mxu0 0.0
    %2542 = vmatpush1.msra.mxu0 0.0
    %2543 = vmatprep.subr.mxu0 0.0
    %2544 = vmatpush1.msra.mxu0 0.0
    %2545 = vmatprep.subr.mxu0 0.0
    %2546 = vmatpush1.msra.mxu0 0.0
    %2547 = vmatprep.subr.mxu0 0.0
    %2548 = vmatpush1.msra.mxu0 0.0
    %2549 = vmatprep.subr.mxu0 0.0
    %2550 = vmatpush1.msra.mxu0 0.0
    %2551 = vmatprep.subr.mxu0 0.0
    %2552 = vmatpush1.msra.mxu0 0.0
    %2553 = vmatprep.subr.mxu0 0.0
    %2554 = vmatpush1.msra.mxu0 0.0
    %2555 = vmatprep.subr.mxu0 0.0
    %2556 = vmatpush1.msra.mxu0 0.0
    %2557 = vmatprep.subr.mxu0 0.0
    %2558 = vmatpush1.msra.mxu0 0.0
    %2559 = vmatprep.subr.mxu0 0.0
    %2560 = vmatpush1.msra.mxu0 0.0
    %2561 = vmatprep.subr.mxu0 0.0
    %2562 = vmatpush1.msra.mxu0 0.0
    %2563 = vmatprep.mubr.f32.mxu0 0.0
    %2564 = vmatmul.mubr.f32.gmra.mrb[0].mxu0 %v725
    %v2565 = vpop.f32.mrb[0].mxu0
    %v2566 = vadd.f32 0.0, %v2565
    %v2567 = vpop.f32.mrb[0].mxu0
    %2568 = vmatprep.mubr.f32.mxu0 0.0
    %2569 = vmatmul.mubr.f32.gmra.mrb[0].mxu0 %v728
    %v2570 = vpop.f32.mrb[0].mxu0
    %v2571 = vadd.f32 0.0, %v2570
    %v2572 = vpop.f32.mrb[0].mxu0
    %2573 = vmatprep.mubr.f32.mxu0 0.0
    %2574 = vmatmul.mubr.f32.gmra.mrb[0].mxu0 %v731
    %v2575 = vpop.f32.mrb[0].mxu0
    %v2576 = vadd.f32 0.0, %v2575
    %v2577 = vpop.f32.mrb[0].mxu0
    %2578 = vmatprep.mubr.f32.mxu0 0.0
    %2579 = vmatmul.mubr.f32.gmra.mrb[0].mxu0 %v734
    %v2580 = vpop.f32.mrb[0].mxu0
    %v2581 = vadd.f32 0.0, %v2580
    %v2582 = vpop.f32.mrb[0].mxu0
    %2583 = vmatprep.mubr.f32.mxu0 0.0
    %2584 = vmatmul.mubr.f32.gmra.mrb[0].mxu0 %v737
    %v2585 = vpop.f32.mrb[0].mxu0
    %v2586 = vadd.f32 0.0, %v2585
    %v2587 = vpop.f32.mrb[0].mxu0
    %2588 = vmatprep.mubr.f32.mxu0 0.0
    %2589 = vmatmul.mubr.f32.gmra.mrb[0].mxu0 %v740
    %v2590 = vpop.f32.mrb[0].mxu0
    %v2591 = vadd.f32 0.0, %v2590
    %v2592 = vpop.f32.mrb[0].mxu0
    %2593 = vdwg.mxu0
    %v2594 = vadd.f32 %v634, %v2566
    %v2595 = vadd.f32 %v635, %v2571
    %v2596 = vadd.f32 %v636, %v2576
    %v2597 = vadd.f32 %v637, %v2581
    %v2598 = vadd.f32 %v638, %v2586
    %v2599 = vadd.f32 %v639, %v2591
    %2601 = vrot.lane.b32.xlu0 %v2244, 126
    %v2602 = vpop.permute.xlu0 %2601
    %v2603 = vsel %vm151, %v2602, 0
    %2605 = vmatprep.subr.mxu0 0.0
    %2606 = vmatpush1.msra.mxu0 %v21
    %2607 = vmatprep.subr.mxu0 0.0
    %2608 = vmatpush1.msra.mxu0 0.0
    %2609 = vmatprep.subr.mxu0 0.0
    %2610 = vmatpush1.msra.mxu0 0.0
    %2611 = vmatprep.subr.mxu0 0.0
    %2612 = vmatpush1.msra.mxu0 0.0
    %2613 = vmatprep.subr.mxu0 0.0
    %2614 = vmatpush1.msra.mxu0 0.0
    %2615 = vmatprep.subr.mxu0 0.0
    %2616 = vmatpush1.msra.mxu0 0.0
    %2617 = vmatprep.subr.mxu0 0.0
    %2618 = vmatpush1.msra.mxu0 0.0
    %2619 = vmatprep.subr.mxu0 0.0
    %2620 = vmatpush1.msra.mxu0 0.0
    %2621 = vmatprep.subr.mxu0 0.0
    %2622 = vmatpush1.msra.mxu0 0.0
    %2623 = vmatprep.subr.mxu0 0.0
    %2624 = vmatpush1.msra.mxu0 0.0
    %2625 = vmatprep.subr.mxu0 0.0
    %2626 = vmatpush1.msra.mxu0 0.0
    %2627 = vmatprep.subr.mxu0 0.0
    %2628 = vmatpush1.msra.mxu0 0.0
    %2629 = vmatprep.subr.mxu0 0.0
    %2630 = vmatpush1.msra.mxu0 0.0
    %2631 = vmatprep.subr.mxu0 0.0
    %2632 = vmatpush1.msra.mxu0 0.0
    %2633 = vmatprep.subr.mxu0 0.0
    %2634 = vmatpush1.msra.mxu0 0.0
    %2635 = vmatprep.subr.mxu0 0.0
    %2636 = vmatpush1.msra.mxu0 0.0
    %2637 = vmatprep.subr.mxu0 0.0
    %2638 = vmatpush1.msra.mxu0 0.0
    %2639 = vmatprep.subr.mxu0 0.0
    %2640 = vmatpush1.msra.mxu0 0.0
    %2641 = vmatprep.subr.mxu0 0.0
    %2642 = vmatpush1.msra.mxu0 0.0
    %2643 = vmatprep.subr.mxu0 0.0
    %2644 = vmatpush1.msra.mxu0 0.0
    %2645 = vmatprep.subr.mxu0 0.0
    %2646 = vmatpush1.msra.mxu0 0.0
    %2647 = vmatprep.subr.mxu0 0.0
    %2648 = vmatpush1.msra.mxu0 0.0
    %2649 = vmatprep.subr.mxu0 0.0
    %2650 = vmatpush1.msra.mxu0 0.0
    %2651 = vmatprep.subr.mxu0 0.0
    %2652 = vmatpush1.msra.mxu0 0.0
    %2653 = vmatprep.subr.mxu0 0.0
    %2654 = vmatpush1.msra.mxu0 0.0
    %2655 = vmatprep.subr.mxu0 0.0
    %2656 = vmatpush1.msra.mxu0 0.0
    %2657 = vmatprep.subr.mxu0 0.0
    %2658 = vmatpush1.msra.mxu0 0.0
    %2659 = vmatprep.subr.mxu0 0.0
    %2660 = vmatpush1.msra.mxu0 0.0
    %2661 = vmatprep.subr.mxu0 0.0
    %2662 = vmatpush1.msra.mxu0 0.0
    %2663 = vmatprep.subr.mxu0 0.0
    %2664 = vmatpush1.msra.mxu0 0.0
    %2665 = vmatprep.subr.mxu0 0.0
    %2666 = vmatpush1.msra.mxu0 0.0
    %2667 = vmatprep.subr.mxu0 0.0
    %2668 = vmatpush1.msra.mxu0 0.0
    %2669 = vmatprep.mubr.f32.mxu0 0.0
    %2670 = vmatmul.mubr.f32.gmra.mrb[0].mxu0 %v2603
    %v2671 = vpop.f32.mrb[0].mxu0
    %v2672 = vadd.f32 0.0, %v2671
    %v2673 = vpop.f32.mrb[0].mxu0
    %2674 = vdwg.mxu0
    %2675 = vmatprep.subr.mxu0 0.0
    %2676 = vmatpush1.msra.mxu0 %v2672
    %2677 = vmatprep.subr.mxu0 0.0
    %2678 = vmatpush1.msra.mxu0 0.0
    %2679 = vmatprep.subr.mxu0 0.0
    %2680 = vmatpush1.msra.mxu0 0.0
    %2681 = vmatprep.subr.mxu0 0.0
    %2682 = vmatpush1.msra.mxu0 0.0
    %2683 = vmatprep.subr.mxu0 0.0
    %2684 = vmatpush1.msra.mxu0 0.0
    %2685 = vmatprep.subr.mxu0 0.0
    %2686 = vmatpush1.msra.mxu0 0.0
    %2687 = vmatprep.subr.mxu0 0.0
    %2688 = vmatpush1.msra.mxu0 0.0
    %2689 = vmatprep.subr.mxu0 0.0
    %2690 = vmatpush1.msra.mxu0 0.0
    %2691 = vmatprep.subr.mxu0 0.0
    %2692 = vmatpush1.msra.mxu0 0.0
    %2693 = vmatprep.subr.mxu0 0.0
    %2694 = vmatpush1.msra.mxu0 0.0
    %2695 = vmatprep.subr.mxu0 0.0
    %2696 = vmatpush1.msra.mxu0 0.0
    %2697 = vmatprep.subr.mxu0 0.0
    %2698 = vmatpush1.msra.mxu0 0.0
    %2699 = vmatprep.subr.mxu0 0.0
    %2700 = vmatpush1.msra.mxu0 0.0
    %2701 = vmatprep.subr.mxu0 0.0
    %2702 = vmatpush1.msra.mxu0 0.0
    %2703 = vmatprep.subr.mxu0 0.0
    %2704 = vmatpush1.msra.mxu0 0.0
    %2705 = vmatprep.subr.mxu0 0.0
    %2706 = vmatpush1.msra.mxu0 0.0
    %2707 = vmatprep.subr.mxu0 0.0
    %2708 = vmatpush1.msra.mxu0 0.0
    %2709 = vmatprep.subr.mxu0 0.0
    %2710 = vmatpush1.msra.mxu0 0.0
    %2711 = vmatprep.subr.mxu0 0.0
    %2712 = vmatpush1.msra.mxu0 0.0
    %2713 = vmatprep.subr.mxu0 0.0
    %2714 = vmatpush1.msra.mxu0 0.0
    %2715 = vmatprep.subr.mxu0 0.0
    %2716 = vmatpush1.msra.mxu0 0.0
    %2717 = vmatprep.subr.mxu0 0.0
    %2718 = vmatpush1.msra.mxu0 0.0
    %2719 = vmatprep.subr.mxu0 0.0
    %2720 = vmatpush1.msra.mxu0 0.0
    %2721 = vmatprep.subr.mxu0 0.0
    %2722 = vmatpush1.msra.mxu0 0.0
    %2723 = vmatprep.subr.mxu0 0.0
    %2724 = vmatpush1.msra.mxu0 0.0
    %2725 = vmatprep.subr.mxu0 0.0
    %2726 = vmatpush1.msra.mxu0 0.0
    %2727 = vmatprep.subr.mxu0 0.0
    %2728 = vmatpush1.msra.mxu0 0.0
    %2729 = vmatprep.subr.mxu0 0.0
    %2730 = vmatpush1.msra.mxu0 0.0
    %2731 = vmatprep.subr.mxu0 0.0
    %2732 = vmatpush1.msra.mxu0 0.0
    %2733 = vmatprep.subr.mxu0 0.0
    %2734 = vmatpush1.msra.mxu0 0.0
    %2735 = vmatprep.subr.mxu0 0.0
    %2736 = vmatpush1.msra.mxu0 0.0
    %2737 = vmatprep.subr.mxu0 0.0
    %2738 = vmatpush1.msra.mxu0 0.0
    %2739 = vmatprep.mubr.f32.mxu0 0.0
    %2740 = vmatmul.mubr.f32.gmra.mrb[0].mxu0 %v920
    %v2741 = vpop.f32.mrb[0].mxu0
    %v2742 = vadd.f32 0.0, %v2741
    %v2743 = vpop.f32.mrb[0].mxu0
    %2744 = vmatprep.mubr.f32.mxu0 0.0
    %2745 = vmatmul.mubr.f32.gmra.mrb[0].mxu0 %v923
    %v2746 = vpop.f32.mrb[0].mxu0
    %v2747 = vadd.f32 0.0, %v2746
    %v2748 = vpop.f32.mrb[0].mxu0
    %2749 = vmatprep.mubr.f32.mxu0 0.0
    %2750 = vmatmul.mubr.f32.gmra.mrb[0].mxu0 %v926
    %v2751 = vpop.f32.mrb[0].mxu0
    %v2752 = vadd.f32 0.0, %v2751
    %v2753 = vpop.f32.mrb[0].mxu0
    %2754 = vmatprep.mubr.f32.mxu0 0.0
    %2755 = vmatmul.mubr.f32.gmra.mrb[0].mxu0 %v153
    %v2756 = vpop.f32.mrb[0].mxu0
    %v2757 = vadd.f32 0.0, %v2756
    %v2758 = vpop.f32.mrb[0].mxu0
    %2759 = vmatprep.mubr.f32.mxu0 0.0
    %2760 = vmatmul.mubr.f32.gmra.mrb[0].mxu0 %v156
    %v2761 = vpop.f32.mrb[0].mxu0
    %v2762 = vadd.f32 0.0, %v2761
    %v2763 = vpop.f32.mrb[0].mxu0
    %2764 = vmatprep.mubr.f32.mxu0 0.0
    %2765 = vmatmul.mubr.f32.gmra.mrb[0].mxu0 %v929
    %v2766 = vpop.f32.mrb[0].mxu0
    %v2767 = vadd.f32 0.0, %v2766
    %v2768 = vpop.f32.mrb[0].mxu0
    %2769 = vdwg.mxu0
    %v2770 = vadd.f32 %v2594, %v2742
    %v2771 = vadd.f32 %v2595, %v2747
    %v2772 = vadd.f32 %v2596, %v2752
    %v2773 = vadd.f32 %v2597, %v2757
    %v2774 = vadd.f32 %v2598, %v2762
    %v2775 = vadd.f32 %v2599, %v2767
    %2776 = vmatprep.subr.mxu0 0.0
    %2777 = vmatpush1.msra.mxu0 %v23
    %2778 = vmatprep.subr.mxu0 0.0
    %2779 = vmatpush1.msra.mxu0 %v24
    %2780 = vmatprep.subr.mxu0 0.0
    %2781 = vmatpush1.msra.mxu0 %v25
    %2782 = vmatprep.subr.mxu0 0.0
    %2783 = vmatpush1.msra.mxu0 %v26
    %2784 = vmatprep.subr.mxu0 0.0
    %2785 = vmatpush1.msra.mxu0 0.0
    %2786 = vmatprep.subr.mxu0 0.0
    %2787 = vmatpush1.msra.mxu0 0.0
    %2788 = vmatprep.subr.mxu0 0.0
    %2789 = vmatpush1.msra.mxu0 0.0
    %2790 = vmatprep.subr.mxu0 0.0
    %2791 = vmatpush1.msra.mxu0 0.0
    %2792 = vmatprep.subr.mxu0 0.0
    %2793 = vmatpush1.msra.mxu0 0.0
    %2794 = vmatprep.subr.mxu0 0.0
    %2795 = vmatpush1.msra.mxu0 0.0
    %2796 = vmatprep.subr.mxu0 0.0
    %2797 = vmatpush1.msra.mxu0 0.0
    %2798 = vmatprep.subr.mxu0 0.0
    %2799 = vmatpush1.msra.mxu0 0.0
    %2800 = vmatprep.subr.mxu0 0.0
    %2801 = vmatpush1.msra.mxu0 0.0
    %2802 = vmatprep.subr.mxu0 0.0
    %2803 = vmatpush1.msra.mxu0 0.0
    %2804 = vmatprep.subr.mxu0 0.0
    %2805 = vmatpush1.msra.mxu0 0.0
    %2806 = vmatprep.subr.mxu0 0.0
    %2807 = vmatpush1.msra.mxu0 0.0
    %2808 = vmatprep.subr.mxu0 0.0
    %2809 = vmatpush1.msra.mxu0 0.0
    %2810 = vmatprep.subr.mxu0 0.0
    %2811 = vmatpush1.msra.mxu0 0.0
    %2812 = vmatprep.subr.mxu0 0.0
    %2813 = vmatpush1.msra.mxu0 0.0
    %2814 = vmatprep.subr.mxu0 0.0
    %2815 = vmatpush1.msra.mxu0 0.0
    %2816 = vmatprep.subr.mxu0 0.0
    %2817 = vmatpush1.msra.mxu0 0.0
    %2818 = vmatprep.subr.mxu0 0.0
    %2819 = vmatpush1.msra.mxu0 0.0
    %2820 = vmatprep.subr.mxu0 0.0
    %2821 = vmatpush1.msra.mxu0 0.0
    %2822 = vmatprep.subr.mxu0 0.0
    %2823 = vmatpush1.msra.mxu0 0.0
    %2824 = vmatprep.subr.mxu0 0.0
    %2825 = vmatpush1.msra.mxu0 0.0
    %2826 = vmatprep.subr.mxu0 0.0
    %2827 = vmatpush1.msra.mxu0 0.0
    %2828 = vmatprep.subr.mxu0 0.0
    %2829 = vmatpush1.msra.mxu0 0.0
    %2830 = vmatprep.subr.mxu0 0.0
    %2831 = vmatpush1.msra.mxu0 0.0
    %2832 = vmatprep.subr.mxu0 0.0
    %2833 = vmatpush1.msra.mxu0 0.0
    %2834 = vmatprep.subr.mxu0 0.0
    %2835 = vmatpush1.msra.mxu0 0.0
    %2836 = vmatprep.subr.mxu0 0.0
    %2837 = vmatpush1.msra.mxu0 0.0
    %2838 = vmatprep.subr.mxu0 0.0
    %2839 = vmatpush1.msra.mxu0 0.0
    %2840 = vmatprep.mubr.f32.mxu0 0.0
    %2841 = vmatmul.mubr.f32.gmra.mrb[0].mxu0 %v1425
    %v2842 = vpop.f32.mrb[0].mxu0
    %v2843 = vadd.f32 0.0, %v2842
    %v2844 = vpop.f32.mrb[0].mxu0
    %2845 = vmatprep.mubr.f32.mxu0 0.0
    %2846 = vmatmul.mubr.f32.gmra.mrb[0].mxu0 %v1427
    %v2847 = vpop.f32.mrb[0].mxu0
    %v2848 = vadd.f32 0.0, %v2847
    %v2849 = vpop.f32.mrb[0].mxu0
    %2850 = vmatprep.mubr.f32.mxu0 0.0
    %2851 = vmatmul.mubr.f32.gmra.mrb[0].mxu0 %v1429
    %v2852 = vpop.f32.mrb[0].mxu0
    %v2853 = vadd.f32 0.0, %v2852
    %v2854 = vpop.f32.mrb[0].mxu0
    %2855 = vmatprep.mubr.f32.mxu0 0.0
    %2856 = vmatmul.mubr.f32.gmra.mrb[0].mxu0 %v1431
    %v2857 = vpop.f32.mrb[0].mxu0
    %v2858 = vadd.f32 0.0, %v2857
    %v2859 = vpop.f32.mrb[0].mxu0
    %2860 = vmatprep.mubr.f32.mxu0 0.0
    %2861 = vmatmul.mubr.f32.gmra.mrb[0].mxu0 %v1433
    %v2862 = vpop.f32.mrb[0].mxu0
    %v2863 = vadd.f32 0.0, %v2862
    %v2864 = vpop.f32.mrb[0].mxu0
    %2865 = vmatprep.mubr.f32.mxu0 0.0
    %2866 = vmatmul.mubr.f32.gmra.mrb[0].mxu0 %v2007
    %v2867 = vpop.f32.mrb[0].mxu0
    %v2868 = vadd.f32 0.0, %v2867
    %v2869 = vpop.f32.mrb[0].mxu0
    %2870 = vdwg.mxu0
    %v2871 = vmul.f32 %v2843, %v51
    %v2872 = vmul.f32 %v2848, %v52
    %v2873 = vmul.f32 %v2853, %v53
    %v2874 = vmul.f32 %v2858, %v54
    %v2875 = vmul.f32 %v2863, %v55
    %v2876 = vmul.f32 %v2868, %v56
    %v2878 = vsel %vm1137, %v2871, 0
    %v2881 = vsel %vm1137, %v2872, 0
    %v2884 = vsel %vm1137, %v2873, 0
    %v2887 = vsel %vm1137, %v2874, 0
    %v2890 = vsel %vm1137, %v2875, 0
    %v2893 = vsel %vm1137, %v2876, 0
    %2895 = vmatprep.subr.mxu0 0.0
    %2896 = vmatpush1.msra.mxu0 %v27
    %2897 = vmatprep.subr.mxu0 0.0
    %2898 = vmatpush1.msra.mxu0 %v28
    %2899 = vmatprep.subr.mxu0 0.0
    %2900 = vmatpush1.msra.mxu0 %v29
    %2901 = vmatprep.subr.mxu0 0.0
    %2902 = vmatpush1.msra.mxu0 %v30
    %2903 = vmatprep.subr.mxu0 0.0
    %2904 = vmatpush1.msra.mxu0 %v31
    %2905 = vmatprep.subr.mxu0 0.0
    %2906 = vmatpush1.msra.mxu0 %v32
    %2907 = vmatprep.subr.mxu0 0.0
    %2908 = vmatpush1.msra.mxu0 %v33
    %2909 = vmatprep.subr.mxu0 0.0
    %2910 = vmatpush1.msra.mxu0 %v34
    %2911 = vmatprep.subr.mxu0 0.0
    %2912 = vmatpush1.msra.mxu0 %v35
    %2913 = vmatprep.subr.mxu0 0.0
    %2914 = vmatpush1.msra.mxu0 %v36
    %2915 = vmatprep.subr.mxu0 0.0
    %2916 = vmatpush1.msra.mxu0 %v37
    %2917 = vmatprep.subr.mxu0 0.0
    %2918 = vmatpush1.msra.mxu0 %v38
    %2919 = vmatprep.subr.mxu0 0.0
    %2920 = vmatpush1.msra.mxu0 0.0
    %2921 = vmatprep.subr.mxu0 0.0
    %2922 = vmatpush1.msra.mxu0 0.0
    %2923 = vmatprep.subr.mxu0 0.0
    %2924 = vmatpush1.msra.mxu0 0.0
    %2925 = vmatprep.subr.mxu0 0.0
    %2926 = vmatpush1.msra.mxu0 0.0
    %2927 = vmatprep.subr.mxu0 0.0
    %2928 = vmatpush1.msra.mxu0 0.0
    %2929 = vmatprep.subr.mxu0 0.0
    %2930 = vmatpush1.msra.mxu0 0.0
    %2931 = vmatprep.subr.mxu0 0.0
    %2932 = vmatpush1.msra.mxu0 0.0
    %2933 = vmatprep.subr.mxu0 0.0
    %2934 = vmatpush1.msra.mxu0 0.0
    %2935 = vmatprep.subr.mxu0 0.0
    %2936 = vmatpush1.msra.mxu0 0.0
    %2937 = vmatprep.subr.mxu0 0.0
    %2938 = vmatpush1.msra.mxu0 0.0
    %2939 = vmatprep.subr.mxu0 0.0
    %2940 = vmatpush1.msra.mxu0 0.0
    %2941 = vmatprep.subr.mxu0 0.0
    %2942 = vmatpush1.msra.mxu0 0.0
    %2943 = vmatprep.subr.mxu0 0.0
    %2944 = vmatpush1.msra.mxu0 0.0
    %2945 = vmatprep.subr.mxu0 0.0
    %2946 = vmatpush1.msra.mxu0 0.0
    %2947 = vmatprep.subr.mxu0 0.0
    %2948 = vmatpush1.msra.mxu0 0.0
    %2949 = vmatprep.subr.mxu0 0.0
    %2950 = vmatpush1.msra.mxu0 0.0
    %2951 = vmatprep.subr.mxu0 0.0
    %2952 = vmatpush1.msra.mxu0 0.0
    %2953 = vmatprep.subr.mxu0 0.0
    %2954 = vmatpush1.msra.mxu0 0.0
    %2955 = vmatprep.subr.mxu0 0.0
    %2956 = vmatpush1.msra.mxu0 0.0
    %2957 = vmatprep.subr.mxu0 0.0
    %2958 = vmatpush1.msra.mxu0 0.0
    %2959 = vmatprep.mubr.f32.mxu0 0.0
    %2960 = vmatmul.mubr.f32.gmra.mrb[0].mxu0 %v2878
    %v2961 = vpop.f32.mrb[0].mxu0
    %v2962 = vadd.f32 %v45, %v2961
    %v2963 = vpop.f32.mrb[0].mxu0
    %2964 = vmatprep.mubr.f32.mxu0 0.0
    %2965 = vmatmul.mubr.f32.gmra.mrb[0].mxu0 %v2881
    %v2966 = vpop.f32.mrb[0].mxu0
    %v2967 = vadd.f32 %v46, %v2966
    %v2968 = vpop.f32.mrb[0].mxu0
    %2969 = vmatprep.mubr.f32.mxu0 0.0
    %2970 = vmatmul.mubr.f32.gmra.mrb[0].mxu0 %v2884
    %v2971 = vpop.f32.mrb[0].mxu0
    %v2972 = vadd.f32 %v47, %v2971
    %v2973 = vpop.f32.mrb[0].mxu0
    %2974 = vmatprep.mubr.f32.mxu0 0.0
    %2975 = vmatmul.mubr.f32.gmra.mrb[0].mxu0 %v2887
    %v2976 = vpop.f32.mrb[0].mxu0
    %v2977 = vadd.f32 %v48, %v2976
    %v2978 = vpop.f32.mrb[0].mxu0
    %2979 = vmatprep.mubr.f32.mxu0 0.0
    %2980 = vmatmul.mubr.f32.gmra.mrb[0].mxu0 %v2890
    %v2981 = vpop.f32.mrb[0].mxu0
    %v2982 = vadd.f32 %v49, %v2981
    %v2983 = vpop.f32.mrb[0].mxu0
    %2984 = vmatprep.mubr.f32.mxu0 0.0
    %2985 = vmatmul.mubr.f32.gmra.mrb[0].mxu0 %v2893
    %v2986 = vpop.f32.mrb[0].mxu0
    %v2987 = vadd.f32 %v50, %v2986
    %v2988 = vpop.f32.mrb[0].mxu0
    %2989 = vdwg.mxu0
    %v2990 = vadd.f32 %v2770, %v2962
    %v2991 = vadd.f32 %v2771, %v2967
    %v2992 = vadd.f32 %v2772, %v2972
    %v2993 = vadd.f32 %v2773, %v2977
    %v2994 = vadd.f32 %v2774, %v2982
    %v2995 = vadd.f32 %v2775, %v2987
    %v2996 = vxor.u32 %v2990, 2147483648
    %v2997 = vxor.u32 %v2991, 2147483648
    %v2998 = vxor.u32 %v2992, 2147483648
    %v2999 = vxor.u32 %v2993, 2147483648
    %v3000 = vxor.u32 %v2994, 2147483648
    %v3001 = vxor.u32 %v2995, 2147483648
    %v3002 = vmul.f32 %v2996, 1.442695
    %v3003 = vpow.pop %v3002
    %v3004 = vmul.f32 %v2997, 1.442695
    %v3005 = vpow.pop %v3004
    %v3006 = vmul.f32 %v2998, 1.442695
    %v3007 = vpow.pop %v3006
    %v3008 = vmul.f32 %v2999, 1.442695
    %v3009 = vpow.pop %v3008
    %v3010 = vmul.f32 %v3000, 1.442695
    %v3011 = vpow.pop %v3010
    %v3012 = vmul.f32 %v3001, 1.442695
    %v3013 = vpow.pop %v3012
    %v3014 = vadd.f32 %v3003, 1.0
    %v3015 = vadd.f32 %v3005, 1.0
    %v3016 = vadd.f32 %v3007, 1.0
    %v3017 = vadd.f32 %v3009, 1.0
    %v3018 = vadd.f32 %v3011, 1.0
    %v3019 = vadd.f32 %v3013, 1.0
    %v3020 = vrcp.pop %v3014
    %v3021 = vmul.f32 1.0, %v3020
    %v3022 = vrcp.pop %v3015
    %v3023 = vmul.f32 1.0, %v3022
    %v3024 = vrcp.pop %v3016
    %v3025 = vmul.f32 1.0, %v3024
    %v3026 = vrcp.pop %v3017
    %v3027 = vmul.f32 1.0, %v3026
    %v3028 = vrcp.pop %v3018
    %v3029 = vmul.f32 1.0, %v3028
    %v3030 = vrcp.pop %v3019
    %v3031 = vmul.f32 1.0, %v3030
    %3038 = vrot.lane.b32.xlu0 %v2962, 64
    %v3039 = vpop.permute.xlu0 %3038
    %3040 = vrot.lane.b32.xlu0 %v2967, 64
    %v3041 = vpop.permute.xlu0 %3040
    %3042 = vrot.lane.b32.xlu0 %v2972, 64
    %v3043 = vpop.permute.xlu0 %3042
    %3044 = vrot.lane.b32.xlu0 %v2977, 64
    %v3045 = vpop.permute.xlu0 %3044
    %3046 = vrot.lane.b32.xlu0 %v2982, 64
    %v3047 = vpop.permute.xlu0 %3046
    %3048 = vrot.lane.b32.xlu0 %v2987, 64
    %v3049 = vpop.permute.xlu0 %3048
    %v3056 = vmul.f32 %v3021, %v3039
    %v3057 = vmul.f32 %v3023, %v3041
    %v3058 = vmul.f32 %v3025, %v3043
    %v3059 = vmul.f32 %v3027, %v3045
    %v3060 = vmul.f32 %v3029, %v3047
    %v3061 = vmul.f32 %v3031, %v3049
    %3068 = vrot.lane.b32.xlu0 %v3056, 64
    %v3069 = vpop.permute.xlu0 %3068
    %3070 = vrot.lane.b32.xlu0 %v3057, 64
    %v3071 = vpop.permute.xlu0 %3070
    %3072 = vrot.lane.b32.xlu0 %v3058, 64
    %v3073 = vpop.permute.xlu0 %3072
    %3074 = vrot.lane.b32.xlu0 %v3059, 64
    %v3075 = vpop.permute.xlu0 %3074
    %3076 = vrot.lane.b32.xlu0 %v3060, 64
    %v3077 = vpop.permute.xlu0 %3076
    %3078 = vrot.lane.b32.xlu0 %v3061, 64
    %v3079 = vpop.permute.xlu0 %3078
    %v3086 = vadd.f32 %v2770, %v3069
    %v3087 = vadd.f32 %v2771, %v3071
    %v3088 = vadd.f32 %v2772, %v3073
    %v3089 = vadd.f32 %v2773, %v3075
    %v3090 = vadd.f32 %v2774, %v3077
    %v3091 = vadd.f32 %v2775, %v3079
    %v3092 = vtanh.pop %v3086
    %v3093 = vtanh.pop %v3087
    %v3094 = vtanh.pop %v3088
    %v3095 = vtanh.pop %v3089
    %v3096 = vtanh.pop %v3090
    %v3097 = vtanh.pop %v3091
    %v3098 = vsub.f32 1.0, %v3021
    %v3099 = vsub.f32 1.0, %v3023
    %v3100 = vsub.f32 1.0, %v3025
    %v3101 = vsub.f32 1.0, %v3027
    %v3102 = vsub.f32 1.0, %v3029
    %v3103 = vsub.f32 1.0, %v3031
    %3110 = vrot.lane.b32.xlu0 %v3092, 96
    %v3111 = vpop.permute.xlu0 %3110
    %3112 = vrot.lane.b32.xlu0 %v3093, 96
    %v3113 = vpop.permute.xlu0 %3112
    %3114 = vrot.lane.b32.xlu0 %v3094, 96
    %v3115 = vpop.permute.xlu0 %3114
    %3116 = vrot.lane.b32.xlu0 %v3095, 96
    %v3117 = vpop.permute.xlu0 %3116
    %3118 = vrot.lane.b32.xlu0 %v3096, 96
    %v3119 = vpop.permute.xlu0 %3118
    %3120 = vrot.lane.b32.xlu0 %v3097, 96
    %v3121 = vpop.permute.xlu0 %3120
    %v3128 = vmul.f32 %v3098, %v3111
    %v3129 = vmul.f32 %v3099, %v3113
    %v3130 = vmul.f32 %v3100, %v3115
    %v3131 = vmul.f32 %v3101, %v3117
    %v3132 = vmul.f32 %v3102, %v3119
    %v3133 = vmul.f32 %v3103, %v3121
    %v3134 = vmul.f32 %v3021, %v1401
    %v3135 = vmul.f32 %v3023, %v1402
    %v3136 = vmul.f32 %v3025, %v1403
    %v3137 = vmul.f32 %v3027, %v1404
    %v3138 = vmul.f32 %v3029, %v1405
    %v3139 = vmul.f32 %v3031, %v2003
    %v3140 = vadd.f32 %v3128, %v3134
    %v3141 = vadd.f32 %v3129, %v3135
    %v3142 = vadd.f32 %v3130, %v3136
    %v3143 = vadd.f32 %v3131, %v3137
    %v3144 = vadd.f32 %v3132, %v3138
    %v3145 = vadd.f32 %v3133, %v3139
    %3152 = vrot.lane.b32.xlu0 %v3140, 96
    %v3153 = vpop.permute.xlu0 %3152
    %3154 = vrot.lane.b32.xlu0 %v3141, 96
    %v3155 = vpop.permute.xlu0 %3154
    %3156 = vrot.lane.b32.xlu0 %v3142, 96
    %v3157 = vpop.permute.xlu0 %3156
    %3158 = vrot.lane.b32.xlu0 %v3143, 96
    %v3159 = vpop.permute.xlu0 %3158
    %3160 = vrot.lane.b32.xlu0 %v3144, 96
    %v3161 = vpop.permute.xlu0 %3160
    %3162 = vrot.lane.b32.xlu0 %v3145, 96
    %v3163 = vpop.permute.xlu0 %3162
    %v3164 = vsel %vm1032, %v3153, 0
    %v3166 = vsel %vm1032, %v3155, 0
    %v3168 = vsel %vm1032, %v3157, 0
    %v3170 = vsel %vm1032, %v3159, 0
    %v3172 = vsel %vm1032, %v3161, 0
    %v3174 = vsel %vm1032, %v3163, 0
    %3176 = vmatprep.subr.mxu0 0.0
    %3177 = vmatpush1.msra.mxu0 %v23
    %3178 = vmatprep.subr.mxu0 0.0
    %3179 = vmatpush1.msra.mxu0 %v24
    %3180 = vmatprep.subr.mxu0 0.0
    %3181 = vmatpush1.msra.mxu0 %v25
    %3182 = vmatprep.subr.mxu0 0.0
    %3183 = vmatpush1.msra.mxu0 %v26
    %3184 = vmatprep.subr.mxu0 0.0
    %3185 = vmatpush1.msra.mxu0 0.0
    %3186 = vmatprep.subr.mxu0 0.0
    %3187 = vmatpush1.msra.mxu0 0.0
    %3188 = vmatprep.subr.mxu0 0.0
    %3189 = vmatpush1.msra.mxu0 0.0
    %3190 = vmatprep.subr.mxu0 0.0
    %3191 = vmatpush1.msra.mxu0 0.0
    %3192 = vmatprep.subr.mxu0 0.0
    %3193 = vmatpush1.msra.mxu0 0.0
    %3194 = vmatprep.subr.mxu0 0.0
    %3195 = vmatpush1.msra.mxu0 0.0
    %3196 = vmatprep.subr.mxu0 0.0
    %3197 = vmatpush1.msra.mxu0 0.0
    %3198 = vmatprep.subr.mxu0 0.0
    %3199 = vmatpush1.msra.mxu0 0.0
    %3200 = vmatprep.subr.mxu0 0.0
    %3201 = vmatpush1.msra.mxu0 0.0
    %3202 = vmatprep.subr.mxu0 0.0
    %3203 = vmatpush1.msra.mxu0 0.0
    %3204 = vmatprep.subr.mxu0 0.0
    %3205 = vmatpush1.msra.mxu0 0.0
    %3206 = vmatprep.subr.mxu0 0.0
    %3207 = vmatpush1.msra.mxu0 0.0
    %3208 = vmatprep.subr.mxu0 0.0
    %3209 = vmatpush1.msra.mxu0 0.0
    %3210 = vmatprep.subr.mxu0 0.0
    %3211 = vmatpush1.msra.mxu0 0.0
    %3212 = vmatprep.subr.mxu0 0.0
    %3213 = vmatpush1.msra.mxu0 0.0
    %3214 = vmatprep.subr.mxu0 0.0
    %3215 = vmatpush1.msra.mxu0 0.0
    %3216 = vmatprep.subr.mxu0 0.0
    %3217 = vmatpush1.msra.mxu0 0.0
    %3218 = vmatprep.subr.mxu0 0.0
    %3219 = vmatpush1.msra.mxu0 0.0
    %3220 = vmatprep.subr.mxu0 0.0
    %3221 = vmatpush1.msra.mxu0 0.0
    %3222 = vmatprep.subr.mxu0 0.0
    %3223 = vmatpush1.msra.mxu0 0.0
    %3224 = vmatprep.subr.mxu0 0.0
    %3225 = vmatpush1.msra.mxu0 0.0
    %3226 = vmatprep.subr.mxu0 0.0
    %3227 = vmatpush1.msra.mxu0 0.0
    %3228 = vmatprep.subr.mxu0 0.0
    %3229 = vmatpush1.msra.mxu0 0.0
    %3230 = vmatprep.subr.mxu0 0.0
    %3231 = vmatpush1.msra.mxu0 0.0
    %3232 = vmatprep.subr.mxu0 0.0
    %3233 = vmatpush1.msra.mxu0 0.0
    %3234 = vmatprep.subr.mxu0 0.0
    %3235 = vmatpush1.msra.mxu0 0.0
    %3236 = vmatprep.subr.mxu0 0.0
    %3237 = vmatpush1.msra.mxu0 0.0
    %3238 = vmatprep.subr.mxu0 0.0
    %3239 = vmatpush1.msra.mxu0 0.0
    %3240 = vmatprep.mubr.f32.mxu0 0.0
    %3241 = vmatmul.mubr.f32.gmra.mrb[0].mxu0 %v3164
    %v3242 = vpop.f32.mrb[0].mxu0
    %v3243 = vadd.f32 0.0, %v3242
    %v3244 = vpop.f32.mrb[0].mxu0
    %3245 = vmatprep.mubr.f32.mxu0 0.0
    %3246 = vmatmul.mubr.f32.gmra.mrb[0].mxu0 %v3166
    %v3247 = vpop.f32.mrb[0].mxu0
    %v3248 = vadd.f32 0.0, %v3247
    %v3249 = vpop.f32.mrb[0].mxu0
    %3250 = vmatprep.mubr.f32.mxu0 0.0
    %3251 = vmatmul.mubr.f32.gmra.mrb[0].mxu0 %v3168
    %v3252 = vpop.f32.mrb[0].mxu0
    %v3253 = vadd.f32 0.0, %v3252
    %v3254 = vpop.f32.mrb[0].mxu0
    %3255 = vmatprep.mubr.f32.mxu0 0.0
    %3256 = vmatmul.mubr.f32.gmra.mrb[0].mxu0 %v3170
    %v3257 = vpop.f32.mrb[0].mxu0
    %v3258 = vadd.f32 0.0, %v3257
    %v3259 = vpop.f32.mrb[0].mxu0
    %3260 = vmatprep.mubr.f32.mxu0 0.0
    %3261 = vmatmul.mubr.f32.gmra.mrb[0].mxu0 %v3172
    %v3262 = vpop.f32.mrb[0].mxu0
    %v3263 = vadd.f32 0.0, %v3262
    %v3264 = vpop.f32.mrb[0].mxu0
    %3265 = vmatprep.mubr.f32.mxu0 0.0
    %3266 = vmatmul.mubr.f32.gmra.mrb[0].mxu0 %v3174
    %v3267 = vpop.f32.mrb[0].mxu0
    %v3268 = vadd.f32 0.0, %v3267
    %v3269 = vpop.f32.mrb[0].mxu0
    %3270 = vdwg.mxu0
    %v3271 = vmul.f32 %v3243, %v51
    %v3272 = vmul.f32 %v3248, %v52
    %v3273 = vmul.f32 %v3253, %v53
    %v3274 = vmul.f32 %v3258, %v54
    %v3275 = vmul.f32 %v3263, %v55
    %v3276 = vmul.f32 %v3268, %v56
    %v3278 = vsel %vm1137, %v3271, 0
    %v3281 = vsel %vm1137, %v3272, 0
    %v3284 = vsel %vm1137, %v3273, 0
    %v3287 = vsel %vm1137, %v3274, 0
    %v3290 = vsel %vm1137, %v3275, 0
    %v3293 = vsel %vm1137, %v3276, 0
    %3295 = vmatprep.subr.mxu0 0.0
    %3296 = vmatpush1.msra.mxu0 %v57
    %3297 = vmatprep.subr.mxu0 0.0
    %3298 = vmatpush1.msra.mxu0 %v58
    %3299 = vmatprep.subr.mxu0 0.0
    %3300 = vmatpush1.msra.mxu0 %v59
    %3301 = vmatprep.subr.mxu0 0.0
    %3302 = vmatpush1.msra.mxu0 %v60
    %3303 = vmatprep.subr.mxu0 0.0
    %3304 = vmatpush1.msra.mxu0 %v61
    %3305 = vmatprep.subr.mxu0 0.0
    %3306 = vmatpush1.msra.mxu0 %v62
    %3307 = vmatprep.subr.mxu0 0.0
    %3308 = vmatpush1.msra.mxu0 %v63
    %3309 = vmatprep.subr.mxu0 0.0
    %3310 = vmatpush1.msra.mxu0 %v64
    %3311 = vmatprep.subr.mxu0 0.0
    %3312 = vmatpush1.msra.mxu0 %v65
    %3313 = vmatprep.subr.mxu0 0.0
    %3314 = vmatpush1.msra.mxu0 %v66
    %3315 = vmatprep.subr.mxu0 0.0
    %3316 = vmatpush1.msra.mxu0 %v67
    %3317 = vmatprep.subr.mxu0 0.0
    %3318 = vmatpush1.msra.mxu0 %v68
    %3319 = vmatprep.subr.mxu0 0.0
    %3320 = vmatpush1.msra.mxu0 0.0
    %3321 = vmatprep.subr.mxu0 0.0
    %3322 = vmatpush1.msra.mxu0 0.0
    %3323 = vmatprep.subr.mxu0 0.0
    %3324 = vmatpush1.msra.mxu0 0.0
    %3325 = vmatprep.subr.mxu0 0.0
    %3326 = vmatpush1.msra.mxu0 0.0
    %3327 = vmatprep.subr.mxu0 0.0
    %3328 = vmatpush1.msra.mxu0 0.0
    %3329 = vmatprep.subr.mxu0 0.0
    %3330 = vmatpush1.msra.mxu0 0.0
    %3331 = vmatprep.subr.mxu0 0.0
    %3332 = vmatpush1.msra.mxu0 0.0
    %3333 = vmatprep.subr.mxu0 0.0
    %3334 = vmatpush1.msra.mxu0 0.0
    %3335 = vmatprep.subr.mxu0 0.0
    %3336 = vmatpush1.msra.mxu0 0.0
    %3337 = vmatprep.subr.mxu0 0.0
    %3338 = vmatpush1.msra.mxu0 0.0
    %3339 = vmatprep.subr.mxu0 0.0
    %3340 = vmatpush1.msra.mxu0 0.0
    %3341 = vmatprep.subr.mxu0 0.0
    %3342 = vmatpush1.msra.mxu0 0.0
    %3343 = vmatprep.subr.mxu0 0.0
    %3344 = vmatpush1.msra.mxu0 0.0
    %3345 = vmatprep.subr.mxu0 0.0
    %3346 = vmatpush1.msra.mxu0 0.0
    %3347 = vmatprep.subr.mxu0 0.0
    %3348 = vmatpush1.msra.mxu0 0.0
    %3349 = vmatprep.subr.mxu0 0.0
    %3350 = vmatpush1.msra.mxu0 0.0
    %3351 = vmatprep.subr.mxu0 0.0
    %3352 = vmatpush1.msra.mxu0 0.0
    %3353 = vmatprep.subr.mxu0 0.0
    %3354 = vmatpush1.msra.mxu0 0.0
    %3355 = vmatprep.subr.mxu0 0.0
    %3356 = vmatpush1.msra.mxu0 0.0
    %3357 = vmatprep.subr.mxu0 0.0
    %3358 = vmatpush1.msra.mxu0 0.0
    %3359 = vmatprep.mubr.f32.mxu0 0.0
    %3360 = vmatmul.mubr.f32.gmra.mrb[0].mxu0 %v3278
    %v3361 = vpop.f32.mrb[0].mxu0
    %v3362 = vadd.f32 %v69, %v3361
    %v3363 = vpop.f32.mrb[0].mxu0
    %3364 = vmatprep.mubr.f32.mxu0 0.0
    %3365 = vmatmul.mubr.f32.gmra.mrb[0].mxu0 %v3281
    %v3366 = vpop.f32.mrb[0].mxu0
    %v3367 = vadd.f32 %v70, %v3366
    %v3368 = vpop.f32.mrb[0].mxu0
    %3369 = vmatprep.mubr.f32.mxu0 0.0
    %3370 = vmatmul.mubr.f32.gmra.mrb[0].mxu0 %v3284
    %v3371 = vpop.f32.mrb[0].mxu0
    %v3372 = vadd.f32 %v71, %v3371
    %v3373 = vpop.f32.mrb[0].mxu0
    %3374 = vmatprep.mubr.f32.mxu0 0.0
    %3375 = vmatmul.mubr.f32.gmra.mrb[0].mxu0 %v3287
    %v3376 = vpop.f32.mrb[0].mxu0
    %v3377 = vadd.f32 %v72, %v3376
    %v3378 = vpop.f32.mrb[0].mxu0
    %3379 = vmatprep.mubr.f32.mxu0 0.0
    %3380 = vmatmul.mubr.f32.gmra.mrb[0].mxu0 %v3290
    %v3381 = vpop.f32.mrb[0].mxu0
    %v3382 = vadd.f32 %v73, %v3381
    %v3383 = vpop.f32.mrb[0].mxu0
    %3384 = vmatprep.mubr.f32.mxu0 0.0
    %3385 = vmatmul.mubr.f32.gmra.mrb[0].mxu0 %v3293
    %v3386 = vpop.f32.mrb[0].mxu0
    %v3387 = vadd.f32 %v74, %v3386
    %v3388 = vpop.f32.mrb[0].mxu0
    %3389 = vdwg.mxu0
    %v3390 = vmax.f32 %v3362, 0.0
    %v3391 = vmax.f32 %v3367, 0.0
    %v3392 = vmax.f32 %v3372, 0.0
    %v3393 = vmax.f32 %v3377, 0.0
    %v3394 = vmax.f32 %v3382, 0.0
    %v3395 = vmax.f32 %v3387, 0.0
    %v3396 = vmax.f32 %v3390, %v3391
    %v3397 = vmax.f32 %v3396, %v3392
    %v3398 = vmax.f32 %v3393, %v3394
    %v3400 = vsel %vm1032, %v3393, 0
    %v3403 = vsel %vm1032, %v3394, 0
    %3405 = vmatprep.subr.mxu0 0.0
    %3406 = vmatpush1.msra.mxu0 %v98
    %3407 = vmatprep.subr.mxu0 0.0
    %3408 = vmatpush1.msra.mxu0 %v99
    %3409 = vmatprep.subr.mxu0 0.0
    %3410 = vmatpush1.msra.mxu0 %v100
    %3411 = vmatprep.subr.mxu0 0.0
    %3412 = vmatpush1.msra.mxu0 %v101
    %3413 = vmatprep.subr.mxu0 0.0
    %3414 = vmatpush1.msra.mxu0 0.0
    %3415 = vmatprep.subr.mxu0 0.0
    %3416 = vmatpush1.msra.mxu0 0.0
    %3417 = vmatprep.subr.mxu0 0.0
    %3418 = vmatpush1.msra.mxu0 0.0
    %3419 = vmatprep.subr.mxu0 0.0
    %3420 = vmatpush1.msra.mxu0 0.0
    %3421 = vmatprep.subr.mxu0 0.0
    %3422 = vmatpush1.msra.mxu0 0.0
    %3423 = vmatprep.subr.mxu0 0.0
    %3424 = vmatpush1.msra.mxu0 0.0
    %3425 = vmatprep.subr.mxu0 0.0
    %3426 = vmatpush1.msra.mxu0 0.0
    %3427 = vmatprep.subr.mxu0 0.0
    %3428 = vmatpush1.msra.mxu0 0.0
    %3429 = vmatprep.subr.mxu0 0.0
    %3430 = vmatpush1.msra.mxu0 0.0
    %3431 = vmatprep.subr.mxu0 0.0
    %3432 = vmatpush1.msra.mxu0 0.0
    %3433 = vmatprep.subr.mxu0 0.0
    %3434 = vmatpush1.msra.mxu0 0.0
    %3435 = vmatprep.subr.mxu0 0.0
    %3436 = vmatpush1.msra.mxu0 0.0
    %3437 = vmatprep.subr.mxu0 0.0
    %3438 = vmatpush1.msra.mxu0 0.0
    %3439 = vmatprep.subr.mxu0 0.0
    %3440 = vmatpush1.msra.mxu0 0.0
    %3441 = vmatprep.subr.mxu0 0.0
    %3442 = vmatpush1.msra.mxu0 0.0
    %3443 = vmatprep.subr.mxu0 0.0
    %3444 = vmatpush1.msra.mxu0 0.0
    %3445 = vmatprep.subr.mxu0 0.0
    %3446 = vmatpush1.msra.mxu0 0.0
    %3447 = vmatprep.subr.mxu0 0.0
    %3448 = vmatpush1.msra.mxu0 0.0
    %3449 = vmatprep.subr.mxu0 0.0
    %3450 = vmatpush1.msra.mxu0 0.0
    %3451 = vmatprep.subr.mxu0 0.0
    %3452 = vmatpush1.msra.mxu0 0.0
    %3453 = vmatprep.subr.mxu0 0.0
    %3454 = vmatpush1.msra.mxu0 0.0
    %3455 = vmatprep.subr.mxu0 0.0
    %3456 = vmatpush1.msra.mxu0 0.0
    %3457 = vmatprep.subr.mxu0 0.0
    %3458 = vmatpush1.msra.mxu0 0.0
    %3459 = vmatprep.subr.mxu0 0.0
    %3460 = vmatpush1.msra.mxu0 0.0
    %3461 = vmatprep.subr.mxu0 0.0
    %3462 = vmatpush1.msra.mxu0 0.0
    %3463 = vmatprep.subr.mxu0 0.0
    %3464 = vmatpush1.msra.mxu0 0.0
    %3465 = vmatprep.subr.mxu0 0.0
    %3466 = vmatpush1.msra.mxu0 0.0
    %3467 = vmatprep.subr.mxu0 0.0
    %3468 = vmatpush1.msra.mxu0 0.0
    %3469 = vmatprep.mubr.f32.mxu0 0.0
    %3470 = vmatmul.mubr.f32.gmra.mrb[0].mxu0 %v3400
    %v3471 = vpop.f32.mrb[0].mxu0
    %v3472 = vadd.f32 %v102, %v3471
    %v3473 = vpop.f32.mrb[0].mxu0
    %3474 = vmatprep.mubr.f32.mxu0 0.0
    %3475 = vmatmul.mubr.f32.gmra.mrb[0].mxu0 %v3403
    %v3476 = vpop.f32.mrb[0].mxu0
    %v3477 = vadd.f32 %v103, %v3476
    %v3478 = vpop.f32.mrb[0].mxu0
    %3479 = vdwg.mxu0
    %v3480 = vmax.f32 %v3472, 0.0
    %v3481 = vmax.f32 %v3477, 0.0
    %v3483 = vsel %vm1032, %v3480, 0
    %v3486 = vsel %vm1032, %v3481, 0
    %3488 = vmatprep.subr.mxu0 0.0
    %3489 = vmatpush1.msra.mxu0 %v104
    %3490 = vmatprep.subr.mxu0 0.0
    %3491 = vmatpush1.msra.mxu0 %v105
    %3492 = vmatprep.subr.mxu0 0.0
    %3493 = vmatpush1.msra.mxu0 %v106
    %3494 = vmatprep.subr.mxu0 0.0
    %3495 = vmatpush1.msra.mxu0 %v107
    %3496 = vmatprep.subr.mxu0 0.0
    %3497 = vmatpush1.msra.mxu0 0.0
    %3498 = vmatprep.subr.mxu0 0.0
    %3499 = vmatpush1.msra.mxu0 0.0
    %3500 = vmatprep.subr.mxu0 0.0
    %3501 = vmatpush1.msra.mxu0 0.0
    %3502 = vmatprep.subr.mxu0 0.0
    %3503 = vmatpush1.msra.mxu0 0.0
    %3504 = vmatprep.subr.mxu0 0.0
    %3505 = vmatpush1.msra.mxu0 0.0
    %3506 = vmatprep.subr.mxu0 0.0
    %3507 = vmatpush1.msra.mxu0 0.0
    %3508 = vmatprep.subr.mxu0 0.0
    %3509 = vmatpush1.msra.mxu0 0.0
    %3510 = vmatprep.subr.mxu0 0.0
    %3511 = vmatpush1.msra.mxu0 0.0
    %3512 = vmatprep.subr.mxu0 0.0
    %3513 = vmatpush1.msra.mxu0 0.0
    %3514 = vmatprep.subr.mxu0 0.0
    %3515 = vmatpush1.msra.mxu0 0.0
    %3516 = vmatprep.subr.mxu0 0.0
    %3517 = vmatpush1.msra.mxu0 0.0
    %3518 = vmatprep.subr.mxu0 0.0
    %3519 = vmatpush1.msra.mxu0 0.0
    %3520 = vmatprep.subr.mxu0 0.0
    %3521 = vmatpush1.msra.mxu0 0.0
    %3522 = vmatprep.subr.mxu0 0.0
    %3523 = vmatpush1.msra.mxu0 0.0
    %3524 = vmatprep.subr.mxu0 0.0
    %3525 = vmatpush1.msra.mxu0 0.0
    %3526 = vmatprep.subr.mxu0 0.0
    %3527 = vmatpush1.msra.mxu0 0.0
    %3528 = vmatprep.subr.mxu0 0.0
    %3529 = vmatpush1.msra.mxu0 0.0
    %3530 = vmatprep.subr.mxu0 0.0
    %3531 = vmatpush1.msra.mxu0 0.0
    %3532 = vmatprep.subr.mxu0 0.0
    %3533 = vmatpush1.msra.mxu0 0.0
    %3534 = vmatprep.subr.mxu0 0.0
    %3535 = vmatpush1.msra.mxu0 0.0
    %3536 = vmatprep.subr.mxu0 0.0
    %3537 = vmatpush1.msra.mxu0 0.0
    %3538 = vmatprep.subr.mxu0 0.0
    %3539 = vmatpush1.msra.mxu0 0.0
    %3540 = vmatprep.subr.mxu0 0.0
    %3541 = vmatpush1.msra.mxu0 0.0
    %3542 = vmatprep.subr.mxu0 0.0
    %3543 = vmatpush1.msra.mxu0 0.0
    %3544 = vmatprep.subr.mxu0 0.0
    %3545 = vmatpush1.msra.mxu0 0.0
    %3546 = vmatprep.subr.mxu0 0.0
    %3547 = vmatpush1.msra.mxu0 0.0
    %3548 = vmatprep.subr.mxu0 0.0
    %3549 = vmatpush1.msra.mxu0 0.0
    %3550 = vmatprep.subr.mxu0 0.0
    %3551 = vmatpush1.msra.mxu0 0.0
    %3552 = vmatprep.mubr.f32.mxu0 0.0
    %3553 = vmatmul.mubr.f32.gmra.mrb[0].mxu0 %v3483
    %v3554 = vpop.f32.mrb[0].mxu0
    %v3555 = vadd.f32 %v108, %v3554
    %v3556 = vpop.f32.mrb[0].mxu0
    %3557 = vmatprep.mubr.f32.mxu0 0.0
    %3558 = vmatmul.mubr.f32.gmra.mrb[0].mxu0 %v3486
    %v3559 = vpop.f32.mrb[0].mxu0
    %v3560 = vadd.f32 %v109, %v3559
    %v3561 = vpop.f32.mrb[0].mxu0
    %3562 = vdwg.mxu0
    %3564 = vrot.lane.b32.xlu0 %v3395, 32
    %v3565 = vpop.permute.xlu0 %3564
    %3568 = vrot.lane.b32.xlu0 %v3398, 64
    %v3569 = vpop.permute.xlu0 %3568
    %v3571 = vsel %vm1032, %v3397, %v3565
    %v3572 = vsel %vm1833, %v3571, %v3569
    %v3574 = vsel %vm1137, %v3572, 0
    %3576 = vmatprep.subr.mxu0 0.0
    %3577 = vmatpush1.msra.mxu0 %v75
    %3578 = vmatprep.subr.mxu0 0.0
    %3579 = vmatpush1.msra.mxu0 %v76
    %3580 = vmatprep.subr.mxu0 0.0
    %3581 = vmatpush1.msra.mxu0 %v77
    %3582 = vmatprep.subr.mxu0 0.0
    %3583 = vmatpush1.msra.mxu0 %v78
    %3584 = vmatprep.subr.mxu0 0.0
    %3585 = vmatpush1.msra.mxu0 %v79
    %3586 = vmatprep.subr.mxu0 0.0
    %3587 = vmatpush1.msra.mxu0 %v80
    %3588 = vmatprep.subr.mxu0 0.0
    %3589 = vmatpush1.msra.mxu0 %v81
    %3590 = vmatprep.subr.mxu0 0.0
    %3591 = vmatpush1.msra.mxu0 %v82
    %3592 = vmatprep.subr.mxu0 0.0
    %3593 = vmatpush1.msra.mxu0 %v83
    %3594 = vmatprep.subr.mxu0 0.0
    %3595 = vmatpush1.msra.mxu0 %v84
    %3596 = vmatprep.subr.mxu0 0.0
    %3597 = vmatpush1.msra.mxu0 %v85
    %3598 = vmatprep.subr.mxu0 0.0
    %3599 = vmatpush1.msra.mxu0 %v86
    %3600 = vmatprep.subr.mxu0 0.0
    %3601 = vmatpush1.msra.mxu0 0.0
    %3602 = vmatprep.subr.mxu0 0.0
    %3603 = vmatpush1.msra.mxu0 0.0
    %3604 = vmatprep.subr.mxu0 0.0
    %3605 = vmatpush1.msra.mxu0 0.0
    %3606 = vmatprep.subr.mxu0 0.0
    %3607 = vmatpush1.msra.mxu0 0.0
    %3608 = vmatprep.subr.mxu0 0.0
    %3609 = vmatpush1.msra.mxu0 0.0
    %3610 = vmatprep.subr.mxu0 0.0
    %3611 = vmatpush1.msra.mxu0 0.0
    %3612 = vmatprep.subr.mxu0 0.0
    %3613 = vmatpush1.msra.mxu0 0.0
    %3614 = vmatprep.subr.mxu0 0.0
    %3615 = vmatpush1.msra.mxu0 0.0
    %3616 = vmatprep.subr.mxu0 0.0
    %3617 = vmatpush1.msra.mxu0 0.0
    %3618 = vmatprep.subr.mxu0 0.0
    %3619 = vmatpush1.msra.mxu0 0.0
    %3620 = vmatprep.subr.mxu0 0.0
    %3621 = vmatpush1.msra.mxu0 0.0
    %3622 = vmatprep.subr.mxu0 0.0
    %3623 = vmatpush1.msra.mxu0 0.0
    %3624 = vmatprep.subr.mxu0 0.0
    %3625 = vmatpush1.msra.mxu0 0.0
    %3626 = vmatprep.subr.mxu0 0.0
    %3627 = vmatpush1.msra.mxu0 0.0
    %3628 = vmatprep.subr.mxu0 0.0
    %3629 = vmatpush1.msra.mxu0 0.0
    %3630 = vmatprep.subr.mxu0 0.0
    %3631 = vmatpush1.msra.mxu0 0.0
    %3632 = vmatprep.subr.mxu0 0.0
    %3633 = vmatpush1.msra.mxu0 0.0
    %3634 = vmatprep.subr.mxu0 0.0
    %3635 = vmatpush1.msra.mxu0 0.0
    %3636 = vmatprep.subr.mxu0 0.0
    %3637 = vmatpush1.msra.mxu0 0.0
    %3638 = vmatprep.subr.mxu0 0.0
    %3639 = vmatpush1.msra.mxu0 0.0
    %3640 = vmatprep.mubr.f32.mxu0 0.0
    %3641 = vmatmul.mubr.f32.gmra.mrb[0].mxu0 %v3574
    %v3642 = vpop.f32.mrb[0].mxu0
    %v3643 = vadd.f32 %v91, %v3642
    %v3644 = vpop.f32.mrb[0].mxu0
    %3645 = vdwg.mxu0
    %3646 = vmatprep.subr.mxu0 0.0
    %3647 = vmatpush1.msra.mxu0 %v87
    %3648 = vmatprep.subr.mxu0 0.0
    %3649 = vmatpush1.msra.mxu0 %v88
    %3650 = vmatprep.subr.mxu0 0.0
    %3651 = vmatpush1.msra.mxu0 %v89
    %3652 = vmatprep.subr.mxu0 0.0
    %3653 = vmatpush1.msra.mxu0 %v90
    %3654 = vmatprep.subr.mxu0 0.0
    %3655 = vmatpush1.msra.mxu0 0.0
    %3656 = vmatprep.subr.mxu0 0.0
    %3657 = vmatpush1.msra.mxu0 0.0
    %3658 = vmatprep.subr.mxu0 0.0
    %3659 = vmatpush1.msra.mxu0 0.0
    %3660 = vmatprep.subr.mxu0 0.0
    %3661 = vmatpush1.msra.mxu0 0.0
    %3662 = vmatprep.subr.mxu0 0.0
    %3663 = vmatpush1.msra.mxu0 0.0
    %3664 = vmatprep.subr.mxu0 0.0
    %3665 = vmatpush1.msra.mxu0 0.0
    %3666 = vmatprep.subr.mxu0 0.0
    %3667 = vmatpush1.msra.mxu0 0.0
    %3668 = vmatprep.subr.mxu0 0.0
    %3669 = vmatpush1.msra.mxu0 0.0
    %3670 = vmatprep.subr.mxu0 0.0
    %3671 = vmatpush1.msra.mxu0 0.0
    %3672 = vmatprep.subr.mxu0 0.0
    %3673 = vmatpush1.msra.mxu0 0.0
    %3674 = vmatprep.subr.mxu0 0.0
    %3675 = vmatpush1.msra.mxu0 0.0
    %3676 = vmatprep.subr.mxu0 0.0
    %3677 = vmatpush1.msra.mxu0 0.0
    %3678 = vmatprep.subr.mxu0 0.0
    %3679 = vmatpush1.msra.mxu0 0.0
    %3680 = vmatprep.subr.mxu0 0.0
    %3681 = vmatpush1.msra.mxu0 0.0
    %3682 = vmatprep.subr.mxu0 0.0
    %3683 = vmatpush1.msra.mxu0 0.0
    %3684 = vmatprep.subr.mxu0 0.0
    %3685 = vmatpush1.msra.mxu0 0.0
    %3686 = vmatprep.subr.mxu0 0.0
    %3687 = vmatpush1.msra.mxu0 0.0
    %3688 = vmatprep.subr.mxu0 0.0
    %3689 = vmatpush1.msra.mxu0 0.0
    %3690 = vmatprep.subr.mxu0 0.0
    %3691 = vmatpush1.msra.mxu0 0.0
    %3692 = vmatprep.subr.mxu0 0.0
    %3693 = vmatpush1.msra.mxu0 0.0
    %3694 = vmatprep.subr.mxu0 0.0
    %3695 = vmatpush1.msra.mxu0 0.0
    %3696 = vmatprep.subr.mxu0 0.0
    %3697 = vmatpush1.msra.mxu0 0.0
    %3698 = vmatprep.subr.mxu0 0.0
    %3699 = vmatpush1.msra.mxu0 0.0
    %3700 = vmatprep.subr.mxu0 0.0
    %3701 = vmatpush1.msra.mxu0 0.0
    %3702 = vmatprep.subr.mxu0 0.0
    %3703 = vmatpush1.msra.mxu0 0.0
    %3704 = vmatprep.subr.mxu0 0.0
    %3705 = vmatpush1.msra.mxu0 0.0
    %3706 = vmatprep.subr.mxu0 0.0
    %3707 = vmatpush1.msra.mxu0 0.0
    %3708 = vmatprep.subr.mxu0 0.0
    %3709 = vmatpush1.msra.mxu0 0.0
    %3710 = vmatprep.mubr.f32.mxu0 0.0
    %3711 = vmatmul.mubr.f32.gmra.mrb[0].mxu0 %v2007
    %v3712 = vpop.f32.mrb[0].mxu0
    %v3713 = vadd.f32 %v92, %v3712
    %v3714 = vpop.f32.mrb[0].mxu0
    %3715 = vdwg.mxu0
    %v3716 = vadd.f32 %v3643, %v3713
    %v3717 = vxor.u32 %v3716, 2147483648
    %v3718 = vmul.f32 %v3717, 1.442695
    %v3719 = vpow.pop %v3718
    %v3720 = vadd.f32 %v3719, 1.0
    %v3721 = vrcp.pop %v3720
    %v3722 = vmul.f32 1.0, %v3721
    %3724 = vrot.lane.b32.xlu0 %v3713, 64
    %v3725 = vpop.permute.xlu0 %3724
    %v3727 = vmul.f32 %v3722, %v3725
    %3729 = vrot.lane.b32.xlu0 %v3727, 64
    %v3730 = vpop.permute.xlu0 %3729
    %v3732 = vadd.f32 %v3643, %v3730
    %v3733 = vtanh.pop %v3732
    %v3734 = vsub.f32 1.0, %v3722
    %3736 = vrot.lane.b32.xlu0 %v3733, 96
    %v3737 = vpop.permute.xlu0 %3736
    %v3739 = vmul.f32 %v3734, %v3737
    %v3740 = vmul.f32 %v3722, %v2003
    %v3741 = vadd.f32 %v3739, %v3740
    %3743 = vrot.lane.b32.xlu0 %v3741, 96
    %v3744 = vpop.permute.xlu0 %3743
    %v3745 = vsel %vm1032, %v3744, 0
    %3747 = vmatprep.subr.mxu0 0.0
    %3748 = vmatpush1.msra.mxu0 %v93
    %3749 = vmatprep.subr.mxu0 0.0
    %3750 = vmatpush1.msra.mxu0 %v94
    %3751 = vmatprep.subr.mxu0 0.0
    %3752 = vmatpush1.msra.mxu0 %v95
    %3753 = vmatprep.subr.mxu0 0.0
    %3754 = vmatpush1.msra.mxu0 %v96
    %3755 = vmatprep.subr.mxu0 0.0
    %3756 = vmatpush1.msra.mxu0 0.0
    %3757 = vmatprep.subr.mxu0 0.0
    %3758 = vmatpush1.msra.mxu0 0.0
    %3759 = vmatprep.subr.mxu0 0.0
    %3760 = vmatpush1.msra.mxu0 0.0
    %3761 = vmatprep.subr.mxu0 0.0
    %3762 = vmatpush1.msra.mxu0 0.0
    %3763 = vmatprep.subr.mxu0 0.0
    %3764 = vmatpush1.msra.mxu0 0.0
    %3765 = vmatprep.subr.mxu0 0.0
    %3766 = vmatpush1.msra.mxu0 0.0
    %3767 = vmatprep.subr.mxu0 0.0
    %3768 = vmatpush1.msra.mxu0 0.0
    %3769 = vmatprep.subr.mxu0 0.0
    %3770 = vmatpush1.msra.mxu0 0.0
    %3771 = vmatprep.subr.mxu0 0.0
    %3772 = vmatpush1.msra.mxu0 0.0
    %3773 = vmatprep.subr.mxu0 0.0
    %3774 = vmatpush1.msra.mxu0 0.0
    %3775 = vmatprep.subr.mxu0 0.0
    %3776 = vmatpush1.msra.mxu0 0.0
    %3777 = vmatprep.subr.mxu0 0.0
    %3778 = vmatpush1.msra.mxu0 0.0
    %3779 = vmatprep.subr.mxu0 0.0
    %3780 = vmatpush1.msra.mxu0 0.0
    %3781 = vmatprep.subr.mxu0 0.0
    %3782 = vmatpush1.msra.mxu0 0.0
    %3783 = vmatprep.subr.mxu0 0.0
    %3784 = vmatpush1.msra.mxu0 0.0
    %3785 = vmatprep.subr.mxu0 0.0
    %3786 = vmatpush1.msra.mxu0 0.0
    %3787 = vmatprep.subr.mxu0 0.0
    %3788 = vmatpush1.msra.mxu0 0.0
    %3789 = vmatprep.subr.mxu0 0.0
    %3790 = vmatpush1.msra.mxu0 0.0
    %3791 = vmatprep.subr.mxu0 0.0
    %3792 = vmatpush1.msra.mxu0 0.0
    %3793 = vmatprep.subr.mxu0 0.0
    %3794 = vmatpush1.msra.mxu0 0.0
    %3795 = vmatprep.subr.mxu0 0.0
    %3796 = vmatpush1.msra.mxu0 0.0
    %3797 = vmatprep.subr.mxu0 0.0
    %3798 = vmatpush1.msra.mxu0 0.0
    %3799 = vmatprep.subr.mxu0 0.0
    %3800 = vmatpush1.msra.mxu0 0.0
    %3801 = vmatprep.subr.mxu0 0.0
    %3802 = vmatpush1.msra.mxu0 0.0
    %3803 = vmatprep.subr.mxu0 0.0
    %3804 = vmatpush1.msra.mxu0 0.0
    %3805 = vmatprep.subr.mxu0 0.0
    %3806 = vmatpush1.msra.mxu0 0.0
    %3807 = vmatprep.subr.mxu0 0.0
    %3808 = vmatpush1.msra.mxu0 0.0
    %3809 = vmatprep.subr.mxu0 0.0
    %3810 = vmatpush1.msra.mxu0 0.0
    %3811 = vmatprep.mubr.f32.mxu0 0.0
    %3812 = vmatmul.mubr.f32.gmra.mrb[0].mxu0 %v3745
    %v3813 = vpop.f32.mrb[0].mxu0
    %v3814 = vadd.f32 %v97, %v3813
    %v3815 = vpop.f32.mrb[0].mxu0
    %3816 = vdwg.mxu0
    %v3817 = vmax.f32 %v3814, 0.0
    %v3819 = vsel %vm1032, %v3817, 0
    %3821 = vmatprep.subr.mxu0 0.0
    %3822 = vmatpush1.msra.mxu0 %v110
    %3823 = vmatprep.subr.mxu0 0.0
    %3824 = vmatpush1.msra.mxu0 %v111
    %3825 = vmatprep.subr.mxu0 0.0
    %3826 = vmatpush1.msra.mxu0 %v112
    %3827 = vmatprep.subr.mxu0 0.0
    %3828 = vmatpush1.msra.mxu0 %v113
    %3829 = vmatprep.subr.mxu0 0.0
    %3830 = vmatpush1.msra.mxu0 0.0
    %3831 = vmatprep.subr.mxu0 0.0
    %3832 = vmatpush1.msra.mxu0 0.0
    %3833 = vmatprep.subr.mxu0 0.0
    %3834 = vmatpush1.msra.mxu0 0.0
    %3835 = vmatprep.subr.mxu0 0.0
    %3836 = vmatpush1.msra.mxu0 0.0
    %3837 = vmatprep.subr.mxu0 0.0
    %3838 = vmatpush1.msra.mxu0 0.0
    %3839 = vmatprep.subr.mxu0 0.0
    %3840 = vmatpush1.msra.mxu0 0.0
    %3841 = vmatprep.subr.mxu0 0.0
    %3842 = vmatpush1.msra.mxu0 0.0
    %3843 = vmatprep.subr.mxu0 0.0
    %3844 = vmatpush1.msra.mxu0 0.0
    %3845 = vmatprep.subr.mxu0 0.0
    %3846 = vmatpush1.msra.mxu0 0.0
    %3847 = vmatprep.subr.mxu0 0.0
    %3848 = vmatpush1.msra.mxu0 0.0
    %3849 = vmatprep.subr.mxu0 0.0
    %3850 = vmatpush1.msra.mxu0 0.0
    %3851 = vmatprep.subr.mxu0 0.0
    %3852 = vmatpush1.msra.mxu0 0.0
    %3853 = vmatprep.subr.mxu0 0.0
    %3854 = vmatpush1.msra.mxu0 0.0
    %3855 = vmatprep.subr.mxu0 0.0
    %3856 = vmatpush1.msra.mxu0 0.0
    %3857 = vmatprep.subr.mxu0 0.0
    %3858 = vmatpush1.msra.mxu0 0.0
    %3859 = vmatprep.subr.mxu0 0.0
    %3860 = vmatpush1.msra.mxu0 0.0
    %3861 = vmatprep.subr.mxu0 0.0
    %3862 = vmatpush1.msra.mxu0 0.0
    %3863 = vmatprep.subr.mxu0 0.0
    %3864 = vmatpush1.msra.mxu0 0.0
    %3865 = vmatprep.subr.mxu0 0.0
    %3866 = vmatpush1.msra.mxu0 0.0
    %3867 = vmatprep.subr.mxu0 0.0
    %3868 = vmatpush1.msra.mxu0 0.0
    %3869 = vmatprep.subr.mxu0 0.0
    %3870 = vmatpush1.msra.mxu0 0.0
    %3871 = vmatprep.subr.mxu0 0.0
    %3872 = vmatpush1.msra.mxu0 0.0
    %3873 = vmatprep.subr.mxu0 0.0
    %3874 = vmatpush1.msra.mxu0 0.0
    %3875 = vmatprep.subr.mxu0 0.0
    %3876 = vmatpush1.msra.mxu0 0.0
    %3877 = vmatprep.subr.mxu0 0.0
    %3878 = vmatpush1.msra.mxu0 0.0
    %3879 = vmatprep.subr.mxu0 0.0
    %3880 = vmatpush1.msra.mxu0 0.0
    %3881 = vmatprep.subr.mxu0 0.0
    %3882 = vmatpush1.msra.mxu0 0.0
    %3883 = vmatprep.subr.mxu0 0.0
    %3884 = vmatpush1.msra.mxu0 0.0
    %3885 = vmatprep.mubr.f32.mxu0 0.0
    %3886 = vmatmul.mubr.f32.gmra.mrb[0].mxu0 %v3819
    %v3887 = vpop.f32.mrb[0].mxu0
    %v3888 = vadd.f32 %v114, %v3887
    %v3889 = vpop.f32.mrb[0].mxu0
    %3890 = vdwg.mxu0
    %v3891 = vmax.f32 %v3888, 0.0
    %v3893 = vsel %vm1833, %v3891, 0
    %3895 = vmatprep.subr.mxu0 0.0
    %3896 = vmatpush1.msra.mxu0 %v115
    %3897 = vmatprep.subr.mxu0 0.0
    %3898 = vmatpush1.msra.mxu0 %v116
    %3899 = vmatprep.subr.mxu0 0.0
    %3900 = vmatpush1.msra.mxu0 %v117
    %3901 = vmatprep.subr.mxu0 0.0
    %3902 = vmatpush1.msra.mxu0 %v118
    %3903 = vmatprep.subr.mxu0 0.0
    %3904 = vmatpush1.msra.mxu0 %v119
    %3905 = vmatprep.subr.mxu0 0.0
    %3906 = vmatpush1.msra.mxu0 %v120
    %3907 = vmatprep.subr.mxu0 0.0
    %3908 = vmatpush1.msra.mxu0 %v121
    %3909 = vmatprep.subr.mxu0 0.0
    %3910 = vmatpush1.msra.mxu0 %v122
    %3911 = vmatprep.subr.mxu0 0.0
    %3912 = vmatpush1.msra.mxu0 0.0
    %3913 = vmatprep.subr.mxu0 0.0
    %3914 = vmatpush1.msra.mxu0 0.0
    %3915 = vmatprep.subr.mxu0 0.0
    %3916 = vmatpush1.msra.mxu0 0.0
    %3917 = vmatprep.subr.mxu0 0.0
    %3918 = vmatpush1.msra.mxu0 0.0
    %3919 = vmatprep.subr.mxu0 0.0
    %3920 = vmatpush1.msra.mxu0 0.0
    %3921 = vmatprep.subr.mxu0 0.0
    %3922 = vmatpush1.msra.mxu0 0.0
    %3923 = vmatprep.subr.mxu0 0.0
    %3924 = vmatpush1.msra.mxu0 0.0
    %3925 = vmatprep.subr.mxu0 0.0
    %3926 = vmatpush1.msra.mxu0 0.0
    %3927 = vmatprep.subr.mxu0 0.0
    %3928 = vmatpush1.msra.mxu0 0.0
    %3929 = vmatprep.subr.mxu0 0.0
    %3930 = vmatpush1.msra.mxu0 0.0
    %3931 = vmatprep.subr.mxu0 0.0
    %3932 = vmatpush1.msra.mxu0 0.0
    %3933 = vmatprep.subr.mxu0 0.0
    %3934 = vmatpush1.msra.mxu0 0.0
    %3935 = vmatprep.subr.mxu0 0.0
    %3936 = vmatpush1.msra.mxu0 0.0
    %3937 = vmatprep.subr.mxu0 0.0
    %3938 = vmatpush1.msra.mxu0 0.0
    %3939 = vmatprep.subr.mxu0 0.0
    %3940 = vmatpush1.msra.mxu0 0.0
    %3941 = vmatprep.subr.mxu0 0.0
    %3942 = vmatpush1.msra.mxu0 0.0
    %3943 = vmatprep.subr.mxu0 0.0
    %3944 = vmatpush1.msra.mxu0 0.0
    %3945 = vmatprep.subr.mxu0 0.0
    %3946 = vmatpush1.msra.mxu0 0.0
    %3947 = vmatprep.subr.mxu0 0.0
    %3948 = vmatpush1.msra.mxu0 0.0
    %3949 = vmatprep.subr.mxu0 0.0
    %3950 = vmatpush1.msra.mxu0 0.0
    %3951 = vmatprep.subr.mxu0 0.0
    %3952 = vmatpush1.msra.mxu0 0.0
    %3953 = vmatprep.subr.mxu0 0.0
    %3954 = vmatpush1.msra.mxu0 0.0
    %3955 = vmatprep.subr.mxu0 0.0
    %3956 = vmatpush1.msra.mxu0 0.0
    %3957 = vmatprep.subr.mxu0 0.0
    %3958 = vmatpush1.msra.mxu0 0.0
    %3959 = vmatprep.mubr.f32.mxu0 0.0
    %3960 = vmatmul.mubr.f32.gmra.mrb[0].mxu0 %v3893
    %v3961 = vpop.f32.mrb[0].mxu0
    %v3962 = vadd.f32 %v123, %v3961
    %v3963 = vpop.f32.mrb[0].mxu0
    %3964 = vdwg.mxu0
    %v3965 = vtanh.pop %v3962
    %v3966 = vmul.f32 %v3965, 0.1
    %v3967 = vsel %vm2229, %v3962, -inf
    %3968 = vmax.xlane.f32.xlu0 %v3967
    %v3969 = vpop.xlane.xlu0 %3968
    %v3970 = vsub.f32 %v3962, %v3969
    %v3971 = vmul.f32 %v3970, 1.442695
    %v3972 = vpow.pop %v3971
    %3974 = vrot.lane.b32.xlu0 %v3972, 126
    %v3975 = vpop.permute.xlu0 %3974
    %v3977 = vsel %vm151, %v3975, 0.0
    %3978 = vadd.xlane.f32.xlu0 %v3977
    %v3979 = vpop.xlane.xlu0 %3978
    %v3980 = vrcp.pop %v3979
    %v3981 = vmul.f32 %v3972, %v3980
    %v3982 = vsel %vm338, %v2402, 0
    %3984 = vmatprep.subr.mxu0 0.0
    %3985 = vmatpush1.msra.mxu0 %v2401
    %3986 = vmatprep.subr.mxu0 0.0
    %3987 = vmatpush1.msra.mxu0 %v3982
    %3988 = vmatprep.subr.mxu0 0.0
    %3989 = vmatpush1.msra.mxu0 0.0
    %3990 = vmatprep.subr.mxu0 0.0
    %3991 = vmatpush1.msra.mxu0 0.0
    %3992 = vmatprep.subr.mxu0 0.0
    %3993 = vmatpush1.msra.mxu0 0.0
    %3994 = vmatprep.subr.mxu0 0.0
    %3995 = vmatpush1.msra.mxu0 0.0
    %3996 = vmatprep.subr.mxu0 0.0
    %3997 = vmatpush1.msra.mxu0 0.0
    %3998 = vmatprep.subr.mxu0 0.0
    %3999 = vmatpush1.msra.mxu0 0.0
    %4000 = vmatprep.subr.mxu0 0.0
    %4001 = vmatpush1.msra.mxu0 0.0
    %4002 = vmatprep.subr.mxu0 0.0
    %4003 = vmatpush1.msra.mxu0 0.0
    %4004 = vmatprep.subr.mxu0 0.0
    %4005 = vmatpush1.msra.mxu0 0.0
    %4006 = vmatprep.subr.mxu0 0.0
    %4007 = vmatpush1.msra.mxu0 0.0
    %4008 = vmatprep.subr.mxu0 0.0
    %4009 = vmatpush1.msra.mxu0 0.0
    %4010 = vmatprep.subr.mxu0 0.0
    %4011 = vmatpush1.msra.mxu0 0.0
    %4012 = vmatprep.subr.mxu0 0.0
    %4013 = vmatpush1.msra.mxu0 0.0
    %4014 = vmatprep.subr.mxu0 0.0
    %4015 = vmatpush1.msra.mxu0 0.0
    %4016 = vmatprep.subr.mxu0 0.0
    %4017 = vmatpush1.msra.mxu0 0.0
    %4018 = vmatprep.subr.mxu0 0.0
    %4019 = vmatpush1.msra.mxu0 0.0
    %4020 = vmatprep.subr.mxu0 0.0
    %4021 = vmatpush1.msra.mxu0 0.0
    %4022 = vmatprep.subr.mxu0 0.0
    %4023 = vmatpush1.msra.mxu0 0.0
    %4024 = vmatprep.subr.mxu0 0.0
    %4025 = vmatpush1.msra.mxu0 0.0
    %4026 = vmatprep.subr.mxu0 0.0
    %4027 = vmatpush1.msra.mxu0 0.0
    %4028 = vmatprep.subr.mxu0 0.0
    %4029 = vmatpush1.msra.mxu0 0.0
    %4030 = vmatprep.subr.mxu0 0.0
    %4031 = vmatpush1.msra.mxu0 0.0
    %4032 = vmatprep.subr.mxu0 0.0
    %4033 = vmatpush1.msra.mxu0 0.0
    %4034 = vmatprep.subr.mxu0 0.0
    %4035 = vmatpush1.msra.mxu0 0.0
    %4036 = vmatprep.subr.mxu0 0.0
    %4037 = vmatpush1.msra.mxu0 0.0
    %4038 = vmatprep.subr.mxu0 0.0
    %4039 = vmatpush1.msra.mxu0 0.0
    %4040 = vmatprep.subr.mxu0 0.0
    %4041 = vmatpush1.msra.mxu0 0.0
    %4042 = vmatprep.subr.mxu0 0.0
    %4043 = vmatpush1.msra.mxu0 0.0
    %4044 = vmatprep.subr.mxu0 0.0
    %4045 = vmatpush1.msra.mxu0 0.0
    %4046 = vmatprep.subr.mxu0 0.0
    %4047 = vmatpush1.msra.mxu0 0.0
    %4048 = vmatprep.mubr.f32.mxu0 0.0
    %4049 = vmatmul.mubr.f32.gmra.mrb[0].mxu0 %v2246
    %v4050 = vpop.f32.mrb[0].mxu0
    %v4051 = vadd.f32 %v3966, %v4050
    %v4052 = vpop.f32.mrb[0].mxu0
    %4053 = vdwg.mxu0
    %4054 = vmatprep.subr.mxu0 0.0
    %4055 = vmatpush1.msra.mxu0 %v3966
    %4056 = vmatprep.subr.mxu0 0.0
    %4057 = vmatpush1.msra.mxu0 0.0
    %4058 = vmatprep.subr.mxu0 0.0
    %4059 = vmatpush1.msra.mxu0 0.0
    %4060 = vmatprep.subr.mxu0 0.0
    %4061 = vmatpush1.msra.mxu0 0.0
    %4062 = vmatprep.subr.mxu0 0.0
    %4063 = vmatpush1.msra.mxu0 0.0
    %4064 = vmatprep.subr.mxu0 0.0
    %4065 = vmatpush1.msra.mxu0 0.0
    %4066 = vmatprep.subr.mxu0 0.0
    %4067 = vmatpush1.msra.mxu0 0.0
    %4068 = vmatprep.subr.mxu0 0.0
    %4069 = vmatpush1.msra.mxu0 0.0
    %4070 = vmatprep.subr.mxu0 0.0
    %4071 = vmatpush1.msra.mxu0 0.0
    %4072 = vmatprep.subr.mxu0 0.0
    %4073 = vmatpush1.msra.mxu0 0.0
    %4074 = vmatprep.subr.mxu0 0.0
    %4075 = vmatpush1.msra.mxu0 0.0
    %4076 = vmatprep.subr.mxu0 0.0
    %4077 = vmatpush1.msra.mxu0 0.0
    %4078 = vmatprep.subr.mxu0 0.0
    %4079 = vmatpush1.msra.mxu0 0.0
    %4080 = vmatprep.subr.mxu0 0.0
    %4081 = vmatpush1.msra.mxu0 0.0
    %4082 = vmatprep.subr.mxu0 0.0
    %4083 = vmatpush1.msra.mxu0 0.0
    %4084 = vmatprep.subr.mxu0 0.0
    %4085 = vmatpush1.msra.mxu0 0.0
    %4086 = vmatprep.subr.mxu0 0.0
    %4087 = vmatpush1.msra.mxu0 0.0
    %4088 = vmatprep.subr.mxu0 0.0
    %4089 = vmatpush1.msra.mxu0 0.0
    %4090 = vmatprep.subr.mxu0 0.0
    %4091 = vmatpush1.msra.mxu0 0.0
    %4092 = vmatprep.subr.mxu0 0.0
    %4093 = vmatpush1.msra.mxu0 0.0
    %4094 = vmatprep.subr.mxu0 0.0
    %4095 = vmatpush1.msra.mxu0 0.0
    %4096 = vmatprep.subr.mxu0 0.0
    %4097 = vmatpush1.msra.mxu0 0.0
    %4098 = vmatprep.subr.mxu0 0.0
    %4099 = vmatpush1.msra.mxu0 0.0
    %4100 = vmatprep.subr.mxu0 0.0
    %4101 = vmatpush1.msra.mxu0 0.0
    %4102 = vmatprep.subr.mxu0 0.0
    %4103 = vmatpush1.msra.mxu0 0.0
    %4104 = vmatprep.subr.mxu0 0.0
    %4105 = vmatpush1.msra.mxu0 0.0
    %4106 = vmatprep.subr.mxu0 0.0
    %4107 = vmatpush1.msra.mxu0 0.0
    %4108 = vmatprep.subr.mxu0 0.0
    %4109 = vmatpush1.msra.mxu0 0.0
    %4110 = vmatprep.subr.mxu0 0.0
    %4111 = vmatpush1.msra.mxu0 0.0
    %4112 = vmatprep.subr.mxu0 0.0
    %4113 = vmatpush1.msra.mxu0 0.0
    %4114 = vmatprep.subr.mxu0 0.0
    %4115 = vmatpush1.msra.mxu0 0.0
    %4116 = vmatprep.subr.mxu0 0.0
    %4117 = vmatpush1.msra.mxu0 0.0
    %4118 = vmatprep.mubr.f32.mxu0 0.0
    %4119 = vmatmul.mubr.f32.gmra.mrb[0].mxu0 %v2321
    %v4120 = vpop.f32.mrb[0].mxu0
    %v4121 = vadd.f32 0.0, %v4120
    %v4122 = vpop.f32.mrb[0].mxu0
    %4123 = vmatprep.mubr.f32.mxu0 0.0
    %4124 = vmatmul.mubr.f32.gmra.mrb[0].mxu0 %v2324
    %v4125 = vpop.f32.mrb[0].mxu0
    %v4126 = vadd.f32 0.0, %v4125
    %v4127 = vpop.f32.mrb[0].mxu0
    %4128 = vdwg.mxu0
    %v4129 = vadd.f32 %v2401, %v4121
    %v4130 = vadd.f32 %v2402, %v4126
    %v4131 = vsub.f32 %v4051, %v18
    %v4132 = vmul.f32 %v4131, %v4131
    %v4133 = vadd.f32 %v2408, %v4132
    %v4134 = vmul.f32 %v3966, %v3966
    %v4135 = vmul.f32 %v4134, 0.1
    %v4136 = vadd.f32 %v4133, %v4135
    %v4137 = vsub.f32 %v3555, %v225
    %v4138 = vsub.f32 %v3560, %v230
    %v4139 = vmul.f32 %v4137, %v4137
    %v4140 = vmul.f32 %v4138, %v4138
    %v4141 = vadd.f32 %v2413, %v4139
    %v4142 = vadd.f32 %v2414, %v4140
    %v4144 = vsel %vm233, %v4129, 0
    %v4147 = vsel %vm233, %v4130, 0
    %4149 = vmatprep.subr.mxu0 0.0
    %4150 = vmatpush1.msra.mxu0 %v647
    %4151 = vmatprep.subr.mxu0 0.0
    %4152 = vmatpush1.msra.mxu0 0.0
    %4153 = vmatprep.subr.mxu0 0.0
    %4154 = vmatpush1.msra.mxu0 0.0
    %4155 = vmatprep.subr.mxu0 0.0
    %4156 = vmatpush1.msra.mxu0 0.0
    %4157 = vmatprep.subr.mxu0 0.0
    %4158 = vmatpush1.msra.mxu0 0.0
    %4159 = vmatprep.subr.mxu0 0.0
    %4160 = vmatpush1.msra.mxu0 0.0
    %4161 = vmatprep.subr.mxu0 0.0
    %4162 = vmatpush1.msra.mxu0 0.0
    %4163 = vmatprep.subr.mxu0 0.0
    %4164 = vmatpush1.msra.mxu0 0.0
    %4165 = vmatprep.subr.mxu0 0.0
    %4166 = vmatpush1.msra.mxu0 0.0
    %4167 = vmatprep.subr.mxu0 0.0
    %4168 = vmatpush1.msra.mxu0 0.0
    %4169 = vmatprep.subr.mxu0 0.0
    %4170 = vmatpush1.msra.mxu0 0.0
    %4171 = vmatprep.subr.mxu0 0.0
    %4172 = vmatpush1.msra.mxu0 0.0
    %4173 = vmatprep.subr.mxu0 0.0
    %4174 = vmatpush1.msra.mxu0 0.0
    %4175 = vmatprep.subr.mxu0 0.0
    %4176 = vmatpush1.msra.mxu0 0.0
    %4177 = vmatprep.subr.mxu0 0.0
    %4178 = vmatpush1.msra.mxu0 0.0
    %4179 = vmatprep.subr.mxu0 0.0
    %4180 = vmatpush1.msra.mxu0 0.0
    %4181 = vmatprep.subr.mxu0 0.0
    %4182 = vmatpush1.msra.mxu0 0.0
    %4183 = vmatprep.subr.mxu0 0.0
    %4184 = vmatpush1.msra.mxu0 0.0
    %4185 = vmatprep.subr.mxu0 0.0
    %4186 = vmatpush1.msra.mxu0 0.0
    %4187 = vmatprep.subr.mxu0 0.0
    %4188 = vmatpush1.msra.mxu0 0.0
    %4189 = vmatprep.subr.mxu0 0.0
    %4190 = vmatpush1.msra.mxu0 0.0
    %4191 = vmatprep.subr.mxu0 0.0
    %4192 = vmatpush1.msra.mxu0 0.0
    %4193 = vmatprep.subr.mxu0 0.0
    %4194 = vmatpush1.msra.mxu0 0.0
    %4195 = vmatprep.subr.mxu0 0.0
    %4196 = vmatpush1.msra.mxu0 0.0
    %4197 = vmatprep.subr.mxu0 0.0
    %4198 = vmatpush1.msra.mxu0 0.0
    %4199 = vmatprep.subr.mxu0 0.0
    %4200 = vmatpush1.msra.mxu0 0.0
    %4201 = vmatprep.subr.mxu0 0.0
    %4202 = vmatpush1.msra.mxu0 0.0
    %4203 = vmatprep.subr.mxu0 0.0
    %4204 = vmatpush1.msra.mxu0 0.0
    %4205 = vmatprep.subr.mxu0 0.0
    %4206 = vmatpush1.msra.mxu0 0.0
    %4207 = vmatprep.subr.mxu0 0.0
    %4208 = vmatpush1.msra.mxu0 0.0
    %4209 = vmatprep.subr.mxu0 0.0
    %4210 = vmatpush1.msra.mxu0 0.0
    %4211 = vmatprep.subr.mxu0 0.0
    %4212 = vmatpush1.msra.mxu0 0.0
    %4213 = vmatprep.mubr.f32.mxu0 0.0
    %4214 = vmatmul.mubr.f32.gmra.mrb[0].mxu0 %v4144
    %v4215 = vpop.f32.mrb[0].mxu0
    %v4216 = vadd.f32 0.0, %v4215
    %v4217 = vpop.f32.mrb[0].mxu0
    %4218 = vmatprep.mubr.f32.mxu0 0.0
    %4219 = vmatmul.mubr.f32.gmra.mrb[0].mxu0 %v4147
    %v4220 = vpop.f32.mrb[0].mxu0
    %v4221 = vadd.f32 0.0, %v4220
    %v4222 = vpop.f32.mrb[0].mxu0
    %4223 = vdwg.mxu0
    %v4225 = vsel %vm338, %v4221, 0
    %4227 = vmatprep.subr.mxu0 0.0
    %4228 = vmatpush1.msra.mxu0 %v4216
    %4229 = vmatprep.subr.mxu0 0.0
    %4230 = vmatpush1.msra.mxu0 %v4225
    %4231 = vmatprep.subr.mxu0 0.0
    %4232 = vmatpush1.msra.mxu0 0.0
    %4233 = vmatprep.subr.mxu0 0.0
    %4234 = vmatpush1.msra.mxu0 0.0
    %4235 = vmatprep.subr.mxu0 0.0
    %4236 = vmatpush1.msra.mxu0 0.0
    %4237 = vmatprep.subr.mxu0 0.0
    %4238 = vmatpush1.msra.mxu0 0.0
    %4239 = vmatprep.subr.mxu0 0.0
    %4240 = vmatpush1.msra.mxu0 0.0
    %4241 = vmatprep.subr.mxu0 0.0
    %4242 = vmatpush1.msra.mxu0 0.0
    %4243 = vmatprep.subr.mxu0 0.0
    %4244 = vmatpush1.msra.mxu0 0.0
    %4245 = vmatprep.subr.mxu0 0.0
    %4246 = vmatpush1.msra.mxu0 0.0
    %4247 = vmatprep.subr.mxu0 0.0
    %4248 = vmatpush1.msra.mxu0 0.0
    %4249 = vmatprep.subr.mxu0 0.0
    %4250 = vmatpush1.msra.mxu0 0.0
    %4251 = vmatprep.subr.mxu0 0.0
    %4252 = vmatpush1.msra.mxu0 0.0
    %4253 = vmatprep.subr.mxu0 0.0
    %4254 = vmatpush1.msra.mxu0 0.0
    %4255 = vmatprep.subr.mxu0 0.0
    %4256 = vmatpush1.msra.mxu0 0.0
    %4257 = vmatprep.subr.mxu0 0.0
    %4258 = vmatpush1.msra.mxu0 0.0
    %4259 = vmatprep.subr.mxu0 0.0
    %4260 = vmatpush1.msra.mxu0 0.0
    %4261 = vmatprep.subr.mxu0 0.0
    %4262 = vmatpush1.msra.mxu0 0.0
    %4263 = vmatprep.subr.mxu0 0.0
    %4264 = vmatpush1.msra.mxu0 0.0
    %4265 = vmatprep.subr.mxu0 0.0
    %4266 = vmatpush1.msra.mxu0 0.0
    %4267 = vmatprep.subr.mxu0 0.0
    %4268 = vmatpush1.msra.mxu0 0.0
    %4269 = vmatprep.subr.mxu0 0.0
    %4270 = vmatpush1.msra.mxu0 0.0
    %4271 = vmatprep.subr.mxu0 0.0
    %4272 = vmatpush1.msra.mxu0 0.0
    %4273 = vmatprep.subr.mxu0 0.0
    %4274 = vmatpush1.msra.mxu0 0.0
    %4275 = vmatprep.subr.mxu0 0.0
    %4276 = vmatpush1.msra.mxu0 0.0
    %4277 = vmatprep.subr.mxu0 0.0
    %4278 = vmatpush1.msra.mxu0 0.0
    %4279 = vmatprep.subr.mxu0 0.0
    %4280 = vmatpush1.msra.mxu0 0.0
    %4281 = vmatprep.subr.mxu0 0.0
    %4282 = vmatpush1.msra.mxu0 0.0
    %4283 = vmatprep.subr.mxu0 0.0
    %4284 = vmatpush1.msra.mxu0 0.0
    %4285 = vmatprep.subr.mxu0 0.0
    %4286 = vmatpush1.msra.mxu0 0.0
    %4287 = vmatprep.subr.mxu0 0.0
    %4288 = vmatpush1.msra.mxu0 0.0
    %4289 = vmatprep.subr.mxu0 0.0
    %4290 = vmatpush1.msra.mxu0 0.0
    %4291 = vmatprep.mubr.f32.mxu0 0.0
    %4292 = vmatmul.mubr.f32.gmra.mrb[0].mxu0 %v725
    %v4293 = vpop.f32.mrb[0].mxu0
    %v4294 = vadd.f32 0.0, %v4293
    %v4295 = vpop.f32.mrb[0].mxu0
    %4296 = vmatprep.mubr.f32.mxu0 0.0
    %4297 = vmatmul.mubr.f32.gmra.mrb[0].mxu0 %v728
    %v4298 = vpop.f32.mrb[0].mxu0
    %v4299 = vadd.f32 0.0, %v4298
    %v4300 = vpop.f32.mrb[0].mxu0
    %4301 = vmatprep.mubr.f32.mxu0 0.0
    %4302 = vmatmul.mubr.f32.gmra.mrb[0].mxu0 %v731
    %v4303 = vpop.f32.mrb[0].mxu0
    %v4304 = vadd.f32 0.0, %v4303
    %v4305 = vpop.f32.mrb[0].mxu0
    %4306 = vmatprep.mubr.f32.mxu0 0.0
    %4307 = vmatmul.mubr.f32.gmra.mrb[0].mxu0 %v734
    %v4308 = vpop.f32.mrb[0].mxu0
    %v4309 = vadd.f32 0.0, %v4308
    %v4310 = vpop.f32.mrb[0].mxu0
    %4311 = vmatprep.mubr.f32.mxu0 0.0
    %4312 = vmatmul.mubr.f32.gmra.mrb[0].mxu0 %v737
    %v4313 = vpop.f32.mrb[0].mxu0
    %v4314 = vadd.f32 0.0, %v4313
    %v4315 = vpop.f32.mrb[0].mxu0
    %4316 = vmatprep.mubr.f32.mxu0 0.0
    %4317 = vmatmul.mubr.f32.gmra.mrb[0].mxu0 %v740
    %v4318 = vpop.f32.mrb[0].mxu0
    %v4319 = vadd.f32 0.0, %v4318
    %v4320 = vpop.f32.mrb[0].mxu0
    %4321 = vdwg.mxu0
    %v4322 = vadd.f32 %v634, %v4294
    %v4323 = vadd.f32 %v635, %v4299
    %v4324 = vadd.f32 %v636, %v4304
    %v4325 = vadd.f32 %v637, %v4309
    %v4326 = vadd.f32 %v638, %v4314
    %v4327 = vadd.f32 %v639, %v4319
    %4329 = vrot.lane.b32.xlu0 %v3981, 126
    %v4330 = vpop.permute.xlu0 %4329
    %v4331 = vsel %vm151, %v4330, 0
    %4333 = vmatprep.subr.mxu0 0.0
    %4334 = vmatpush1.msra.mxu0 %v21
    %4335 = vmatprep.subr.mxu0 0.0
    %4336 = vmatpush1.msra.mxu0 0.0
    %4337 = vmatprep.subr.mxu0 0.0
    %4338 = vmatpush1.msra.mxu0 0.0
    %4339 = vmatprep.subr.mxu0 0.0
    %4340 = vmatpush1.msra.mxu0 0.0
    %4341 = vmatprep.subr.mxu0 0.0
    %4342 = vmatpush1.msra.mxu0 0.0
    %4343 = vmatprep.subr.mxu0 0.0
    %4344 = vmatpush1.msra.mxu0 0.0
    %4345 = vmatprep.subr.mxu0 0.0
    %4346 = vmatpush1.msra.mxu0 0.0
    %4347 = vmatprep.subr.mxu0 0.0
    %4348 = vmatpush1.msra.mxu0 0.0
    %4349 = vmatprep.subr.mxu0 0.0
    %4350 = vmatpush1.msra.mxu0 0.0
    %4351 = vmatprep.subr.mxu0 0.0
    %4352 = vmatpush1.msra.mxu0 0.0
    %4353 = vmatprep.subr.mxu0 0.0
    %4354 = vmatpush1.msra.mxu0 0.0
    %4355 = vmatprep.subr.mxu0 0.0
    %4356 = vmatpush1.msra.mxu0 0.0
    %4357 = vmatprep.subr.mxu0 0.0
    %4358 = vmatpush1.msra.mxu0 0.0
    %4359 = vmatprep.subr.mxu0 0.0
    %4360 = vmatpush1.msra.mxu0 0.0
    %4361 = vmatprep.subr.mxu0 0.0
    %4362 = vmatpush1.msra.mxu0 0.0
    %4363 = vmatprep.subr.mxu0 0.0
    %4364 = vmatpush1.msra.mxu0 0.0
    %4365 = vmatprep.subr.mxu0 0.0
    %4366 = vmatpush1.msra.mxu0 0.0
    %4367 = vmatprep.subr.mxu0 0.0
    %4368 = vmatpush1.msra.mxu0 0.0
    %4369 = vmatprep.subr.mxu0 0.0
    %4370 = vmatpush1.msra.mxu0 0.0
    %4371 = vmatprep.subr.mxu0 0.0
    %4372 = vmatpush1.msra.mxu0 0.0
    %4373 = vmatprep.subr.mxu0 0.0
    %4374 = vmatpush1.msra.mxu0 0.0
    %4375 = vmatprep.subr.mxu0 0.0
    %4376 = vmatpush1.msra.mxu0 0.0
    %4377 = vmatprep.subr.mxu0 0.0
    %4378 = vmatpush1.msra.mxu0 0.0
    %4379 = vmatprep.subr.mxu0 0.0
    %4380 = vmatpush1.msra.mxu0 0.0
    %4381 = vmatprep.subr.mxu0 0.0
    %4382 = vmatpush1.msra.mxu0 0.0
    %4383 = vmatprep.subr.mxu0 0.0
    %4384 = vmatpush1.msra.mxu0 0.0
    %4385 = vmatprep.subr.mxu0 0.0
    %4386 = vmatpush1.msra.mxu0 0.0
    %4387 = vmatprep.subr.mxu0 0.0
    %4388 = vmatpush1.msra.mxu0 0.0
    %4389 = vmatprep.subr.mxu0 0.0
    %4390 = vmatpush1.msra.mxu0 0.0
    %4391 = vmatprep.subr.mxu0 0.0
    %4392 = vmatpush1.msra.mxu0 0.0
    %4393 = vmatprep.subr.mxu0 0.0
    %4394 = vmatpush1.msra.mxu0 0.0
    %4395 = vmatprep.subr.mxu0 0.0
    %4396 = vmatpush1.msra.mxu0 0.0
    %4397 = vmatprep.mubr.f32.mxu0 0.0
    %4398 = vmatmul.mubr.f32.gmra.mrb[0].mxu0 %v4331
    %v4399 = vpop.f32.mrb[0].mxu0
    %v4400 = vadd.f32 0.0, %v4399
    %v4401 = vpop.f32.mrb[0].mxu0
    %4402 = vdwg.mxu0
    %4403 = vmatprep.subr.mxu0 0.0
    %4404 = vmatpush1.msra.mxu0 %v4400
    %4405 = vmatprep.subr.mxu0 0.0
    %4406 = vmatpush1.msra.mxu0 0.0
    %4407 = vmatprep.subr.mxu0 0.0
    %4408 = vmatpush1.msra.mxu0 0.0
    %4409 = vmatprep.subr.mxu0 0.0
    %4410 = vmatpush1.msra.mxu0 0.0
    %4411 = vmatprep.subr.mxu0 0.0
    %4412 = vmatpush1.msra.mxu0 0.0
    %4413 = vmatprep.subr.mxu0 0.0
    %4414 = vmatpush1.msra.mxu0 0.0
    %4415 = vmatprep.subr.mxu0 0.0
    %4416 = vmatpush1.msra.mxu0 0.0
    %4417 = vmatprep.subr.mxu0 0.0
    %4418 = vmatpush1.msra.mxu0 0.0
    %4419 = vmatprep.subr.mxu0 0.0
    %4420 = vmatpush1.msra.mxu0 0.0
    %4421 = vmatprep.subr.mxu0 0.0
    %4422 = vmatpush1.msra.mxu0 0.0
    %4423 = vmatprep.subr.mxu0 0.0
    %4424 = vmatpush1.msra.mxu0 0.0
    %4425 = vmatprep.subr.mxu0 0.0
    %4426 = vmatpush1.msra.mxu0 0.0
    %4427 = vmatprep.subr.mxu0 0.0
    %4428 = vmatpush1.msra.mxu0 0.0
    %4429 = vmatprep.subr.mxu0 0.0
    %4430 = vmatpush1.msra.mxu0 0.0
    %4431 = vmatprep.subr.mxu0 0.0
    %4432 = vmatpush1.msra.mxu0 0.0
    %4433 = vmatprep.subr.mxu0 0.0
    %4434 = vmatpush1.msra.mxu0 0.0
    %4435 = vmatprep.subr.mxu0 0.0
    %4436 = vmatpush1.msra.mxu0 0.0
    %4437 = vmatprep.subr.mxu0 0.0
    %4438 = vmatpush1.msra.mxu0 0.0
    %4439 = vmatprep.subr.mxu0 0.0
    %4440 = vmatpush1.msra.mxu0 0.0
    %4441 = vmatprep.subr.mxu0 0.0
    %4442 = vmatpush1.msra.mxu0 0.0
    %4443 = vmatprep.subr.mxu0 0.0
    %4444 = vmatpush1.msra.mxu0 0.0
    %4445 = vmatprep.subr.mxu0 0.0
    %4446 = vmatpush1.msra.mxu0 0.0
    %4447 = vmatprep.subr.mxu0 0.0
    %4448 = vmatpush1.msra.mxu0 0.0
    %4449 = vmatprep.subr.mxu0 0.0
    %4450 = vmatpush1.msra.mxu0 0.0
    %4451 = vmatprep.subr.mxu0 0.0
    %4452 = vmatpush1.msra.mxu0 0.0
    %4453 = vmatprep.subr.mxu0 0.0
    %4454 = vmatpush1.msra.mxu0 0.0
    %4455 = vmatprep.subr.mxu0 0.0
    %4456 = vmatpush1.msra.mxu0 0.0
    %4457 = vmatprep.subr.mxu0 0.0
    %4458 = vmatpush1.msra.mxu0 0.0
    %4459 = vmatprep.subr.mxu0 0.0
    %4460 = vmatpush1.msra.mxu0 0.0
    %4461 = vmatprep.subr.mxu0 0.0
    %4462 = vmatpush1.msra.mxu0 0.0
    %4463 = vmatprep.subr.mxu0 0.0
    %4464 = vmatpush1.msra.mxu0 0.0
    %4465 = vmatprep.subr.mxu0 0.0
    %4466 = vmatpush1.msra.mxu0 0.0
    %4467 = vmatprep.mubr.f32.mxu0 0.0
    %4468 = vmatmul.mubr.f32.gmra.mrb[0].mxu0 %v920
    %v4469 = vpop.f32.mrb[0].mxu0
    %v4470 = vadd.f32 0.0, %v4469
    %v4471 = vpop.f32.mrb[0].mxu0
    %4472 = vmatprep.mubr.f32.mxu0 0.0
    %4473 = vmatmul.mubr.f32.gmra.mrb[0].mxu0 %v923
    %v4474 = vpop.f32.mrb[0].mxu0
    %v4475 = vadd.f32 0.0, %v4474
    %v4476 = vpop.f32.mrb[0].mxu0
    %4477 = vmatprep.mubr.f32.mxu0 0.0
    %4478 = vmatmul.mubr.f32.gmra.mrb[0].mxu0 %v926
    %v4479 = vpop.f32.mrb[0].mxu0
    %v4480 = vadd.f32 0.0, %v4479
    %v4481 = vpop.f32.mrb[0].mxu0
    %4482 = vmatprep.mubr.f32.mxu0 0.0
    %4483 = vmatmul.mubr.f32.gmra.mrb[0].mxu0 %v153
    %v4484 = vpop.f32.mrb[0].mxu0
    %v4485 = vadd.f32 0.0, %v4484
    %v4486 = vpop.f32.mrb[0].mxu0
    %4487 = vmatprep.mubr.f32.mxu0 0.0
    %4488 = vmatmul.mubr.f32.gmra.mrb[0].mxu0 %v156
    %v4489 = vpop.f32.mrb[0].mxu0
    %v4490 = vadd.f32 0.0, %v4489
    %v4491 = vpop.f32.mrb[0].mxu0
    %4492 = vmatprep.mubr.f32.mxu0 0.0
    %4493 = vmatmul.mubr.f32.gmra.mrb[0].mxu0 %v929
    %v4494 = vpop.f32.mrb[0].mxu0
    %v4495 = vadd.f32 0.0, %v4494
    %v4496 = vpop.f32.mrb[0].mxu0
    %4497 = vdwg.mxu0
    %v4498 = vadd.f32 %v4322, %v4470
    %v4499 = vadd.f32 %v4323, %v4475
    %v4500 = vadd.f32 %v4324, %v4480
    %v4501 = vadd.f32 %v4325, %v4485
    %v4502 = vadd.f32 %v4326, %v4490
    %v4503 = vadd.f32 %v4327, %v4495
    %4504 = vmatprep.subr.mxu0 0.0
    %4505 = vmatpush1.msra.mxu0 %v23
    %4506 = vmatprep.subr.mxu0 0.0
    %4507 = vmatpush1.msra.mxu0 %v24
    %4508 = vmatprep.subr.mxu0 0.0
    %4509 = vmatpush1.msra.mxu0 %v25
    %4510 = vmatprep.subr.mxu0 0.0
    %4511 = vmatpush1.msra.mxu0 %v26
    %4512 = vmatprep.subr.mxu0 0.0
    %4513 = vmatpush1.msra.mxu0 0.0
    %4514 = vmatprep.subr.mxu0 0.0
    %4515 = vmatpush1.msra.mxu0 0.0
    %4516 = vmatprep.subr.mxu0 0.0
    %4517 = vmatpush1.msra.mxu0 0.0
    %4518 = vmatprep.subr.mxu0 0.0
    %4519 = vmatpush1.msra.mxu0 0.0
    %4520 = vmatprep.subr.mxu0 0.0
    %4521 = vmatpush1.msra.mxu0 0.0
    %4522 = vmatprep.subr.mxu0 0.0
    %4523 = vmatpush1.msra.mxu0 0.0
    %4524 = vmatprep.subr.mxu0 0.0
    %4525 = vmatpush1.msra.mxu0 0.0
    %4526 = vmatprep.subr.mxu0 0.0
    %4527 = vmatpush1.msra.mxu0 0.0
    %4528 = vmatprep.subr.mxu0 0.0
    %4529 = vmatpush1.msra.mxu0 0.0
    %4530 = vmatprep.subr.mxu0 0.0
    %4531 = vmatpush1.msra.mxu0 0.0
    %4532 = vmatprep.subr.mxu0 0.0
    %4533 = vmatpush1.msra.mxu0 0.0
    %4534 = vmatprep.subr.mxu0 0.0
    %4535 = vmatpush1.msra.mxu0 0.0
    %4536 = vmatprep.subr.mxu0 0.0
    %4537 = vmatpush1.msra.mxu0 0.0
    %4538 = vmatprep.subr.mxu0 0.0
    %4539 = vmatpush1.msra.mxu0 0.0
    %4540 = vmatprep.subr.mxu0 0.0
    %4541 = vmatpush1.msra.mxu0 0.0
    %4542 = vmatprep.subr.mxu0 0.0
    %4543 = vmatpush1.msra.mxu0 0.0
    %4544 = vmatprep.subr.mxu0 0.0
    %4545 = vmatpush1.msra.mxu0 0.0
    %4546 = vmatprep.subr.mxu0 0.0
    %4547 = vmatpush1.msra.mxu0 0.0
    %4548 = vmatprep.subr.mxu0 0.0
    %4549 = vmatpush1.msra.mxu0 0.0
    %4550 = vmatprep.subr.mxu0 0.0
    %4551 = vmatpush1.msra.mxu0 0.0
    %4552 = vmatprep.subr.mxu0 0.0
    %4553 = vmatpush1.msra.mxu0 0.0
    %4554 = vmatprep.subr.mxu0 0.0
    %4555 = vmatpush1.msra.mxu0 0.0
    %4556 = vmatprep.subr.mxu0 0.0
    %4557 = vmatpush1.msra.mxu0 0.0
    %4558 = vmatprep.subr.mxu0 0.0
    %4559 = vmatpush1.msra.mxu0 0.0
    %4560 = vmatprep.subr.mxu0 0.0
    %4561 = vmatpush1.msra.mxu0 0.0
    %4562 = vmatprep.subr.mxu0 0.0
    %4563 = vmatpush1.msra.mxu0 0.0
    %4564 = vmatprep.subr.mxu0 0.0
    %4565 = vmatpush1.msra.mxu0 0.0
    %4566 = vmatprep.subr.mxu0 0.0
    %4567 = vmatpush1.msra.mxu0 0.0
    %4568 = vmatprep.mubr.f32.mxu0 0.0
    %4569 = vmatmul.mubr.f32.gmra.mrb[0].mxu0 %v3164
    %v4570 = vpop.f32.mrb[0].mxu0
    %v4571 = vadd.f32 0.0, %v4570
    %v4572 = vpop.f32.mrb[0].mxu0
    %4573 = vmatprep.mubr.f32.mxu0 0.0
    %4574 = vmatmul.mubr.f32.gmra.mrb[0].mxu0 %v3166
    %v4575 = vpop.f32.mrb[0].mxu0
    %v4576 = vadd.f32 0.0, %v4575
    %v4577 = vpop.f32.mrb[0].mxu0
    %4578 = vmatprep.mubr.f32.mxu0 0.0
    %4579 = vmatmul.mubr.f32.gmra.mrb[0].mxu0 %v3168
    %v4580 = vpop.f32.mrb[0].mxu0
    %v4581 = vadd.f32 0.0, %v4580
    %v4582 = vpop.f32.mrb[0].mxu0
    %4583 = vmatprep.mubr.f32.mxu0 0.0
    %4584 = vmatmul.mubr.f32.gmra.mrb[0].mxu0 %v3170
    %v4585 = vpop.f32.mrb[0].mxu0
    %v4586 = vadd.f32 0.0, %v4585
    %v4587 = vpop.f32.mrb[0].mxu0
    %4588 = vmatprep.mubr.f32.mxu0 0.0
    %4589 = vmatmul.mubr.f32.gmra.mrb[0].mxu0 %v3172
    %v4590 = vpop.f32.mrb[0].mxu0
    %v4591 = vadd.f32 0.0, %v4590
    %v4592 = vpop.f32.mrb[0].mxu0
    %4593 = vmatprep.mubr.f32.mxu0 0.0
    %4594 = vmatmul.mubr.f32.gmra.mrb[0].mxu0 %v3745
    %v4595 = vpop.f32.mrb[0].mxu0
    %v4596 = vadd.f32 0.0, %v4595
    %v4597 = vpop.f32.mrb[0].mxu0
    %4598 = vdwg.mxu0
    %v4599 = vmul.f32 %v4571, %v51
    %v4600 = vmul.f32 %v4576, %v52
    %v4601 = vmul.f32 %v4581, %v53
    %v4602 = vmul.f32 %v4586, %v54
    %v4603 = vmul.f32 %v4591, %v55
    %v4604 = vmul.f32 %v4596, %v56
    %v4606 = vsel %vm1137, %v4599, 0
    %v4609 = vsel %vm1137, %v4600, 0
    %v4612 = vsel %vm1137, %v4601, 0
    %v4615 = vsel %vm1137, %v4602, 0
    %v4618 = vsel %vm1137, %v4603, 0
    %v4621 = vsel %vm1137, %v4604, 0
    %4623 = vmatprep.subr.mxu0 0.0
    %4624 = vmatpush1.msra.mxu0 %v27
    %4625 = vmatprep.subr.mxu0 0.0
    %4626 = vmatpush1.msra.mxu0 %v28
    %4627 = vmatprep.subr.mxu0 0.0
    %4628 = vmatpush1.msra.mxu0 %v29
    %4629 = vmatprep.subr.mxu0 0.0
    %4630 = vmatpush1.msra.mxu0 %v30
    %4631 = vmatprep.subr.mxu0 0.0
    %4632 = vmatpush1.msra.mxu0 %v31
    %4633 = vmatprep.subr.mxu0 0.0
    %4634 = vmatpush1.msra.mxu0 %v32
    %4635 = vmatprep.subr.mxu0 0.0
    %4636 = vmatpush1.msra.mxu0 %v33
    %4637 = vmatprep.subr.mxu0 0.0
    %4638 = vmatpush1.msra.mxu0 %v34
    %4639 = vmatprep.subr.mxu0 0.0
    %4640 = vmatpush1.msra.mxu0 %v35
    %4641 = vmatprep.subr.mxu0 0.0
    %4642 = vmatpush1.msra.mxu0 %v36
    %4643 = vmatprep.subr.mxu0 0.0
    %4644 = vmatpush1.msra.mxu0 %v37
    %4645 = vmatprep.subr.mxu0 0.0
    %4646 = vmatpush1.msra.mxu0 %v38
    %4647 = vmatprep.subr.mxu0 0.0
    %4648 = vmatpush1.msra.mxu0 0.0
    %4649 = vmatprep.subr.mxu0 0.0
    %4650 = vmatpush1.msra.mxu0 0.0
    %4651 = vmatprep.subr.mxu0 0.0
    %4652 = vmatpush1.msra.mxu0 0.0
    %4653 = vmatprep.subr.mxu0 0.0
    %4654 = vmatpush1.msra.mxu0 0.0
    %4655 = vmatprep.subr.mxu0 0.0
    %4656 = vmatpush1.msra.mxu0 0.0
    %4657 = vmatprep.subr.mxu0 0.0
    %4658 = vmatpush1.msra.mxu0 0.0
    %4659 = vmatprep.subr.mxu0 0.0
    %4660 = vmatpush1.msra.mxu0 0.0
    %4661 = vmatprep.subr.mxu0 0.0
    %4662 = vmatpush1.msra.mxu0 0.0
    %4663 = vmatprep.subr.mxu0 0.0
    %4664 = vmatpush1.msra.mxu0 0.0
    %4665 = vmatprep.subr.mxu0 0.0
    %4666 = vmatpush1.msra.mxu0 0.0
    %4667 = vmatprep.subr.mxu0 0.0
    %4668 = vmatpush1.msra.mxu0 0.0
    %4669 = vmatprep.subr.mxu0 0.0
    %4670 = vmatpush1.msra.mxu0 0.0
    %4671 = vmatprep.subr.mxu0 0.0
    %4672 = vmatpush1.msra.mxu0 0.0
    %4673 = vmatprep.subr.mxu0 0.0
    %4674 = vmatpush1.msra.mxu0 0.0
    %4675 = vmatprep.subr.mxu0 0.0
    %4676 = vmatpush1.msra.mxu0 0.0
    %4677 = vmatprep.subr.mxu0 0.0
    %4678 = vmatpush1.msra.mxu0 0.0
    %4679 = vmatprep.subr.mxu0 0.0
    %4680 = vmatpush1.msra.mxu0 0.0
    %4681 = vmatprep.subr.mxu0 0.0
    %4682 = vmatpush1.msra.mxu0 0.0
    %4683 = vmatprep.subr.mxu0 0.0
    %4684 = vmatpush1.msra.mxu0 0.0
    %4685 = vmatprep.subr.mxu0 0.0
    %4686 = vmatpush1.msra.mxu0 0.0
    %4687 = vmatprep.mubr.f32.mxu0 0.0
    %4688 = vmatmul.mubr.f32.gmra.mrb[0].mxu0 %v4606
    %v4689 = vpop.f32.mrb[0].mxu0
    %v4690 = vadd.f32 %v45, %v4689
    %v4691 = vpop.f32.mrb[0].mxu0
    %4692 = vmatprep.mubr.f32.mxu0 0.0
    %4693 = vmatmul.mubr.f32.gmra.mrb[0].mxu0 %v4609
    %v4694 = vpop.f32.mrb[0].mxu0
    %v4695 = vadd.f32 %v46, %v4694
    %v4696 = vpop.f32.mrb[0].mxu0
    %4697 = vmatprep.mubr.f32.mxu0 0.0
    %4698 = vmatmul.mubr.f32.gmra.mrb[0].mxu0 %v4612
    %v4699 = vpop.f32.mrb[0].mxu0
    %v4700 = vadd.f32 %v47, %v4699
    %v4701 = vpop.f32.mrb[0].mxu0
    %4702 = vmatprep.mubr.f32.mxu0 0.0
    %4703 = vmatmul.mubr.f32.gmra.mrb[0].mxu0 %v4615
    %v4704 = vpop.f32.mrb[0].mxu0
    %v4705 = vadd.f32 %v48, %v4704
    %v4706 = vpop.f32.mrb[0].mxu0
    %4707 = vmatprep.mubr.f32.mxu0 0.0
    %4708 = vmatmul.mubr.f32.gmra.mrb[0].mxu0 %v4618
    %v4709 = vpop.f32.mrb[0].mxu0
    %v4710 = vadd.f32 %v49, %v4709
    %v4711 = vpop.f32.mrb[0].mxu0
    %4712 = vmatprep.mubr.f32.mxu0 0.0
    %4713 = vmatmul.mubr.f32.gmra.mrb[0].mxu0 %v4621
    %v4714 = vpop.f32.mrb[0].mxu0
    %v4715 = vadd.f32 %v50, %v4714
    %v4716 = vpop.f32.mrb[0].mxu0
    %4717 = vdwg.mxu0
    %v4718 = vadd.f32 %v4498, %v4690
    %v4719 = vadd.f32 %v4499, %v4695
    %v4720 = vadd.f32 %v4500, %v4700
    %v4721 = vadd.f32 %v4501, %v4705
    %v4722 = vadd.f32 %v4502, %v4710
    %v4723 = vadd.f32 %v4503, %v4715
    %v4724 = vxor.u32 %v4718, 2147483648
    %v4725 = vxor.u32 %v4719, 2147483648
    %v4726 = vxor.u32 %v4720, 2147483648
    %v4727 = vxor.u32 %v4721, 2147483648
    %v4728 = vxor.u32 %v4722, 2147483648
    %v4729 = vxor.u32 %v4723, 2147483648
    %v4730 = vmul.f32 %v4724, 1.442695
    %v4731 = vpow.pop %v4730
    %v4732 = vmul.f32 %v4725, 1.442695
    %v4733 = vpow.pop %v4732
    %v4734 = vmul.f32 %v4726, 1.442695
    %v4735 = vpow.pop %v4734
    %v4736 = vmul.f32 %v4727, 1.442695
    %v4737 = vpow.pop %v4736
    %v4738 = vmul.f32 %v4728, 1.442695
    %v4739 = vpow.pop %v4738
    %v4740 = vmul.f32 %v4729, 1.442695
    %v4741 = vpow.pop %v4740
    %v4742 = vadd.f32 %v4731, 1.0
    %v4743 = vadd.f32 %v4733, 1.0
    %v4744 = vadd.f32 %v4735, 1.0
    %v4745 = vadd.f32 %v4737, 1.0
    %v4746 = vadd.f32 %v4739, 1.0
    %v4747 = vadd.f32 %v4741, 1.0
    %v4748 = vrcp.pop %v4742
    %v4749 = vmul.f32 1.0, %v4748
    %v4750 = vrcp.pop %v4743
    %v4751 = vmul.f32 1.0, %v4750
    %v4752 = vrcp.pop %v4744
    %v4753 = vmul.f32 1.0, %v4752
    %v4754 = vrcp.pop %v4745
    %v4755 = vmul.f32 1.0, %v4754
    %v4756 = vrcp.pop %v4746
    %v4757 = vmul.f32 1.0, %v4756
    %v4758 = vrcp.pop %v4747
    %v4759 = vmul.f32 1.0, %v4758
    %4766 = vrot.lane.b32.xlu0 %v4690, 64
    %v4767 = vpop.permute.xlu0 %4766
    %4768 = vrot.lane.b32.xlu0 %v4695, 64
    %v4769 = vpop.permute.xlu0 %4768
    %4770 = vrot.lane.b32.xlu0 %v4700, 64
    %v4771 = vpop.permute.xlu0 %4770
    %4772 = vrot.lane.b32.xlu0 %v4705, 64
    %v4773 = vpop.permute.xlu0 %4772
    %4774 = vrot.lane.b32.xlu0 %v4710, 64
    %v4775 = vpop.permute.xlu0 %4774
    %4776 = vrot.lane.b32.xlu0 %v4715, 64
    %v4777 = vpop.permute.xlu0 %4776
    %v4784 = vmul.f32 %v4749, %v4767
    %v4785 = vmul.f32 %v4751, %v4769
    %v4786 = vmul.f32 %v4753, %v4771
    %v4787 = vmul.f32 %v4755, %v4773
    %v4788 = vmul.f32 %v4757, %v4775
    %v4789 = vmul.f32 %v4759, %v4777
    %4796 = vrot.lane.b32.xlu0 %v4784, 64
    %v4797 = vpop.permute.xlu0 %4796
    %4798 = vrot.lane.b32.xlu0 %v4785, 64
    %v4799 = vpop.permute.xlu0 %4798
    %4800 = vrot.lane.b32.xlu0 %v4786, 64
    %v4801 = vpop.permute.xlu0 %4800
    %4802 = vrot.lane.b32.xlu0 %v4787, 64
    %v4803 = vpop.permute.xlu0 %4802
    %4804 = vrot.lane.b32.xlu0 %v4788, 64
    %v4805 = vpop.permute.xlu0 %4804
    %4806 = vrot.lane.b32.xlu0 %v4789, 64
    %v4807 = vpop.permute.xlu0 %4806
    %v4814 = vadd.f32 %v4498, %v4797
    %v4815 = vadd.f32 %v4499, %v4799
    %v4816 = vadd.f32 %v4500, %v4801
    %v4817 = vadd.f32 %v4501, %v4803
    %v4818 = vadd.f32 %v4502, %v4805
    %v4819 = vadd.f32 %v4503, %v4807
    %v4820 = vtanh.pop %v4814
    %v4821 = vtanh.pop %v4815
    %v4822 = vtanh.pop %v4816
    %v4823 = vtanh.pop %v4817
    %v4824 = vtanh.pop %v4818
    %v4825 = vtanh.pop %v4819
    %v4826 = vsub.f32 1.0, %v4749
    %v4827 = vsub.f32 1.0, %v4751
    %v4828 = vsub.f32 1.0, %v4753
    %v4829 = vsub.f32 1.0, %v4755
    %v4830 = vsub.f32 1.0, %v4757
    %v4831 = vsub.f32 1.0, %v4759
    %4838 = vrot.lane.b32.xlu0 %v4820, 96
    %v4839 = vpop.permute.xlu0 %4838
    %4840 = vrot.lane.b32.xlu0 %v4821, 96
    %v4841 = vpop.permute.xlu0 %4840
    %4842 = vrot.lane.b32.xlu0 %v4822, 96
    %v4843 = vpop.permute.xlu0 %4842
    %4844 = vrot.lane.b32.xlu0 %v4823, 96
    %v4845 = vpop.permute.xlu0 %4844
    %4846 = vrot.lane.b32.xlu0 %v4824, 96
    %v4847 = vpop.permute.xlu0 %4846
    %4848 = vrot.lane.b32.xlu0 %v4825, 96
    %v4849 = vpop.permute.xlu0 %4848
    %v4856 = vmul.f32 %v4826, %v4839
    %v4857 = vmul.f32 %v4827, %v4841
    %v4858 = vmul.f32 %v4828, %v4843
    %v4859 = vmul.f32 %v4829, %v4845
    %v4860 = vmul.f32 %v4830, %v4847
    %v4861 = vmul.f32 %v4831, %v4849
    %v4862 = vmul.f32 %v4749, %v3140
    %v4863 = vmul.f32 %v4751, %v3141
    %v4864 = vmul.f32 %v4753, %v3142
    %v4865 = vmul.f32 %v4755, %v3143
    %v4866 = vmul.f32 %v4757, %v3144
    %v4867 = vmul.f32 %v4759, %v3741
    %v4868 = vadd.f32 %v4856, %v4862
    %v4869 = vadd.f32 %v4857, %v4863
    %v4870 = vadd.f32 %v4858, %v4864
    %v4871 = vadd.f32 %v4859, %v4865
    %v4872 = vadd.f32 %v4860, %v4866
    %v4873 = vadd.f32 %v4861, %v4867
    %4880 = vrot.lane.b32.xlu0 %v4868, 96
    %v4881 = vpop.permute.xlu0 %4880
    %4882 = vrot.lane.b32.xlu0 %v4869, 96
    %v4883 = vpop.permute.xlu0 %4882
    %4884 = vrot.lane.b32.xlu0 %v4870, 96
    %v4885 = vpop.permute.xlu0 %4884
    %4886 = vrot.lane.b32.xlu0 %v4871, 96
    %v4887 = vpop.permute.xlu0 %4886
    %4888 = vrot.lane.b32.xlu0 %v4872, 96
    %v4889 = vpop.permute.xlu0 %4888
    %4890 = vrot.lane.b32.xlu0 %v4873, 96
    %v4891 = vpop.permute.xlu0 %4890
    %v4892 = vsel %vm1032, %v4881, 0
    %v4894 = vsel %vm1032, %v4883, 0
    %v4896 = vsel %vm1032, %v4885, 0
    %v4898 = vsel %vm1032, %v4887, 0
    %v4900 = vsel %vm1032, %v4889, 0
    %v4902 = vsel %vm1032, %v4891, 0
    %4904 = vmatprep.subr.mxu0 0.0
    %4905 = vmatpush1.msra.mxu0 %v23
    %4906 = vmatprep.subr.mxu0 0.0
    %4907 = vmatpush1.msra.mxu0 %v24
    %4908 = vmatprep.subr.mxu0 0.0
    %4909 = vmatpush1.msra.mxu0 %v25
    %4910 = vmatprep.subr.mxu0 0.0
    %4911 = vmatpush1.msra.mxu0 %v26
    %4912 = vmatprep.subr.mxu0 0.0
    %4913 = vmatpush1.msra.mxu0 0.0
    %4914 = vmatprep.subr.mxu0 0.0
    %4915 = vmatpush1.msra.mxu0 0.0
    %4916 = vmatprep.subr.mxu0 0.0
    %4917 = vmatpush1.msra.mxu0 0.0
    %4918 = vmatprep.subr.mxu0 0.0
    %4919 = vmatpush1.msra.mxu0 0.0
    %4920 = vmatprep.subr.mxu0 0.0
    %4921 = vmatpush1.msra.mxu0 0.0
    %4922 = vmatprep.subr.mxu0 0.0
    %4923 = vmatpush1.msra.mxu0 0.0
    %4924 = vmatprep.subr.mxu0 0.0
    %4925 = vmatpush1.msra.mxu0 0.0
    %4926 = vmatprep.subr.mxu0 0.0
    %4927 = vmatpush1.msra.mxu0 0.0
    %4928 = vmatprep.subr.mxu0 0.0
    %4929 = vmatpush1.msra.mxu0 0.0
    %4930 = vmatprep.subr.mxu0 0.0
    %4931 = vmatpush1.msra.mxu0 0.0
    %4932 = vmatprep.subr.mxu0 0.0
    %4933 = vmatpush1.msra.mxu0 0.0
    %4934 = vmatprep.subr.mxu0 0.0
    %4935 = vmatpush1.msra.mxu0 0.0
    %4936 = vmatprep.subr.mxu0 0.0
    %4937 = vmatpush1.msra.mxu0 0.0
    %4938 = vmatprep.subr.mxu0 0.0
    %4939 = vmatpush1.msra.mxu0 0.0
    %4940 = vmatprep.subr.mxu0 0.0
    %4941 = vmatpush1.msra.mxu0 0.0
    %4942 = vmatprep.subr.mxu0 0.0
    %4943 = vmatpush1.msra.mxu0 0.0
    %4944 = vmatprep.subr.mxu0 0.0
    %4945 = vmatpush1.msra.mxu0 0.0
    %4946 = vmatprep.subr.mxu0 0.0
    %4947 = vmatpush1.msra.mxu0 0.0
    %4948 = vmatprep.subr.mxu0 0.0
    %4949 = vmatpush1.msra.mxu0 0.0
    %4950 = vmatprep.subr.mxu0 0.0
    %4951 = vmatpush1.msra.mxu0 0.0
    %4952 = vmatprep.subr.mxu0 0.0
    %4953 = vmatpush1.msra.mxu0 0.0
    %4954 = vmatprep.subr.mxu0 0.0
    %4955 = vmatpush1.msra.mxu0 0.0
    %4956 = vmatprep.subr.mxu0 0.0
    %4957 = vmatpush1.msra.mxu0 0.0
    %4958 = vmatprep.subr.mxu0 0.0
    %4959 = vmatpush1.msra.mxu0 0.0
    %4960 = vmatprep.subr.mxu0 0.0
    %4961 = vmatpush1.msra.mxu0 0.0
    %4962 = vmatprep.subr.mxu0 0.0
    %4963 = vmatpush1.msra.mxu0 0.0
    %4964 = vmatprep.subr.mxu0 0.0
    %4965 = vmatpush1.msra.mxu0 0.0
    %4966 = vmatprep.subr.mxu0 0.0
    %4967 = vmatpush1.msra.mxu0 0.0
    %4968 = vmatprep.mubr.f32.mxu0 0.0
    %4969 = vmatmul.mubr.f32.gmra.mrb[0].mxu0 %v4892
    %v4970 = vpop.f32.mrb[0].mxu0
    %v4971 = vadd.f32 0.0, %v4970
    %v4972 = vpop.f32.mrb[0].mxu0
    %4973 = vmatprep.mubr.f32.mxu0 0.0
    %4974 = vmatmul.mubr.f32.gmra.mrb[0].mxu0 %v4894
    %v4975 = vpop.f32.mrb[0].mxu0
    %v4976 = vadd.f32 0.0, %v4975
    %v4977 = vpop.f32.mrb[0].mxu0
    %4978 = vmatprep.mubr.f32.mxu0 0.0
    %4979 = vmatmul.mubr.f32.gmra.mrb[0].mxu0 %v4896
    %v4980 = vpop.f32.mrb[0].mxu0
    %v4981 = vadd.f32 0.0, %v4980
    %v4982 = vpop.f32.mrb[0].mxu0
    %4983 = vmatprep.mubr.f32.mxu0 0.0
    %4984 = vmatmul.mubr.f32.gmra.mrb[0].mxu0 %v4898
    %v4985 = vpop.f32.mrb[0].mxu0
    %v4986 = vadd.f32 0.0, %v4985
    %v4987 = vpop.f32.mrb[0].mxu0
    %4988 = vmatprep.mubr.f32.mxu0 0.0
    %4989 = vmatmul.mubr.f32.gmra.mrb[0].mxu0 %v4900
    %v4990 = vpop.f32.mrb[0].mxu0
    %v4991 = vadd.f32 0.0, %v4990
    %v4992 = vpop.f32.mrb[0].mxu0
    %4993 = vmatprep.mubr.f32.mxu0 0.0
    %4994 = vmatmul.mubr.f32.gmra.mrb[0].mxu0 %v4902
    %v4995 = vpop.f32.mrb[0].mxu0
    %v4996 = vadd.f32 0.0, %v4995
    %v4997 = vpop.f32.mrb[0].mxu0
    %4998 = vdwg.mxu0
    %v4999 = vmul.f32 %v4971, %v51
    %v5000 = vmul.f32 %v4976, %v52
    %v5001 = vmul.f32 %v4981, %v53
    %v5002 = vmul.f32 %v4986, %v54
    %v5003 = vmul.f32 %v4991, %v55
    %v5004 = vmul.f32 %v4996, %v56
    %v5006 = vsel %vm1137, %v4999, 0
    %v5009 = vsel %vm1137, %v5000, 0
    %v5012 = vsel %vm1137, %v5001, 0
    %v5015 = vsel %vm1137, %v5002, 0
    %v5018 = vsel %vm1137, %v5003, 0
    %v5021 = vsel %vm1137, %v5004, 0
    %5023 = vmatprep.subr.mxu0 0.0
    %5024 = vmatpush1.msra.mxu0 %v57
    %5025 = vmatprep.subr.mxu0 0.0
    %5026 = vmatpush1.msra.mxu0 %v58
    %5027 = vmatprep.subr.mxu0 0.0
    %5028 = vmatpush1.msra.mxu0 %v59
    %5029 = vmatprep.subr.mxu0 0.0
    %5030 = vmatpush1.msra.mxu0 %v60
    %5031 = vmatprep.subr.mxu0 0.0
    %5032 = vmatpush1.msra.mxu0 %v61
    %5033 = vmatprep.subr.mxu0 0.0
    %5034 = vmatpush1.msra.mxu0 %v62
    %5035 = vmatprep.subr.mxu0 0.0
    %5036 = vmatpush1.msra.mxu0 %v63
    %5037 = vmatprep.subr.mxu0 0.0
    %5038 = vmatpush1.msra.mxu0 %v64
    %5039 = vmatprep.subr.mxu0 0.0
    %5040 = vmatpush1.msra.mxu0 %v65
    %5041 = vmatprep.subr.mxu0 0.0
    %5042 = vmatpush1.msra.mxu0 %v66
    %5043 = vmatprep.subr.mxu0 0.0
    %5044 = vmatpush1.msra.mxu0 %v67
    %5045 = vmatprep.subr.mxu0 0.0
    %5046 = vmatpush1.msra.mxu0 %v68
    %5047 = vmatprep.subr.mxu0 0.0
    %5048 = vmatpush1.msra.mxu0 0.0
    %5049 = vmatprep.subr.mxu0 0.0
    %5050 = vmatpush1.msra.mxu0 0.0
    %5051 = vmatprep.subr.mxu0 0.0
    %5052 = vmatpush1.msra.mxu0 0.0
    %5053 = vmatprep.subr.mxu0 0.0
    %5054 = vmatpush1.msra.mxu0 0.0
    %5055 = vmatprep.subr.mxu0 0.0
    %5056 = vmatpush1.msra.mxu0 0.0
    %5057 = vmatprep.subr.mxu0 0.0
    %5058 = vmatpush1.msra.mxu0 0.0
    %5059 = vmatprep.subr.mxu0 0.0
    %5060 = vmatpush1.msra.mxu0 0.0
    %5061 = vmatprep.subr.mxu0 0.0
    %5062 = vmatpush1.msra.mxu0 0.0
    %5063 = vmatprep.subr.mxu0 0.0
    %5064 = vmatpush1.msra.mxu0 0.0
    %5065 = vmatprep.subr.mxu0 0.0
    %5066 = vmatpush1.msra.mxu0 0.0
    %5067 = vmatprep.subr.mxu0 0.0
    %5068 = vmatpush1.msra.mxu0 0.0
    %5069 = vmatprep.subr.mxu0 0.0
    %5070 = vmatpush1.msra.mxu0 0.0
    %5071 = vmatprep.subr.mxu0 0.0
    %5072 = vmatpush1.msra.mxu0 0.0
    %5073 = vmatprep.subr.mxu0 0.0
    %5074 = vmatpush1.msra.mxu0 0.0
    %5075 = vmatprep.subr.mxu0 0.0
    %5076 = vmatpush1.msra.mxu0 0.0
    %5077 = vmatprep.subr.mxu0 0.0
    %5078 = vmatpush1.msra.mxu0 0.0
    %5079 = vmatprep.subr.mxu0 0.0
    %5080 = vmatpush1.msra.mxu0 0.0
    %5081 = vmatprep.subr.mxu0 0.0
    %5082 = vmatpush1.msra.mxu0 0.0
    %5083 = vmatprep.subr.mxu0 0.0
    %5084 = vmatpush1.msra.mxu0 0.0
    %5085 = vmatprep.subr.mxu0 0.0
    %5086 = vmatpush1.msra.mxu0 0.0
    %5087 = vmatprep.mubr.f32.mxu0 0.0
    %5088 = vmatmul.mubr.f32.gmra.mrb[0].mxu0 %v5006
    %v5089 = vpop.f32.mrb[0].mxu0
    %v5090 = vadd.f32 %v69, %v5089
    %v5091 = vpop.f32.mrb[0].mxu0
    %5092 = vmatprep.mubr.f32.mxu0 0.0
    %5093 = vmatmul.mubr.f32.gmra.mrb[0].mxu0 %v5009
    %v5094 = vpop.f32.mrb[0].mxu0
    %v5095 = vadd.f32 %v70, %v5094
    %v5096 = vpop.f32.mrb[0].mxu0
    %5097 = vmatprep.mubr.f32.mxu0 0.0
    %5098 = vmatmul.mubr.f32.gmra.mrb[0].mxu0 %v5012
    %v5099 = vpop.f32.mrb[0].mxu0
    %v5100 = vadd.f32 %v71, %v5099
    %v5101 = vpop.f32.mrb[0].mxu0
    %5102 = vmatprep.mubr.f32.mxu0 0.0
    %5103 = vmatmul.mubr.f32.gmra.mrb[0].mxu0 %v5015
    %v5104 = vpop.f32.mrb[0].mxu0
    %v5105 = vadd.f32 %v72, %v5104
    %v5106 = vpop.f32.mrb[0].mxu0
    %5107 = vmatprep.mubr.f32.mxu0 0.0
    %5108 = vmatmul.mubr.f32.gmra.mrb[0].mxu0 %v5018
    %v5109 = vpop.f32.mrb[0].mxu0
    %v5110 = vadd.f32 %v73, %v5109
    %v5111 = vpop.f32.mrb[0].mxu0
    %5112 = vmatprep.mubr.f32.mxu0 0.0
    %5113 = vmatmul.mubr.f32.gmra.mrb[0].mxu0 %v5021
    %v5114 = vpop.f32.mrb[0].mxu0
    %v5115 = vadd.f32 %v74, %v5114
    %v5116 = vpop.f32.mrb[0].mxu0
    %5117 = vdwg.mxu0
    %v5118 = vmax.f32 %v5090, 0.0
    %v5119 = vmax.f32 %v5095, 0.0
    %v5120 = vmax.f32 %v5100, 0.0
    %v5121 = vmax.f32 %v5105, 0.0
    %v5122 = vmax.f32 %v5110, 0.0
    %v5123 = vmax.f32 %v5115, 0.0
    %v5124 = vmax.f32 %v5118, %v5119
    %v5125 = vmax.f32 %v5124, %v5120
    %v5126 = vmax.f32 %v5121, %v5122
    %v5128 = vsel %vm1032, %v5121, 0
    %v5131 = vsel %vm1032, %v5122, 0
    %5133 = vmatprep.subr.mxu0 0.0
    %5134 = vmatpush1.msra.mxu0 %v98
    %5135 = vmatprep.subr.mxu0 0.0
    %5136 = vmatpush1.msra.mxu0 %v99
    %5137 = vmatprep.subr.mxu0 0.0
    %5138 = vmatpush1.msra.mxu0 %v100
    %5139 = vmatprep.subr.mxu0 0.0
    %5140 = vmatpush1.msra.mxu0 %v101
    %5141 = vmatprep.subr.mxu0 0.0
    %5142 = vmatpush1.msra.mxu0 0.0
    %5143 = vmatprep.subr.mxu0 0.0
    %5144 = vmatpush1.msra.mxu0 0.0
    %5145 = vmatprep.subr.mxu0 0.0
    %5146 = vmatpush1.msra.mxu0 0.0
    %5147 = vmatprep.subr.mxu0 0.0
    %5148 = vmatpush1.msra.mxu0 0.0
    %5149 = vmatprep.subr.mxu0 0.0
    %5150 = vmatpush1.msra.mxu0 0.0
    %5151 = vmatprep.subr.mxu0 0.0
    %5152 = vmatpush1.msra.mxu0 0.0
    %5153 = vmatprep.subr.mxu0 0.0
    %5154 = vmatpush1.msra.mxu0 0.0
    %5155 = vmatprep.subr.mxu0 0.0
    %5156 = vmatpush1.msra.mxu0 0.0
    %5157 = vmatprep.subr.mxu0 0.0
    %5158 = vmatpush1.msra.mxu0 0.0
    %5159 = vmatprep.subr.mxu0 0.0
    %5160 = vmatpush1.msra.mxu0 0.0
    %5161 = vmatprep.subr.mxu0 0.0
    %5162 = vmatpush1.msra.mxu0 0.0
    %5163 = vmatprep.subr.mxu0 0.0
    %5164 = vmatpush1.msra.mxu0 0.0
    %5165 = vmatprep.subr.mxu0 0.0
    %5166 = vmatpush1.msra.mxu0 0.0
    %5167 = vmatprep.subr.mxu0 0.0
    %5168 = vmatpush1.msra.mxu0 0.0
    %5169 = vmatprep.subr.mxu0 0.0
    %5170 = vmatpush1.msra.mxu0 0.0
    %5171 = vmatprep.subr.mxu0 0.0
    %5172 = vmatpush1.msra.mxu0 0.0
    %5173 = vmatprep.subr.mxu0 0.0
    %5174 = vmatpush1.msra.mxu0 0.0
    %5175 = vmatprep.subr.mxu0 0.0
    %5176 = vmatpush1.msra.mxu0 0.0
    %5177 = vmatprep.subr.mxu0 0.0
    %5178 = vmatpush1.msra.mxu0 0.0
    %5179 = vmatprep.subr.mxu0 0.0
    %5180 = vmatpush1.msra.mxu0 0.0
    %5181 = vmatprep.subr.mxu0 0.0
    %5182 = vmatpush1.msra.mxu0 0.0
    %5183 = vmatprep.subr.mxu0 0.0
    %5184 = vmatpush1.msra.mxu0 0.0
    %5185 = vmatprep.subr.mxu0 0.0
    %5186 = vmatpush1.msra.mxu0 0.0
    %5187 = vmatprep.subr.mxu0 0.0
    %5188 = vmatpush1.msra.mxu0 0.0
    %5189 = vmatprep.subr.mxu0 0.0
    %5190 = vmatpush1.msra.mxu0 0.0
    %5191 = vmatprep.subr.mxu0 0.0
    %5192 = vmatpush1.msra.mxu0 0.0
    %5193 = vmatprep.subr.mxu0 0.0
    %5194 = vmatpush1.msra.mxu0 0.0
    %5195 = vmatprep.subr.mxu0 0.0
    %5196 = vmatpush1.msra.mxu0 0.0
    %5197 = vmatprep.mubr.f32.mxu0 0.0
    %5198 = vmatmul.mubr.f32.gmra.mrb[0].mxu0 %v5128
    %v5199 = vpop.f32.mrb[0].mxu0
    %v5200 = vadd.f32 %v102, %v5199
    %v5201 = vpop.f32.mrb[0].mxu0
    %5202 = vmatprep.mubr.f32.mxu0 0.0
    %5203 = vmatmul.mubr.f32.gmra.mrb[0].mxu0 %v5131
    %v5204 = vpop.f32.mrb[0].mxu0
    %v5205 = vadd.f32 %v103, %v5204
    %v5206 = vpop.f32.mrb[0].mxu0
    %5207 = vdwg.mxu0
    %v5208 = vmax.f32 %v5200, 0.0
    %v5209 = vmax.f32 %v5205, 0.0
    %v5211 = vsel %vm1032, %v5208, 0
    %v5214 = vsel %vm1032, %v5209, 0
    %5216 = vmatprep.subr.mxu0 0.0
    %5217 = vmatpush1.msra.mxu0 %v104
    %5218 = vmatprep.subr.mxu0 0.0
    %5219 = vmatpush1.msra.mxu0 %v105
    %5220 = vmatprep.subr.mxu0 0.0
    %5221 = vmatpush1.msra.mxu0 %v106
    %5222 = vmatprep.subr.mxu0 0.0
    %5223 = vmatpush1.msra.mxu0 %v107
    %5224 = vmatprep.subr.mxu0 0.0
    %5225 = vmatpush1.msra.mxu0 0.0
    %5226 = vmatprep.subr.mxu0 0.0
    %5227 = vmatpush1.msra.mxu0 0.0
    %5228 = vmatprep.subr.mxu0 0.0
    %5229 = vmatpush1.msra.mxu0 0.0
    %5230 = vmatprep.subr.mxu0 0.0
    %5231 = vmatpush1.msra.mxu0 0.0
    %5232 = vmatprep.subr.mxu0 0.0
    %5233 = vmatpush1.msra.mxu0 0.0
    %5234 = vmatprep.subr.mxu0 0.0
    %5235 = vmatpush1.msra.mxu0 0.0
    %5236 = vmatprep.subr.mxu0 0.0
    %5237 = vmatpush1.msra.mxu0 0.0
    %5238 = vmatprep.subr.mxu0 0.0
    %5239 = vmatpush1.msra.mxu0 0.0
    %5240 = vmatprep.subr.mxu0 0.0
    %5241 = vmatpush1.msra.mxu0 0.0
    %5242 = vmatprep.subr.mxu0 0.0
    %5243 = vmatpush1.msra.mxu0 0.0
    %5244 = vmatprep.subr.mxu0 0.0
    %5245 = vmatpush1.msra.mxu0 0.0
    %5246 = vmatprep.subr.mxu0 0.0
    %5247 = vmatpush1.msra.mxu0 0.0
    %5248 = vmatprep.subr.mxu0 0.0
    %5249 = vmatpush1.msra.mxu0 0.0
    %5250 = vmatprep.subr.mxu0 0.0
    %5251 = vmatpush1.msra.mxu0 0.0
    %5252 = vmatprep.subr.mxu0 0.0
    %5253 = vmatpush1.msra.mxu0 0.0
    %5254 = vmatprep.subr.mxu0 0.0
    %5255 = vmatpush1.msra.mxu0 0.0
    %5256 = vmatprep.subr.mxu0 0.0
    %5257 = vmatpush1.msra.mxu0 0.0
    %5258 = vmatprep.subr.mxu0 0.0
    %5259 = vmatpush1.msra.mxu0 0.0
    %5260 = vmatprep.subr.mxu0 0.0
    %5261 = vmatpush1.msra.mxu0 0.0
    %5262 = vmatprep.subr.mxu0 0.0
    %5263 = vmatpush1.msra.mxu0 0.0
    %5264 = vmatprep.subr.mxu0 0.0
    %5265 = vmatpush1.msra.mxu0 0.0
    %5266 = vmatprep.subr.mxu0 0.0
    %5267 = vmatpush1.msra.mxu0 0.0
    %5268 = vmatprep.subr.mxu0 0.0
    %5269 = vmatpush1.msra.mxu0 0.0
    %5270 = vmatprep.subr.mxu0 0.0
    %5271 = vmatpush1.msra.mxu0 0.0
    %5272 = vmatprep.subr.mxu0 0.0
    %5273 = vmatpush1.msra.mxu0 0.0
    %5274 = vmatprep.subr.mxu0 0.0
    %5275 = vmatpush1.msra.mxu0 0.0
    %5276 = vmatprep.subr.mxu0 0.0
    %5277 = vmatpush1.msra.mxu0 0.0
    %5278 = vmatprep.subr.mxu0 0.0
    %5279 = vmatpush1.msra.mxu0 0.0
    %5280 = vmatprep.mubr.f32.mxu0 0.0
    %5281 = vmatmul.mubr.f32.gmra.mrb[0].mxu0 %v5211
    %v5282 = vpop.f32.mrb[0].mxu0
    %v5283 = vadd.f32 %v108, %v5282
    %v5284 = vpop.f32.mrb[0].mxu0
    %5285 = vmatprep.mubr.f32.mxu0 0.0
    %5286 = vmatmul.mubr.f32.gmra.mrb[0].mxu0 %v5214
    %v5287 = vpop.f32.mrb[0].mxu0
    %v5288 = vadd.f32 %v109, %v5287
    %v5289 = vpop.f32.mrb[0].mxu0
    %5290 = vdwg.mxu0
    %5292 = vrot.lane.b32.xlu0 %v5123, 32
    %v5293 = vpop.permute.xlu0 %5292
    %5296 = vrot.lane.b32.xlu0 %v5126, 64
    %v5297 = vpop.permute.xlu0 %5296
    %v5299 = vsel %vm1032, %v5125, %v5293
    %v5300 = vsel %vm1833, %v5299, %v5297
    %v5302 = vsel %vm1137, %v5300, 0
    %5304 = vmatprep.subr.mxu0 0.0
    %5305 = vmatpush1.msra.mxu0 %v75
    %5306 = vmatprep.subr.mxu0 0.0
    %5307 = vmatpush1.msra.mxu0 %v76
    %5308 = vmatprep.subr.mxu0 0.0
    %5309 = vmatpush1.msra.mxu0 %v77
    %5310 = vmatprep.subr.mxu0 0.0
    %5311 = vmatpush1.msra.mxu0 %v78
    %5312 = vmatprep.subr.mxu0 0.0
    %5313 = vmatpush1.msra.mxu0 %v79
    %5314 = vmatprep.subr.mxu0 0.0
    %5315 = vmatpush1.msra.mxu0 %v80
    %5316 = vmatprep.subr.mxu0 0.0
    %5317 = vmatpush1.msra.mxu0 %v81
    %5318 = vmatprep.subr.mxu0 0.0
    %5319 = vmatpush1.msra.mxu0 %v82
    %5320 = vmatprep.subr.mxu0 0.0
    %5321 = vmatpush1.msra.mxu0 %v83
    %5322 = vmatprep.subr.mxu0 0.0
    %5323 = vmatpush1.msra.mxu0 %v84
    %5324 = vmatprep.subr.mxu0 0.0
    %5325 = vmatpush1.msra.mxu0 %v85
    %5326 = vmatprep.subr.mxu0 0.0
    %5327 = vmatpush1.msra.mxu0 %v86
    %5328 = vmatprep.subr.mxu0 0.0
    %5329 = vmatpush1.msra.mxu0 0.0
    %5330 = vmatprep.subr.mxu0 0.0
    %5331 = vmatpush1.msra.mxu0 0.0
    %5332 = vmatprep.subr.mxu0 0.0
    %5333 = vmatpush1.msra.mxu0 0.0
    %5334 = vmatprep.subr.mxu0 0.0
    %5335 = vmatpush1.msra.mxu0 0.0
    %5336 = vmatprep.subr.mxu0 0.0
    %5337 = vmatpush1.msra.mxu0 0.0
    %5338 = vmatprep.subr.mxu0 0.0
    %5339 = vmatpush1.msra.mxu0 0.0
    %5340 = vmatprep.subr.mxu0 0.0
    %5341 = vmatpush1.msra.mxu0 0.0
    %5342 = vmatprep.subr.mxu0 0.0
    %5343 = vmatpush1.msra.mxu0 0.0
    %5344 = vmatprep.subr.mxu0 0.0
    %5345 = vmatpush1.msra.mxu0 0.0
    %5346 = vmatprep.subr.mxu0 0.0
    %5347 = vmatpush1.msra.mxu0 0.0
    %5348 = vmatprep.subr.mxu0 0.0
    %5349 = vmatpush1.msra.mxu0 0.0
    %5350 = vmatprep.subr.mxu0 0.0
    %5351 = vmatpush1.msra.mxu0 0.0
    %5352 = vmatprep.subr.mxu0 0.0
    %5353 = vmatpush1.msra.mxu0 0.0
    %5354 = vmatprep.subr.mxu0 0.0
    %5355 = vmatpush1.msra.mxu0 0.0
    %5356 = vmatprep.subr.mxu0 0.0
    %5357 = vmatpush1.msra.mxu0 0.0
    %5358 = vmatprep.subr.mxu0 0.0
    %5359 = vmatpush1.msra.mxu0 0.0
    %5360 = vmatprep.subr.mxu0 0.0
    %5361 = vmatpush1.msra.mxu0 0.0
    %5362 = vmatprep.subr.mxu0 0.0
    %5363 = vmatpush1.msra.mxu0 0.0
    %5364 = vmatprep.subr.mxu0 0.0
    %5365 = vmatpush1.msra.mxu0 0.0
    %5366 = vmatprep.subr.mxu0 0.0
    %5367 = vmatpush1.msra.mxu0 0.0
    %5368 = vmatprep.mubr.f32.mxu0 0.0
    %5369 = vmatmul.mubr.f32.gmra.mrb[0].mxu0 %v5302
    %v5370 = vpop.f32.mrb[0].mxu0
    %v5371 = vadd.f32 %v91, %v5370
    %v5372 = vpop.f32.mrb[0].mxu0
    %5373 = vdwg.mxu0
    %5374 = vmatprep.subr.mxu0 0.0
    %5375 = vmatpush1.msra.mxu0 %v87
    %5376 = vmatprep.subr.mxu0 0.0
    %5377 = vmatpush1.msra.mxu0 %v88
    %5378 = vmatprep.subr.mxu0 0.0
    %5379 = vmatpush1.msra.mxu0 %v89
    %5380 = vmatprep.subr.mxu0 0.0
    %5381 = vmatpush1.msra.mxu0 %v90
    %5382 = vmatprep.subr.mxu0 0.0
    %5383 = vmatpush1.msra.mxu0 0.0
    %5384 = vmatprep.subr.mxu0 0.0
    %5385 = vmatpush1.msra.mxu0 0.0
    %5386 = vmatprep.subr.mxu0 0.0
    %5387 = vmatpush1.msra.mxu0 0.0
    %5388 = vmatprep.subr.mxu0 0.0
    %5389 = vmatpush1.msra.mxu0 0.0
    %5390 = vmatprep.subr.mxu0 0.0
    %5391 = vmatpush1.msra.mxu0 0.0
    %5392 = vmatprep.subr.mxu0 0.0
    %5393 = vmatpush1.msra.mxu0 0.0
    %5394 = vmatprep.subr.mxu0 0.0
    %5395 = vmatpush1.msra.mxu0 0.0
    %5396 = vmatprep.subr.mxu0 0.0
    %5397 = vmatpush1.msra.mxu0 0.0
    %5398 = vmatprep.subr.mxu0 0.0
    %5399 = vmatpush1.msra.mxu0 0.0
    %5400 = vmatprep.subr.mxu0 0.0
    %5401 = vmatpush1.msra.mxu0 0.0
    %5402 = vmatprep.subr.mxu0 0.0
    %5403 = vmatpush1.msra.mxu0 0.0
    %5404 = vmatprep.subr.mxu0 0.0
    %5405 = vmatpush1.msra.mxu0 0.0
    %5406 = vmatprep.subr.mxu0 0.0
    %5407 = vmatpush1.msra.mxu0 0.0
    %5408 = vmatprep.subr.mxu0 0.0
    %5409 = vmatpush1.msra.mxu0 0.0
    %5410 = vmatprep.subr.mxu0 0.0
    %5411 = vmatpush1.msra.mxu0 0.0
    %5412 = vmatprep.subr.mxu0 0.0
    %5413 = vmatpush1.msra.mxu0 0.0
    %5414 = vmatprep.subr.mxu0 0.0
    %5415 = vmatpush1.msra.mxu0 0.0
    %5416 = vmatprep.subr.mxu0 0.0
    %5417 = vmatpush1.msra.mxu0 0.0
    %5418 = vmatprep.subr.mxu0 0.0
    %5419 = vmatpush1.msra.mxu0 0.0
    %5420 = vmatprep.subr.mxu0 0.0
    %5421 = vmatpush1.msra.mxu0 0.0
    %5422 = vmatprep.subr.mxu0 0.0
    %5423 = vmatpush1.msra.mxu0 0.0
    %5424 = vmatprep.subr.mxu0 0.0
    %5425 = vmatpush1.msra.mxu0 0.0
    %5426 = vmatprep.subr.mxu0 0.0
    %5427 = vmatpush1.msra.mxu0 0.0
    %5428 = vmatprep.subr.mxu0 0.0
    %5429 = vmatpush1.msra.mxu0 0.0
    %5430 = vmatprep.subr.mxu0 0.0
    %5431 = vmatpush1.msra.mxu0 0.0
    %5432 = vmatprep.subr.mxu0 0.0
    %5433 = vmatpush1.msra.mxu0 0.0
    %5434 = vmatprep.subr.mxu0 0.0
    %5435 = vmatpush1.msra.mxu0 0.0
    %5436 = vmatprep.subr.mxu0 0.0
    %5437 = vmatpush1.msra.mxu0 0.0
    %5438 = vmatprep.mubr.f32.mxu0 0.0
    %5439 = vmatmul.mubr.f32.gmra.mrb[0].mxu0 %v3745
    %v5440 = vpop.f32.mrb[0].mxu0
    %v5441 = vadd.f32 %v92, %v5440
    %v5442 = vpop.f32.mrb[0].mxu0
    %5443 = vdwg.mxu0
    %v5444 = vadd.f32 %v5371, %v5441
    %v5445 = vxor.u32 %v5444, 2147483648
    %v5446 = vmul.f32 %v5445, 1.442695
    %v5447 = vpow.pop %v5446
    %v5448 = vadd.f32 %v5447, 1.0
    %v5449 = vrcp.pop %v5448
    %v5450 = vmul.f32 1.0, %v5449
    %5452 = vrot.lane.b32.xlu0 %v5441, 64
    %v5453 = vpop.permute.xlu0 %5452
    %v5455 = vmul.f32 %v5450, %v5453
    %5457 = vrot.lane.b32.xlu0 %v5455, 64
    %v5458 = vpop.permute.xlu0 %5457
    %v5460 = vadd.f32 %v5371, %v5458
    %v5461 = vtanh.pop %v5460
    %v5462 = vsub.f32 1.0, %v5450
    %5464 = vrot.lane.b32.xlu0 %v5461, 96
    %v5465 = vpop.permute.xlu0 %5464
    %v5467 = vmul.f32 %v5462, %v5465
    %v5468 = vmul.f32 %v5450, %v3741
    %v5469 = vadd.f32 %v5467, %v5468
    %5471 = vrot.lane.b32.xlu0 %v5469, 96
    %v5472 = vpop.permute.xlu0 %5471
    %v5473 = vsel %vm1032, %v5472, 0
    %5475 = vmatprep.subr.mxu0 0.0
    %5476 = vmatpush1.msra.mxu0 %v93
    %5477 = vmatprep.subr.mxu0 0.0
    %5478 = vmatpush1.msra.mxu0 %v94
    %5479 = vmatprep.subr.mxu0 0.0
    %5480 = vmatpush1.msra.mxu0 %v95
    %5481 = vmatprep.subr.mxu0 0.0
    %5482 = vmatpush1.msra.mxu0 %v96
    %5483 = vmatprep.subr.mxu0 0.0
    %5484 = vmatpush1.msra.mxu0 0.0
    %5485 = vmatprep.subr.mxu0 0.0
    %5486 = vmatpush1.msra.mxu0 0.0
    %5487 = vmatprep.subr.mxu0 0.0
    %5488 = vmatpush1.msra.mxu0 0.0
    %5489 = vmatprep.subr.mxu0 0.0
    %5490 = vmatpush1.msra.mxu0 0.0
    %5491 = vmatprep.subr.mxu0 0.0
    %5492 = vmatpush1.msra.mxu0 0.0
    %5493 = vmatprep.subr.mxu0 0.0
    %5494 = vmatpush1.msra.mxu0 0.0
    %5495 = vmatprep.subr.mxu0 0.0
    %5496 = vmatpush1.msra.mxu0 0.0
    %5497 = vmatprep.subr.mxu0 0.0
    %5498 = vmatpush1.msra.mxu0 0.0
    %5499 = vmatprep.subr.mxu0 0.0
    %5500 = vmatpush1.msra.mxu0 0.0
    %5501 = vmatprep.subr.mxu0 0.0
    %5502 = vmatpush1.msra.mxu0 0.0
    %5503 = vmatprep.subr.mxu0 0.0
    %5504 = vmatpush1.msra.mxu0 0.0
    %5505 = vmatprep.subr.mxu0 0.0
    %5506 = vmatpush1.msra.mxu0 0.0
    %5507 = vmatprep.subr.mxu0 0.0
    %5508 = vmatpush1.msra.mxu0 0.0
    %5509 = vmatprep.subr.mxu0 0.0
    %5510 = vmatpush1.msra.mxu0 0.0
    %5511 = vmatprep.subr.mxu0 0.0
    %5512 = vmatpush1.msra.mxu0 0.0
    %5513 = vmatprep.subr.mxu0 0.0
    %5514 = vmatpush1.msra.mxu0 0.0
    %5515 = vmatprep.subr.mxu0 0.0
    %5516 = vmatpush1.msra.mxu0 0.0
    %5517 = vmatprep.subr.mxu0 0.0
    %5518 = vmatpush1.msra.mxu0 0.0
    %5519 = vmatprep.subr.mxu0 0.0
    %5520 = vmatpush1.msra.mxu0 0.0
    %5521 = vmatprep.subr.mxu0 0.0
    %5522 = vmatpush1.msra.mxu0 0.0
    %5523 = vmatprep.subr.mxu0 0.0
    %5524 = vmatpush1.msra.mxu0 0.0
    %5525 = vmatprep.subr.mxu0 0.0
    %5526 = vmatpush1.msra.mxu0 0.0
    %5527 = vmatprep.subr.mxu0 0.0
    %5528 = vmatpush1.msra.mxu0 0.0
    %5529 = vmatprep.subr.mxu0 0.0
    %5530 = vmatpush1.msra.mxu0 0.0
    %5531 = vmatprep.subr.mxu0 0.0
    %5532 = vmatpush1.msra.mxu0 0.0
    %5533 = vmatprep.subr.mxu0 0.0
    %5534 = vmatpush1.msra.mxu0 0.0
    %5535 = vmatprep.subr.mxu0 0.0
    %5536 = vmatpush1.msra.mxu0 0.0
    %5537 = vmatprep.subr.mxu0 0.0
    %5538 = vmatpush1.msra.mxu0 0.0
    %5539 = vmatprep.mubr.f32.mxu0 0.0
    %5540 = vmatmul.mubr.f32.gmra.mrb[0].mxu0 %v5473
    %v5541 = vpop.f32.mrb[0].mxu0
    %v5542 = vadd.f32 %v97, %v5541
    %v5543 = vpop.f32.mrb[0].mxu0
    %5544 = vdwg.mxu0
    %v5545 = vmax.f32 %v5542, 0.0
    %v5547 = vsel %vm1032, %v5545, 0
    %5549 = vmatprep.subr.mxu0 0.0
    %5550 = vmatpush1.msra.mxu0 %v110
    %5551 = vmatprep.subr.mxu0 0.0
    %5552 = vmatpush1.msra.mxu0 %v111
    %5553 = vmatprep.subr.mxu0 0.0
    %5554 = vmatpush1.msra.mxu0 %v112
    %5555 = vmatprep.subr.mxu0 0.0
    %5556 = vmatpush1.msra.mxu0 %v113
    %5557 = vmatprep.subr.mxu0 0.0
    %5558 = vmatpush1.msra.mxu0 0.0
    %5559 = vmatprep.subr.mxu0 0.0
    %5560 = vmatpush1.msra.mxu0 0.0
    %5561 = vmatprep.subr.mxu0 0.0
    %5562 = vmatpush1.msra.mxu0 0.0
    %5563 = vmatprep.subr.mxu0 0.0
    %5564 = vmatpush1.msra.mxu0 0.0
    %5565 = vmatprep.subr.mxu0 0.0
    %5566 = vmatpush1.msra.mxu0 0.0
    %5567 = vmatprep.subr.mxu0 0.0
    %5568 = vmatpush1.msra.mxu0 0.0
    %5569 = vmatprep.subr.mxu0 0.0
    %5570 = vmatpush1.msra.mxu0 0.0
    %5571 = vmatprep.subr.mxu0 0.0
    %5572 = vmatpush1.msra.mxu0 0.0
    %5573 = vmatprep.subr.mxu0 0.0
    %5574 = vmatpush1.msra.mxu0 0.0
    %5575 = vmatprep.subr.mxu0 0.0
    %5576 = vmatpush1.msra.mxu0 0.0
    %5577 = vmatprep.subr.mxu0 0.0
    %5578 = vmatpush1.msra.mxu0 0.0
    %5579 = vmatprep.subr.mxu0 0.0
    %5580 = vmatpush1.msra.mxu0 0.0
    %5581 = vmatprep.subr.mxu0 0.0
    %5582 = vmatpush1.msra.mxu0 0.0
    %5583 = vmatprep.subr.mxu0 0.0
    %5584 = vmatpush1.msra.mxu0 0.0
    %5585 = vmatprep.subr.mxu0 0.0
    %5586 = vmatpush1.msra.mxu0 0.0
    %5587 = vmatprep.subr.mxu0 0.0
    %5588 = vmatpush1.msra.mxu0 0.0
    %5589 = vmatprep.subr.mxu0 0.0
    %5590 = vmatpush1.msra.mxu0 0.0
    %5591 = vmatprep.subr.mxu0 0.0
    %5592 = vmatpush1.msra.mxu0 0.0
    %5593 = vmatprep.subr.mxu0 0.0
    %5594 = vmatpush1.msra.mxu0 0.0
    %5595 = vmatprep.subr.mxu0 0.0
    %5596 = vmatpush1.msra.mxu0 0.0
    %5597 = vmatprep.subr.mxu0 0.0
    %5598 = vmatpush1.msra.mxu0 0.0
    %5599 = vmatprep.subr.mxu0 0.0
    %5600 = vmatpush1.msra.mxu0 0.0
    %5601 = vmatprep.subr.mxu0 0.0
    %5602 = vmatpush1.msra.mxu0 0.0
    %5603 = vmatprep.subr.mxu0 0.0
    %5604 = vmatpush1.msra.mxu0 0.0
    %5605 = vmatprep.subr.mxu0 0.0
    %5606 = vmatpush1.msra.mxu0 0.0
    %5607 = vmatprep.subr.mxu0 0.0
    %5608 = vmatpush1.msra.mxu0 0.0
    %5609 = vmatprep.subr.mxu0 0.0
    %5610 = vmatpush1.msra.mxu0 0.0
    %5611 = vmatprep.subr.mxu0 0.0
    %5612 = vmatpush1.msra.mxu0 0.0
    %5613 = vmatprep.mubr.f32.mxu0 0.0
    %5614 = vmatmul.mubr.f32.gmra.mrb[0].mxu0 %v5547
    %v5615 = vpop.f32.mrb[0].mxu0
    %v5616 = vadd.f32 %v114, %v5615
    %v5617 = vpop.f32.mrb[0].mxu0
    %5618 = vdwg.mxu0
    %v5619 = vmax.f32 %v5616, 0.0
    %v5621 = vsel %vm1833, %v5619, 0
    %5623 = vmatprep.subr.mxu0 0.0
    %5624 = vmatpush1.msra.mxu0 %v115
    %5625 = vmatprep.subr.mxu0 0.0
    %5626 = vmatpush1.msra.mxu0 %v116
    %5627 = vmatprep.subr.mxu0 0.0
    %5628 = vmatpush1.msra.mxu0 %v117
    %5629 = vmatprep.subr.mxu0 0.0
    %5630 = vmatpush1.msra.mxu0 %v118
    %5631 = vmatprep.subr.mxu0 0.0
    %5632 = vmatpush1.msra.mxu0 %v119
    %5633 = vmatprep.subr.mxu0 0.0
    %5634 = vmatpush1.msra.mxu0 %v120
    %5635 = vmatprep.subr.mxu0 0.0
    %5636 = vmatpush1.msra.mxu0 %v121
    %5637 = vmatprep.subr.mxu0 0.0
    %5638 = vmatpush1.msra.mxu0 %v122
    %5639 = vmatprep.subr.mxu0 0.0
    %5640 = vmatpush1.msra.mxu0 0.0
    %5641 = vmatprep.subr.mxu0 0.0
    %5642 = vmatpush1.msra.mxu0 0.0
    %5643 = vmatprep.subr.mxu0 0.0
    %5644 = vmatpush1.msra.mxu0 0.0
    %5645 = vmatprep.subr.mxu0 0.0
    %5646 = vmatpush1.msra.mxu0 0.0
    %5647 = vmatprep.subr.mxu0 0.0
    %5648 = vmatpush1.msra.mxu0 0.0
    %5649 = vmatprep.subr.mxu0 0.0
    %5650 = vmatpush1.msra.mxu0 0.0
    %5651 = vmatprep.subr.mxu0 0.0
    %5652 = vmatpush1.msra.mxu0 0.0
    %5653 = vmatprep.subr.mxu0 0.0
    %5654 = vmatpush1.msra.mxu0 0.0
    %5655 = vmatprep.subr.mxu0 0.0
    %5656 = vmatpush1.msra.mxu0 0.0
    %5657 = vmatprep.subr.mxu0 0.0
    %5658 = vmatpush1.msra.mxu0 0.0
    %5659 = vmatprep.subr.mxu0 0.0
    %5660 = vmatpush1.msra.mxu0 0.0
    %5661 = vmatprep.subr.mxu0 0.0
    %5662 = vmatpush1.msra.mxu0 0.0
    %5663 = vmatprep.subr.mxu0 0.0
    %5664 = vmatpush1.msra.mxu0 0.0
    %5665 = vmatprep.subr.mxu0 0.0
    %5666 = vmatpush1.msra.mxu0 0.0
    %5667 = vmatprep.subr.mxu0 0.0
    %5668 = vmatpush1.msra.mxu0 0.0
    %5669 = vmatprep.subr.mxu0 0.0
    %5670 = vmatpush1.msra.mxu0 0.0
    %5671 = vmatprep.subr.mxu0 0.0
    %5672 = vmatpush1.msra.mxu0 0.0
    %5673 = vmatprep.subr.mxu0 0.0
    %5674 = vmatpush1.msra.mxu0 0.0
    %5675 = vmatprep.subr.mxu0 0.0
    %5676 = vmatpush1.msra.mxu0 0.0
    %5677 = vmatprep.subr.mxu0 0.0
    %5678 = vmatpush1.msra.mxu0 0.0
    %5679 = vmatprep.subr.mxu0 0.0
    %5680 = vmatpush1.msra.mxu0 0.0
    %5681 = vmatprep.subr.mxu0 0.0
    %5682 = vmatpush1.msra.mxu0 0.0
    %5683 = vmatprep.subr.mxu0 0.0
    %5684 = vmatpush1.msra.mxu0 0.0
    %5685 = vmatprep.subr.mxu0 0.0
    %5686 = vmatpush1.msra.mxu0 0.0
    %5687 = vmatprep.mubr.f32.mxu0 0.0
    %5688 = vmatmul.mubr.f32.gmra.mrb[0].mxu0 %v5621
    %v5689 = vpop.f32.mrb[0].mxu0
    %v5690 = vadd.f32 %v123, %v5689
    %v5691 = vpop.f32.mrb[0].mxu0
    %5692 = vdwg.mxu0
    %v5693 = vtanh.pop %v5690
    %v5694 = vmul.f32 %v5693, 0.1
    %v5695 = vsel %vm338, %v4130, 0
    %5697 = vmatprep.subr.mxu0 0.0
    %5698 = vmatpush1.msra.mxu0 %v4129
    %5699 = vmatprep.subr.mxu0 0.0
    %5700 = vmatpush1.msra.mxu0 %v5695
    %5701 = vmatprep.subr.mxu0 0.0
    %5702 = vmatpush1.msra.mxu0 0.0
    %5703 = vmatprep.subr.mxu0 0.0
    %5704 = vmatpush1.msra.mxu0 0.0
    %5705 = vmatprep.subr.mxu0 0.0
    %5706 = vmatpush1.msra.mxu0 0.0
    %5707 = vmatprep.subr.mxu0 0.0
    %5708 = vmatpush1.msra.mxu0 0.0
    %5709 = vmatprep.subr.mxu0 0.0
    %5710 = vmatpush1.msra.mxu0 0.0
    %5711 = vmatprep.subr.mxu0 0.0
    %5712 = vmatpush1.msra.mxu0 0.0
    %5713 = vmatprep.subr.mxu0 0.0
    %5714 = vmatpush1.msra.mxu0 0.0
    %5715 = vmatprep.subr.mxu0 0.0
    %5716 = vmatpush1.msra.mxu0 0.0
    %5717 = vmatprep.subr.mxu0 0.0
    %5718 = vmatpush1.msra.mxu0 0.0
    %5719 = vmatprep.subr.mxu0 0.0
    %5720 = vmatpush1.msra.mxu0 0.0
    %5721 = vmatprep.subr.mxu0 0.0
    %5722 = vmatpush1.msra.mxu0 0.0
    %5723 = vmatprep.subr.mxu0 0.0
    %5724 = vmatpush1.msra.mxu0 0.0
    %5725 = vmatprep.subr.mxu0 0.0
    %5726 = vmatpush1.msra.mxu0 0.0
    %5727 = vmatprep.subr.mxu0 0.0
    %5728 = vmatpush1.msra.mxu0 0.0
    %5729 = vmatprep.subr.mxu0 0.0
    %5730 = vmatpush1.msra.mxu0 0.0
    %5731 = vmatprep.subr.mxu0 0.0
    %5732 = vmatpush1.msra.mxu0 0.0
    %5733 = vmatprep.subr.mxu0 0.0
    %5734 = vmatpush1.msra.mxu0 0.0
    %5735 = vmatprep.subr.mxu0 0.0
    %5736 = vmatpush1.msra.mxu0 0.0
    %5737 = vmatprep.subr.mxu0 0.0
    %5738 = vmatpush1.msra.mxu0 0.0
    %5739 = vmatprep.subr.mxu0 0.0
    %5740 = vmatpush1.msra.mxu0 0.0
    %5741 = vmatprep.subr.mxu0 0.0
    %5742 = vmatpush1.msra.mxu0 0.0
    %5743 = vmatprep.subr.mxu0 0.0
    %5744 = vmatpush1.msra.mxu0 0.0
    %5745 = vmatprep.subr.mxu0 0.0
    %5746 = vmatpush1.msra.mxu0 0.0
    %5747 = vmatprep.subr.mxu0 0.0
    %5748 = vmatpush1.msra.mxu0 0.0
    %5749 = vmatprep.subr.mxu0 0.0
    %5750 = vmatpush1.msra.mxu0 0.0
    %5751 = vmatprep.subr.mxu0 0.0
    %5752 = vmatpush1.msra.mxu0 0.0
    %5753 = vmatprep.subr.mxu0 0.0
    %5754 = vmatpush1.msra.mxu0 0.0
    %5755 = vmatprep.subr.mxu0 0.0
    %5756 = vmatpush1.msra.mxu0 0.0
    %5757 = vmatprep.subr.mxu0 0.0
    %5758 = vmatpush1.msra.mxu0 0.0
    %5759 = vmatprep.subr.mxu0 0.0
    %5760 = vmatpush1.msra.mxu0 0.0
    %5761 = vmatprep.mubr.f32.mxu0 0.0
    %5762 = vmatmul.mubr.f32.gmra.mrb[0].mxu0 %v2246
    %v5763 = vpop.f32.mrb[0].mxu0
    %v5764 = vadd.f32 %v5694, %v5763
    %v5765 = vpop.f32.mrb[0].mxu0
    %5766 = vdwg.mxu0
    %v5767 = vsub.f32 %v5764, %v18
    %v5768 = vmul.f32 %v5767, %v5767
    %v5769 = vadd.f32 %v4136, %v5768
    %v5770 = vmul.f32 %v5694, %v5694
    %v5771 = vmul.f32 %v5770, 0.1
    %v5772 = vadd.f32 %v5769, %v5771
    %v5773 = vsub.f32 %v5283, %v225
    %v5774 = vsub.f32 %v5288, %v230
    %v5775 = vmul.f32 %v5773, %v5773
    %v5776 = vmul.f32 %v5774, %v5774
    %v5777 = vadd.f32 %v4141, %v5775
    %v5778 = vadd.f32 %v4142, %v5776
    %v5779 = vsel %vm233, %v5772, 0.0
    %5780 = vadd.xlane.f32.xlu0 %v5779
    %v5781 = vpop.xlane.xlu0 %5780
    %v5782 = vrot.slane %v5781, 4
    %v5783 = vadd.f32 %v5781, %v5782
    %v5784 = vrot.slane %v5783, 2
    %v5785 = vadd.f32 %v5783, %v5784
    %v5786 = vrot.slane %v5785, 1
    %v5787 = vadd.f32 %v5785, %v5786
    %s5788 = vtos %v5787
    %v5789 = vsel %vm443, %v5777, 0.0
    %v5790 = vsel %vm443, %v5778, 0.0
    %v5791 = vadd.f32 %v5789, %v5790
    %5792 = vadd.xlane.f32.xlu0 %v5791
    %v5793 = vpop.xlane.xlu0 %5792
    %v5794 = vrot.slane %v5793, 4
    %v5795 = vadd.f32 %v5793, %v5794
    %v5796 = vrot.slane %v5795, 2
    %v5797 = vadd.f32 %v5795, %v5796
    %v5798 = vrot.slane %v5797, 1
    %v5799 = vadd.f32 %v5797, %v5798
    %s5800 = vtos %v5799
    %s5801 = smul.f32 %s5800, 0.01
    %s5802 = sadd.f32 %s5788, %s5801
    %v5803 = vstv %s5802
    %vm5804 = vcmask 0
    %5805 = vst.msk [vmem:[#allocation2] sm:$0x1] %vm5804, %v5803
    // Predicated region
    $region10: #{agent_module_forward.1} parent=1 // pred_check
      _
    $region11: #{agent_module_forward.1} parent=1 // pred_check_branch
      %5807 = sbr.rel (0) target = $region13
    $region12: #{agent_module_forward.1} parent=1 // pred_region
      %s5809 = ssub.s32 16, 16
      %5810 = vsyncadd [#allocation3], %s5809
      %s5812 = sshll.u32 [#allocation2], 4
      %s5813 = int_to_ptr.vmem [resolvable:$true] %s5812
      %5815 = dma.vmem_to_hbm [thread:$0]  %s5813, 16, %s2, [#allocation3]
    $region13: #{agent_module_forward.1} parent=1 // pred_fallthru
      _
    // Predicated region
    $region14: #{agent_module_forward.1} parent=1 // pred_check
      _
    $region15: #{agent_module_forward.1} parent=1 // pred_check_branch
      %5817 = sbr.rel (0) target = $region17
    $region16: #{agent_module_forward.1} parent=1 // pred_region
      %5818 = dma.done [#allocation3], 16
    $region17: #{agent_module_forward.1} parent=1 // pred_fallthru
      _
    %5819 = vsyncpa [#allocation3], 1

</llo_original>
